<compile_context>
chip_gen: v6e
topology: v6e:2x2x1
jax: 0.10.0
libtpu: 0.0.40
codegen_flags: <defaults>
</compile_context>

<pallas_src>
import functools

import numpy as np
import jax
import jax.numpy as jnp
from jax.experimental import pallas as pl
from jax.experimental.pallas import tpu as pltpu


def _round_up(n, m):
    return ((n + m - 1) // m) * m


def _compiler_params():
    # Explicit scoped-VMEM limit (review item): raises the v5e 16 MiB default
    # so bigger batch blocks pipeline cleanly; capped at 3/4 physical so it is
    # always valid (v7x has 64 MiB/TC).  Falls back to the compiler default if
    # the hardware query is unavailable.
    try:
        cap = pltpu.get_tpu_info().vmem_capacity_bytes
        limit = int(min(cap * 3 // 4, 64 * 1024 * 1024))
    except Exception:
        limit = None
    return pltpu.CompilerParams(dimension_semantics=("parallel",),
                                vmem_limit_bytes=limit)


# ----------------------------------------------------------------------------
# Kernel 1: fused conv2d(3x3, stride 1, VALID) + bias + ReLU + maxpool(2, 2).
# One grid step = one block of `block_b` images; a single MXU matmul per step
# against a block-diagonal weight (one kkc x Cout block per pool offset), then
# a max over the four Cout-wide lane groups, bias + ReLU, bf16 store.
# ----------------------------------------------------------------------------
def _conv_pool_kernel(p_ref, w_ref, b_ref, o_ref, *, cout):
    # p_ref: (bm, 4*kkc) bf16 im2col patches, pool offsets folded along lanes
    # w_ref: (4*kkc, 4*cout) bf16 block-diagonal weight
    # b_ref: (1, cout) f32;  o_ref: (bm, cout) bf16
    z = jnp.dot(p_ref[...], w_ref[...], preferred_element_type=jnp.float32)
    m = jnp.maximum(jnp.maximum(z[:, 0 * cout:1 * cout], z[:, 1 * cout:2 * cout]),
                    jnp.maximum(z[:, 2 * cout:3 * cout], z[:, 3 * cout:4 * cout]))
    # max(conv_o) + b then relu == max(relu(conv_o + b)) since b is offset-invariant.
    o_ref[...] = jnp.maximum(m + b_ref[...], 0.0).astype(o_ref.dtype)


def conv_relu_pool(x_nhwc, w_hwio, bias, *, block_b):
    """Fused 3x3 VALID conv + bias + ReLU + 2x2/2 max-pool.  x: (B, H, W, Cin) bf16."""
    B, H, W, Cin = x_nhwc.shape
    K, _, _, Cout = w_hwio.shape
    Ho, Wo = H - K + 1, W - K + 1
    Hp, Wp = Ho // 2, Wo // 2                 # floor, matches nn.MaxPool2d(2, 2)
    assert B % block_b == 0, "batch must be padded to a multiple of block_b"
    nb = B // block_b
    bm = block_b * Hp * Wp                    # matmul rows per grid step
    kkc = K * K * Cin

    # im2col with the four pool offsets folded into the lane dim (offset-major,
    # then (ky, kx, cin)).  Single pass, no stack/transpose of the big tensor.
    # Layout plumbing only; all FLOPs run inside the kernel.
    offs = []
    for dy in range(2):
        for dx in range(2):
            taps = [x_nhwc[:, dy + ky: dy + ky + 2 * Hp: 2,
                              dx + kx: dx + kx + 2 * Wp: 2, :]
                    for ky in range(K) for kx in range(K)]
            offs.append(jnp.concatenate(taps, axis=-1))              # (B,Hp,Wp,kkc)
    patches = (jnp.concatenate(offs, axis=-1)                        # (B,Hp,Wp,4*kkc)
               .reshape(B * Hp * Wp, 4 * kkc)
               .astype(jnp.bfloat16))

    # Block-diagonal weight: offset o's patch columns [o*kkc,(o+1)*kkc) map to
    # output lanes [o*Cout,(o+1)*Cout); off-diagonal zeros contribute exact 0s.
    w2d = w_hwio.reshape(kkc, Cout).astype(jnp.float32)
    wbd = jnp.kron(jnp.eye(4, dtype=jnp.float32), w2d).astype(jnp.bfloat16)
    b2d = bias.reshape(1, Cout).astype(jnp.float32)

    out = pl.pallas_call(
        functools.partial(_conv_pool_kernel, cout=Cout),
        out_shape=jax.ShapeDtypeStruct((B * Hp * Wp, Cout), jnp.bfloat16),
        grid=(nb,),
        in_specs=[
            pl.BlockSpec((bm, 4 * kkc), lambda i: (i, 0)),
            pl.BlockSpec((4 * kkc, 4 * Cout), lambda i: (0, 0)),
            pl.BlockSpec((1, Cout), lambda i: (0, 0)),
        ],
        out_specs=pl.BlockSpec((bm, Cout), lambda i: (i, 0)),
        compiler_params=_compiler_params(),
    )(patches, wbd, b2d)
    return out.reshape(B, Hp, Wp, Cout)


# ----------------------------------------------------------------------------
# Kernel 2: fused fc1 + ReLU + fc2 + softmax(dim=1), tiled over the batch.
# Output is a lane-dense 128-wide block (10 real logits + masked padding).
# ----------------------------------------------------------------------------
def _mlp_softmax_kernel(x_ref, w1_ref, b1_ref, w2_ref, b2_ref, o_ref):
    h = jnp.dot(x_ref[...], w1_ref[...], preferred_element_type=jnp.float32)
    h = jnp.maximum(h + b1_ref[...], 0.0).astype(jnp.bfloat16)       # relu(fc1)
    z = jnp.dot(h, w2_ref[...], preferred_element_type=jnp.float32) + b2_ref[...]
    z = z - jnp.max(z, axis=1, keepdims=True)                        # stable softmax
    e = jnp.exp(z)                                                   # padded lanes -> 0
    o_ref[...] = (e / jnp.sum(e, axis=1, keepdims=True)).astype(o_ref.dtype)


def mlp_softmax(x, w1, b1, w2, b2, *, block_b):
    Bm, Din = x.shape
    Hd = w1.shape[1]
    Od = w2.shape[1]
    assert Bm % block_b == 0
    # Weight blocks use constant index maps and are <1.5 MiB each, so default
    # double-buffering is a negligible VMEM cost even on v7x (no need for
    # single-buffering via pipeline_mode at these sizes).
    return pl.pallas_call(
        _mlp_softmax_kernel,
        out_shape=jax.ShapeDtypeStruct((Bm, Od), jnp.float32),
        grid=(Bm // block_b,),
        in_specs=[
            pl.BlockSpec((block_b, Din), lambda i: (i, 0)),
            pl.BlockSpec((Din, Hd), lambda i: (0, 0)),
            pl.BlockSpec((1, Hd), lambda i: (0, 0)),
            pl.BlockSpec((Hd, Od), lambda i: (0, 0)),
            pl.BlockSpec((1, Od), lambda i: (0, 0)),
        ],
        out_specs=pl.BlockSpec((block_b, Od), lambda i: (i, 0)),
        compiler_params=_compiler_params(),
    )(x, w1, b1, w2, b2)


# ----------------------------------------------------------------------------
# Deterministic parameter init (PyTorch-style shapes, uniform(-1/sqrt(fan_in)))
# ----------------------------------------------------------------------------
def init_params(key):
    ks = jax.random.split(key, 8)

    def u(k, shape, fan_in):
        bound = 1.0 / np.sqrt(fan_in)
        return jax.random.uniform(k, shape, jnp.float32, -bound, bound)

    return {
        "conv1_w": u(ks[0], (32, 1, 3, 3), 1 * 9),      # OIHW
        "conv1_b": u(ks[1], (32,), 1 * 9),
        "conv2_w": u(ks[2], (48, 32, 3, 3), 32 * 9),    # OIHW
        "conv2_b": u(ks[3], (48,), 32 * 9),
        "fc1_w": u(ks[4], (500, 5 * 5 * 48), 5 * 5 * 48),   # (out, in)
        "fc1_b": u(ks[5], (500,), 5 * 5 * 48),
        "fc2_w": u(ks[6], (10, 500), 500),
        "fc2_b": u(ks[7], (10,), 500),
    }


def cnn_forward(x_nchw, p, *, conv_block_b=16, mlp_block_b=512):
    B0 = x_nchw.shape[0]
    # Conv batch blocking: 16 images/step keeps the per-step VMEM working set
    # well under every generation's default scoped VMEM; raise toward 32-64 for
    # huge batches (the vmem_limit_bytes in _compiler_params already allows it).
    # Keeping blocks modest also keeps the grid length >= 2 on v7x (2 TCs) for
    # realistic batches.
    cb = min(conv_block_b, _round_up(B0, 8))
    B = _round_up(B0, cb)

    x = jnp.transpose(x_nchw, (0, 2, 3, 1)).astype(jnp.bfloat16)     # NCHW->NHWC, bf16 once
    if B != B0:
        x = jnp.pad(x, ((0, B - B0), (0, 0), (0, 0), (0, 0)))

    w1 = jnp.transpose(p["conv1_w"], (2, 3, 1, 0))                   # OIHW -> HWIO
    w2 = jnp.transpose(p["conv2_w"], (2, 3, 1, 0))
    x = conv_relu_pool(x, w1, p["conv1_b"], block_b=cb)              # (B,13,13,32) bf16
    x = conv_relu_pool(x, w2, p["conv2_b"], block_b=cb)              # (B, 5, 5,48) bf16
    # TODO(synk): nn.Dropout(0.5) treated as identity (eval-mode forward);
    # training-mode RNG masking not implemented.

    Hp, Wp, C = x.shape[1], x.shape[2], x.shape[3]
    feats = x.reshape(B, Hp * Wp * C)        # contiguous HWC flatten (free), bf16

    # fc1: permute weight rows from torch's CHW flatten order to our HWC order
    # (host-side layout plumbing); zero-pad K 1200->1280 and width 500->512 so
    # every MXU K/N tile is full.
    chw_idx = np.transpose(
        np.arange(C * Hp * Wp).reshape(C, Hp, Wp), (1, 2, 0)).reshape(-1)
    Din = Hp * Wp * C
    Din_p = _round_up(Din, 128)                                      # 1200 -> 1280
    wf1 = jnp.transpose(p["fc1_w"])[chw_idx, :]                      # (1200, 500)
    Hd = wf1.shape[1]
    Hd_p = _round_up(Hd, 128)                                        # 500 -> 512
    wf1 = jnp.pad(wf1, ((0, Din_p - Din), (0, Hd_p - Hd))).astype(jnp.bfloat16)
    bf1 = jnp.pad(p["fc1_b"], (0, Hd_p - Hd)).reshape(1, -1).astype(jnp.float32)

    # fc2: zero-pad K 500->512; pad the 10 logits to 128 lanes so the output
    # store is lane-dense.  Padded logit columns get a -1e30 bias so they
    # vanish under softmax; they are sliced off below.
    Od = p["fc2_w"].shape[0]
    Od_p = _round_up(Od, 128)                                        # 10 -> 128
    wf2 = jnp.pad(jnp.transpose(p["fc2_w"]),
                  ((0, Hd_p - Hd), (0, Od_p - Od))).astype(jnp.bfloat16)
    bf2 = jnp.pad(p["fc2_b"], (0, Od_p - Od),
                  constant_values=-1e30).reshape(1, -1).astype(jnp.float32)

    feats = jnp.pad(feats, ((0, 0), (0, Din_p - Din)))               # (B, 1280) bf16

    TB = min(mlp_block_b, B)                                         # MLP batch tile
    Bm = _round_up(B, TB)
    if Bm != B:
        feats = jnp.pad(feats, ((0, Bm - B), (0, 0)))
    out = mlp_softmax(feats, wf1, bf1, wf2, bf2, block_b=TB)         # (Bm, 128) f32
    # NOTE: zero-padded batch rows produce meaningless (uniform-over-10)
    # softmax rows; they (and the padded logit lanes) are dropped here.
    return out[:B0, :Od]


# Pure-JAX f32 reference (NCHW, identical semantics) used as a correctness check.
def cnn_reference(x_nchw, p):
    dn1 = jax.lax.conv_dimension_numbers(x_nchw.shape, p["conv1_w"].shape, ("NCHW", "OIHW", "NCHW"))
    x = jax.lax.conv_general_dilated(x_nchw, p["conv1_w"], (1, 1), "VALID", dimension_numbers=dn1)
    x = jax.nn.relu(x + p["conv1_b"][None, :, None, None])
    x = jax.lax.reduce_window(x, -jnp.inf, jax.lax.max, (1, 1, 2, 2), (1, 1, 2, 2), "VALID")
    dn2 = jax.lax.conv_dimension_numbers(x.shape, p["conv2_w"].shape, ("NCHW", "OIHW", "NCHW"))
    x = jax.lax.conv_general_dilated(x, p["conv2_w"], (1, 1), "VALID", dimension_numbers=dn2)
    x = jax.nn.relu(x + p["conv2_b"][None, :, None, None])
    x = jax.lax.reduce_window(x, -jnp.inf, jax.lax.max, (1, 1, 2, 2), (1, 1, 2, 2), "VALID")
    x = x.reshape(x.shape[0], -1)
    x = jax.nn.relu(x @ p["fc1_w"].T + p["fc1_b"])
    return jax.nn.softmax(x @ p["fc2_w"].T + p["fc2_b"], axis=1)


if __name__ == "__main__":
    key = jax.random.PRNGKey(0)
    pkey, xkey = jax.random.split(key)
    params = init_params(pkey)
    # fc1 expects 5*5*48 features => 28x28 single-channel input (MNIST-sized).
    x = jax.random.normal(xkey, (2, 1, 28, 28), jnp.float32)

    fwd = jax.jit(cnn_forward)
    out = jax.block_until_ready(fwd(x, params))

    ref = cnn_reference(x, params)
    # bf16 matmul operands / bf16 stored activations (f32 accumulate) vs f32 ref.
    np.testing.assert_allclose(np.asarray(out), np.asarray(ref), rtol=5e-2, atol=5e-3)
    assert out.shape == (2, 10)
    print("KERNEL_OK")
</pallas_src>

<mosaic_0001>
module attributes {stable_mosaic.version = 11 : i64} {
  func.func @_conv_pool_kernel(%arg0: i32, %arg1: memref<1352x36xbf16, #tpu.memory_space<vmem>>, %arg2: memref<36x128xbf16, #tpu.memory_space<vmem>>, %arg3: memref<1x32xf32, #tpu.memory_space<vmem>>, %arg4: memref<1352x32xbf16, #tpu.memory_space<vmem>>) attributes {dimension_semantics = [#tpu.dimension_semantics<parallel>], iteration_bounds = array<i64: 1>, scalar_prefetch = 0 : i64, scratch_operands = 0 : i64, tpu.core_type = #tpu.core_type<tc>, window_params = [{transform_indices = @transform_0, window_bounds = array<i64: 1352, 36>}, {pipeline_mode = #tpu.pipeline_mode<synchronous>, transform_indices = @transform_1, window_bounds = array<i64: 36, 128>}, {pipeline_mode = #tpu.pipeline_mode<synchronous>, transform_indices = @transform_2, window_bounds = array<i64: 1, 32>}, {transform_indices = @transform_3, window_bounds = array<i64: 1352, 32>}]} {
    %c0 = arith.constant 0 : index
    %c0_0 = arith.constant 0 : index
    %0 = vector.load %arg1[%c0, %c0_0] : memref<1352x36xbf16, #tpu.memory_space<vmem>>, vector<1352x36xbf16>
    %c0_1 = arith.constant 0 : index
    %c0_2 = arith.constant 0 : index
    %1 = vector.load %arg2[%c0_1, %c0_2] : memref<36x128xbf16, #tpu.memory_space<vmem>>, vector<36x128xbf16>
    %cst = arith.constant dense<0.000000e+00> : vector<1352x128xf32>
    %2 = tpu.matmul %0, %1, %cst {dimension_numbers = #tpu.dot_dimension_numbers<[1], [0], [0], [1], [0, 0, 1, 1], [], []>} : vector<1352x36xbf16>, vector<36x128xbf16>, vector<1352x128xf32> -> vector<1352x128xf32>
    %3 = vector.extract_strided_slice %2 {offsets = [0, 0], sizes = [1352, 32], strides = [1, 1]} : vector<1352x128xf32> to vector<1352x32xf32>
    %4 = vector.extract_strided_slice %2 {offsets = [0, 32], sizes = [1352, 32], strides = [1, 1]} : vector<1352x128xf32> to vector<1352x32xf32>
    %5 = arith.maximumf %3, %4 : vector<1352x32xf32>
    %6 = vector.extract_strided_slice %2 {offsets = [0, 64], sizes = [1352, 32], strides = [1, 1]} : vector<1352x128xf32> to vector<1352x32xf32>
    %7 = vector.extract_strided_slice %2 {offsets = [0, 96], sizes = [1352, 32], strides = [1, 1]} : vector<1352x128xf32> to vector<1352x32xf32>
    %8 = arith.maximumf %6, %7 : vector<1352x32xf32>
    %9 = arith.maximumf %5, %8 : vector<1352x32xf32>
    %c0_3 = arith.constant 0 : index
    %c0_4 = arith.constant 0 : index
    %10 = vector.load %arg3[%c0_3, %c0_4] : memref<1x32xf32, #tpu.memory_space<vmem>>, vector<1x32xf32>
    %11 = vector.broadcast %10 : vector<1x32xf32> to vector<1352x32xf32>
    %12 = arith.addf %9, %11 : vector<1352x32xf32>
    %cst_5 = arith.constant 0.000000e+00 : f32
    %13 = vector.broadcast %cst_5 : f32 to vector<1352x32xf32>
    %14 = arith.maximumf %12, %13 : vector<1352x32xf32>
    %15 = arith.truncf %14 : vector<1352x32xf32> to vector<1352x32xbf16>
    %c0_6 = arith.constant 0 : index
    %c0_7 = arith.constant 0 : index
    %16 = vector.load %arg4[%c0_6, %c0_7] : memref<1352x32xbf16, #tpu.memory_space<vmem>>, vector<1352x32xbf16>
    tpu.vector_store %arg4[%c0_6, %c0_7], %15 {strides = array<i32>} : memref<1352x32xbf16, #tpu.memory_space<vmem>>, vector<1352x32xbf16>,
    return
  }
  func.func @transform_0(%arg0: i32) -> (i32, i32) {
    %c0_i32 = arith.constant 0 : i32
    %c0_i32_0 = arith.constant 0 : i32
    return %arg0, %c0_i32 : i32, i32
  }
  func.func @transform_1(%arg0: i32) -> (i32, i32) {
    %c0_i32 = arith.constant 0 : i32
    %c0_i32_0 = arith.constant 0 : i32
    %c0_i32_1 = arith.constant 0 : i32
    return %c0_i32, %c0_i32_0 : i32, i32
  }
  func.func @transform_2(%arg0: i32) -> (i32, i32) {
    %c0_i32 = arith.constant 0 : i32
    %c0_i32_0 = arith.constant 0 : i32
    %c0_i32_1 = arith.constant 0 : i32
    return %c0_i32, %c0_i32_0 : i32, i32
  }
  func.func @transform_3(%arg0: i32) -> (i32, i32) {
    %c0_i32 = arith.constant 0 : i32
    %c0_i32_0 = arith.constant 0 : i32
    return %arg0, %c0_i32 : i32, i32
  }
}

module attributes {stable_mosaic.version = 11 : i64} {
  func.func @_conv_pool_kernel(%arg0: i32, %arg1: memref<200x1152xbf16, #tpu.memory_space<vmem>>, %arg2: memref<1152x192xbf16, #tpu.memory_space<vmem>>, %arg3: memref<1x48xf32, #tpu.memory_space<vmem>>, %arg4: memref<200x48xbf16, #tpu.memory_space<vmem>>) attributes {dimension_semantics = [#tpu.dimension_semantics<parallel>], iteration_bounds = array<i64: 1>, scalar_prefetch = 0 : i64, scratch_operands = 0 : i64, tpu.core_type = #tpu.core_type<tc>, window_params = [{transform_indices = @transform_0, window_bounds = array<i64: 200, 1152>}, {pipeline_mode = #tpu.pipeline_mode<synchronous>, transform_indices = @transform_1, window_bounds = array<i64: 1152, 192>}, {pipeline_mode = #tpu.pipeline_mode<synchronous>, transform_indices = @transform_2, window_bounds = array<i64: 1, 48>}, {transform_indices = @transform_3, window_bounds = array<i64: 200, 48>}]} {
    %c0 = arith.constant 0 : index
    %c0_0 = arith.constant 0 : index
    %0 = vector.load %arg1[%c0, %c0_0] : memref<200x1152xbf16, #tpu.memory_space<vmem>>, vector<200x1152xbf16>
    %c0_1 = arith.constant 0 : index
    %c0_2 = arith.constant 0 : index
    %1 = vector.load %arg2[%c0_1, %c0_2] : memref<1152x192xbf16, #tpu.memory_space<vmem>>, vector<1152x192xbf16>
    %cst = arith.constant dense<0.000000e+00> : vector<200x192xf32>
    %2 = tpu.matmul %0, %1, %cst {dimension_numbers = #tpu.dot_dimension_numbers<[1], [0], [0], [1], [0, 0, 1, 1], [], []>} : vector<200x1152xbf16>, vector<1152x192xbf16>, vector<200x192xf32> -> vector<200x192xf32>
    %3 = vector.extract_strided_slice %2 {offsets = [0, 0], sizes = [200, 48], strides = [1, 1]} : vector<200x192xf32> to vector<200x48xf32>
    %4 = vector.extract_strided_slice %2 {offsets = [0, 48], sizes = [200, 48], strides = [1, 1]} : vector<200x192xf32> to vector<200x48xf32>
    %5 = arith.maximumf %3, %4 : vector<200x48xf32>
    %6 = vector.extract_strided_slice %2 {offsets = [0, 96], sizes = [200, 48], strides = [1, 1]} : vector<200x192xf32> to vector<200x48xf32>
    %7 = vector.extract_strided_slice %2 {offsets = [0, 144], sizes = [200, 48], strides = [1, 1]} : vector<200x192xf32> to vector<200x48xf32>
    %8 = arith.maximumf %6, %7 : vector<200x48xf32>
    %9 = arith.maximumf %5, %8 : vector<200x48xf32>
    %c0_3 = arith.constant 0 : index
    %c0_4 = arith.constant 0 : index
    %10 = vector.load %arg3[%c0_3, %c0_4] : memref<1x48xf32, #tpu.memory_space<vmem>>, vector<1x48xf32>
    %11 = vector.broadcast %10 : vector<1x48xf32> to vector<200x48xf32>
    %12 = arith.addf %9, %11 : vector<200x48xf32>
    %cst_5 = arith.constant 0.000000e+00 : f32
    %13 = vector.broadcast %cst_5 : f32 to vector<200x48xf32>
    %14 = arith.maximumf %12, %13 : vector<200x48xf32>
    %15 = arith.truncf %14 : vector<200x48xf32> to vector<200x48xbf16>
    %c0_6 = arith.constant 0 : index
    %c0_7 = arith.constant 0 : index
    %16 = vector.load %arg4[%c0_6, %c0_7] : memref<200x48xbf16, #tpu.memory_space<vmem>>, vector<200x48xbf16>
    tpu.vector_store %arg4[%c0_6, %c0_7], %15 {strides = array<i32>} : memref<200x48xbf16, #tpu.memory_space<vmem>>, vector<200x48xbf16>,
    return
  }
  func.func @transform_0(%arg0: i32) -> (i32, i32) {
    %c0_i32 = arith.constant 0 : i32
    %c0_i32_0 = arith.constant 0 : i32
    return %arg0, %c0_i32 : i32, i32
  }
  func.func @transform_1(%arg0: i32) -> (i32, i32) {
    %c0_i32 = arith.constant 0 : i32
    %c0_i32_0 = arith.constant 0 : i32
    %c0_i32_1 = arith.constant 0 : i32
    return %c0_i32, %c0_i32_0 : i32, i32
  }
  func.func @transform_2(%arg0: i32) -> (i32, i32) {
    %c0_i32 = arith.constant 0 : i32
    %c0_i32_0 = arith.constant 0 : i32
    %c0_i32_1 = arith.constant 0 : i32
    return %c0_i32, %c0_i32_0 : i32, i32
  }
  func.func @transform_3(%arg0: i32) -> (i32, i32) {
    %c0_i32 = arith.constant 0 : i32
    %c0_i32_0 = arith.constant 0 : i32
    return %arg0, %c0_i32 : i32, i32
  }
}

module attributes {stable_mosaic.version = 11 : i64} {
  func.func @_mlp_softmax_kernel(%arg0: i32, %arg1: memref<8x1280xbf16, #tpu.memory_space<vmem>>, %arg2: memref<1280x512xbf16, #tpu.memory_space<vmem>>, %arg3: memref<1x512xf32, #tpu.memory_space<vmem>>, %arg4: memref<512x128xbf16, #tpu.memory_space<vmem>>, %arg5: memref<1x128xf32, #tpu.memory_space<vmem>>, %arg6: memref<8x128xf32, #tpu.memory_space<vmem>>) attributes {dimension_semantics = [#tpu.dimension_semantics<parallel>], iteration_bounds = array<i64: 1>, scalar_prefetch = 0 : i64, scratch_operands = 0 : i64, tpu.core_type = #tpu.core_type<tc>, window_params = [{transform_indices = @transform_0, window_bounds = array<i64: 8, 1280>}, {pipeline_mode = #tpu.pipeline_mode<synchronous>, transform_indices = @transform_1, window_bounds = array<i64: 1280, 512>}, {pipeline_mode = #tpu.pipeline_mode<synchronous>, transform_indices = @transform_2, window_bounds = array<i64: 1, 512>}, {pipeline_mode = #tpu.pipeline_mode<synchronous>, transform_indices = @transform_3, window_bounds = array<i64: 512, 128>}, {pipeline_mode = #tpu.pipeline_mode<synchronous>, transform_indices = @transform_4, window_bounds = array<i64: 1, 128>}, {transform_indices = @transform_5, window_bounds = array<i64: 8, 128>}]} {
    %c0 = arith.constant 0 : index
    %c0_0 = arith.constant 0 : index
    %0 = vector.load %arg1[%c0, %c0_0] : memref<8x1280xbf16, #tpu.memory_space<vmem>>, vector<8x1280xbf16>
    %c0_1 = arith.constant 0 : index
    %c0_2 = arith.constant 0 : index
    %1 = vector.load %arg2[%c0_1, %c0_2] : memref<1280x512xbf16, #tpu.memory_space<vmem>>, vector<1280x512xbf16>
    %cst = arith.constant dense<0.000000e+00> : vector<8x512xf32>
    %2 = tpu.matmul %0, %1, %cst {dimension_numbers = #tpu.dot_dimension_numbers<[1], [0], [0], [1], [0, 0, 1, 1], [], []>} : vector<8x1280xbf16>, vector<1280x512xbf16>, vector<8x512xf32> -> vector<8x512xf32>
    %c0_3 = arith.constant 0 : index
    %c0_4 = arith.constant 0 : index
    %3 = vector.load %arg3[%c0_3, %c0_4] : memref<1x512xf32, #tpu.memory_space<vmem>>, vector<1x512xf32>
    %4 = vector.broadcast %3 : vector<1x512xf32> to vector<8x512xf32>
    %5 = arith.addf %2, %4 : vector<8x512xf32>
    %cst_5 = arith.constant 0.000000e+00 : f32
    %6 = vector.broadcast %cst_5 : f32 to vector<8x512xf32>
    %7 = arith.maximumf %5, %6 : vector<8x512xf32>
    %8 = arith.truncf %7 : vector<8x512xf32> to vector<8x512xbf16>
    %c0_6 = arith.constant 0 : index
    %c0_7 = arith.constant 0 : index
    %9 = vector.load %arg4[%c0_6, %c0_7] : memref<512x128xbf16, #tpu.memory_space<vmem>>, vector<512x128xbf16>
    %cst_8 = arith.constant dense<0.000000e+00> : vector<8x128xf32>
    %10 = tpu.matmul %8, %9, %cst_8 {dimension_numbers = #tpu.dot_dimension_numbers<[1], [0], [0], [1], [0, 0, 1, 1], [], []>} : vector<8x512xbf16>, vector<512x128xbf16>, vector<8x128xf32> -> vector<8x128xf32>
    %c0_9 = arith.constant 0 : index
    %c0_10 = arith.constant 0 : index
    %11 = vector.load %arg5[%c0_9, %c0_10] : memref<1x128xf32, #tpu.memory_space<vmem>>, vector<1x128xf32>
    %12 = vector.broadcast %11 : vector<1x128xf32> to vector<8x128xf32>
    %13 = arith.addf %10, %12 : vector<8x128xf32>
    %cst_11 = arith.constant dense<0xFF800000> : vector<8xf32>
    %14 = vector.multi_reduction <maximumf>, %13, %cst_11 [1] : vector<8x128xf32> to vector<8xf32>
    %15 = vector.shape_cast %14 : vector<8xf32> to vector<8x1xf32>
    %16 = vector.broadcast %15 : vector<8x1xf32> to vector<8x128xf32>
    %17 = arith.subf %13, %16 : vector<8x128xf32>
    %18 = math.exp %17 : vector<8x128xf32>
    %cst_12 = arith.constant dense<0.000000e+00> : vector<8xf32>
    %19 = vector.multi_reduction <add>, %18, %cst_12 [1] : vector<8x128xf32> to vector<8xf32>
    %20 = vector.shape_cast %19 : vector<8xf32> to vector<8x1xf32>
    %21 = vector.broadcast %20 : vector<8x1xf32> to vector<8x128xf32>
    %22 = arith.divf %18, %21 : vector<8x128xf32>
    %c0_13 = arith.constant 0 : index
    %c0_14 = arith.constant 0 : index
    %23 = vector.load %arg6[%c0_13, %c0_14] : memref<8x128xf32, #tpu.memory_space<vmem>>, vector<8x128xf32>
    tpu.vector_store %arg6[%c0_13, %c0_14], %22 {strides = array<i32>} : memref<8x128xf32, #tpu.memory_space<vmem>>, vector<8x128xf32>,
    return
  }
  func.func @transform_0(%arg0: i32) -> (i32, i32) {
    %c0_i32 = arith.constant 0 : i32
    %c0_i32_0 = arith.constant 0 : i32
    return %arg0, %c0_i32 : i32, i32
  }
  func.func @transform_1(%arg0: i32) -> (i32, i32) {
    %c0_i32 = arith.constant 0 : i32
    %c0_i32_0 = arith.constant 0 : i32
    %c0_i32_1 = arith.constant 0 : i32
    return %c0_i32, %c0_i32_0 : i32, i32
  }
  func.func @transform_2(%arg0: i32) -> (i32, i32) {
    %c0_i32 = arith.constant 0 : i32
    %c0_i32_0 = arith.constant 0 : i32
    %c0_i32_1 = arith.constant 0 : i32
    return %c0_i32, %c0_i32_0 : i32, i32
  }
  func.func @transform_3(%arg0: i32) -> (i32, i32) {
    %c0_i32 = arith.constant 0 : i32
    %c0_i32_0 = arith.constant 0 : i32
    %c0_i32_1 = arith.constant 0 : i32
    return %c0_i32, %c0_i32_0 : i32, i32
  }
  func.func @transform_4(%arg0: i32) -> (i32, i32) {
    %c0_i32 = arith.constant 0 : i32
    %c0_i32_0 = arith.constant 0 : i32
    %c0_i32_1 = arith.constant 0 : i32
    return %c0_i32, %c0_i32_0 : i32, i32
  }
  func.func @transform_5(%arg0: i32) -> (i32, i32) {
    %c0_i32 = arith.constant 0 : i32
    %c0_i32_0 = arith.constant 0 : i32
    return %arg0, %c0_i32 : i32, i32
  }
}

</mosaic_0001>

<llo_original>
// kernel: mul.4
$region0: #{mul.4}
  %s0 = inlined_call_operand.vmem [shape: f32[3,3,32], index: 0, kind: input, shape index: {}]
  %s1 = inlined_call_operand.vmem [shape: f32[9,32], index: 1, kind: output, shape index: {}]
  $region1: #{mul.4} parent=0
    #allocation0 [shape = 'u8[12288]{0}', space=vmem, size = 0x3000, scoped, tag = 'scoped mem for input reshape']
    %s3 = sshll.u32 1, 4
    %s4 = ssub.s32 %s3, 1
    %s5 = smul.addr 4, 2
    %s6 = scalar_lea.vmem %s0, %s5
    %v7 = vld [vmem:[%s6] sm:%s4]
    %s8 = scalar_lea.vmem [#allocation0], 16
    %9 = vst [vmem:[%s8] sm:%s4] %v7
    %s10 = scalar_lea.vmem %s0, 4
    %v11 = vld [vmem:[%s10] sm:%s4]
    %s12 = scalar_lea.vmem [#allocation0], 8
    %13 = vst [vmem:[%s12] sm:%s4] %v11
    %v14 = vld [vmem:[%s0] sm:%s4]
    %15 = vst [vmem:[#allocation0] sm:%s4] %v14
    %v16 = vld [vmem:[#allocation0] sm:$0x7]
    %vm17 = vcmask 261120
    %18 = vst.msk [vmem:[%s1] sm:$0x7] %vm17, %v16
    %s19 = scalar_lea.vmem [#allocation0], 8
    %v20 = vld [vmem:[%s19] sm:$0x7]
    %vm21 = vcmask 261120
    %s22 = scalar_lea.vmem %s1, 3
    %23 = vst.msk [vmem:[%s22] sm:$0x7] %vm21, %v20
    %s24 = scalar_lea.vmem [#allocation0], 16
    %v25 = vld [vmem:[%s24] sm:$0x7]
    %vm26 = vcmask 261120
    %s27 = scalar_lea.vmem %s1, 6
    %28 = vst.msk [vmem:[%s27] sm:$0x7] %vm26, %v25

// kernel: cnn_forward.3
$region0: #{cnn_forward.3}
  #allocation0 [shape = 'u32[]', space=smem, size = 0x4, offset = 0x4, fixed_abs, tag = 'smem constant byte address 0x4 - core index']
  #allocation1 [shape = 'u32[144,128]{1,0:T(1,128)}', space=vmem, size = 0x12000, scoped, tag = 'internal scratch']
  %s0 = inlined_call_operand.vmem [shape: bf16[1352,36], index: 0, kind: input, shape index: {}]
  %s1 = inlined_call_operand.vmem [shape: bf16[36,128], index: 1, kind: input, shape index: {}]
  %s2 = inlined_call_operand.vmem [shape: f32[1,32], index: 2, kind: input, shape index: {}]
  %s3 = inlined_call_operand.vmem [shape: bf16[1352,32], index: 3, kind: output, shape index: {}]
  %s4 = sld [smem:[#allocation0]]
  $region22: #{cnn_forward.3} parent=0
    _
  %s6 = ssub.s32 1, %s4
  %s7 = scalar_select 0, %s6, %s4
  // Predicated region
  $region2: #{cnn_forward.3} parent=0 // pred_check
    _
  $region3: #{cnn_forward.3} parent=0 // pred_check_branch
    %9 = sbr.rel (0) target = $region5
  $region4: #{cnn_forward.3} parent=0 // pred_region
    _
  $region5: #{cnn_forward.3} parent=0 // pred_fallthru
    _
  // Predicated region
  $region6: #{cnn_forward.3} parent=0 // pred_check
    _
  $region7: #{cnn_forward.3} parent=0 // pred_check_branch
    %11 = sbr.rel (0) target = $region9
  $region8: #{cnn_forward.3} parent=0 // pred_region
    _
  $region9: #{cnn_forward.3} parent=0 // pred_fallthru
    _
  // Predicated region
  $region10: #{cnn_forward.3} parent=0 // pred_check
    _
  $region11: #{cnn_forward.3} parent=0 // pred_check_branch
    %13 = sbr.rel (0) target = $region13
  $region12: #{cnn_forward.3} parent=0 // pred_region
    _
  $region13: #{cnn_forward.3} parent=0 // pred_fallthru
    _
  %v15 = vld [vmem:[%s0] sm:$0xf]
  %v16 = vld [vmem:[%s0 + $0x4] sm:$0xf]
  %v17 = vld [vmem:[%s0 + $0x8] sm:$0xf]
  %v18 = vld [vmem:[%s0 + $0xc] sm:$0xf]
  %v19 = vld [vmem:[%s0 + $0x10] sm:$0xf]
  %v20 = vld [vmem:[%s0 + $0x14] sm:$0xf]
  %v21 = vld [vmem:[%s0 + $0x18] sm:$0xf]
  %v22 = vld [vmem:[%s0 + $0x1c] sm:$0xf]
  %v23 = vld [vmem:[%s0 + $0x20] sm:$0xf]
  %v24 = vld [vmem:[%s0 + $0x24] sm:$0xf]
  %v25 = vld [vmem:[%s0 + $0x28] sm:$0xf]
  %v26 = vld [vmem:[%s0 + $0x2c] sm:$0xf]
  %v27 = vld [vmem:[%s0 + $0x30] sm:$0xf]
  %v28 = vld [vmem:[%s0 + $0x34] sm:$0xf]
  %v29 = vld [vmem:[%s0 + $0x38] sm:$0xf]
  %v30 = vld [vmem:[%s0 + $0x3c] sm:$0xf]
  %v31 = vld [vmem:[%s0 + $0x40] sm:$0xf]
  %v32 = vld [vmem:[%s0 + $0x44] sm:$0xf]
  %v33 = vld [vmem:[%s0 + $0x48] sm:$0xf]
  %v34 = vld [vmem:[%s0 + $0x4c] sm:$0xf]
  %v35 = vld [vmem:[%s0 + $0x50] sm:$0xf]
  %v36 = vld [vmem:[%s0 + $0x54] sm:$0xf]
  %v37 = vld [vmem:[%s0 + $0x58] sm:$0xf]
  %v38 = vld [vmem:[%s0 + $0x5c] sm:$0xf]
  %v39 = vld [vmem:[%s0 + $0x60] sm:$0xf]
  %v40 = vld [vmem:[%s0 + $0x64] sm:$0xf]
  %v41 = vld [vmem:[%s0 + $0x68] sm:$0xf]
  %v42 = vld [vmem:[%s0 + $0x6c] sm:$0xf]
  %v43 = vld [vmem:[%s0 + $0x70] sm:$0xf]
  %v44 = vld [vmem:[%s0 + $0x74] sm:$0xf]
  %v45 = vld [vmem:[%s0 + $0x78] sm:$0xf]
  %v46 = vld [vmem:[%s0 + $0x7c] sm:$0xf]
  %v47 = vld [vmem:[%s0 + $0x80] sm:$0xf]
  %v48 = vld [vmem:[%s0 + $0x84] sm:$0xf]
  %v49 = vld [vmem:[%s0 + $0x88] sm:$0xf]
  %v50 = vld [vmem:[%s0 + $0x8c] sm:$0xf]
  %v51 = vld [vmem:[%s0 + $0x90] sm:$0xf]
  %v52 = vld [vmem:[%s0 + $0x94] sm:$0xf]
  %v53 = vld [vmem:[%s0 + $0x98] sm:$0xf]
  %v54 = vld [vmem:[%s0 + $0x9c] sm:$0xf]
  %v55 = vld [vmem:[%s0 + $0xa0] sm:$0xf]
  %v56 = vld [vmem:[%s0 + $0xa4] sm:$0xf]
  %v57 = vld [vmem:[%s0 + $0xa8] sm:$0xf]
  %v58 = vld [vmem:[%s0 + $0xac] sm:$0xf]
  %v59 = vld [vmem:[%s0 + $0xb0] sm:$0xf]
  %v60 = vld [vmem:[%s0 + $0xb4] sm:$0xf]
  %v61 = vld [vmem:[%s0 + $0xb8] sm:$0xf]
  %v62 = vld [vmem:[%s0 + $0xbc] sm:$0xf]
  %v63 = vld [vmem:[%s0 + $0xc0] sm:$0xf]
  %v64 = vld [vmem:[%s0 + $0xc4] sm:$0xf]
  %v65 = vld [vmem:[%s0 + $0xc8] sm:$0xf]
  %v66 = vld [vmem:[%s0 + $0xcc] sm:$0xf]
  %v67 = vld [vmem:[%s0 + $0xd0] sm:$0xf]
  %v68 = vld [vmem:[%s0 + $0xd4] sm:$0xf]
  %v69 = vld [vmem:[%s0 + $0xd8] sm:$0xf]
  %v70 = vld [vmem:[%s0 + $0xdc] sm:$0xf]
  %v71 = vld [vmem:[%s0 + $0xe0] sm:$0xf]
  %v72 = vld [vmem:[%s0 + $0xe4] sm:$0xf]
  %v73 = vld [vmem:[%s0 + $0xe8] sm:$0xf]
  %v74 = vld [vmem:[%s0 + $0xec] sm:$0xf]
  %v75 = vld [vmem:[%s0 + $0xf0] sm:$0xf]
  %v76 = vld [vmem:[%s0 + $0xf4] sm:$0xf]
  %v77 = vld [vmem:[%s0 + $0xf8] sm:$0xf]
  %v78 = vld [vmem:[%s0 + $0xfc] sm:$0xf]
  %v79 = vld [vmem:[%s0 + $0x100] sm:$0xf]
  %v80 = vld [vmem:[%s0 + $0x104] sm:$0xf]
  %v81 = vld [vmem:[%s0 + $0x108] sm:$0xf]
  %v82 = vld [vmem:[%s0 + $0x10c] sm:$0xf]
  %v83 = vld [vmem:[%s0 + $0x110] sm:$0xf]
  %v84 = vld [vmem:[%s0 + $0x114] sm:$0xf]
  %v85 = vld [vmem:[%s0 + $0x118] sm:$0xf]
  %v86 = vld [vmem:[%s0 + $0x11c] sm:$0xf]
  %v87 = vld [vmem:[%s0 + $0x120] sm:$0xf]
  %v88 = vld [vmem:[%s0 + $0x124] sm:$0xf]
  %v89 = vld [vmem:[%s0 + $0x128] sm:$0xf]
  %v90 = vld [vmem:[%s0 + $0x12c] sm:$0xf]
  %v91 = vld [vmem:[%s0 + $0x130] sm:$0xf]
  %v92 = vld [vmem:[%s0 + $0x134] sm:$0xf]
  %v93 = vld [vmem:[%s0 + $0x138] sm:$0xf]
  %v94 = vld [vmem:[%s0 + $0x13c] sm:$0xf]
  %v95 = vld [vmem:[%s0 + $0x140] sm:$0xf]
  %v96 = vld [vmem:[%s0 + $0x144] sm:$0xf]
  %v97 = vld [vmem:[%s0 + $0x148] sm:$0xf]
  %v98 = vld [vmem:[%s0 + $0x14c] sm:$0xf]
  %v99 = vld [vmem:[%s0 + $0x150] sm:$0xf]
  %v100 = vld [vmem:[%s0 + $0x154] sm:$0xf]
  %v101 = vld [vmem:[%s0 + $0x158] sm:$0xf]
  %v102 = vld [vmem:[%s0 + $0x15c] sm:$0xf]
  %v103 = vld [vmem:[%s0 + $0x160] sm:$0xf]
  %v104 = vld [vmem:[%s0 + $0x164] sm:$0xf]
  %v105 = vld [vmem:[%s0 + $0x168] sm:$0xf]
  %v106 = vld [vmem:[%s0 + $0x16c] sm:$0xf]
  %v107 = vld [vmem:[%s0 + $0x170] sm:$0xf]
  %v108 = vld [vmem:[%s0 + $0x174] sm:$0xf]
  %v109 = vld [vmem:[%s0 + $0x178] sm:$0xf]
  %v110 = vld [vmem:[%s0 + $0x17c] sm:$0xf]
  %v111 = vld [vmem:[%s0 + $0x180] sm:$0xf]
  %v112 = vld [vmem:[%s0 + $0x184] sm:$0xf]
  %v113 = vld [vmem:[%s0 + $0x188] sm:$0xf]
  %v114 = vld [vmem:[%s0 + $0x18c] sm:$0xf]
  %v115 = vld [vmem:[%s0 + $0x190] sm:$0xf]
  %v116 = vld [vmem:[%s0 + $0x194] sm:$0xf]
  %v117 = vld [vmem:[%s0 + $0x198] sm:$0xf]
  %v118 = vld [vmem:[%s0 + $0x19c] sm:$0xf]
  %v119 = vld [vmem:[%s0 + $0x1a0] sm:$0xf]
  %v120 = vld [vmem:[%s0 + $0x1a4] sm:$0xf]
  %v121 = vld [vmem:[%s0 + $0x1a8] sm:$0xf]
  %v122 = vld [vmem:[%s0 + $0x1ac] sm:$0xf]
  %v123 = vld [vmem:[%s0 + $0x1b0] sm:$0xf]
  %v124 = vld [vmem:[%s0 + $0x1b4] sm:$0xf]
  %v125 = vld [vmem:[%s0 + $0x1b8] sm:$0xf]
  %v126 = vld [vmem:[%s0 + $0x1bc] sm:$0xf]
  %v127 = vld [vmem:[%s0 + $0x1c0] sm:$0xf]
  %v128 = vld [vmem:[%s0 + $0x1c4] sm:$0xf]
  %v129 = vld [vmem:[%s0 + $0x1c8] sm:$0xf]
  %v130 = vld [vmem:[%s0 + $0x1cc] sm:$0xf]
  %v131 = vld [vmem:[%s0 + $0x1d0] sm:$0xf]
  %v132 = vld [vmem:[%s0 + $0x1d4] sm:$0xf]
  %v133 = vld [vmem:[%s0 + $0x1d8] sm:$0xf]
  %v134 = vld [vmem:[%s0 + $0x1dc] sm:$0xf]
  %v135 = vld [vmem:[%s0 + $0x1e0] sm:$0xf]
  %v136 = vld [vmem:[%s0 + $0x1e4] sm:$0xf]
  %v137 = vld [vmem:[%s0 + $0x1e8] sm:$0xf]
  %v138 = vld [vmem:[%s0 + $0x1ec] sm:$0xf]
  %v139 = vld [vmem:[%s0 + $0x1f0] sm:$0xf]
  %v140 = vld [vmem:[%s0 + $0x1f4] sm:$0xf]
  %v141 = vld [vmem:[%s0 + $0x1f8] sm:$0xf]
  %v142 = vld [vmem:[%s0 + $0x1fc] sm:$0xf]
  %v143 = vld [vmem:[%s0 + $0x200] sm:$0xf]
  %v144 = vld [vmem:[%s0 + $0x204] sm:$0xf]
  %v145 = vld [vmem:[%s0 + $0x208] sm:$0xf]
  %v146 = vld [vmem:[%s0 + $0x20c] sm:$0xf]
  %v147 = vld [vmem:[%s0 + $0x210] sm:$0xf]
  %v148 = vld [vmem:[%s0 + $0x214] sm:$0xf]
  %v149 = vld [vmem:[%s0 + $0x218] sm:$0xf]
  %v150 = vld [vmem:[%s0 + $0x21c] sm:$0xf]
  %v151 = vld [vmem:[%s0 + $0x220] sm:$0xf]
  %v152 = vld [vmem:[%s0 + $0x224] sm:$0xf]
  %v153 = vld [vmem:[%s0 + $0x228] sm:$0xf]
  %v154 = vld [vmem:[%s0 + $0x22c] sm:$0xf]
  %v155 = vld [vmem:[%s0 + $0x230] sm:$0xf]
  %v156 = vld [vmem:[%s0 + $0x234] sm:$0xf]
  %v157 = vld [vmem:[%s0 + $0x238] sm:$0xf]
  %v158 = vld [vmem:[%s0 + $0x23c] sm:$0xf]
  %v159 = vld [vmem:[%s0 + $0x240] sm:$0xf]
  %v160 = vld [vmem:[%s0 + $0x244] sm:$0xf]
  %v161 = vld [vmem:[%s0 + $0x248] sm:$0xf]
  %v162 = vld [vmem:[%s0 + $0x24c] sm:$0xf]
  %v163 = vld [vmem:[%s0 + $0x250] sm:$0xf]
  %v164 = vld [vmem:[%s0 + $0x254] sm:$0xf]
  %v165 = vld [vmem:[%s0 + $0x258] sm:$0xf]
  %v166 = vld [vmem:[%s0 + $0x25c] sm:$0xf]
  %v167 = vld [vmem:[%s0 + $0x260] sm:$0xf]
  %v168 = vld [vmem:[%s0 + $0x264] sm:$0xf]
  %v169 = vld [vmem:[%s0 + $0x268] sm:$0xf]
  %v170 = vld [vmem:[%s0 + $0x26c] sm:$0xf]
  %v171 = vld [vmem:[%s0 + $0x270] sm:$0xf]
  %v172 = vld [vmem:[%s0 + $0x274] sm:$0xf]
  %v173 = vld [vmem:[%s0 + $0x278] sm:$0xf]
  %v174 = vld [vmem:[%s0 + $0x27c] sm:$0xf]
  %v175 = vld [vmem:[%s0 + $0x280] sm:$0xf]
  %v176 = vld [vmem:[%s0 + $0x284] sm:$0xf]
  %v177 = vld [vmem:[%s0 + $0x288] sm:$0xf]
  %v178 = vld [vmem:[%s0 + $0x28c] sm:$0xf]
  %v179 = vld [vmem:[%s0 + $0x290] sm:$0xf]
  %v180 = vld [vmem:[%s0 + $0x294] sm:$0xf]
  %v181 = vld [vmem:[%s0 + $0x298] sm:$0xf]
  %v182 = vld [vmem:[%s0 + $0x29c] sm:$0xf]
  %v183 = vld [vmem:[%s0 + $0x2a0] sm:$0xf]
  %v184 = vld [vmem:[%s1] sm:$0xf]
  %v185 = vld [vmem:[%s1 + $0x4] sm:$0xf]
  %v186 = vld [vmem:[%s1 + $0x8] sm:$0xf]
  %v187 = vld [vmem:[%s1 + $0xc] sm:$0xf]
  %v188 = vld [vmem:[%s1 + $0x10] sm:$0x3]
  %v358 = vunpack.c.l.b16 %v15
  %v359 = vunpack.c.l.b16 %v16
  %v360 = vunpack.c.l.b16 %v17
  %v361 = vunpack.c.l.b16 %v18
  %v362 = vunpack.c.l.b16 %v19
  %v363 = vunpack.c.l.b16 %v20
  %v364 = vunpack.c.l.b16 %v21
  %v365 = vunpack.c.l.b16 %v22
  %v366 = vunpack.c.l.b16 %v23
  %v367 = vunpack.c.l.b16 %v24
  %v368 = vunpack.c.l.b16 %v25
  %v369 = vunpack.c.l.b16 %v26
  %v370 = vunpack.c.l.b16 %v27
  %v371 = vunpack.c.l.b16 %v28
  %v372 = vunpack.c.l.b16 %v29
  %v373 = vunpack.c.l.b16 %v30
  %v374 = vunpack.c.l.b16 %v31
  %v375 = vunpack.c.l.b16 %v32
  %v376 = vunpack.c.l.b16 %v33
  %v377 = vunpack.c.l.b16 %v34
  %v378 = vunpack.c.l.b16 %v35
  %v379 = vunpack.c.l.b16 %v36
  %v380 = vunpack.c.l.b16 %v37
  %v381 = vunpack.c.l.b16 %v38
  %v382 = vunpack.c.l.b16 %v39
  %v383 = vunpack.c.l.b16 %v40
  %v384 = vunpack.c.l.b16 %v41
  %v385 = vunpack.c.l.b16 %v42
  %v386 = vunpack.c.l.b16 %v43
  %v387 = vunpack.c.l.b16 %v44
  %v388 = vunpack.c.l.b16 %v45
  %v389 = vunpack.c.l.b16 %v46
  %v390 = vunpack.c.l.b16 %v47
  %v391 = vunpack.c.l.b16 %v48
  %v392 = vunpack.c.l.b16 %v49
  %v393 = vunpack.c.l.b16 %v50
  %v394 = vunpack.c.l.b16 %v51
  %v395 = vunpack.c.l.b16 %v52
  %v396 = vunpack.c.l.b16 %v53
  %v397 = vunpack.c.l.b16 %v54
  %v398 = vunpack.c.l.b16 %v55
  %v399 = vunpack.c.l.b16 %v56
  %v400 = vunpack.c.l.b16 %v57
  %v401 = vunpack.c.l.b16 %v58
  %v402 = vunpack.c.l.b16 %v59
  %v403 = vunpack.c.l.b16 %v60
  %v404 = vunpack.c.l.b16 %v61
  %v405 = vunpack.c.l.b16 %v62
  %v406 = vunpack.c.l.b16 %v63
  %v407 = vunpack.c.l.b16 %v64
  %v408 = vunpack.c.l.b16 %v65
  %v409 = vunpack.c.l.b16 %v66
  %v410 = vunpack.c.l.b16 %v67
  %v411 = vunpack.c.l.b16 %v68
  %v412 = vunpack.c.l.b16 %v69
  %v413 = vunpack.c.l.b16 %v70
  %v414 = vunpack.c.l.b16 %v71
  %v415 = vunpack.c.l.b16 %v72
  %v416 = vunpack.c.l.b16 %v73
  %v417 = vunpack.c.l.b16 %v74
  %v418 = vunpack.c.l.b16 %v75
  %v419 = vunpack.c.l.b16 %v76
  %v420 = vunpack.c.l.b16 %v77
  %v421 = vunpack.c.l.b16 %v78
  %v422 = vunpack.c.l.b16 %v79
  %v423 = vunpack.c.l.b16 %v80
  %v424 = vunpack.c.l.b16 %v81
  %v425 = vunpack.c.l.b16 %v82
  %v426 = vunpack.c.l.b16 %v83
  %v427 = vunpack.c.l.b16 %v84
  %v428 = vunpack.c.l.b16 %v85
  %v429 = vunpack.c.l.b16 %v86
  %v430 = vunpack.c.l.b16 %v87
  %v431 = vunpack.c.l.b16 %v88
  %v432 = vunpack.c.l.b16 %v89
  %v433 = vunpack.c.l.b16 %v90
  %v434 = vunpack.c.l.b16 %v91
  %v435 = vunpack.c.l.b16 %v92
  %v436 = vunpack.c.l.b16 %v93
  %v437 = vunpack.c.l.b16 %v94
  %v438 = vunpack.c.l.b16 %v95
  %v439 = vunpack.c.l.b16 %v96
  %v440 = vunpack.c.l.b16 %v97
  %v441 = vunpack.c.l.b16 %v98
  %v442 = vunpack.c.l.b16 %v99
  %v443 = vunpack.c.l.b16 %v100
  %v444 = vunpack.c.l.b16 %v101
  %v445 = vunpack.c.l.b16 %v102
  %v446 = vunpack.c.l.b16 %v103
  %v447 = vunpack.c.l.b16 %v104
  %v448 = vunpack.c.l.b16 %v105
  %v449 = vunpack.c.l.b16 %v106
  %v450 = vunpack.c.l.b16 %v107
  %v451 = vunpack.c.l.b16 %v108
  %v452 = vunpack.c.l.b16 %v109
  %v453 = vunpack.c.l.b16 %v110
  %v454 = vunpack.c.l.b16 %v111
  %v455 = vunpack.c.l.b16 %v112
  %v456 = vunpack.c.l.b16 %v113
  %v457 = vunpack.c.l.b16 %v114
  %v458 = vunpack.c.l.b16 %v115
  %v459 = vunpack.c.l.b16 %v116
  %v460 = vunpack.c.l.b16 %v117
  %v461 = vunpack.c.l.b16 %v118
  %v462 = vunpack.c.l.b16 %v119
  %v463 = vunpack.c.l.b16 %v120
  %v464 = vunpack.c.l.b16 %v121
  %v465 = vunpack.c.l.b16 %v122
  %v466 = vunpack.c.l.b16 %v123
  %v467 = vunpack.c.l.b16 %v124
  %v468 = vunpack.c.l.b16 %v125
  %v469 = vunpack.c.l.b16 %v126
  %v470 = vunpack.c.l.b16 %v127
  %v471 = vunpack.c.l.b16 %v128
  %v472 = vunpack.c.l.b16 %v129
  %v473 = vunpack.c.l.b16 %v130
  %v474 = vunpack.c.l.b16 %v131
  %v475 = vunpack.c.l.b16 %v132
  %v476 = vunpack.c.l.b16 %v133
  %v477 = vunpack.c.l.b16 %v134
  %v478 = vunpack.c.l.b16 %v135
  %v479 = vunpack.c.l.b16 %v136
  %v480 = vunpack.c.l.b16 %v137
  %v481 = vunpack.c.l.b16 %v138
  %v482 = vunpack.c.l.b16 %v139
  %v483 = vunpack.c.l.b16 %v140
  %v484 = vunpack.c.l.b16 %v141
  %v485 = vunpack.c.l.b16 %v142
  %v486 = vunpack.c.l.b16 %v143
  %v487 = vunpack.c.l.b16 %v144
  %v488 = vunpack.c.l.b16 %v145
  %v489 = vunpack.c.l.b16 %v146
  %v490 = vunpack.c.l.b16 %v147
  %v491 = vunpack.c.l.b16 %v148
  %v492 = vunpack.c.l.b16 %v149
  %v493 = vunpack.c.l.b16 %v150
  %v494 = vunpack.c.l.b16 %v151
  %v495 = vunpack.c.l.b16 %v152
  %v496 = vunpack.c.l.b16 %v153
  %v497 = vunpack.c.l.b16 %v154
  %v498 = vunpack.c.l.b16 %v155
  %v499 = vunpack.c.l.b16 %v156
  %v500 = vunpack.c.l.b16 %v157
  %v501 = vunpack.c.l.b16 %v158
  %v502 = vunpack.c.l.b16 %v159
  %v503 = vunpack.c.l.b16 %v160
  %v504 = vunpack.c.l.b16 %v161
  %v505 = vunpack.c.l.b16 %v162
  %v506 = vunpack.c.l.b16 %v163
  %v507 = vunpack.c.l.b16 %v164
  %v508 = vunpack.c.l.b16 %v165
  %v509 = vunpack.c.l.b16 %v166
  %v510 = vunpack.c.l.b16 %v167
  %v511 = vunpack.c.l.b16 %v168
  %v512 = vunpack.c.l.b16 %v169
  %v513 = vunpack.c.l.b16 %v170
  %v514 = vunpack.c.l.b16 %v171
  %v515 = vunpack.c.l.b16 %v172
  %v516 = vunpack.c.l.b16 %v173
  %v517 = vunpack.c.l.b16 %v174
  %v518 = vunpack.c.l.b16 %v175
  %v519 = vunpack.c.l.b16 %v176
  %v520 = vunpack.c.l.b16 %v177
  %v521 = vunpack.c.l.b16 %v178
  %v522 = vunpack.c.l.b16 %v179
  %v523 = vunpack.c.l.b16 %v180
  %v524 = vunpack.c.l.b16 %v181
  %v525 = vunpack.c.l.b16 %v182
  %v526 = vunpack.c.l.b16 %v183
  %v527 = vpack.c.b16 %v359, %v358
  %v528 = vpack.c.b16 %v361, %v360
  %v529 = vpack.c.b16 %v363, %v362
  %v530 = vpack.c.b16 %v365, %v364
  %v531 = vpack.c.b16 %v367, %v366
  %v532 = vpack.c.b16 %v369, %v368
  %v533 = vpack.c.b16 %v371, %v370
  %v534 = vpack.c.b16 %v373, %v372
  %v535 = vpack.c.b16 %v375, %v374
  %v536 = vpack.c.b16 %v377, %v376
  %v537 = vpack.c.b16 %v379, %v378
  %v538 = vpack.c.b16 %v381, %v380
  %v539 = vpack.c.b16 %v383, %v382
  %v540 = vpack.c.b16 %v385, %v384
  %v541 = vpack.c.b16 %v387, %v386
  %v542 = vpack.c.b16 %v389, %v388
  %v543 = vpack.c.b16 %v391, %v390
  %v544 = vpack.c.b16 %v393, %v392
  %v545 = vpack.c.b16 %v395, %v394
  %v546 = vpack.c.b16 %v397, %v396
  %v547 = vpack.c.b16 %v399, %v398
  %v548 = vpack.c.b16 %v401, %v400
  %v549 = vpack.c.b16 %v403, %v402
  %v550 = vpack.c.b16 %v405, %v404
  %v551 = vpack.c.b16 %v407, %v406
  %v552 = vpack.c.b16 %v409, %v408
  %v553 = vpack.c.b16 %v411, %v410
  %v554 = vpack.c.b16 %v413, %v412
  %v555 = vpack.c.b16 %v415, %v414
  %v556 = vpack.c.b16 %v417, %v416
  %v557 = vpack.c.b16 %v419, %v418
  %v558 = vpack.c.b16 %v421, %v420
  %v559 = vpack.c.b16 %v423, %v422
  %v560 = vpack.c.b16 %v425, %v424
  %v561 = vpack.c.b16 %v427, %v426
  %v562 = vpack.c.b16 %v429, %v428
  %v563 = vpack.c.b16 %v431, %v430
  %v564 = vpack.c.b16 %v433, %v432
  %v565 = vpack.c.b16 %v435, %v434
  %v566 = vpack.c.b16 %v437, %v436
  %v567 = vpack.c.b16 %v439, %v438
  %v568 = vpack.c.b16 %v441, %v440
  %v569 = vpack.c.b16 %v443, %v442
  %v570 = vpack.c.b16 %v445, %v444
  %v571 = vpack.c.b16 %v447, %v446
  %v572 = vpack.c.b16 %v449, %v448
  %v573 = vpack.c.b16 %v451, %v450
  %v574 = vpack.c.b16 %v453, %v452
  %v575 = vpack.c.b16 %v455, %v454
  %v576 = vpack.c.b16 %v457, %v456
  %v577 = vpack.c.b16 %v459, %v458
  %v578 = vpack.c.b16 %v461, %v460
  %v579 = vpack.c.b16 %v463, %v462
  %v580 = vpack.c.b16 %v465, %v464
  %v581 = vpack.c.b16 %v467, %v466
  %v582 = vpack.c.b16 %v469, %v468
  %v583 = vpack.c.b16 %v471, %v470
  %v584 = vpack.c.b16 %v473, %v472
  %v585 = vpack.c.b16 %v475, %v474
  %v586 = vpack.c.b16 %v477, %v476
  %v587 = vpack.c.b16 %v479, %v478
  %v588 = vpack.c.b16 %v481, %v480
  %v589 = vpack.c.b16 %v483, %v482
  %v590 = vpack.c.b16 %v485, %v484
  %v591 = vpack.c.b16 %v487, %v486
  %v592 = vpack.c.b16 %v489, %v488
  %v593 = vpack.c.b16 %v491, %v490
  %v594 = vpack.c.b16 %v493, %v492
  %v595 = vpack.c.b16 %v495, %v494
  %v596 = vpack.c.b16 %v497, %v496
  %v597 = vpack.c.b16 %v499, %v498
  %v598 = vpack.c.b16 %v501, %v500
  %v599 = vpack.c.b16 %v503, %v502
  %v600 = vpack.c.b16 %v505, %v504
  %v601 = vpack.c.b16 %v507, %v506
  %v602 = vpack.c.b16 %v509, %v508
  %v603 = vpack.c.b16 %v511, %v510
  %v604 = vpack.c.b16 %v513, %v512
  %v605 = vpack.c.b16 %v515, %v514
  %v606 = vpack.c.b16 %v517, %v516
  %v607 = vpack.c.b16 %v519, %v518
  %v608 = vpack.c.b16 %v521, %v520
  %v609 = vpack.c.b16 %v523, %v522
  %v610 = vpack.c.b16 %v525, %v524
  %v611 = vpack.c.b16 %v526, %v526
  %v617 = vunpack.c.l.b16 %v184
  %v618 = vunpack.c.l.b16 %v185
  %v619 = vunpack.c.l.b16 %v186
  %v620 = vunpack.c.l.b16 %v187
  %v621 = vunpack.c.l.b16 %v188
  %v622 = vpack.c.b16 %v618, %v617
  %v623 = vpack.c.b16 %v620, %v619
  %v624 = vpack.c.b16 %v621, %v621
  %vm627 = vcmask 293888
  %v629 = vsel %vm627, %v527, 0
  %v632 = vsel %vm627, %v528, 0
  %v635 = vsel %vm627, %v529, 0
  %v638 = vsel %vm627, %v530, 0
  %v641 = vsel %vm627, %v531, 0
  %v644 = vsel %vm627, %v532, 0
  %v647 = vsel %vm627, %v533, 0
  %v650 = vsel %vm627, %v534, 0
  %v653 = vsel %vm627, %v535, 0
  %v656 = vsel %vm627, %v536, 0
  %v659 = vsel %vm627, %v537, 0
  %v662 = vsel %vm627, %v538, 0
  %v665 = vsel %vm627, %v539, 0
  %v668 = vsel %vm627, %v540, 0
  %v671 = vsel %vm627, %v541, 0
  %v674 = vsel %vm627, %v542, 0
  %v677 = vsel %vm627, %v543, 0
  %v680 = vsel %vm627, %v544, 0
  %v683 = vsel %vm627, %v545, 0
  %v686 = vsel %vm627, %v546, 0
  %v689 = vsel %vm627, %v547, 0
  %v692 = vsel %vm627, %v548, 0
  %v695 = vsel %vm627, %v549, 0
  %v698 = vsel %vm627, %v550, 0
  %v701 = vsel %vm627, %v551, 0
  %v704 = vsel %vm627, %v552, 0
  %v707 = vsel %vm627, %v553, 0
  %v710 = vsel %vm627, %v554, 0
  %v713 = vsel %vm627, %v555, 0
  %v716 = vsel %vm627, %v556, 0
  %v719 = vsel %vm627, %v557, 0
  %v722 = vsel %vm627, %v558, 0
  %v725 = vsel %vm627, %v559, 0
  %v728 = vsel %vm627, %v560, 0
  %v731 = vsel %vm627, %v561, 0
  %v734 = vsel %vm627, %v562, 0
  %v737 = vsel %vm627, %v563, 0
  %v740 = vsel %vm627, %v564, 0
  %v743 = vsel %vm627, %v565, 0
  %v746 = vsel %vm627, %v566, 0
  %v749 = vsel %vm627, %v567, 0
  %v752 = vsel %vm627, %v568, 0
  %v755 = vsel %vm627, %v569, 0
  %v758 = vsel %vm627, %v570, 0
  %v761 = vsel %vm627, %v571, 0
  %v764 = vsel %vm627, %v572, 0
  %v767 = vsel %vm627, %v573, 0
  %v770 = vsel %vm627, %v574, 0
  %v773 = vsel %vm627, %v575, 0
  %v776 = vsel %vm627, %v576, 0
  %v779 = vsel %vm627, %v577, 0
  %v782 = vsel %vm627, %v578, 0
  %v785 = vsel %vm627, %v579, 0
  %v788 = vsel %vm627, %v580, 0
  %v791 = vsel %vm627, %v581, 0
  %v794 = vsel %vm627, %v582, 0
  %v797 = vsel %vm627, %v583, 0
  %v800 = vsel %vm627, %v584, 0
  %v803 = vsel %vm627, %v585, 0
  %v806 = vsel %vm627, %v586, 0
  %v809 = vsel %vm627, %v587, 0
  %v812 = vsel %vm627, %v588, 0
  %v815 = vsel %vm627, %v589, 0
  %v818 = vsel %vm627, %v590, 0
  %v821 = vsel %vm627, %v591, 0
  %v824 = vsel %vm627, %v592, 0
  %v827 = vsel %vm627, %v593, 0
  %v830 = vsel %vm627, %v594, 0
  %v833 = vsel %vm627, %v595, 0
  %v836 = vsel %vm627, %v596, 0
  %v839 = vsel %vm627, %v597, 0
  %v842 = vsel %vm627, %v598, 0
  %v845 = vsel %vm627, %v599, 0
  %v848 = vsel %vm627, %v600, 0
  %v851 = vsel %vm627, %v601, 0
  %v854 = vsel %vm627, %v602, 0
  %v857 = vsel %vm627, %v603, 0
  %v860 = vsel %vm627, %v604, 0
  %v863 = vsel %vm627, %v605, 0
  %v866 = vsel %vm627, %v606, 0
  %v869 = vsel %vm627, %v607, 0
  %v872 = vsel %vm627, %v608, 0
  %v875 = vsel %vm627, %v609, 0
  %v878 = vsel %vm627, %v610, 0
  %v881 = vsel %vm627, %v611, 0
  %vm883 = vcmask 1041408
  %v885 = vsel %vm883, %v624, 0
  %887 = vmatprep.subr.bf16.mxu0 0
  %888 = vmatpush1.bf16.msra.mxu0 0
  %889 = vmatprep.subr.bf16.mxu0 0
  %890 = vmatpush1.bf16.msra.mxu0 0
  %891 = vmatprep.subr.bf16.mxu0 0
  %892 = vmatpush1.bf16.msra.mxu0 0
  %893 = vmatprep.subr.bf16.mxu0 0
  %894 = vmatpush1.bf16.msra.mxu0 0
  %895 = vmatprep.subr.bf16.mxu0 0
  %896 = vmatpush1.bf16.msra.mxu0 0
  %897 = vmatprep.subr.bf16.mxu0 0
  %898 = vmatpush1.bf16.msra.mxu0 %v885
  %899 = vmatprep.subr.bf16.mxu0 0
  %900 = vmatpush1.bf16.msra.mxu0 %v623
  %901 = vmatprep.subr.bf16.mxu0 0
  %902 = vmatpush1.bf16.msra.mxu0 %v622
  %903 = vmatprep.subr.bf16.mxu0 0
  %904 = vmatpush2.bf16.msra.mxu0 0
  %905 = vmatprep.subr.bf16.mxu0 0
  %906 = vmatpush2.bf16.msra.mxu0 0
  %907 = vmatprep.subr.bf16.mxu0 0
  %908 = vmatpush2.bf16.msra.mxu0 0
  %909 = vmatprep.subr.bf16.mxu0 0
  %910 = vmatpush2.bf16.msra.mxu0 0
  %911 = vmatprep.subr.bf16.mxu0 0
  %912 = vmatpush2.bf16.msra.mxu0 0
  %913 = vmatprep.subr.bf16.mxu0 0
  %914 = vmatpush2.bf16.msra.mxu0 0
  %915 = vmatprep.subr.bf16.mxu0 0
  %916 = vmatpush2.bf16.msra.mxu0 0
  %917 = vmatprep.subr.bf16.mxu0 0
  %918 = vmatpush2.bf16.msra.mxu0 0
  %919 = vmatprep.mubr.bf16.mxu0 0
  %920 = vmatmul.mubr.bf16.gmra.mxu0 %v629
  %v921 = vpop.f32.mrf.mxu0
  %v922 = vadd.f32 0.0, %v921
  %v923 = vpop.f32.mrf.mxu0
  %v924 = vpop.f32.mrf.mxu0
  %v925 = vadd.f32 0.0, %v924
  %v926 = vpop.f32.mrf.mxu0
  %927 = vmatprep.mubr.bf16.mxu0 0
  %928 = vmatmul.mubr.bf16.gmra.mxu0 %v632
  %v929 = vpop.f32.mrf.mxu0
  %v930 = vadd.f32 0.0, %v929
  %v931 = vpop.f32.mrf.mxu0
  %v932 = vpop.f32.mrf.mxu0
  %v933 = vadd.f32 0.0, %v932
  %v934 = vpop.f32.mrf.mxu0
  %935 = vmatprep.mubr.bf16.mxu0 0
  %936 = vmatmul.mubr.bf16.gmra.mxu0 %v635
  %v937 = vpop.f32.mrf.mxu0
  %v938 = vadd.f32 0.0, %v937
  %v939 = vpop.f32.mrf.mxu0
  %v940 = vpop.f32.mrf.mxu0
  %v941 = vadd.f32 0.0, %v940
  %v942 = vpop.f32.mrf.mxu0
  %943 = vmatprep.mubr.bf16.mxu0 0
  %944 = vmatmul.mubr.bf16.gmra.mxu0 %v638
  %v945 = vpop.f32.mrf.mxu0
  %v946 = vadd.f32 0.0, %v945
  %v947 = vpop.f32.mrf.mxu0
  %v948 = vpop.f32.mrf.mxu0
  %v949 = vadd.f32 0.0, %v948
  %v950 = vpop.f32.mrf.mxu0
  %951 = vmatprep.mubr.bf16.mxu0 0
  %952 = vmatmul.mubr.bf16.gmra.mxu0 %v641
  %v953 = vpop.f32.mrf.mxu0
  %v954 = vadd.f32 0.0, %v953
  %v955 = vpop.f32.mrf.mxu0
  %v956 = vpop.f32.mrf.mxu0
  %v957 = vadd.f32 0.0, %v956
  %v958 = vpop.f32.mrf.mxu0
  %959 = vmatprep.mubr.bf16.mxu0 0
  %960 = vmatmul.mubr.bf16.gmra.mxu0 %v644
  %v961 = vpop.f32.mrf.mxu0
  %v962 = vadd.f32 0.0, %v961
  %v963 = vpop.f32.mrf.mxu0
  %v964 = vpop.f32.mrf.mxu0
  %v965 = vadd.f32 0.0, %v964
  %v966 = vpop.f32.mrf.mxu0
  %967 = vmatprep.mubr.bf16.mxu0 0
  %968 = vmatmul.mubr.bf16.gmra.mxu0 %v647
  %v969 = vpop.f32.mrf.mxu0
  %v970 = vadd.f32 0.0, %v969
  %v971 = vpop.f32.mrf.mxu0
  %v972 = vpop.f32.mrf.mxu0
  %v973 = vadd.f32 0.0, %v972
  %v974 = vpop.f32.mrf.mxu0
  %975 = vmatprep.mubr.bf16.mxu0 0
  %976 = vmatmul.mubr.bf16.gmra.mxu0 %v650
  %v977 = vpop.f32.mrf.mxu0
  %v978 = vadd.f32 0.0, %v977
  %v979 = vpop.f32.mrf.mxu0
  %v980 = vpop.f32.mrf.mxu0
  %v981 = vadd.f32 0.0, %v980
  %v982 = vpop.f32.mrf.mxu0
  %983 = vmatprep.mubr.bf16.mxu0 0
  %984 = vmatmul.mubr.bf16.gmra.mxu0 %v653
  %v985 = vpop.f32.mrf.mxu0
  %v986 = vadd.f32 0.0, %v985
  %v987 = vpop.f32.mrf.mxu0
  %v988 = vpop.f32.mrf.mxu0
  %v989 = vadd.f32 0.0, %v988
  %v990 = vpop.f32.mrf.mxu0
  %991 = vmatprep.mubr.bf16.mxu0 0
  %992 = vmatmul.mubr.bf16.gmra.mxu0 %v656
  %v993 = vpop.f32.mrf.mxu0
  %v994 = vadd.f32 0.0, %v993
  %v995 = vpop.f32.mrf.mxu0
  %v996 = vpop.f32.mrf.mxu0
  %v997 = vadd.f32 0.0, %v996
  %v998 = vpop.f32.mrf.mxu0
  %999 = vmatprep.mubr.bf16.mxu0 0
  %1000 = vmatmul.mubr.bf16.gmra.mxu0 %v659
  %v1001 = vpop.f32.mrf.mxu0
  %v1002 = vadd.f32 0.0, %v1001
  %v1003 = vpop.f32.mrf.mxu0
  %v1004 = vpop.f32.mrf.mxu0
  %v1005 = vadd.f32 0.0, %v1004
  %v1006 = vpop.f32.mrf.mxu0
  %1007 = vmatprep.mubr.bf16.mxu0 0
  %1008 = vmatmul.mubr.bf16.gmra.mxu0 %v662
  %v1009 = vpop.f32.mrf.mxu0
  %v1010 = vadd.f32 0.0, %v1009
  %v1011 = vpop.f32.mrf.mxu0
  %v1012 = vpop.f32.mrf.mxu0
  %v1013 = vadd.f32 0.0, %v1012
  %v1014 = vpop.f32.mrf.mxu0
  %1015 = vmatprep.mubr.bf16.mxu0 0
  %1016 = vmatmul.mubr.bf16.gmra.mxu0 %v665
  %v1017 = vpop.f32.mrf.mxu0
  %v1018 = vadd.f32 0.0, %v1017
  %v1019 = vpop.f32.mrf.mxu0
  %v1020 = vpop.f32.mrf.mxu0
  %v1021 = vadd.f32 0.0, %v1020
  %v1022 = vpop.f32.mrf.mxu0
  %1023 = vmatprep.mubr.bf16.mxu0 0
  %1024 = vmatmul.mubr.bf16.gmra.mxu0 %v668
  %v1025 = vpop.f32.mrf.mxu0
  %v1026 = vadd.f32 0.0, %v1025
  %v1027 = vpop.f32.mrf.mxu0
  %v1028 = vpop.f32.mrf.mxu0
  %v1029 = vadd.f32 0.0, %v1028
  %v1030 = vpop.f32.mrf.mxu0
  %1031 = vmatprep.mubr.bf16.mxu0 0
  %1032 = vmatmul.mubr.bf16.gmra.mxu0 %v671
  %v1033 = vpop.f32.mrf.mxu0
  %v1034 = vadd.f32 0.0, %v1033
  %v1035 = vpop.f32.mrf.mxu0
  %v1036 = vpop.f32.mrf.mxu0
  %v1037 = vadd.f32 0.0, %v1036
  %v1038 = vpop.f32.mrf.mxu0
  %1039 = vmatprep.mubr.bf16.mxu0 0
  %1040 = vmatmul.mubr.bf16.gmra.mxu0 %v674
  %v1041 = vpop.f32.mrf.mxu0
  %v1042 = vadd.f32 0.0, %v1041
  %v1043 = vpop.f32.mrf.mxu0
  %v1044 = vpop.f32.mrf.mxu0
  %v1045 = vadd.f32 0.0, %v1044
  %v1046 = vpop.f32.mrf.mxu0
  %1047 = vmatprep.mubr.bf16.mxu0 0
  %1048 = vmatmul.mubr.bf16.gmra.mxu0 %v677
  %v1049 = vpop.f32.mrf.mxu0
  %v1050 = vadd.f32 0.0, %v1049
  %v1051 = vpop.f32.mrf.mxu0
  %v1052 = vpop.f32.mrf.mxu0
  %v1053 = vadd.f32 0.0, %v1052
  %v1054 = vpop.f32.mrf.mxu0
  %1055 = vmatprep.mubr.bf16.mxu0 0
  %1056 = vmatmul.mubr.bf16.gmra.mxu0 %v680
  %v1057 = vpop.f32.mrf.mxu0
  %v1058 = vadd.f32 0.0, %v1057
  %v1059 = vpop.f32.mrf.mxu0
  %v1060 = vpop.f32.mrf.mxu0
  %v1061 = vadd.f32 0.0, %v1060
  %v1062 = vpop.f32.mrf.mxu0
  %1063 = vmatprep.mubr.bf16.mxu0 0
  %1064 = vmatmul.mubr.bf16.gmra.mxu0 %v683
  %v1065 = vpop.f32.mrf.mxu0
  %v1066 = vadd.f32 0.0, %v1065
  %v1067 = vpop.f32.mrf.mxu0
  %v1068 = vpop.f32.mrf.mxu0
  %v1069 = vadd.f32 0.0, %v1068
  %v1070 = vpop.f32.mrf.mxu0
  %1071 = vmatprep.mubr.bf16.mxu0 0
  %1072 = vmatmul.mubr.bf16.gmra.mxu0 %v686
  %v1073 = vpop.f32.mrf.mxu0
  %v1074 = vadd.f32 0.0, %v1073
  %v1075 = vpop.f32.mrf.mxu0
  %v1076 = vpop.f32.mrf.mxu0
  %v1077 = vadd.f32 0.0, %v1076
  %v1078 = vpop.f32.mrf.mxu0
  %1079 = vmatprep.mubr.bf16.mxu0 0
  %1080 = vmatmul.mubr.bf16.gmra.mxu0 %v689
  %v1081 = vpop.f32.mrf.mxu0
  %v1082 = vadd.f32 0.0, %v1081
  %v1083 = vpop.f32.mrf.mxu0
  %v1084 = vpop.f32.mrf.mxu0
  %v1085 = vadd.f32 0.0, %v1084
  %v1086 = vpop.f32.mrf.mxu0
  %1087 = vmatprep.mubr.bf16.mxu0 0
  %1088 = vmatmul.mubr.bf16.gmra.mxu0 %v692
  %v1089 = vpop.f32.mrf.mxu0
  %v1090 = vadd.f32 0.0, %v1089
  %v1091 = vpop.f32.mrf.mxu0
  %v1092 = vpop.f32.mrf.mxu0
  %v1093 = vadd.f32 0.0, %v1092
  %v1094 = vpop.f32.mrf.mxu0
  %1095 = vmatprep.mubr.bf16.mxu0 0
  %1096 = vmatmul.mubr.bf16.gmra.mxu0 %v695
  %v1097 = vpop.f32.mrf.mxu0
  %v1098 = vadd.f32 0.0, %v1097
  %v1099 = vpop.f32.mrf.mxu0
  %v1100 = vpop.f32.mrf.mxu0
  %v1101 = vadd.f32 0.0, %v1100
  %v1102 = vpop.f32.mrf.mxu0
  %1103 = vmatprep.mubr.bf16.mxu0 0
  %1104 = vmatmul.mubr.bf16.gmra.mxu0 %v698
  %v1105 = vpop.f32.mrf.mxu0
  %v1106 = vadd.f32 0.0, %v1105
  %v1107 = vpop.f32.mrf.mxu0
  %v1108 = vpop.f32.mrf.mxu0
  %v1109 = vadd.f32 0.0, %v1108
  %v1110 = vpop.f32.mrf.mxu0
  %1111 = vmatprep.mubr.bf16.mxu0 0
  %1112 = vmatmul.mubr.bf16.gmra.mxu0 %v701
  %v1113 = vpop.f32.mrf.mxu0
  %v1114 = vadd.f32 0.0, %v1113
  %v1115 = vpop.f32.mrf.mxu0
  %v1116 = vpop.f32.mrf.mxu0
  %v1117 = vadd.f32 0.0, %v1116
  %v1118 = vpop.f32.mrf.mxu0
  %1119 = vmatprep.mubr.bf16.mxu0 0
  %1120 = vmatmul.mubr.bf16.gmra.mxu0 %v704
  %v1121 = vpop.f32.mrf.mxu0
  %v1122 = vadd.f32 0.0, %v1121
  %v1123 = vpop.f32.mrf.mxu0
  %v1124 = vpop.f32.mrf.mxu0
  %v1125 = vadd.f32 0.0, %v1124
  %v1126 = vpop.f32.mrf.mxu0
  %1127 = vmatprep.mubr.bf16.mxu0 0
  %1128 = vmatmul.mubr.bf16.gmra.mxu0 %v707
  %v1129 = vpop.f32.mrf.mxu0
  %v1130 = vadd.f32 0.0, %v1129
  %v1131 = vpop.f32.mrf.mxu0
  %v1132 = vpop.f32.mrf.mxu0
  %v1133 = vadd.f32 0.0, %v1132
  %v1134 = vpop.f32.mrf.mxu0
  %1135 = vmatprep.mubr.bf16.mxu0 0
  %1136 = vmatmul.mubr.bf16.gmra.mxu0 %v710
  %v1137 = vpop.f32.mrf.mxu0
  %v1138 = vadd.f32 0.0, %v1137
  %v1139 = vpop.f32.mrf.mxu0
  %v1140 = vpop.f32.mrf.mxu0
  %v1141 = vadd.f32 0.0, %v1140
  %v1142 = vpop.f32.mrf.mxu0
  %1143 = vmatprep.mubr.bf16.mxu0 0
  %1144 = vmatmul.mubr.bf16.gmra.mxu0 %v713
  %v1145 = vpop.f32.mrf.mxu0
  %v1146 = vadd.f32 0.0, %v1145
  %v1147 = vpop.f32.mrf.mxu0
  %v1148 = vpop.f32.mrf.mxu0
  %v1149 = vadd.f32 0.0, %v1148
  %v1150 = vpop.f32.mrf.mxu0
  %1151 = vmatprep.mubr.bf16.mxu0 0
  %1152 = vmatmul.mubr.bf16.gmra.mxu0 %v716
  %v1153 = vpop.f32.mrf.mxu0
  %v1154 = vadd.f32 0.0, %v1153
  %v1155 = vpop.f32.mrf.mxu0
  %v1156 = vpop.f32.mrf.mxu0
  %v1157 = vadd.f32 0.0, %v1156
  %v1158 = vpop.f32.mrf.mxu0
  %1159 = vmatprep.mubr.bf16.mxu0 0
  %1160 = vmatmul.mubr.bf16.gmra.mxu0 %v719
  %v1161 = vpop.f32.mrf.mxu0
  %v1162 = vadd.f32 0.0, %v1161
  %v1163 = vpop.f32.mrf.mxu0
  %v1164 = vpop.f32.mrf.mxu0
  %v1165 = vadd.f32 0.0, %v1164
  %v1166 = vpop.f32.mrf.mxu0
  %1167 = vmatprep.mubr.bf16.mxu0 0
  %1168 = vmatmul.mubr.bf16.gmra.mxu0 %v722
  %v1169 = vpop.f32.mrf.mxu0
  %v1170 = vadd.f32 0.0, %v1169
  %v1171 = vpop.f32.mrf.mxu0
  %v1172 = vpop.f32.mrf.mxu0
  %v1173 = vadd.f32 0.0, %v1172
  %v1174 = vpop.f32.mrf.mxu0
  %1175 = vmatprep.mubr.bf16.mxu0 0
  %1176 = vmatmul.mubr.bf16.gmra.mxu0 %v725
  %v1177 = vpop.f32.mrf.mxu0
  %v1178 = vadd.f32 0.0, %v1177
  %v1179 = vpop.f32.mrf.mxu0
  %v1180 = vpop.f32.mrf.mxu0
  %v1181 = vadd.f32 0.0, %v1180
  %v1182 = vpop.f32.mrf.mxu0
  %1183 = vmatprep.mubr.bf16.mxu0 0
  %1184 = vmatmul.mubr.bf16.gmra.mxu0 %v728
  %v1185 = vpop.f32.mrf.mxu0
  %v1186 = vadd.f32 0.0, %v1185
  %v1187 = vpop.f32.mrf.mxu0
  %v1188 = vpop.f32.mrf.mxu0
  %v1189 = vadd.f32 0.0, %v1188
  %v1190 = vpop.f32.mrf.mxu0
  %1191 = vmatprep.mubr.bf16.mxu0 0
  %1192 = vmatmul.mubr.bf16.gmra.mxu0 %v731
  %v1193 = vpop.f32.mrf.mxu0
  %v1194 = vadd.f32 0.0, %v1193
  %v1195 = vpop.f32.mrf.mxu0
  %v1196 = vpop.f32.mrf.mxu0
  %v1197 = vadd.f32 0.0, %v1196
  %v1198 = vpop.f32.mrf.mxu0
  %1199 = vmatprep.mubr.bf16.mxu0 0
  %1200 = vmatmul.mubr.bf16.gmra.mxu0 %v734
  %v1201 = vpop.f32.mrf.mxu0
  %v1202 = vadd.f32 0.0, %v1201
  %v1203 = vpop.f32.mrf.mxu0
  %v1204 = vpop.f32.mrf.mxu0
  %v1205 = vadd.f32 0.0, %v1204
  %v1206 = vpop.f32.mrf.mxu0
  %1207 = vmatprep.mubr.bf16.mxu0 0
  %1208 = vmatmul.mubr.bf16.gmra.mxu0 %v737
  %v1209 = vpop.f32.mrf.mxu0
  %v1210 = vadd.f32 0.0, %v1209
  %v1211 = vpop.f32.mrf.mxu0
  %v1212 = vpop.f32.mrf.mxu0
  %v1213 = vadd.f32 0.0, %v1212
  %v1214 = vpop.f32.mrf.mxu0
  %1215 = vmatprep.mubr.bf16.mxu0 0
  %1216 = vmatmul.mubr.bf16.gmra.mxu0 %v740
  %v1217 = vpop.f32.mrf.mxu0
  %v1218 = vadd.f32 0.0, %v1217
  %v1219 = vpop.f32.mrf.mxu0
  %v1220 = vpop.f32.mrf.mxu0
  %v1221 = vadd.f32 0.0, %v1220
  %v1222 = vpop.f32.mrf.mxu0
  %1223 = vmatprep.mubr.bf16.mxu0 0
  %1224 = vmatmul.mubr.bf16.gmra.mxu0 %v743
  %v1225 = vpop.f32.mrf.mxu0
  %v1226 = vadd.f32 0.0, %v1225
  %v1227 = vpop.f32.mrf.mxu0
  %v1228 = vpop.f32.mrf.mxu0
  %v1229 = vadd.f32 0.0, %v1228
  %v1230 = vpop.f32.mrf.mxu0
  %1231 = vmatprep.mubr.bf16.mxu0 0
  %1232 = vmatmul.mubr.bf16.gmra.mxu0 %v746
  %v1233 = vpop.f32.mrf.mxu0
  %v1234 = vadd.f32 0.0, %v1233
  %v1235 = vpop.f32.mrf.mxu0
  %v1236 = vpop.f32.mrf.mxu0
  %v1237 = vadd.f32 0.0, %v1236
  %v1238 = vpop.f32.mrf.mxu0
  %1239 = vmatprep.mubr.bf16.mxu0 0
  %1240 = vmatmul.mubr.bf16.gmra.mxu0 %v749
  %v1241 = vpop.f32.mrf.mxu0
  %v1242 = vadd.f32 0.0, %v1241
  %v1243 = vpop.f32.mrf.mxu0
  %v1244 = vpop.f32.mrf.mxu0
  %v1245 = vadd.f32 0.0, %v1244
  %v1246 = vpop.f32.mrf.mxu0
  %1247 = vmatprep.mubr.bf16.mxu0 0
  %1248 = vmatmul.mubr.bf16.gmra.mxu0 %v752
  %v1249 = vpop.f32.mrf.mxu0
  %v1250 = vadd.f32 0.0, %v1249
  %v1251 = vpop.f32.mrf.mxu0
  %v1252 = vpop.f32.mrf.mxu0
  %v1253 = vadd.f32 0.0, %v1252
  %v1254 = vpop.f32.mrf.mxu0
  %1255 = vmatprep.mubr.bf16.mxu0 0
  %1256 = vmatmul.mubr.bf16.gmra.mxu0 %v755
  %v1257 = vpop.f32.mrf.mxu0
  %v1258 = vadd.f32 0.0, %v1257
  %v1259 = vpop.f32.mrf.mxu0
  %v1260 = vpop.f32.mrf.mxu0
  %v1261 = vadd.f32 0.0, %v1260
  %v1262 = vpop.f32.mrf.mxu0
  %1263 = vmatprep.mubr.bf16.mxu0 0
  %1264 = vmatmul.mubr.bf16.gmra.mxu0 %v758
  %v1265 = vpop.f32.mrf.mxu0
  %v1266 = vadd.f32 0.0, %v1265
  %v1267 = vpop.f32.mrf.mxu0
  %v1268 = vpop.f32.mrf.mxu0
  %v1269 = vadd.f32 0.0, %v1268
  %v1270 = vpop.f32.mrf.mxu0
  %1271 = vmatprep.mubr.bf16.mxu0 0
  %1272 = vmatmul.mubr.bf16.gmra.mxu0 %v761
  %v1273 = vpop.f32.mrf.mxu0
  %v1274 = vadd.f32 0.0, %v1273
  %v1275 = vpop.f32.mrf.mxu0
  %v1276 = vpop.f32.mrf.mxu0
  %v1277 = vadd.f32 0.0, %v1276
  %v1278 = vpop.f32.mrf.mxu0
  %1279 = vmatprep.mubr.bf16.mxu0 0
  %1280 = vmatmul.mubr.bf16.gmra.mxu0 %v764
  %v1281 = vpop.f32.mrf.mxu0
  %v1282 = vadd.f32 0.0, %v1281
  %v1283 = vpop.f32.mrf.mxu0
  %v1284 = vpop.f32.mrf.mxu0
  %v1285 = vadd.f32 0.0, %v1284
  %v1286 = vpop.f32.mrf.mxu0
  %1287 = vmatprep.mubr.bf16.mxu0 0
  %1288 = vmatmul.mubr.bf16.gmra.mxu0 %v767
  %v1289 = vpop.f32.mrf.mxu0
  %v1290 = vadd.f32 0.0, %v1289
  %v1291 = vpop.f32.mrf.mxu0
  %v1292 = vpop.f32.mrf.mxu0
  %v1293 = vadd.f32 0.0, %v1292
  %v1294 = vpop.f32.mrf.mxu0
  %1295 = vmatprep.mubr.bf16.mxu0 0
  %1296 = vmatmul.mubr.bf16.gmra.mxu0 %v770
  %v1297 = vpop.f32.mrf.mxu0
  %v1298 = vadd.f32 0.0, %v1297
  %v1299 = vpop.f32.mrf.mxu0
  %v1300 = vpop.f32.mrf.mxu0
  %v1301 = vadd.f32 0.0, %v1300
  %v1302 = vpop.f32.mrf.mxu0
  %1303 = vmatprep.mubr.bf16.mxu0 0
  %1304 = vmatmul.mubr.bf16.gmra.mxu0 %v773
  %v1305 = vpop.f32.mrf.mxu0
  %v1306 = vadd.f32 0.0, %v1305
  %v1307 = vpop.f32.mrf.mxu0
  %v1308 = vpop.f32.mrf.mxu0
  %v1309 = vadd.f32 0.0, %v1308
  %v1310 = vpop.f32.mrf.mxu0
  %1311 = vmatprep.mubr.bf16.mxu0 0
  %1312 = vmatmul.mubr.bf16.gmra.mxu0 %v776
  %v1313 = vpop.f32.mrf.mxu0
  %v1314 = vadd.f32 0.0, %v1313
  %v1315 = vpop.f32.mrf.mxu0
  %v1316 = vpop.f32.mrf.mxu0
  %v1317 = vadd.f32 0.0, %v1316
  %v1318 = vpop.f32.mrf.mxu0
  %1319 = vmatprep.mubr.bf16.mxu0 0
  %1320 = vmatmul.mubr.bf16.gmra.mxu0 %v779
  %v1321 = vpop.f32.mrf.mxu0
  %v1322 = vadd.f32 0.0, %v1321
  %v1323 = vpop.f32.mrf.mxu0
  %v1324 = vpop.f32.mrf.mxu0
  %v1325 = vadd.f32 0.0, %v1324
  %v1326 = vpop.f32.mrf.mxu0
  %1327 = vmatprep.mubr.bf16.mxu0 0
  %1328 = vmatmul.mubr.bf16.gmra.mxu0 %v782
  %v1329 = vpop.f32.mrf.mxu0
  %v1330 = vadd.f32 0.0, %v1329
  %v1331 = vpop.f32.mrf.mxu0
  %v1332 = vpop.f32.mrf.mxu0
  %v1333 = vadd.f32 0.0, %v1332
  %v1334 = vpop.f32.mrf.mxu0
  %1335 = vmatprep.mubr.bf16.mxu0 0
  %1336 = vmatmul.mubr.bf16.gmra.mxu0 %v785
  %v1337 = vpop.f32.mrf.mxu0
  %v1338 = vadd.f32 0.0, %v1337
  %v1339 = vpop.f32.mrf.mxu0
  %v1340 = vpop.f32.mrf.mxu0
  %v1341 = vadd.f32 0.0, %v1340
  %v1342 = vpop.f32.mrf.mxu0
  %1343 = vmatprep.mubr.bf16.mxu0 0
  %1344 = vmatmul.mubr.bf16.gmra.mxu0 %v788
  %v1345 = vpop.f32.mrf.mxu0
  %v1346 = vadd.f32 0.0, %v1345
  %v1347 = vpop.f32.mrf.mxu0
  %v1348 = vpop.f32.mrf.mxu0
  %v1349 = vadd.f32 0.0, %v1348
  %v1350 = vpop.f32.mrf.mxu0
  %1351 = vmatprep.mubr.bf16.mxu0 0
  %1352 = vmatmul.mubr.bf16.gmra.mxu0 %v791
  %v1353 = vpop.f32.mrf.mxu0
  %v1354 = vadd.f32 0.0, %v1353
  %v1355 = vpop.f32.mrf.mxu0
  %v1356 = vpop.f32.mrf.mxu0
  %v1357 = vadd.f32 0.0, %v1356
  %v1358 = vpop.f32.mrf.mxu0
  %1359 = vmatprep.mubr.bf16.mxu0 0
  %1360 = vmatmul.mubr.bf16.gmra.mxu0 %v794
  %v1361 = vpop.f32.mrf.mxu0
  %v1362 = vadd.f32 0.0, %v1361
  %v1363 = vpop.f32.mrf.mxu0
  %v1364 = vpop.f32.mrf.mxu0
  %v1365 = vadd.f32 0.0, %v1364
  %v1366 = vpop.f32.mrf.mxu0
  %1367 = vmatprep.mubr.bf16.mxu0 0
  %1368 = vmatmul.mubr.bf16.gmra.mxu0 %v797
  %v1369 = vpop.f32.mrf.mxu0
  %v1370 = vadd.f32 0.0, %v1369
  %v1371 = vpop.f32.mrf.mxu0
  %v1372 = vpop.f32.mrf.mxu0
  %v1373 = vadd.f32 0.0, %v1372
  %v1374 = vpop.f32.mrf.mxu0
  %1375 = vmatprep.mubr.bf16.mxu0 0
  %1376 = vmatmul.mubr.bf16.gmra.mxu0 %v800
  %v1377 = vpop.f32.mrf.mxu0
  %v1378 = vadd.f32 0.0, %v1377
  %v1379 = vpop.f32.mrf.mxu0
  %v1380 = vpop.f32.mrf.mxu0
  %v1381 = vadd.f32 0.0, %v1380
  %v1382 = vpop.f32.mrf.mxu0
  %1383 = vmatprep.mubr.bf16.mxu0 0
  %1384 = vmatmul.mubr.bf16.gmra.mxu0 %v803
  %v1385 = vpop.f32.mrf.mxu0
  %v1386 = vadd.f32 0.0, %v1385
  %v1387 = vpop.f32.mrf.mxu0
  %v1388 = vpop.f32.mrf.mxu0
  %v1389 = vadd.f32 0.0, %v1388
  %v1390 = vpop.f32.mrf.mxu0
  %1391 = vmatprep.mubr.bf16.mxu0 0
  %1392 = vmatmul.mubr.bf16.gmra.mxu0 %v806
  %v1393 = vpop.f32.mrf.mxu0
  %v1394 = vadd.f32 0.0, %v1393
  %v1395 = vpop.f32.mrf.mxu0
  %v1396 = vpop.f32.mrf.mxu0
  %v1397 = vadd.f32 0.0, %v1396
  %v1398 = vpop.f32.mrf.mxu0
  %1399 = vmatprep.mubr.bf16.mxu0 0
  %1400 = vmatmul.mubr.bf16.gmra.mxu0 %v809
  %v1401 = vpop.f32.mrf.mxu0
  %v1402 = vadd.f32 0.0, %v1401
  %v1403 = vpop.f32.mrf.mxu0
  %v1404 = vpop.f32.mrf.mxu0
  %v1405 = vadd.f32 0.0, %v1404
  %v1406 = vpop.f32.mrf.mxu0
  %1407 = vmatprep.mubr.bf16.mxu0 0
  %1408 = vmatmul.mubr.bf16.gmra.mxu0 %v812
  %v1409 = vpop.f32.mrf.mxu0
  %v1410 = vadd.f32 0.0, %v1409
  %v1411 = vpop.f32.mrf.mxu0
  %v1412 = vpop.f32.mrf.mxu0
  %v1413 = vadd.f32 0.0, %v1412
  %v1414 = vpop.f32.mrf.mxu0
  %1415 = vmatprep.mubr.bf16.mxu0 0
  %1416 = vmatmul.mubr.bf16.gmra.mxu0 %v815
  %v1417 = vpop.f32.mrf.mxu0
  %v1418 = vadd.f32 0.0, %v1417
  %v1419 = vpop.f32.mrf.mxu0
  %v1420 = vpop.f32.mrf.mxu0
  %v1421 = vadd.f32 0.0, %v1420
  %v1422 = vpop.f32.mrf.mxu0
  %1423 = vmatprep.mubr.bf16.mxu0 0
  %1424 = vmatmul.mubr.bf16.gmra.mxu0 %v818
  %v1425 = vpop.f32.mrf.mxu0
  %v1426 = vadd.f32 0.0, %v1425
  %v1427 = vpop.f32.mrf.mxu0
  %v1428 = vpop.f32.mrf.mxu0
  %v1429 = vadd.f32 0.0, %v1428
  %v1430 = vpop.f32.mrf.mxu0
  %1431 = vmatprep.mubr.bf16.mxu0 0
  %1432 = vmatmul.mubr.bf16.gmra.mxu0 %v821
  %v1433 = vpop.f32.mrf.mxu0
  %v1434 = vadd.f32 0.0, %v1433
  %v1435 = vpop.f32.mrf.mxu0
  %v1436 = vpop.f32.mrf.mxu0
  %v1437 = vadd.f32 0.0, %v1436
  %v1438 = vpop.f32.mrf.mxu0
  %1439 = vmatprep.mubr.bf16.mxu0 0
  %1440 = vmatmul.mubr.bf16.gmra.mxu0 %v824
  %v1441 = vpop.f32.mrf.mxu0
  %v1442 = vadd.f32 0.0, %v1441
  %v1443 = vpop.f32.mrf.mxu0
  %v1444 = vpop.f32.mrf.mxu0
  %v1445 = vadd.f32 0.0, %v1444
  %v1446 = vpop.f32.mrf.mxu0
  %1447 = vmatprep.mubr.bf16.mxu0 0
  %1448 = vmatmul.mubr.bf16.gmra.mxu0 %v827
  %v1449 = vpop.f32.mrf.mxu0
  %v1450 = vadd.f32 0.0, %v1449
  %v1451 = vpop.f32.mrf.mxu0
  %v1452 = vpop.f32.mrf.mxu0
  %v1453 = vadd.f32 0.0, %v1452
  %v1454 = vpop.f32.mrf.mxu0
  %1455 = vmatprep.mubr.bf16.mxu0 0
  %1456 = vmatmul.mubr.bf16.gmra.mxu0 %v830
  %v1457 = vpop.f32.mrf.mxu0
  %v1458 = vadd.f32 0.0, %v1457
  %v1459 = vpop.f32.mrf.mxu0
  %v1460 = vpop.f32.mrf.mxu0
  %v1461 = vadd.f32 0.0, %v1460
  %v1462 = vpop.f32.mrf.mxu0
  %1463 = vmatprep.mubr.bf16.mxu0 0
  %1464 = vmatmul.mubr.bf16.gmra.mxu0 %v833
  %v1465 = vpop.f32.mrf.mxu0
  %v1466 = vadd.f32 0.0, %v1465
  %v1467 = vpop.f32.mrf.mxu0
  %v1468 = vpop.f32.mrf.mxu0
  %v1469 = vadd.f32 0.0, %v1468
  %v1470 = vpop.f32.mrf.mxu0
  %1471 = vmatprep.mubr.bf16.mxu0 0
  %1472 = vmatmul.mubr.bf16.gmra.mxu0 %v836
  %v1473 = vpop.f32.mrf.mxu0
  %v1474 = vadd.f32 0.0, %v1473
  %v1475 = vpop.f32.mrf.mxu0
  %v1476 = vpop.f32.mrf.mxu0
  %v1477 = vadd.f32 0.0, %v1476
  %v1478 = vpop.f32.mrf.mxu0
  %1479 = vmatprep.mubr.bf16.mxu0 0
  %1480 = vmatmul.mubr.bf16.gmra.mxu0 %v839
  %v1481 = vpop.f32.mrf.mxu0
  %v1482 = vadd.f32 0.0, %v1481
  %v1483 = vpop.f32.mrf.mxu0
  %v1484 = vpop.f32.mrf.mxu0
  %v1485 = vadd.f32 0.0, %v1484
  %v1486 = vpop.f32.mrf.mxu0
  %1487 = vmatprep.mubr.bf16.mxu0 0
  %1488 = vmatmul.mubr.bf16.gmra.mxu0 %v842
  %v1489 = vpop.f32.mrf.mxu0
  %v1490 = vadd.f32 0.0, %v1489
  %v1491 = vpop.f32.mrf.mxu0
  %v1492 = vpop.f32.mrf.mxu0
  %v1493 = vadd.f32 0.0, %v1492
  %v1494 = vpop.f32.mrf.mxu0
  %1495 = vmatprep.mubr.bf16.mxu0 0
  %1496 = vmatmul.mubr.bf16.gmra.mxu0 %v845
  %v1497 = vpop.f32.mrf.mxu0
  %v1498 = vadd.f32 0.0, %v1497
  %v1499 = vpop.f32.mrf.mxu0
  %v1500 = vpop.f32.mrf.mxu0
  %v1501 = vadd.f32 0.0, %v1500
  %v1502 = vpop.f32.mrf.mxu0
  %1503 = vmatprep.mubr.bf16.mxu0 0
  %1504 = vmatmul.mubr.bf16.gmra.mxu0 %v848
  %v1505 = vpop.f32.mrf.mxu0
  %v1506 = vadd.f32 0.0, %v1505
  %v1507 = vpop.f32.mrf.mxu0
  %v1508 = vpop.f32.mrf.mxu0
  %v1509 = vadd.f32 0.0, %v1508
  %v1510 = vpop.f32.mrf.mxu0
  %1511 = vmatprep.mubr.bf16.mxu0 0
  %1512 = vmatmul.mubr.bf16.gmra.mxu0 %v851
  %v1513 = vpop.f32.mrf.mxu0
  %v1514 = vadd.f32 0.0, %v1513
  %v1515 = vpop.f32.mrf.mxu0
  %v1516 = vpop.f32.mrf.mxu0
  %v1517 = vadd.f32 0.0, %v1516
  %v1518 = vpop.f32.mrf.mxu0
  %1519 = vmatprep.mubr.bf16.mxu0 0
  %1520 = vmatmul.mubr.bf16.gmra.mxu0 %v854
  %v1521 = vpop.f32.mrf.mxu0
  %v1522 = vadd.f32 0.0, %v1521
  %v1523 = vpop.f32.mrf.mxu0
  %v1524 = vpop.f32.mrf.mxu0
  %v1525 = vadd.f32 0.0, %v1524
  %v1526 = vpop.f32.mrf.mxu0
  %1527 = vmatprep.mubr.bf16.mxu0 0
  %1528 = vmatmul.mubr.bf16.gmra.mxu0 %v857
  %v1529 = vpop.f32.mrf.mxu0
  %v1530 = vadd.f32 0.0, %v1529
  %v1531 = vpop.f32.mrf.mxu0
  %v1532 = vpop.f32.mrf.mxu0
  %v1533 = vadd.f32 0.0, %v1532
  %v1534 = vpop.f32.mrf.mxu0
  %1535 = vmatprep.mubr.bf16.mxu0 0
  %1536 = vmatmul.mubr.bf16.gmra.mxu0 %v860
  %v1537 = vpop.f32.mrf.mxu0
  %v1538 = vadd.f32 0.0, %v1537
  %v1539 = vpop.f32.mrf.mxu0
  %v1540 = vpop.f32.mrf.mxu0
  %v1541 = vadd.f32 0.0, %v1540
  %v1542 = vpop.f32.mrf.mxu0
  %1543 = vmatprep.mubr.bf16.mxu0 0
  %1544 = vmatmul.mubr.bf16.gmra.mxu0 %v863
  %v1545 = vpop.f32.mrf.mxu0
  %v1546 = vadd.f32 0.0, %v1545
  %v1547 = vpop.f32.mrf.mxu0
  %v1548 = vpop.f32.mrf.mxu0
  %v1549 = vadd.f32 0.0, %v1548
  %v1550 = vpop.f32.mrf.mxu0
  %1551 = vmatprep.mubr.bf16.mxu0 0
  %1552 = vmatmul.mubr.bf16.gmra.mxu0 %v866
  %v1553 = vpop.f32.mrf.mxu0
  %v1554 = vadd.f32 0.0, %v1553
  %v1555 = vpop.f32.mrf.mxu0
  %v1556 = vpop.f32.mrf.mxu0
  %v1557 = vadd.f32 0.0, %v1556
  %v1558 = vpop.f32.mrf.mxu0
  %1559 = vmatprep.mubr.bf16.mxu0 0
  %1560 = vmatmul.mubr.bf16.gmra.mxu0 %v869
  %v1561 = vpop.f32.mrf.mxu0
  %v1562 = vadd.f32 0.0, %v1561
  %v1563 = vpop.f32.mrf.mxu0
  %v1564 = vpop.f32.mrf.mxu0
  %v1565 = vadd.f32 0.0, %v1564
  %v1566 = vpop.f32.mrf.mxu0
  %1567 = vmatprep.mubr.bf16.mxu0 0
  %1568 = vmatmul.mubr.bf16.gmra.mxu0 %v872
  %v1569 = vpop.f32.mrf.mxu0
  %v1570 = vadd.f32 0.0, %v1569
  %v1571 = vpop.f32.mrf.mxu0
  %v1572 = vpop.f32.mrf.mxu0
  %v1573 = vadd.f32 0.0, %v1572
  %v1574 = vpop.f32.mrf.mxu0
  %1575 = vmatprep.mubr.bf16.mxu0 0
  %1576 = vmatmul.mubr.bf16.gmra.mxu0 %v875
  %v1577 = vpop.f32.mrf.mxu0
  %v1578 = vadd.f32 0.0, %v1577
  %v1579 = vpop.f32.mrf.mxu0
  %v1580 = vpop.f32.mrf.mxu0
  %v1581 = vadd.f32 0.0, %v1580
  %v1582 = vpop.f32.mrf.mxu0
  %1583 = vmatprep.mubr.bf16.mxu0 0
  %1584 = vmatmul.mubr.bf16.gmra.mxu0 %v878
  %v1585 = vpop.f32.mrf.mxu0
  %v1586 = vadd.f32 0.0, %v1585
  %v1587 = vpop.f32.mrf.mxu0
  %v1588 = vpop.f32.mrf.mxu0
  %v1589 = vadd.f32 0.0, %v1588
  %v1590 = vpop.f32.mrf.mxu0
  %1591 = vmatprep.mubr.bf16.mxu0 0
  %1592 = vmatmul.mubr.bf16.gmra.mxu0 %v881
  %v1593 = vpop.f32.mrf.mxu0
  %v1594 = vadd.f32 0.0, %v1593
  %v1595 = vpop.f32.mrf.mxu0
  %v1596 = vpop.f32.mrf.mxu0
  %v1597 = vpop.f32.mrf.mxu0
  %1598 = vdwg.mxu0
  %1768 = vrot.lane.b32.xlu0 %v922, 96
  %v1769 = vpop.permute.xlu0 %1768
  %1770 = vrot.lane.b32.xlu0 %v925, 96
  %v1771 = vpop.permute.xlu0 %1770
  %1772 = vrot.lane.b32.xlu0 %v930, 96
  %v1773 = vpop.permute.xlu0 %1772
  %1774 = vrot.lane.b32.xlu0 %v933, 96
  %v1775 = vpop.permute.xlu0 %1774
  %1776 = vrot.lane.b32.xlu0 %v938, 96
  %v1777 = vpop.permute.xlu0 %1776
  %1778 = vrot.lane.b32.xlu0 %v941, 96
  %v1779 = vpop.permute.xlu0 %1778
  %1780 = vrot.lane.b32.xlu0 %v946, 96
  %v1781 = vpop.permute.xlu0 %1780
  %1782 = vrot.lane.b32.xlu0 %v949, 96
  %v1783 = vpop.permute.xlu0 %1782
  %1784 = vrot.lane.b32.xlu0 %v954, 96
  %v1785 = vpop.permute.xlu0 %1784
  %1786 = vrot.lane.b32.xlu0 %v957, 96
  %v1787 = vpop.permute.xlu0 %1786
  %1788 = vrot.lane.b32.xlu0 %v962, 96
  %v1789 = vpop.permute.xlu0 %1788
  %1790 = vrot.lane.b32.xlu0 %v965, 96
  %v1791 = vpop.permute.xlu0 %1790
  %1792 = vrot.lane.b32.xlu0 %v970, 96
  %v1793 = vpop.permute.xlu0 %1792
  %1794 = vrot.lane.b32.xlu0 %v973, 96
  %v1795 = vpop.permute.xlu0 %1794
  %1796 = vrot.lane.b32.xlu0 %v978, 96
  %v1797 = vpop.permute.xlu0 %1796
  %1798 = vrot.lane.b32.xlu0 %v981, 96
  %v1799 = vpop.permute.xlu0 %1798
  %1800 = vrot.lane.b32.xlu0 %v986, 96
  %v1801 = vpop.permute.xlu0 %1800
  %1802 = vrot.lane.b32.xlu0 %v989, 96
  %v1803 = vpop.permute.xlu0 %1802
  %1804 = vrot.lane.b32.xlu0 %v994, 96
  %v1805 = vpop.permute.xlu0 %1804
  %1806 = vrot.lane.b32.xlu0 %v997, 96
  %v1807 = vpop.permute.xlu0 %1806
  %1808 = vrot.lane.b32.xlu0 %v1002, 96
  %v1809 = vpop.permute.xlu0 %1808
  %1810 = vrot.lane.b32.xlu0 %v1005, 96
  %v1811 = vpop.permute.xlu0 %1810
  %1812 = vrot.lane.b32.xlu0 %v1010, 96
  %v1813 = vpop.permute.xlu0 %1812
  %1814 = vrot.lane.b32.xlu0 %v1013, 96
  %v1815 = vpop.permute.xlu0 %1814
  %1816 = vrot.lane.b32.xlu0 %v1018, 96
  %v1817 = vpop.permute.xlu0 %1816
  %1818 = vrot.lane.b32.xlu0 %v1021, 96
  %v1819 = vpop.permute.xlu0 %1818
  %1820 = vrot.lane.b32.xlu0 %v1026, 96
  %v1821 = vpop.permute.xlu0 %1820
  %1822 = vrot.lane.b32.xlu0 %v1029, 96
  %v1823 = vpop.permute.xlu0 %1822
  %1824 = vrot.lane.b32.xlu0 %v1034, 96
  %v1825 = vpop.permute.xlu0 %1824
  %1826 = vrot.lane.b32.xlu0 %v1037, 96
  %v1827 = vpop.permute.xlu0 %1826
  %1828 = vrot.lane.b32.xlu0 %v1042, 96
  %v1829 = vpop.permute.xlu0 %1828
  %1830 = vrot.lane.b32.xlu0 %v1045, 96
  %v1831 = vpop.permute.xlu0 %1830
  %1832 = vrot.lane.b32.xlu0 %v1050, 96
  %v1833 = vpop.permute.xlu0 %1832
  %1834 = vrot.lane.b32.xlu0 %v1053, 96
  %v1835 = vpop.permute.xlu0 %1834
  %1836 = vrot.lane.b32.xlu0 %v1058, 96
  %v1837 = vpop.permute.xlu0 %1836
  %1838 = vrot.lane.b32.xlu0 %v1061, 96
  %v1839 = vpop.permute.xlu0 %1838
  %1840 = vrot.lane.b32.xlu0 %v1066, 96
  %v1841 = vpop.permute.xlu0 %1840
  %1842 = vrot.lane.b32.xlu0 %v1069, 96
  %v1843 = vpop.permute.xlu0 %1842
  %1844 = vrot.lane.b32.xlu0 %v1074, 96
  %v1845 = vpop.permute.xlu0 %1844
  %1846 = vrot.lane.b32.xlu0 %v1077, 96
  %v1847 = vpop.permute.xlu0 %1846
  %1848 = vrot.lane.b32.xlu0 %v1082, 96
  %v1849 = vpop.permute.xlu0 %1848
  %1850 = vrot.lane.b32.xlu0 %v1085, 96
  %v1851 = vpop.permute.xlu0 %1850
  %1852 = vrot.lane.b32.xlu0 %v1090, 96
  %v1853 = vpop.permute.xlu0 %1852
  %1854 = vrot.lane.b32.xlu0 %v1093, 96
  %v1855 = vpop.permute.xlu0 %1854
  %1856 = vrot.lane.b32.xlu0 %v1098, 96
  %v1857 = vpop.permute.xlu0 %1856
  %1858 = vrot.lane.b32.xlu0 %v1101, 96
  %v1859 = vpop.permute.xlu0 %1858
  %1860 = vrot.lane.b32.xlu0 %v1106, 96
  %v1861 = vpop.permute.xlu0 %1860
  %1862 = vrot.lane.b32.xlu0 %v1109, 96
  %v1863 = vpop.permute.xlu0 %1862
  %1864 = vrot.lane.b32.xlu0 %v1114, 96
  %v1865 = vpop.permute.xlu0 %1864
  %1866 = vrot.lane.b32.xlu0 %v1117, 96
  %v1867 = vpop.permute.xlu0 %1866
  %1868 = vrot.lane.b32.xlu0 %v1122, 96
  %v1869 = vpop.permute.xlu0 %1868
  %1870 = vrot.lane.b32.xlu0 %v1125, 96
  %v1871 = vpop.permute.xlu0 %1870
  %1872 = vrot.lane.b32.xlu0 %v1130, 96
  %v1873 = vpop.permute.xlu0 %1872
  %1874 = vrot.lane.b32.xlu0 %v1133, 96
  %v1875 = vpop.permute.xlu0 %1874
  %1876 = vrot.lane.b32.xlu0 %v1138, 96
  %v1877 = vpop.permute.xlu0 %1876
  %1878 = vrot.lane.b32.xlu0 %v1141, 96
  %v1879 = vpop.permute.xlu0 %1878
  %1880 = vrot.lane.b32.xlu0 %v1146, 96
  %v1881 = vpop.permute.xlu0 %1880
  %1882 = vrot.lane.b32.xlu0 %v1149, 96
  %v1883 = vpop.permute.xlu0 %1882
  %1884 = vrot.lane.b32.xlu0 %v1154, 96
  %v1885 = vpop.permute.xlu0 %1884
  %1886 = vrot.lane.b32.xlu0 %v1157, 96
  %v1887 = vpop.permute.xlu0 %1886
  %1888 = vrot.lane.b32.xlu0 %v1162, 96
  %v1889 = vpop.permute.xlu0 %1888
  %1890 = vrot.lane.b32.xlu0 %v1165, 96
  %v1891 = vpop.permute.xlu0 %1890
  %1892 = vrot.lane.b32.xlu0 %v1170, 96
  %v1893 = vpop.permute.xlu0 %1892
  %1894 = vrot.lane.b32.xlu0 %v1173, 96
  %v1895 = vpop.permute.xlu0 %1894
  %1896 = vrot.lane.b32.xlu0 %v1178, 96
  %v1897 = vpop.permute.xlu0 %1896
  %1898 = vrot.lane.b32.xlu0 %v1181, 96
  %v1899 = vpop.permute.xlu0 %1898
  %1900 = vrot.lane.b32.xlu0 %v1186, 96
  %v1901 = vpop.permute.xlu0 %1900
  %1902 = vrot.lane.b32.xlu0 %v1189, 96
  %v1903 = vpop.permute.xlu0 %1902
  %1904 = vrot.lane.b32.xlu0 %v1194, 96
  %v1905 = vpop.permute.xlu0 %1904
  %1906 = vrot.lane.b32.xlu0 %v1197, 96
  %v1907 = vpop.permute.xlu0 %1906
  %1908 = vrot.lane.b32.xlu0 %v1202, 96
  %v1909 = vpop.permute.xlu0 %1908
  %1910 = vrot.lane.b32.xlu0 %v1205, 96
  %v1911 = vpop.permute.xlu0 %1910
  %1912 = vrot.lane.b32.xlu0 %v1210, 96
  %v1913 = vpop.permute.xlu0 %1912
  %1914 = vrot.lane.b32.xlu0 %v1213, 96
  %v1915 = vpop.permute.xlu0 %1914
  %1916 = vrot.lane.b32.xlu0 %v1218, 96
  %v1917 = vpop.permute.xlu0 %1916
  %1918 = vrot.lane.b32.xlu0 %v1221, 96
  %v1919 = vpop.permute.xlu0 %1918
  %1920 = vrot.lane.b32.xlu0 %v1226, 96
  %v1921 = vpop.permute.xlu0 %1920
  %1922 = vrot.lane.b32.xlu0 %v1229, 96
  %v1923 = vpop.permute.xlu0 %1922
  %1924 = vrot.lane.b32.xlu0 %v1234, 96
  %v1925 = vpop.permute.xlu0 %1924
  %1926 = vrot.lane.b32.xlu0 %v1237, 96
  %v1927 = vpop.permute.xlu0 %1926
  %1928 = vrot.lane.b32.xlu0 %v1242, 96
  %v1929 = vpop.permute.xlu0 %1928
  %1930 = vrot.lane.b32.xlu0 %v1245, 96
  %v1931 = vpop.permute.xlu0 %1930
  %1932 = vrot.lane.b32.xlu0 %v1250, 96
  %v1933 = vpop.permute.xlu0 %1932
  %1934 = vrot.lane.b32.xlu0 %v1253, 96
  %v1935 = vpop.permute.xlu0 %1934
  %1936 = vrot.lane.b32.xlu0 %v1258, 96
  %v1937 = vpop.permute.xlu0 %1936
  %1938 = vrot.lane.b32.xlu0 %v1261, 96
  %v1939 = vpop.permute.xlu0 %1938
  %1940 = vrot.lane.b32.xlu0 %v1266, 96
  %v1941 = vpop.permute.xlu0 %1940
  %1942 = vrot.lane.b32.xlu0 %v1269, 96
  %v1943 = vpop.permute.xlu0 %1942
  %1944 = vrot.lane.b32.xlu0 %v1274, 96
  %v1945 = vpop.permute.xlu0 %1944
  %1946 = vrot.lane.b32.xlu0 %v1277, 96
  %v1947 = vpop.permute.xlu0 %1946
  %1948 = vrot.lane.b32.xlu0 %v1282, 96
  %v1949 = vpop.permute.xlu0 %1948
  %1950 = vrot.lane.b32.xlu0 %v1285, 96
  %v1951 = vpop.permute.xlu0 %1950
  %1952 = vrot.lane.b32.xlu0 %v1290, 96
  %v1953 = vpop.permute.xlu0 %1952
  %1954 = vrot.lane.b32.xlu0 %v1293, 96
  %v1955 = vpop.permute.xlu0 %1954
  %1956 = vrot.lane.b32.xlu0 %v1298, 96
  %v1957 = vpop.permute.xlu0 %1956
  %1958 = vrot.lane.b32.xlu0 %v1301, 96
  %v1959 = vpop.permute.xlu0 %1958
  %1960 = vrot.lane.b32.xlu0 %v1306, 96
  %v1961 = vpop.permute.xlu0 %1960
  %1962 = vrot.lane.b32.xlu0 %v1309, 96
  %v1963 = vpop.permute.xlu0 %1962
  %1964 = vrot.lane.b32.xlu0 %v1314, 96
  %v1965 = vpop.permute.xlu0 %1964
  %1966 = vrot.lane.b32.xlu0 %v1317, 96
  %v1967 = vpop.permute.xlu0 %1966
  %1968 = vrot.lane.b32.xlu0 %v1322, 96
  %v1969 = vpop.permute.xlu0 %1968
  %1970 = vrot.lane.b32.xlu0 %v1325, 96
  %v1971 = vpop.permute.xlu0 %1970
  %1972 = vrot.lane.b32.xlu0 %v1330, 96
  %v1973 = vpop.permute.xlu0 %1972
  %1974 = vrot.lane.b32.xlu0 %v1333, 96
  %v1975 = vpop.permute.xlu0 %1974
  %1976 = vrot.lane.b32.xlu0 %v1338, 96
  %v1977 = vpop.permute.xlu0 %1976
  %1978 = vrot.lane.b32.xlu0 %v1341, 96
  %v1979 = vpop.permute.xlu0 %1978
  %1980 = vrot.lane.b32.xlu0 %v1346, 96
  %v1981 = vpop.permute.xlu0 %1980
  %1982 = vrot.lane.b32.xlu0 %v1349, 96
  %v1983 = vpop.permute.xlu0 %1982
  %1984 = vrot.lane.b32.xlu0 %v1354, 96
  %v1985 = vpop.permute.xlu0 %1984
  %1986 = vrot.lane.b32.xlu0 %v1357, 96
  %v1987 = vpop.permute.xlu0 %1986
  %1988 = vrot.lane.b32.xlu0 %v1362, 96
  %v1989 = vpop.permute.xlu0 %1988
  %1990 = vrot.lane.b32.xlu0 %v1365, 96
  %v1991 = vpop.permute.xlu0 %1990
  %1992 = vrot.lane.b32.xlu0 %v1370, 96
  %v1993 = vpop.permute.xlu0 %1992
  %1994 = vrot.lane.b32.xlu0 %v1373, 96
  %v1995 = vpop.permute.xlu0 %1994
  %1996 = vrot.lane.b32.xlu0 %v1378, 96
  %v1997 = vpop.permute.xlu0 %1996
  %1998 = vrot.lane.b32.xlu0 %v1381, 96
  %v1999 = vpop.permute.xlu0 %1998
  %2000 = vrot.lane.b32.xlu0 %v1386, 96
  %v2001 = vpop.permute.xlu0 %2000
  %2002 = vrot.lane.b32.xlu0 %v1389, 96
  %v2003 = vpop.permute.xlu0 %2002
  %2004 = vrot.lane.b32.xlu0 %v1394, 96
  %v2005 = vpop.permute.xlu0 %2004
  %2006 = vrot.lane.b32.xlu0 %v1397, 96
  %v2007 = vpop.permute.xlu0 %2006
  %2008 = vrot.lane.b32.xlu0 %v1402, 96
  %v2009 = vpop.permute.xlu0 %2008
  %2010 = vrot.lane.b32.xlu0 %v1405, 96
  %v2011 = vpop.permute.xlu0 %2010
  %2012 = vrot.lane.b32.xlu0 %v1410, 96
  %v2013 = vpop.permute.xlu0 %2012
  %2014 = vrot.lane.b32.xlu0 %v1413, 96
  %v2015 = vpop.permute.xlu0 %2014
  %2016 = vrot.lane.b32.xlu0 %v1418, 96
  %v2017 = vpop.permute.xlu0 %2016
  %2018 = vrot.lane.b32.xlu0 %v1421, 96
  %v2019 = vpop.permute.xlu0 %2018
  %2020 = vrot.lane.b32.xlu0 %v1426, 96
  %v2021 = vpop.permute.xlu0 %2020
  %2022 = vrot.lane.b32.xlu0 %v1429, 96
  %v2023 = vpop.permute.xlu0 %2022
  %2024 = vrot.lane.b32.xlu0 %v1434, 96
  %v2025 = vpop.permute.xlu0 %2024
  %2026 = vrot.lane.b32.xlu0 %v1437, 96
  %v2027 = vpop.permute.xlu0 %2026
  %2028 = vrot.lane.b32.xlu0 %v1442, 96
  %v2029 = vpop.permute.xlu0 %2028
  %2030 = vrot.lane.b32.xlu0 %v1445, 96
  %v2031 = vpop.permute.xlu0 %2030
  %2032 = vrot.lane.b32.xlu0 %v1450, 96
  %v2033 = vpop.permute.xlu0 %2032
  %2034 = vrot.lane.b32.xlu0 %v1453, 96
  %v2035 = vpop.permute.xlu0 %2034
  %2036 = vrot.lane.b32.xlu0 %v1458, 96
  %v2037 = vpop.permute.xlu0 %2036
  %2038 = vrot.lane.b32.xlu0 %v1461, 96
  %v2039 = vpop.permute.xlu0 %2038
  %2040 = vrot.lane.b32.xlu0 %v1466, 96
  %v2041 = vpop.permute.xlu0 %2040
  %2042 = vrot.lane.b32.xlu0 %v1469, 96
  %v2043 = vpop.permute.xlu0 %2042
  %2044 = vrot.lane.b32.xlu0 %v1474, 96
  %v2045 = vpop.permute.xlu0 %2044
  %2046 = vrot.lane.b32.xlu0 %v1477, 96
  %v2047 = vpop.permute.xlu0 %2046
  %2048 = vrot.lane.b32.xlu0 %v1482, 96
  %v2049 = vpop.permute.xlu0 %2048
  %2050 = vrot.lane.b32.xlu0 %v1485, 96
  %v2051 = vpop.permute.xlu0 %2050
  %2052 = vrot.lane.b32.xlu0 %v1490, 96
  %v2053 = vpop.permute.xlu0 %2052
  %2054 = vrot.lane.b32.xlu0 %v1493, 96
  %v2055 = vpop.permute.xlu0 %2054
  %2056 = vrot.lane.b32.xlu0 %v1498, 96
  %v2057 = vpop.permute.xlu0 %2056
  %2058 = vrot.lane.b32.xlu0 %v1501, 96
  %v2059 = vpop.permute.xlu0 %2058
  %2060 = vrot.lane.b32.xlu0 %v1506, 96
  %v2061 = vpop.permute.xlu0 %2060
  %2062 = vrot.lane.b32.xlu0 %v1509, 96
  %v2063 = vpop.permute.xlu0 %2062
  %2064 = vrot.lane.b32.xlu0 %v1514, 96
  %v2065 = vpop.permute.xlu0 %2064
  %2066 = vrot.lane.b32.xlu0 %v1517, 96
  %v2067 = vpop.permute.xlu0 %2066
  %2068 = vrot.lane.b32.xlu0 %v1522, 96
  %v2069 = vpop.permute.xlu0 %2068
  %2070 = vrot.lane.b32.xlu0 %v1525, 96
  %v2071 = vpop.permute.xlu0 %2070
  %2072 = vrot.lane.b32.xlu0 %v1530, 96
  %v2073 = vpop.permute.xlu0 %2072
  %2074 = vrot.lane.b32.xlu0 %v1533, 96
  %v2075 = vpop.permute.xlu0 %2074
  %2076 = vrot.lane.b32.xlu0 %v1538, 96
  %v2077 = vpop.permute.xlu0 %2076
  %2078 = vrot.lane.b32.xlu0 %v1541, 96
  %v2079 = vpop.permute.xlu0 %2078
  %2080 = vrot.lane.b32.xlu0 %v1546, 96
  %v2081 = vpop.permute.xlu0 %2080
  %2082 = vrot.lane.b32.xlu0 %v1549, 96
  %v2083 = vpop.permute.xlu0 %2082
  %2084 = vrot.lane.b32.xlu0 %v1554, 96
  %v2085 = vpop.permute.xlu0 %2084
  %2086 = vrot.lane.b32.xlu0 %v1557, 96
  %v2087 = vpop.permute.xlu0 %2086
  %2088 = vrot.lane.b32.xlu0 %v1562, 96
  %v2089 = vpop.permute.xlu0 %2088
  %2090 = vrot.lane.b32.xlu0 %v1565, 96
  %v2091 = vpop.permute.xlu0 %2090
  %2092 = vrot.lane.b32.xlu0 %v1570, 96
  %v2093 = vpop.permute.xlu0 %2092
  %2094 = vrot.lane.b32.xlu0 %v1573, 96
  %v2095 = vpop.permute.xlu0 %2094
  %2096 = vrot.lane.b32.xlu0 %v1578, 96
  %v2097 = vpop.permute.xlu0 %2096
  %2098 = vrot.lane.b32.xlu0 %v1581, 96
  %v2099 = vpop.permute.xlu0 %2098
  %2100 = vrot.lane.b32.xlu0 %v1586, 96
  %v2101 = vpop.permute.xlu0 %2100
  %2102 = vrot.lane.b32.xlu0 %v1589, 96
  %v2103 = vpop.permute.xlu0 %2102
  %2104 = vrot.lane.b32.xlu0 %v1594, 96
  %v2105 = vpop.permute.xlu0 %2104
  %v2275 = vmax.f32 %v922, %v1769
  %v2276 = vmax.f32 %v925, %v1771
  %v2277 = vmax.f32 %v930, %v1773
  %v2278 = vmax.f32 %v933, %v1775
  %v2279 = vmax.f32 %v938, %v1777
  %v2280 = vmax.f32 %v941, %v1779
  %v2281 = vmax.f32 %v946, %v1781
  %v2282 = vmax.f32 %v949, %v1783
  %v2283 = vmax.f32 %v954, %v1785
  %v2284 = vmax.f32 %v957, %v1787
  %v2285 = vmax.f32 %v962, %v1789
  %v2286 = vmax.f32 %v965, %v1791
  %v2287 = vmax.f32 %v970, %v1793
  %v2288 = vmax.f32 %v973, %v1795
  %v2289 = vmax.f32 %v978, %v1797
  %v2290 = vmax.f32 %v981, %v1799
  %v2291 = vmax.f32 %v986, %v1801
  %v2292 = vmax.f32 %v989, %v1803
  %v2293 = vmax.f32 %v994, %v1805
  %v2294 = vmax.f32 %v997, %v1807
  %v2295 = vmax.f32 %v1002, %v1809
  %v2296 = vmax.f32 %v1005, %v1811
  %v2297 = vmax.f32 %v1010, %v1813
  %v2298 = vmax.f32 %v1013, %v1815
  %v2299 = vmax.f32 %v1018, %v1817
  %v2300 = vmax.f32 %v1021, %v1819
  %v2301 = vmax.f32 %v1026, %v1821
  %v2302 = vmax.f32 %v1029, %v1823
  %v2303 = vmax.f32 %v1034, %v1825
  %v2304 = vmax.f32 %v1037, %v1827
  %v2305 = vmax.f32 %v1042, %v1829
  %v2306 = vmax.f32 %v1045, %v1831
  %v2307 = vmax.f32 %v1050, %v1833
  %v2308 = vmax.f32 %v1053, %v1835
  %v2309 = vmax.f32 %v1058, %v1837
  %v2310 = vmax.f32 %v1061, %v1839
  %v2311 = vmax.f32 %v1066, %v1841
  %v2312 = vmax.f32 %v1069, %v1843
  %v2313 = vmax.f32 %v1074, %v1845
  %v2314 = vmax.f32 %v1077, %v1847
  %v2315 = vmax.f32 %v1082, %v1849
  %v2316 = vmax.f32 %v1085, %v1851
  %v2317 = vmax.f32 %v1090, %v1853
  %v2318 = vmax.f32 %v1093, %v1855
  %v2319 = vmax.f32 %v1098, %v1857
  %v2320 = vmax.f32 %v1101, %v1859
  %v2321 = vmax.f32 %v1106, %v1861
  %v2322 = vmax.f32 %v1109, %v1863
  %v2323 = vmax.f32 %v1114, %v1865
  %v2324 = vmax.f32 %v1117, %v1867
  %v2325 = vmax.f32 %v1122, %v1869
  %v2326 = vmax.f32 %v1125, %v1871
  %v2327 = vmax.f32 %v1130, %v1873
  %v2328 = vmax.f32 %v1133, %v1875
  %v2329 = vmax.f32 %v1138, %v1877
  %v2330 = vmax.f32 %v1141, %v1879
  %v2331 = vmax.f32 %v1146, %v1881
  %v2332 = vmax.f32 %v1149, %v1883
  %v2333 = vmax.f32 %v1154, %v1885
  %v2334 = vmax.f32 %v1157, %v1887
  %v2335 = vmax.f32 %v1162, %v1889
  %v2336 = vmax.f32 %v1165, %v1891
  %v2337 = vmax.f32 %v1170, %v1893
  %v2338 = vmax.f32 %v1173, %v1895
  %v2339 = vmax.f32 %v1178, %v1897
  %v2340 = vmax.f32 %v1181, %v1899
  %v2341 = vmax.f32 %v1186, %v1901
  %v2342 = vmax.f32 %v1189, %v1903
  %v2343 = vmax.f32 %v1194, %v1905
  %v2344 = vmax.f32 %v1197, %v1907
  %v2345 = vmax.f32 %v1202, %v1909
  %v2346 = vmax.f32 %v1205, %v1911
  %v2347 = vmax.f32 %v1210, %v1913
  %v2348 = vmax.f32 %v1213, %v1915
  %v2349 = vmax.f32 %v1218, %v1917
  %v2350 = vmax.f32 %v1221, %v1919
  %v2351 = vmax.f32 %v1226, %v1921
  %v2352 = vmax.f32 %v1229, %v1923
  %v2353 = vmax.f32 %v1234, %v1925
  %v2354 = vmax.f32 %v1237, %v1927
  %v2355 = vmax.f32 %v1242, %v1929
  %v2356 = vmax.f32 %v1245, %v1931
  %v2357 = vmax.f32 %v1250, %v1933
  %v2358 = vmax.f32 %v1253, %v1935
  %v2359 = vmax.f32 %v1258, %v1937
  %v2360 = vmax.f32 %v1261, %v1939
  %v2361 = vmax.f32 %v1266, %v1941
  %v2362 = vmax.f32 %v1269, %v1943
  %v2363 = vmax.f32 %v1274, %v1945
  %v2364 = vmax.f32 %v1277, %v1947
  %v2365 = vmax.f32 %v1282, %v1949
  %v2366 = vmax.f32 %v1285, %v1951
  %v2367 = vmax.f32 %v1290, %v1953
  %v2368 = vmax.f32 %v1293, %v1955
  %v2369 = vmax.f32 %v1298, %v1957
  %v2370 = vmax.f32 %v1301, %v1959
  %v2371 = vmax.f32 %v1306, %v1961
  %v2372 = vmax.f32 %v1309, %v1963
  %v2373 = vmax.f32 %v1314, %v1965
  %v2374 = vmax.f32 %v1317, %v1967
  %v2375 = vmax.f32 %v1322, %v1969
  %v2376 = vmax.f32 %v1325, %v1971
  %v2377 = vmax.f32 %v1330, %v1973
  %v2378 = vmax.f32 %v1333, %v1975
  %v2379 = vmax.f32 %v1338, %v1977
  %v2380 = vmax.f32 %v1341, %v1979
  %v2381 = vmax.f32 %v1346, %v1981
  %v2382 = vmax.f32 %v1349, %v1983
  %v2383 = vmax.f32 %v1354, %v1985
  %v2384 = vmax.f32 %v1357, %v1987
  %v2385 = vmax.f32 %v1362, %v1989
  %v2386 = vmax.f32 %v1365, %v1991
  %v2387 = vmax.f32 %v1370, %v1993
  %v2388 = vmax.f32 %v1373, %v1995
  %v2389 = vmax.f32 %v1378, %v1997
  %v2390 = vmax.f32 %v1381, %v1999
  %v2391 = vmax.f32 %v1386, %v2001
  %v2392 = vmax.f32 %v1389, %v2003
  %v2393 = vmax.f32 %v1394, %v2005
  %v2394 = vmax.f32 %v1397, %v2007
  %v2395 = vmax.f32 %v1402, %v2009
  %v2396 = vmax.f32 %v1405, %v2011
  %v2397 = vmax.f32 %v1410, %v2013
  %v2398 = vmax.f32 %v1413, %v2015
  %v2399 = vmax.f32 %v1418, %v2017
  %v2400 = vmax.f32 %v1421, %v2019
  %v2401 = vmax.f32 %v1426, %v2021
  %v2402 = vmax.f32 %v1429, %v2023
  %v2403 = vmax.f32 %v1434, %v2025
  %v2404 = vmax.f32 %v1437, %v2027
  %v2405 = vmax.f32 %v1442, %v2029
  %v2406 = vmax.f32 %v1445, %v2031
  %v2407 = vmax.f32 %v1450, %v2033
  %v2408 = vmax.f32 %v1453, %v2035
  %v2409 = vmax.f32 %v1458, %v2037
  %v2410 = vmax.f32 %v1461, %v2039
  %v2411 = vmax.f32 %v1466, %v2041
  %v2412 = vmax.f32 %v1469, %v2043
  %v2413 = vmax.f32 %v1474, %v2045
  %v2414 = vmax.f32 %v1477, %v2047
  %v2415 = vmax.f32 %v1482, %v2049
  %v2416 = vmax.f32 %v1485, %v2051
  %v2417 = vmax.f32 %v1490, %v2053
  %v2418 = vmax.f32 %v1493, %v2055
  %v2419 = vmax.f32 %v1498, %v2057
  %v2420 = vmax.f32 %v1501, %v2059
  %v2421 = vmax.f32 %v1506, %v2061
  %v2422 = vmax.f32 %v1509, %v2063
  %v2423 = vmax.f32 %v1514, %v2065
  %v2424 = vmax.f32 %v1517, %v2067
  %v2425 = vmax.f32 %v1522, %v2069
  %v2426 = vmax.f32 %v1525, %v2071
  %v2427 = vmax.f32 %v1530, %v2073
  %v2428 = vmax.f32 %v1533, %v2075
  %v2429 = vmax.f32 %v1538, %v2077
  %v2430 = vmax.f32 %v1541, %v2079
  %v2431 = vmax.f32 %v1546, %v2081
  %v2432 = vmax.f32 %v1549, %v2083
  %v2433 = vmax.f32 %v1554, %v2085
  %v2434 = vmax.f32 %v1557, %v2087
  %v2435 = vmax.f32 %v1562, %v2089
  %v2436 = vmax.f32 %v1565, %v2091
  %v2437 = vmax.f32 %v1570, %v2093
  %v2438 = vmax.f32 %v1573, %v2095
  %v2439 = vmax.f32 %v1578, %v2097
  %v2440 = vmax.f32 %v1581, %v2099
  %v2441 = vmax.f32 %v1586, %v2101
  %v2442 = vmax.f32 %v1589, %v2103
  %v2443 = vmax.f32 %v1594, %v2105
  %2613 = vrot.lane.b32.xlu0 %v2275, 64
  %v2614 = vpop.permute.xlu0 %2613
  %2615 = vrot.lane.b32.xlu0 %v2276, 64
  %v2616 = vpop.permute.xlu0 %2615
  %2617 = vrot.lane.b32.xlu0 %v2277, 64
  %v2618 = vpop.permute.xlu0 %2617
  %2619 = vrot.lane.b32.xlu0 %v2278, 64
  %v2620 = vpop.permute.xlu0 %2619
  %2621 = vrot.lane.b32.xlu0 %v2279, 64
  %v2622 = vpop.permute.xlu0 %2621
  %2623 = vrot.lane.b32.xlu0 %v2280, 64
  %v2624 = vpop.permute.xlu0 %2623
  %2625 = vrot.lane.b32.xlu0 %v2281, 64
  %v2626 = vpop.permute.xlu0 %2625
  %2627 = vrot.lane.b32.xlu0 %v2282, 64
  %v2628 = vpop.permute.xlu0 %2627
  %2629 = vrot.lane.b32.xlu0 %v2283, 64
  %v2630 = vpop.permute.xlu0 %2629
  %2631 = vrot.lane.b32.xlu0 %v2284, 64
  %v2632 = vpop.permute.xlu0 %2631
  %2633 = vrot.lane.b32.xlu0 %v2285, 64
  %v2634 = vpop.permute.xlu0 %2633
  %2635 = vrot.lane.b32.xlu0 %v2286, 64
  %v2636 = vpop.permute.xlu0 %2635
  %2637 = vrot.lane.b32.xlu0 %v2287, 64
  %v2638 = vpop.permute.xlu0 %2637
  %2639 = vrot.lane.b32.xlu0 %v2288, 64
  %v2640 = vpop.permute.xlu0 %2639
  %2641 = vrot.lane.b32.xlu0 %v2289, 64
  %v2642 = vpop.permute.xlu0 %2641
  %2643 = vrot.lane.b32.xlu0 %v2290, 64
  %v2644 = vpop.permute.xlu0 %2643
  %2645 = vrot.lane.b32.xlu0 %v2291, 64
  %v2646 = vpop.permute.xlu0 %2645
  %2647 = vrot.lane.b32.xlu0 %v2292, 64
  %v2648 = vpop.permute.xlu0 %2647
  %2649 = vrot.lane.b32.xlu0 %v2293, 64
  %v2650 = vpop.permute.xlu0 %2649
  %2651 = vrot.lane.b32.xlu0 %v2294, 64
  %v2652 = vpop.permute.xlu0 %2651
  %2653 = vrot.lane.b32.xlu0 %v2295, 64
  %v2654 = vpop.permute.xlu0 %2653
  %2655 = vrot.lane.b32.xlu0 %v2296, 64
  %v2656 = vpop.permute.xlu0 %2655
  %2657 = vrot.lane.b32.xlu0 %v2297, 64
  %v2658 = vpop.permute.xlu0 %2657
  %2659 = vrot.lane.b32.xlu0 %v2298, 64
  %v2660 = vpop.permute.xlu0 %2659
  %2661 = vrot.lane.b32.xlu0 %v2299, 64
  %v2662 = vpop.permute.xlu0 %2661
  %2663 = vrot.lane.b32.xlu0 %v2300, 64
  %v2664 = vpop.permute.xlu0 %2663
  %2665 = vrot.lane.b32.xlu0 %v2301, 64
  %v2666 = vpop.permute.xlu0 %2665
  %2667 = vrot.lane.b32.xlu0 %v2302, 64
  %v2668 = vpop.permute.xlu0 %2667
  %2669 = vrot.lane.b32.xlu0 %v2303, 64
  %v2670 = vpop.permute.xlu0 %2669
  %2671 = vrot.lane.b32.xlu0 %v2304, 64
  %v2672 = vpop.permute.xlu0 %2671
  %2673 = vrot.lane.b32.xlu0 %v2305, 64
  %v2674 = vpop.permute.xlu0 %2673
  %2675 = vrot.lane.b32.xlu0 %v2306, 64
  %v2676 = vpop.permute.xlu0 %2675
  %2677 = vrot.lane.b32.xlu0 %v2307, 64
  %v2678 = vpop.permute.xlu0 %2677
  %2679 = vrot.lane.b32.xlu0 %v2308, 64
  %v2680 = vpop.permute.xlu0 %2679
  %2681 = vrot.lane.b32.xlu0 %v2309, 64
  %v2682 = vpop.permute.xlu0 %2681
  %2683 = vrot.lane.b32.xlu0 %v2310, 64
  %v2684 = vpop.permute.xlu0 %2683
  %2685 = vrot.lane.b32.xlu0 %v2311, 64
  %v2686 = vpop.permute.xlu0 %2685
  %2687 = vrot.lane.b32.xlu0 %v2312, 64
  %v2688 = vpop.permute.xlu0 %2687
  %2689 = vrot.lane.b32.xlu0 %v2313, 64
  %v2690 = vpop.permute.xlu0 %2689
  %2691 = vrot.lane.b32.xlu0 %v2314, 64
  %v2692 = vpop.permute.xlu0 %2691
  %2693 = vrot.lane.b32.xlu0 %v2315, 64
  %v2694 = vpop.permute.xlu0 %2693
  %2695 = vrot.lane.b32.xlu0 %v2316, 64
  %v2696 = vpop.permute.xlu0 %2695
  %2697 = vrot.lane.b32.xlu0 %v2317, 64
  %v2698 = vpop.permute.xlu0 %2697
  %2699 = vrot.lane.b32.xlu0 %v2318, 64
  %v2700 = vpop.permute.xlu0 %2699
  %2701 = vrot.lane.b32.xlu0 %v2319, 64
  %v2702 = vpop.permute.xlu0 %2701
  %2703 = vrot.lane.b32.xlu0 %v2320, 64
  %v2704 = vpop.permute.xlu0 %2703
  %2705 = vrot.lane.b32.xlu0 %v2321, 64
  %v2706 = vpop.permute.xlu0 %2705
  %2707 = vrot.lane.b32.xlu0 %v2322, 64
  %v2708 = vpop.permute.xlu0 %2707
  %2709 = vrot.lane.b32.xlu0 %v2323, 64
  %v2710 = vpop.permute.xlu0 %2709
  %2711 = vrot.lane.b32.xlu0 %v2324, 64
  %v2712 = vpop.permute.xlu0 %2711
  %2713 = vrot.lane.b32.xlu0 %v2325, 64
  %v2714 = vpop.permute.xlu0 %2713
  %2715 = vrot.lane.b32.xlu0 %v2326, 64
  %v2716 = vpop.permute.xlu0 %2715
  %2717 = vrot.lane.b32.xlu0 %v2327, 64
  %v2718 = vpop.permute.xlu0 %2717
  %2719 = vrot.lane.b32.xlu0 %v2328, 64
  %v2720 = vpop.permute.xlu0 %2719
  %2721 = vrot.lane.b32.xlu0 %v2329, 64
  %v2722 = vpop.permute.xlu0 %2721
  %2723 = vrot.lane.b32.xlu0 %v2330, 64
  %v2724 = vpop.permute.xlu0 %2723
  %2725 = vrot.lane.b32.xlu0 %v2331, 64
  %v2726 = vpop.permute.xlu0 %2725
  %2727 = vrot.lane.b32.xlu0 %v2332, 64
  %v2728 = vpop.permute.xlu0 %2727
  %2729 = vrot.lane.b32.xlu0 %v2333, 64
  %v2730 = vpop.permute.xlu0 %2729
  %2731 = vrot.lane.b32.xlu0 %v2334, 64
  %v2732 = vpop.permute.xlu0 %2731
  %2733 = vrot.lane.b32.xlu0 %v2335, 64
  %v2734 = vpop.permute.xlu0 %2733
  %2735 = vrot.lane.b32.xlu0 %v2336, 64
  %v2736 = vpop.permute.xlu0 %2735
  %2737 = vrot.lane.b32.xlu0 %v2337, 64
  %v2738 = vpop.permute.xlu0 %2737
  %2739 = vrot.lane.b32.xlu0 %v2338, 64
  %v2740 = vpop.permute.xlu0 %2739
  %2741 = vrot.lane.b32.xlu0 %v2339, 64
  %v2742 = vpop.permute.xlu0 %2741
  %2743 = vrot.lane.b32.xlu0 %v2340, 64
  %v2744 = vpop.permute.xlu0 %2743
  %2745 = vrot.lane.b32.xlu0 %v2341, 64
  %v2746 = vpop.permute.xlu0 %2745
  %2747 = vrot.lane.b32.xlu0 %v2342, 64
  %v2748 = vpop.permute.xlu0 %2747
  %2749 = vrot.lane.b32.xlu0 %v2343, 64
  %v2750 = vpop.permute.xlu0 %2749
  %2751 = vrot.lane.b32.xlu0 %v2344, 64
  %v2752 = vpop.permute.xlu0 %2751
  %2753 = vrot.lane.b32.xlu0 %v2345, 64
  %v2754 = vpop.permute.xlu0 %2753
  %2755 = vrot.lane.b32.xlu0 %v2346, 64
  %v2756 = vpop.permute.xlu0 %2755
  %2757 = vrot.lane.b32.xlu0 %v2347, 64
  %v2758 = vpop.permute.xlu0 %2757
  %2759 = vrot.lane.b32.xlu0 %v2348, 64
  %v2760 = vpop.permute.xlu0 %2759
  %2761 = vrot.lane.b32.xlu0 %v2349, 64
  %v2762 = vpop.permute.xlu0 %2761
  %2763 = vrot.lane.b32.xlu0 %v2350, 64
  %v2764 = vpop.permute.xlu0 %2763
  %2765 = vrot.lane.b32.xlu0 %v2351, 64
  %v2766 = vpop.permute.xlu0 %2765
  %2767 = vrot.lane.b32.xlu0 %v2352, 64
  %v2768 = vpop.permute.xlu0 %2767
  %2769 = vrot.lane.b32.xlu0 %v2353, 64
  %v2770 = vpop.permute.xlu0 %2769
  %2771 = vrot.lane.b32.xlu0 %v2354, 64
  %v2772 = vpop.permute.xlu0 %2771
  %2773 = vrot.lane.b32.xlu0 %v2355, 64
  %v2774 = vpop.permute.xlu0 %2773
  %2775 = vrot.lane.b32.xlu0 %v2356, 64
  %v2776 = vpop.permute.xlu0 %2775
  %2777 = vrot.lane.b32.xlu0 %v2357, 64
  %v2778 = vpop.permute.xlu0 %2777
  %2779 = vrot.lane.b32.xlu0 %v2358, 64
  %v2780 = vpop.permute.xlu0 %2779
  %2781 = vrot.lane.b32.xlu0 %v2359, 64
  %v2782 = vpop.permute.xlu0 %2781
  %2783 = vrot.lane.b32.xlu0 %v2360, 64
  %v2784 = vpop.permute.xlu0 %2783
  %2785 = vrot.lane.b32.xlu0 %v2361, 64
  %v2786 = vpop.permute.xlu0 %2785
  %2787 = vrot.lane.b32.xlu0 %v2362, 64
  %v2788 = vpop.permute.xlu0 %2787
  %2789 = vrot.lane.b32.xlu0 %v2363, 64
  %v2790 = vpop.permute.xlu0 %2789
  %2791 = vrot.lane.b32.xlu0 %v2364, 64
  %v2792 = vpop.permute.xlu0 %2791
  %2793 = vrot.lane.b32.xlu0 %v2365, 64
  %v2794 = vpop.permute.xlu0 %2793
  %2795 = vrot.lane.b32.xlu0 %v2366, 64
  %v2796 = vpop.permute.xlu0 %2795
  %2797 = vrot.lane.b32.xlu0 %v2367, 64
  %v2798 = vpop.permute.xlu0 %2797
  %2799 = vrot.lane.b32.xlu0 %v2368, 64
  %v2800 = vpop.permute.xlu0 %2799
  %2801 = vrot.lane.b32.xlu0 %v2369, 64
  %v2802 = vpop.permute.xlu0 %2801
  %2803 = vrot.lane.b32.xlu0 %v2370, 64
  %v2804 = vpop.permute.xlu0 %2803
  %2805 = vrot.lane.b32.xlu0 %v2371, 64
  %v2806 = vpop.permute.xlu0 %2805
  %2807 = vrot.lane.b32.xlu0 %v2372, 64
  %v2808 = vpop.permute.xlu0 %2807
  %2809 = vrot.lane.b32.xlu0 %v2373, 64
  %v2810 = vpop.permute.xlu0 %2809
  %2811 = vrot.lane.b32.xlu0 %v2374, 64
  %v2812 = vpop.permute.xlu0 %2811
  %2813 = vrot.lane.b32.xlu0 %v2375, 64
  %v2814 = vpop.permute.xlu0 %2813
  %2815 = vrot.lane.b32.xlu0 %v2376, 64
  %v2816 = vpop.permute.xlu0 %2815
  %2817 = vrot.lane.b32.xlu0 %v2377, 64
  %v2818 = vpop.permute.xlu0 %2817
  %2819 = vrot.lane.b32.xlu0 %v2378, 64
  %v2820 = vpop.permute.xlu0 %2819
  %2821 = vrot.lane.b32.xlu0 %v2379, 64
  %v2822 = vpop.permute.xlu0 %2821
  %2823 = vrot.lane.b32.xlu0 %v2380, 64
  %v2824 = vpop.permute.xlu0 %2823
  %2825 = vrot.lane.b32.xlu0 %v2381, 64
  %v2826 = vpop.permute.xlu0 %2825
  %2827 = vrot.lane.b32.xlu0 %v2382, 64
  %v2828 = vpop.permute.xlu0 %2827
  %2829 = vrot.lane.b32.xlu0 %v2383, 64
  %v2830 = vpop.permute.xlu0 %2829
  %2831 = vrot.lane.b32.xlu0 %v2384, 64
  %v2832 = vpop.permute.xlu0 %2831
  %2833 = vrot.lane.b32.xlu0 %v2385, 64
  %v2834 = vpop.permute.xlu0 %2833
  %2835 = vrot.lane.b32.xlu0 %v2386, 64
  %v2836 = vpop.permute.xlu0 %2835
  %2837 = vrot.lane.b32.xlu0 %v2387, 64
  %v2838 = vpop.permute.xlu0 %2837
  %2839 = vrot.lane.b32.xlu0 %v2388, 64
  %v2840 = vpop.permute.xlu0 %2839
  %2841 = vrot.lane.b32.xlu0 %v2389, 64
  %v2842 = vpop.permute.xlu0 %2841
  %2843 = vrot.lane.b32.xlu0 %v2390, 64
  %v2844 = vpop.permute.xlu0 %2843
  %2845 = vrot.lane.b32.xlu0 %v2391, 64
  %v2846 = vpop.permute.xlu0 %2845
  %2847 = vrot.lane.b32.xlu0 %v2392, 64
  %v2848 = vpop.permute.xlu0 %2847
  %2849 = vrot.lane.b32.xlu0 %v2393, 64
  %v2850 = vpop.permute.xlu0 %2849
  %2851 = vrot.lane.b32.xlu0 %v2394, 64
  %v2852 = vpop.permute.xlu0 %2851
  %2853 = vrot.lane.b32.xlu0 %v2395, 64
  %v2854 = vpop.permute.xlu0 %2853
  %2855 = vrot.lane.b32.xlu0 %v2396, 64
  %v2856 = vpop.permute.xlu0 %2855
  %2857 = vrot.lane.b32.xlu0 %v2397, 64
  %v2858 = vpop.permute.xlu0 %2857
  %2859 = vrot.lane.b32.xlu0 %v2398, 64
  %v2860 = vpop.permute.xlu0 %2859
  %2861 = vrot.lane.b32.xlu0 %v2399, 64
  %v2862 = vpop.permute.xlu0 %2861
  %2863 = vrot.lane.b32.xlu0 %v2400, 64
  %v2864 = vpop.permute.xlu0 %2863
  %2865 = vrot.lane.b32.xlu0 %v2401, 64
  %v2866 = vpop.permute.xlu0 %2865
  %2867 = vrot.lane.b32.xlu0 %v2402, 64
  %v2868 = vpop.permute.xlu0 %2867
  %2869 = vrot.lane.b32.xlu0 %v2403, 64
  %v2870 = vpop.permute.xlu0 %2869
  %2871 = vrot.lane.b32.xlu0 %v2404, 64
  %v2872 = vpop.permute.xlu0 %2871
  %2873 = vrot.lane.b32.xlu0 %v2405, 64
  %v2874 = vpop.permute.xlu0 %2873
  %2875 = vrot.lane.b32.xlu0 %v2406, 64
  %v2876 = vpop.permute.xlu0 %2875
  %2877 = vrot.lane.b32.xlu0 %v2407, 64
  %v2878 = vpop.permute.xlu0 %2877
  %2879 = vrot.lane.b32.xlu0 %v2408, 64
  %v2880 = vpop.permute.xlu0 %2879
  %2881 = vrot.lane.b32.xlu0 %v2409, 64
  %v2882 = vpop.permute.xlu0 %2881
  %2883 = vrot.lane.b32.xlu0 %v2410, 64
  %v2884 = vpop.permute.xlu0 %2883
  %2885 = vrot.lane.b32.xlu0 %v2411, 64
  %v2886 = vpop.permute.xlu0 %2885
  %2887 = vrot.lane.b32.xlu0 %v2412, 64
  %v2888 = vpop.permute.xlu0 %2887
  %2889 = vrot.lane.b32.xlu0 %v2413, 64
  %v2890 = vpop.permute.xlu0 %2889
  %2891 = vrot.lane.b32.xlu0 %v2414, 64
  %v2892 = vpop.permute.xlu0 %2891
  %2893 = vrot.lane.b32.xlu0 %v2415, 64
  %v2894 = vpop.permute.xlu0 %2893
  %2895 = vrot.lane.b32.xlu0 %v2416, 64
  %v2896 = vpop.permute.xlu0 %2895
  %2897 = vrot.lane.b32.xlu0 %v2417, 64
  %v2898 = vpop.permute.xlu0 %2897
  %2899 = vrot.lane.b32.xlu0 %v2418, 64
  %v2900 = vpop.permute.xlu0 %2899
  %2901 = vrot.lane.b32.xlu0 %v2419, 64
  %v2902 = vpop.permute.xlu0 %2901
  %2903 = vrot.lane.b32.xlu0 %v2420, 64
  %v2904 = vpop.permute.xlu0 %2903
  %2905 = vrot.lane.b32.xlu0 %v2421, 64
  %v2906 = vpop.permute.xlu0 %2905
  %2907 = vrot.lane.b32.xlu0 %v2422, 64
  %v2908 = vpop.permute.xlu0 %2907
  %2909 = vrot.lane.b32.xlu0 %v2423, 64
  %v2910 = vpop.permute.xlu0 %2909
  %2911 = vrot.lane.b32.xlu0 %v2424, 64
  %v2912 = vpop.permute.xlu0 %2911
  %2913 = vrot.lane.b32.xlu0 %v2425, 64
  %v2914 = vpop.permute.xlu0 %2913
  %2915 = vrot.lane.b32.xlu0 %v2426, 64
  %v2916 = vpop.permute.xlu0 %2915
  %2917 = vrot.lane.b32.xlu0 %v2427, 64
  %v2918 = vpop.permute.xlu0 %2917
  %2919 = vrot.lane.b32.xlu0 %v2428, 64
  %v2920 = vpop.permute.xlu0 %2919
  %2921 = vrot.lane.b32.xlu0 %v2429, 64
  %v2922 = vpop.permute.xlu0 %2921
  %2923 = vrot.lane.b32.xlu0 %v2430, 64
  %v2924 = vpop.permute.xlu0 %2923
  %2925 = vrot.lane.b32.xlu0 %v2431, 64
  %v2926 = vpop.permute.xlu0 %2925
  %2927 = vrot.lane.b32.xlu0 %v2432, 64
  %v2928 = vpop.permute.xlu0 %2927
  %2929 = vrot.lane.b32.xlu0 %v2433, 64
  %v2930 = vpop.permute.xlu0 %2929
  %2931 = vrot.lane.b32.xlu0 %v2434, 64
  %v2932 = vpop.permute.xlu0 %2931
  %2933 = vrot.lane.b32.xlu0 %v2435, 64
  %v2934 = vpop.permute.xlu0 %2933
  %2935 = vrot.lane.b32.xlu0 %v2436, 64
  %v2936 = vpop.permute.xlu0 %2935
  %2937 = vrot.lane.b32.xlu0 %v2437, 64
  %v2938 = vpop.permute.xlu0 %2937
  %2939 = vrot.lane.b32.xlu0 %v2438, 64
  %v2940 = vpop.permute.xlu0 %2939
  %2941 = vrot.lane.b32.xlu0 %v2439, 64
  %v2942 = vpop.permute.xlu0 %2941
  %2943 = vrot.lane.b32.xlu0 %v2440, 64
  %v2944 = vpop.permute.xlu0 %2943
  %2945 = vrot.lane.b32.xlu0 %v2441, 64
  %v2946 = vpop.permute.xlu0 %2945
  %2947 = vrot.lane.b32.xlu0 %v2442, 64
  %v2948 = vpop.permute.xlu0 %2947
  %2949 = vrot.lane.b32.xlu0 %v2443, 64
  %v2950 = vpop.permute.xlu0 %2949
  %v3120 = vmax.f32 %v2275, %v2614
  %v3121 = vmax.f32 %v2276, %v2616
  %v3122 = vmax.f32 %v2277, %v2618
  %v3123 = vmax.f32 %v2278, %v2620
  %v3124 = vmax.f32 %v2279, %v2622
  %v3125 = vmax.f32 %v2280, %v2624
  %v3126 = vmax.f32 %v2281, %v2626
  %v3127 = vmax.f32 %v2282, %v2628
  %v3128 = vmax.f32 %v2283, %v2630
  %v3129 = vmax.f32 %v2284, %v2632
  %v3130 = vmax.f32 %v2285, %v2634
  %v3131 = vmax.f32 %v2286, %v2636
  %v3132 = vmax.f32 %v2287, %v2638
  %v3133 = vmax.f32 %v2288, %v2640
  %v3134 = vmax.f32 %v2289, %v2642
  %v3135 = vmax.f32 %v2290, %v2644
  %v3136 = vmax.f32 %v2291, %v2646
  %v3137 = vmax.f32 %v2292, %v2648
  %v3138 = vmax.f32 %v2293, %v2650
  %v3139 = vmax.f32 %v2294, %v2652
  %v3140 = vmax.f32 %v2295, %v2654
  %v3141 = vmax.f32 %v2296, %v2656
  %v3142 = vmax.f32 %v2297, %v2658
  %v3143 = vmax.f32 %v2298, %v2660
  %v3144 = vmax.f32 %v2299, %v2662
  %v3145 = vmax.f32 %v2300, %v2664
  %v3146 = vmax.f32 %v2301, %v2666
  %v3147 = vmax.f32 %v2302, %v2668
  %v3148 = vmax.f32 %v2303, %v2670
  %v3149 = vmax.f32 %v2304, %v2672
  %v3150 = vmax.f32 %v2305, %v2674
  %v3151 = vmax.f32 %v2306, %v2676
  %v3152 = vmax.f32 %v2307, %v2678
  %v3153 = vmax.f32 %v2308, %v2680
  %v3154 = vmax.f32 %v2309, %v2682
  %v3155 = vmax.f32 %v2310, %v2684
  %v3156 = vmax.f32 %v2311, %v2686
  %v3157 = vmax.f32 %v2312, %v2688
  %v3158 = vmax.f32 %v2313, %v2690
  %v3159 = vmax.f32 %v2314, %v2692
  %v3160 = vmax.f32 %v2315, %v2694
  %v3161 = vmax.f32 %v2316, %v2696
  %v3162 = vmax.f32 %v2317, %v2698
  %v3163 = vmax.f32 %v2318, %v2700
  %v3164 = vmax.f32 %v2319, %v2702
  %v3165 = vmax.f32 %v2320, %v2704
  %v3166 = vmax.f32 %v2321, %v2706
  %v3167 = vmax.f32 %v2322, %v2708
  %v3168 = vmax.f32 %v2323, %v2710
  %v3169 = vmax.f32 %v2324, %v2712
  %v3170 = vmax.f32 %v2325, %v2714
  %v3171 = vmax.f32 %v2326, %v2716
  %v3172 = vmax.f32 %v2327, %v2718
  %v3173 = vmax.f32 %v2328, %v2720
  %v3174 = vmax.f32 %v2329, %v2722
  %v3175 = vmax.f32 %v2330, %v2724
  %v3176 = vmax.f32 %v2331, %v2726
  %v3177 = vmax.f32 %v2332, %v2728
  %v3178 = vmax.f32 %v2333, %v2730
  %v3179 = vmax.f32 %v2334, %v2732
  %v3180 = vmax.f32 %v2335, %v2734
  %v3181 = vmax.f32 %v2336, %v2736
  %v3182 = vmax.f32 %v2337, %v2738
  %v3183 = vmax.f32 %v2338, %v2740
  %v3184 = vmax.f32 %v2339, %v2742
  %v3185 = vmax.f32 %v2340, %v2744
  %v3186 = vmax.f32 %v2341, %v2746
  %v3187 = vmax.f32 %v2342, %v2748
  %v3188 = vmax.f32 %v2343, %v2750
  %v3189 = vmax.f32 %v2344, %v2752
  %v3190 = vmax.f32 %v2345, %v2754
  %v3191 = vmax.f32 %v2346, %v2756
  %v3192 = vmax.f32 %v2347, %v2758
  %v3193 = vmax.f32 %v2348, %v2760
  %v3194 = vmax.f32 %v2349, %v2762
  %v3195 = vmax.f32 %v2350, %v2764
  %v3196 = vmax.f32 %v2351, %v2766
  %v3197 = vmax.f32 %v2352, %v2768
  %v3198 = vmax.f32 %v2353, %v2770
  %v3199 = vmax.f32 %v2354, %v2772
  %v3200 = vmax.f32 %v2355, %v2774
  %v3201 = vmax.f32 %v2356, %v2776
  %v3202 = vmax.f32 %v2357, %v2778
  %v3203 = vmax.f32 %v2358, %v2780
  %v3204 = vmax.f32 %v2359, %v2782
  %v3205 = vmax.f32 %v2360, %v2784
  %v3206 = vmax.f32 %v2361, %v2786
  %v3207 = vmax.f32 %v2362, %v2788
  %v3208 = vmax.f32 %v2363, %v2790
  %v3209 = vmax.f32 %v2364, %v2792
  %v3210 = vmax.f32 %v2365, %v2794
  %v3211 = vmax.f32 %v2366, %v2796
  %v3212 = vmax.f32 %v2367, %v2798
  %v3213 = vmax.f32 %v2368, %v2800
  %v3214 = vmax.f32 %v2369, %v2802
  %v3215 = vmax.f32 %v2370, %v2804
  %v3216 = vmax.f32 %v2371, %v2806
  %v3217 = vmax.f32 %v2372, %v2808
  %v3218 = vmax.f32 %v2373, %v2810
  %v3219 = vmax.f32 %v2374, %v2812
  %v3220 = vmax.f32 %v2375, %v2814
  %v3221 = vmax.f32 %v2376, %v2816
  %v3222 = vmax.f32 %v2377, %v2818
  %v3223 = vmax.f32 %v2378, %v2820
  %v3224 = vmax.f32 %v2379, %v2822
  %v3225 = vmax.f32 %v2380, %v2824
  %v3226 = vmax.f32 %v2381, %v2826
  %v3227 = vmax.f32 %v2382, %v2828
  %v3228 = vmax.f32 %v2383, %v2830
  %v3229 = vmax.f32 %v2384, %v2832
  %v3230 = vmax.f32 %v2385, %v2834
  %v3231 = vmax.f32 %v2386, %v2836
  %v3232 = vmax.f32 %v2387, %v2838
  %v3233 = vmax.f32 %v2388, %v2840
  %v3234 = vmax.f32 %v2389, %v2842
  %v3235 = vmax.f32 %v2390, %v2844
  %v3236 = vmax.f32 %v2391, %v2846
  %v3237 = vmax.f32 %v2392, %v2848
  %v3238 = vmax.f32 %v2393, %v2850
  %v3239 = vmax.f32 %v2394, %v2852
  %v3240 = vmax.f32 %v2395, %v2854
  %v3241 = vmax.f32 %v2396, %v2856
  %v3242 = vmax.f32 %v2397, %v2858
  %v3243 = vmax.f32 %v2398, %v2860
  %v3244 = vmax.f32 %v2399, %v2862
  %v3245 = vmax.f32 %v2400, %v2864
  %v3246 = vmax.f32 %v2401, %v2866
  %v3247 = vmax.f32 %v2402, %v2868
  %v3248 = vmax.f32 %v2403, %v2870
  %v3249 = vmax.f32 %v2404, %v2872
  %v3250 = vmax.f32 %v2405, %v2874
  %v3251 = vmax.f32 %v2406, %v2876
  %v3252 = vmax.f32 %v2407, %v2878
  %v3253 = vmax.f32 %v2408, %v2880
  %v3254 = vmax.f32 %v2409, %v2882
  %v3255 = vmax.f32 %v2410, %v2884
  %v3256 = vmax.f32 %v2411, %v2886
  %v3257 = vmax.f32 %v2412, %v2888
  %v3258 = vmax.f32 %v2413, %v2890
  %v3259 = vmax.f32 %v2414, %v2892
  %v3260 = vmax.f32 %v2415, %v2894
  %v3261 = vmax.f32 %v2416, %v2896
  %v3262 = vmax.f32 %v2417, %v2898
  %v3263 = vmax.f32 %v2418, %v2900
  %v3264 = vmax.f32 %v2419, %v2902
  %v3265 = vmax.f32 %v2420, %v2904
  %v3266 = vmax.f32 %v2421, %v2906
  %v3267 = vmax.f32 %v2422, %v2908
  %v3268 = vmax.f32 %v2423, %v2910
  %v3269 = vmax.f32 %v2424, %v2912
  %v3270 = vmax.f32 %v2425, %v2914
  %v3271 = vmax.f32 %v2426, %v2916
  %v3272 = vmax.f32 %v2427, %v2918
  %v3273 = vmax.f32 %v2428, %v2920
  %v3274 = vmax.f32 %v2429, %v2922
  %v3275 = vmax.f32 %v2430, %v2924
  %v3276 = vmax.f32 %v2431, %v2926
  %v3277 = vmax.f32 %v2432, %v2928
  %v3278 = vmax.f32 %v2433, %v2930
  %v3279 = vmax.f32 %v2434, %v2932
  %v3280 = vmax.f32 %v2435, %v2934
  %v3281 = vmax.f32 %v2436, %v2936
  %v3282 = vmax.f32 %v2437, %v2938
  %v3283 = vmax.f32 %v2438, %v2940
  %v3284 = vmax.f32 %v2439, %v2942
  %v3285 = vmax.f32 %v2440, %v2944
  %v3286 = vmax.f32 %v2441, %v2946
  %v3287 = vmax.f32 %v2442, %v2948
  %v3288 = vmax.f32 %v2443, %v2950
  %v3289 = vld [vmem:[%s2] sm:$0x1]
  %v3291 = vlaneseq
  %v3292 = vshrl.u32 %v3291, 7
  %v3293 = vsub.s32 0, %v3292
  %v3294 = vrot.slane %v3289, %v3293
  %v3296 = vadd.f32 %v3120, %v3294
  %v3297 = vadd.f32 %v3121, %v3294
  %v3298 = vadd.f32 %v3122, %v3294
  %v3299 = vadd.f32 %v3123, %v3294
  %v3300 = vadd.f32 %v3124, %v3294
  %v3301 = vadd.f32 %v3125, %v3294
  %v3302 = vadd.f32 %v3126, %v3294
  %v3303 = vadd.f32 %v3127, %v3294
  %v3304 = vadd.f32 %v3128, %v3294
  %v3305 = vadd.f32 %v3129, %v3294
  %v3306 = vadd.f32 %v3130, %v3294
  %v3307 = vadd.f32 %v3131, %v3294
  %v3308 = vadd.f32 %v3132, %v3294
  %v3309 = vadd.f32 %v3133, %v3294
  %v3310 = vadd.f32 %v3134, %v3294
  %v3311 = vadd.f32 %v3135, %v3294
  %v3312 = vadd.f32 %v3136, %v3294
  %v3313 = vadd.f32 %v3137, %v3294
  %v3314 = vadd.f32 %v3138, %v3294
  %v3315 = vadd.f32 %v3139, %v3294
  %v3316 = vadd.f32 %v3140, %v3294
  %v3317 = vadd.f32 %v3141, %v3294
  %v3318 = vadd.f32 %v3142, %v3294
  %v3319 = vadd.f32 %v3143, %v3294
  %v3320 = vadd.f32 %v3144, %v3294
  %v3321 = vadd.f32 %v3145, %v3294
  %v3322 = vadd.f32 %v3146, %v3294
  %v3323 = vadd.f32 %v3147, %v3294
  %v3324 = vadd.f32 %v3148, %v3294
  %v3325 = vadd.f32 %v3149, %v3294
  %v3326 = vadd.f32 %v3150, %v3294
  %v3327 = vadd.f32 %v3151, %v3294
  %v3328 = vadd.f32 %v3152, %v3294
  %v3329 = vadd.f32 %v3153, %v3294
  %v3330 = vadd.f32 %v3154, %v3294
  %v3331 = vadd.f32 %v3155, %v3294
  %v3332 = vadd.f32 %v3156, %v3294
  %v3333 = vadd.f32 %v3157, %v3294
  %v3334 = vadd.f32 %v3158, %v3294
  %v3335 = vadd.f32 %v3159, %v3294
  %v3336 = vadd.f32 %v3160, %v3294
  %v3337 = vadd.f32 %v3161, %v3294
  %v3338 = vadd.f32 %v3162, %v3294
  %v3339 = vadd.f32 %v3163, %v3294
  %v3340 = vadd.f32 %v3164, %v3294
  %v3341 = vadd.f32 %v3165, %v3294
  %v3342 = vadd.f32 %v3166, %v3294
  %v3343 = vadd.f32 %v3167, %v3294
  %v3344 = vadd.f32 %v3168, %v3294
  %v3345 = vadd.f32 %v3169, %v3294
  %v3346 = vadd.f32 %v3170, %v3294
  %v3347 = vadd.f32 %v3171, %v3294
  %v3348 = vadd.f32 %v3172, %v3294
  %v3349 = vadd.f32 %v3173, %v3294
  %v3350 = vadd.f32 %v3174, %v3294
  %v3351 = vadd.f32 %v3175, %v3294
  %v3352 = vadd.f32 %v3176, %v3294
  %v3353 = vadd.f32 %v3177, %v3294
  %v3354 = vadd.f32 %v3178, %v3294
  %v3355 = vadd.f32 %v3179, %v3294
  %v3356 = vadd.f32 %v3180, %v3294
  %v3357 = vadd.f32 %v3181, %v3294
  %v3358 = vadd.f32 %v3182, %v3294
  %v3359 = vadd.f32 %v3183, %v3294
  %v3360 = vadd.f32 %v3184, %v3294
  %v3361 = vadd.f32 %v3185, %v3294
  %v3362 = vadd.f32 %v3186, %v3294
  %v3363 = vadd.f32 %v3187, %v3294
  %v3364 = vadd.f32 %v3188, %v3294
  %v3365 = vadd.f32 %v3189, %v3294
  %v3366 = vadd.f32 %v3190, %v3294
  %v3367 = vadd.f32 %v3191, %v3294
  %v3368 = vadd.f32 %v3192, %v3294
  %v3369 = vadd.f32 %v3193, %v3294
  %v3370 = vadd.f32 %v3194, %v3294
  %v3371 = vadd.f32 %v3195, %v3294
  %v3372 = vadd.f32 %v3196, %v3294
  %v3373 = vadd.f32 %v3197, %v3294
  %v3374 = vadd.f32 %v3198, %v3294
  %v3375 = vadd.f32 %v3199, %v3294
  %v3376 = vadd.f32 %v3200, %v3294
  %v3377 = vadd.f32 %v3201, %v3294
  %v3378 = vadd.f32 %v3202, %v3294
  %v3379 = vadd.f32 %v3203, %v3294
  %v3380 = vadd.f32 %v3204, %v3294
  %v3381 = vadd.f32 %v3205, %v3294
  %v3382 = vadd.f32 %v3206, %v3294
  %v3383 = vadd.f32 %v3207, %v3294
  %v3384 = vadd.f32 %v3208, %v3294
  %v3385 = vadd.f32 %v3209, %v3294
  %v3386 = vadd.f32 %v3210, %v3294
  %v3387 = vadd.f32 %v3211, %v3294
  %v3388 = vadd.f32 %v3212, %v3294
  %v3389 = vadd.f32 %v3213, %v3294
  %v3390 = vadd.f32 %v3214, %v3294
  %v3391 = vadd.f32 %v3215, %v3294
  %v3392 = vadd.f32 %v3216, %v3294
  %v3393 = vadd.f32 %v3217, %v3294
  %v3394 = vadd.f32 %v3218, %v3294
  %v3395 = vadd.f32 %v3219, %v3294
  %v3396 = vadd.f32 %v3220, %v3294
  %v3397 = vadd.f32 %v3221, %v3294
  %v3398 = vadd.f32 %v3222, %v3294
  %v3399 = vadd.f32 %v3223, %v3294
  %v3400 = vadd.f32 %v3224, %v3294
  %v3401 = vadd.f32 %v3225, %v3294
  %v3402 = vadd.f32 %v3226, %v3294
  %v3403 = vadd.f32 %v3227, %v3294
  %v3404 = vadd.f32 %v3228, %v3294
  %v3405 = vadd.f32 %v3229, %v3294
  %v3406 = vadd.f32 %v3230, %v3294
  %v3407 = vadd.f32 %v3231, %v3294
  %v3408 = vadd.f32 %v3232, %v3294
  %v3409 = vadd.f32 %v3233, %v3294
  %v3410 = vadd.f32 %v3234, %v3294
  %v3411 = vadd.f32 %v3235, %v3294
  %v3412 = vadd.f32 %v3236, %v3294
  %v3413 = vadd.f32 %v3237, %v3294
  %v3414 = vadd.f32 %v3238, %v3294
  %v3415 = vadd.f32 %v3239, %v3294
  %v3416 = vadd.f32 %v3240, %v3294
  %v3417 = vadd.f32 %v3241, %v3294
  %v3418 = vadd.f32 %v3242, %v3294
  %v3419 = vadd.f32 %v3243, %v3294
  %v3420 = vadd.f32 %v3244, %v3294
  %v3421 = vadd.f32 %v3245, %v3294
  %v3422 = vadd.f32 %v3246, %v3294
  %v3423 = vadd.f32 %v3247, %v3294
  %v3424 = vadd.f32 %v3248, %v3294
  %v3425 = vadd.f32 %v3249, %v3294
  %v3426 = vadd.f32 %v3250, %v3294
  %v3427 = vadd.f32 %v3251, %v3294
  %v3428 = vadd.f32 %v3252, %v3294
  %v3429 = vadd.f32 %v3253, %v3294
  %v3430 = vadd.f32 %v3254, %v3294
  %v3431 = vadd.f32 %v3255, %v3294
  %v3432 = vadd.f32 %v3256, %v3294
  %v3433 = vadd.f32 %v3257, %v3294
  %v3434 = vadd.f32 %v3258, %v3294
  %v3435 = vadd.f32 %v3259, %v3294
  %v3436 = vadd.f32 %v3260, %v3294
  %v3437 = vadd.f32 %v3261, %v3294
  %v3438 = vadd.f32 %v3262, %v3294
  %v3439 = vadd.f32 %v3263, %v3294
  %v3440 = vadd.f32 %v3264, %v3294
  %v3441 = vadd.f32 %v3265, %v3294
  %v3442 = vadd.f32 %v3266, %v3294
  %v3443 = vadd.f32 %v3267, %v3294
  %v3444 = vadd.f32 %v3268, %v3294
  %v3445 = vadd.f32 %v3269, %v3294
  %v3446 = vadd.f32 %v3270, %v3294
  %v3447 = vadd.f32 %v3271, %v3294
  %v3448 = vadd.f32 %v3272, %v3294
  %v3449 = vadd.f32 %v3273, %v3294
  %v3450 = vadd.f32 %v3274, %v3294
  %v3451 = vadd.f32 %v3275, %v3294
  %v3452 = vadd.f32 %v3276, %v3294
  %v3453 = vadd.f32 %v3277, %v3294
  %v3454 = vadd.f32 %v3278, %v3294
  %v3455 = vadd.f32 %v3279, %v3294
  %v3456 = vadd.f32 %v3280, %v3294
  %v3457 = vadd.f32 %v3281, %v3294
  %v3458 = vadd.f32 %v3282, %v3294
  %v3459 = vadd.f32 %v3283, %v3294
  %v3460 = vadd.f32 %v3284, %v3294
  %v3461 = vadd.f32 %v3285, %v3294
  %v3462 = vadd.f32 %v3286, %v3294
  %v3463 = vadd.f32 %v3287, %v3294
  %v3464 = vadd.f32 %v3288, %v3294
  %v3465 = vmax.f32 %v3296, 0.0
  %v3466 = vmax.f32 %v3297, 0.0
  %v3467 = vmax.f32 %v3298, 0.0
  %v3468 = vmax.f32 %v3299, 0.0
  %v3469 = vmax.f32 %v3300, 0.0
  %v3470 = vmax.f32 %v3301, 0.0
  %v3471 = vmax.f32 %v3302, 0.0
  %v3472 = vmax.f32 %v3303, 0.0
  %v3473 = vmax.f32 %v3304, 0.0
  %v3474 = vmax.f32 %v3305, 0.0
  %v3475 = vmax.f32 %v3306, 0.0
  %v3476 = vmax.f32 %v3307, 0.0
  %v3477 = vmax.f32 %v3308, 0.0
  %v3478 = vmax.f32 %v3309, 0.0
  %v3479 = vmax.f32 %v3310, 0.0
  %v3480 = vmax.f32 %v3311, 0.0
  %v3481 = vmax.f32 %v3312, 0.0
  %v3482 = vmax.f32 %v3313, 0.0
  %v3483 = vmax.f32 %v3314, 0.0
  %v3484 = vmax.f32 %v3315, 0.0
  %v3485 = vmax.f32 %v3316, 0.0
  %v3486 = vmax.f32 %v3317, 0.0
  %v3487 = vmax.f32 %v3318, 0.0
  %v3488 = vmax.f32 %v3319, 0.0
  %v3489 = vmax.f32 %v3320, 0.0
  %v3490 = vmax.f32 %v3321, 0.0
  %v3491 = vmax.f32 %v3322, 0.0
  %v3492 = vmax.f32 %v3323, 0.0
  %v3493 = vmax.f32 %v3324, 0.0
  %v3494 = vmax.f32 %v3325, 0.0
  %v3495 = vmax.f32 %v3326, 0.0
  %v3496 = vmax.f32 %v3327, 0.0
  %v3497 = vmax.f32 %v3328, 0.0
  %v3498 = vmax.f32 %v3329, 0.0
  %v3499 = vmax.f32 %v3330, 0.0
  %v3500 = vmax.f32 %v3331, 0.0
  %v3501 = vmax.f32 %v3332, 0.0
  %v3502 = vmax.f32 %v3333, 0.0
  %v3503 = vmax.f32 %v3334, 0.0
  %v3504 = vmax.f32 %v3335, 0.0
  %v3505 = vmax.f32 %v3336, 0.0
  %v3506 = vmax.f32 %v3337, 0.0
  %v3507 = vmax.f32 %v3338, 0.0
  %v3508 = vmax.f32 %v3339, 0.0
  %v3509 = vmax.f32 %v3340, 0.0
  %v3510 = vmax.f32 %v3341, 0.0
  %v3511 = vmax.f32 %v3342, 0.0
  %v3512 = vmax.f32 %v3343, 0.0
  %v3513 = vmax.f32 %v3344, 0.0
  %v3514 = vmax.f32 %v3345, 0.0
  %v3515 = vmax.f32 %v3346, 0.0
  %v3516 = vmax.f32 %v3347, 0.0
  %v3517 = vmax.f32 %v3348, 0.0
  %v3518 = vmax.f32 %v3349, 0.0
  %v3519 = vmax.f32 %v3350, 0.0
  %v3520 = vmax.f32 %v3351, 0.0
  %v3521 = vmax.f32 %v3352, 0.0
  %v3522 = vmax.f32 %v3353, 0.0
  %v3523 = vmax.f32 %v3354, 0.0
  %v3524 = vmax.f32 %v3355, 0.0
  %v3525 = vmax.f32 %v3356, 0.0
  %v3526 = vmax.f32 %v3357, 0.0
  %v3527 = vmax.f32 %v3358, 0.0
  %v3528 = vmax.f32 %v3359, 0.0
  %v3529 = vmax.f32 %v3360, 0.0
  %v3530 = vmax.f32 %v3361, 0.0
  %v3531 = vmax.f32 %v3362, 0.0
  %v3532 = vmax.f32 %v3363, 0.0
  %v3533 = vmax.f32 %v3364, 0.0
  %v3534 = vmax.f32 %v3365, 0.0
  %v3535 = vmax.f32 %v3366, 0.0
  %v3536 = vmax.f32 %v3367, 0.0
  %v3537 = vmax.f32 %v3368, 0.0
  %v3538 = vmax.f32 %v3369, 0.0
  %v3539 = vmax.f32 %v3370, 0.0
  %v3540 = vmax.f32 %v3371, 0.0
  %v3541 = vmax.f32 %v3372, 0.0
  %v3542 = vmax.f32 %v3373, 0.0
  %v3543 = vmax.f32 %v3374, 0.0
  %v3544 = vmax.f32 %v3375, 0.0
  %v3545 = vmax.f32 %v3376, 0.0
  %v3546 = vmax.f32 %v3377, 0.0
  %v3547 = vmax.f32 %v3378, 0.0
  %v3548 = vmax.f32 %v3379, 0.0
  %v3549 = vmax.f32 %v3380, 0.0
  %v3550 = vmax.f32 %v3381, 0.0
  %v3551 = vmax.f32 %v3382, 0.0
  %v3552 = vmax.f32 %v3383, 0.0
  %v3553 = vmax.f32 %v3384, 0.0
  %v3554 = vmax.f32 %v3385, 0.0
  %v3555 = vmax.f32 %v3386, 0.0
  %v3556 = vmax.f32 %v3387, 0.0
  %v3557 = vmax.f32 %v3388, 0.0
  %v3558 = vmax.f32 %v3389, 0.0
  %v3559 = vmax.f32 %v3390, 0.0
  %v3560 = vmax.f32 %v3391, 0.0
  %v3561 = vmax.f32 %v3392, 0.0
  %v3562 = vmax.f32 %v3393, 0.0
  %v3563 = vmax.f32 %v3394, 0.0
  %v3564 = vmax.f32 %v3395, 0.0
  %v3565 = vmax.f32 %v3396, 0.0
  %v3566 = vmax.f32 %v3397, 0.0
  %v3567 = vmax.f32 %v3398, 0.0
  %v3568 = vmax.f32 %v3399, 0.0
  %v3569 = vmax.f32 %v3400, 0.0
  %v3570 = vmax.f32 %v3401, 0.0
  %v3571 = vmax.f32 %v3402, 0.0
  %v3572 = vmax.f32 %v3403, 0.0
  %v3573 = vmax.f32 %v3404, 0.0
  %v3574 = vmax.f32 %v3405, 0.0
  %v3575 = vmax.f32 %v3406, 0.0
  %v3576 = vmax.f32 %v3407, 0.0
  %v3577 = vmax.f32 %v3408, 0.0
  %v3578 = vmax.f32 %v3409, 0.0
  %v3579 = vmax.f32 %v3410, 0.0
  %v3580 = vmax.f32 %v3411, 0.0
  %v3581 = vmax.f32 %v3412, 0.0
  %v3582 = vmax.f32 %v3413, 0.0
  %v3583 = vmax.f32 %v3414, 0.0
  %v3584 = vmax.f32 %v3415, 0.0
  %v3585 = vmax.f32 %v3416, 0.0
  %v3586 = vmax.f32 %v3417, 0.0
  %v3587 = vmax.f32 %v3418, 0.0
  %v3588 = vmax.f32 %v3419, 0.0
  %v3589 = vmax.f32 %v3420, 0.0
  %v3590 = vmax.f32 %v3421, 0.0
  %v3591 = vmax.f32 %v3422, 0.0
  %v3592 = vmax.f32 %v3423, 0.0
  %v3593 = vmax.f32 %v3424, 0.0
  %v3594 = vmax.f32 %v3425, 0.0
  %v3595 = vmax.f32 %v3426, 0.0
  %v3596 = vmax.f32 %v3427, 0.0
  %v3597 = vmax.f32 %v3428, 0.0
  %v3598 = vmax.f32 %v3429, 0.0
  %v3599 = vmax.f32 %v3430, 0.0
  %v3600 = vmax.f32 %v3431, 0.0
  %v3601 = vmax.f32 %v3432, 0.0
  %v3602 = vmax.f32 %v3433, 0.0
  %v3603 = vmax.f32 %v3434, 0.0
  %v3604 = vmax.f32 %v3435, 0.0
  %v3605 = vmax.f32 %v3436, 0.0
  %v3606 = vmax.f32 %v3437, 0.0
  %v3607 = vmax.f32 %v3438, 0.0
  %v3608 = vmax.f32 %v3439, 0.0
  %v3609 = vmax.f32 %v3440, 0.0
  %v3610 = vmax.f32 %v3441, 0.0
  %v3611 = vmax.f32 %v3442, 0.0
  %v3612 = vmax.f32 %v3443, 0.0
  %v3613 = vmax.f32 %v3444, 0.0
  %v3614 = vmax.f32 %v3445, 0.0
  %v3615 = vmax.f32 %v3446, 0.0
  %v3616 = vmax.f32 %v3447, 0.0
  %v3617 = vmax.f32 %v3448, 0.0
  %v3618 = vmax.f32 %v3449, 0.0
  %v3619 = vmax.f32 %v3450, 0.0
  %v3620 = vmax.f32 %v3451, 0.0
  %v3621 = vmax.f32 %v3452, 0.0
  %v3622 = vmax.f32 %v3453, 0.0
  %v3623 = vmax.f32 %v3454, 0.0
  %v3624 = vmax.f32 %v3455, 0.0
  %v3625 = vmax.f32 %v3456, 0.0
  %v3626 = vmax.f32 %v3457, 0.0
  %v3627 = vmax.f32 %v3458, 0.0
  %v3628 = vmax.f32 %v3459, 0.0
  %v3629 = vmax.f32 %v3460, 0.0
  %v3630 = vmax.f32 %v3461, 0.0
  %v3631 = vmax.f32 %v3462, 0.0
  %v3632 = vmax.f32 %v3463, 0.0
  %v3633 = vmax.f32 %v3464, 0.0
  %v3634 = vpack.c.bf16 %v3466, %v3465
  %v3635 = vpack.c.bf16 %v3468, %v3467
  %v3636 = vpack.c.bf16 %v3470, %v3469
  %v3637 = vpack.c.bf16 %v3472, %v3471
  %v3638 = vpack.c.bf16 %v3474, %v3473
  %v3639 = vpack.c.bf16 %v3476, %v3475
  %v3640 = vpack.c.bf16 %v3478, %v3477
  %v3641 = vpack.c.bf16 %v3480, %v3479
  %v3642 = vpack.c.bf16 %v3482, %v3481
  %v3643 = vpack.c.bf16 %v3484, %v3483
  %v3644 = vpack.c.bf16 %v3486, %v3485
  %v3645 = vpack.c.bf16 %v3488, %v3487
  %v3646 = vpack.c.bf16 %v3490, %v3489
  %v3647 = vpack.c.bf16 %v3492, %v3491
  %v3648 = vpack.c.bf16 %v3494, %v3493
  %v3649 = vpack.c.bf16 %v3496, %v3495
  %v3650 = vpack.c.bf16 %v3498, %v3497
  %v3651 = vpack.c.bf16 %v3500, %v3499
  %v3652 = vpack.c.bf16 %v3502, %v3501
  %v3653 = vpack.c.bf16 %v3504, %v3503
  %v3654 = vpack.c.bf16 %v3506, %v3505
  %v3655 = vpack.c.bf16 %v3508, %v3507
  %v3656 = vpack.c.bf16 %v3510, %v3509
  %v3657 = vpack.c.bf16 %v3512, %v3511
  %v3658 = vpack.c.bf16 %v3514, %v3513
  %v3659 = vpack.c.bf16 %v3516, %v3515
  %v3660 = vpack.c.bf16 %v3518, %v3517
  %v3661 = vpack.c.bf16 %v3520, %v3519
  %v3662 = vpack.c.bf16 %v3522, %v3521
  %v3663 = vpack.c.bf16 %v3524, %v3523
  %v3664 = vpack.c.bf16 %v3526, %v3525
  %v3665 = vpack.c.bf16 %v3528, %v3527
  %v3666 = vpack.c.bf16 %v3530, %v3529
  %v3667 = vpack.c.bf16 %v3532, %v3531
  %v3668 = vpack.c.bf16 %v3534, %v3533
  %v3669 = vpack.c.bf16 %v3536, %v3535
  %v3670 = vpack.c.bf16 %v3538, %v3537
  %v3671 = vpack.c.bf16 %v3540, %v3539
  %v3672 = vpack.c.bf16 %v3542, %v3541
  %v3673 = vpack.c.bf16 %v3544, %v3543
  %v3674 = vpack.c.bf16 %v3546, %v3545
  %v3675 = vpack.c.bf16 %v3548, %v3547
  %v3676 = vpack.c.bf16 %v3550, %v3549
  %v3677 = vpack.c.bf16 %v3552, %v3551
  %v3678 = vpack.c.bf16 %v3554, %v3553
  %v3679 = vpack.c.bf16 %v3556, %v3555
  %v3680 = vpack.c.bf16 %v3558, %v3557
  %v3681 = vpack.c.bf16 %v3560, %v3559
  %v3682 = vpack.c.bf16 %v3562, %v3561
  %v3683 = vpack.c.bf16 %v3564, %v3563
  %v3684 = vpack.c.bf16 %v3566, %v3565
  %v3685 = vpack.c.bf16 %v3568, %v3567
  %v3686 = vpack.c.bf16 %v3570, %v3569
  %v3687 = vpack.c.bf16 %v3572, %v3571
  %v3688 = vpack.c.bf16 %v3574, %v3573
  %v3689 = vpack.c.bf16 %v3576, %v3575
  %v3690 = vpack.c.bf16 %v3578, %v3577
  %v3691 = vpack.c.bf16 %v3580, %v3579
  %v3692 = vpack.c.bf16 %v3582, %v3581
  %v3693 = vpack.c.bf16 %v3584, %v3583
  %v3694 = vpack.c.bf16 %v3586, %v3585
  %v3695 = vpack.c.bf16 %v3588, %v3587
  %v3696 = vpack.c.bf16 %v3590, %v3589
  %v3697 = vpack.c.bf16 %v3592, %v3591
  %v3698 = vpack.c.bf16 %v3594, %v3593
  %v3699 = vpack.c.bf16 %v3596, %v3595
  %v3700 = vpack.c.bf16 %v3598, %v3597
  %v3701 = vpack.c.bf16 %v3600, %v3599
  %v3702 = vpack.c.bf16 %v3602, %v3601
  %v3703 = vpack.c.bf16 %v3604, %v3603
  %v3704 = vpack.c.bf16 %v3606, %v3605
  %v3705 = vpack.c.bf16 %v3608, %v3607
  %v3706 = vpack.c.bf16 %v3610, %v3609
  %v3707 = vpack.c.bf16 %v3612, %v3611
  %v3708 = vpack.c.bf16 %v3614, %v3613
  %v3709 = vpack.c.bf16 %v3616, %v3615
  %v3710 = vpack.c.bf16 %v3618, %v3617
  %v3711 = vpack.c.bf16 %v3620, %v3619
  %v3712 = vpack.c.bf16 %v3622, %v3621
  %v3713 = vpack.c.bf16 %v3624, %v3623
  %v3714 = vpack.c.bf16 %v3626, %v3625
  %v3715 = vpack.c.bf16 %v3628, %v3627
  %v3716 = vpack.c.bf16 %v3630, %v3629
  %v3717 = vpack.c.bf16 %v3632, %v3631
  %v3718 = vpack.c.bf16 %v3633, %v3633
  %v3804 = vunpack.c.l.b16 %v3634
  %v3805 = vunpack.c.h.b16 %v3634
  %v3806 = vunpack.c.l.b16 %v3635
  %v3807 = vunpack.c.h.b16 %v3635
  %v3808 = vunpack.c.l.b16 %v3636
  %v3809 = vunpack.c.h.b16 %v3636
  %v3810 = vunpack.c.l.b16 %v3637
  %v3811 = vunpack.c.h.b16 %v3637
  %v3812 = vunpack.c.l.b16 %v3638
  %v3813 = vunpack.c.h.b16 %v3638
  %v3814 = vunpack.c.l.b16 %v3639
  %v3815 = vunpack.c.h.b16 %v3639
  %v3816 = vunpack.c.l.b16 %v3640
  %v3817 = vunpack.c.h.b16 %v3640
  %v3818 = vunpack.c.l.b16 %v3641
  %v3819 = vunpack.c.h.b16 %v3641
  %v3820 = vunpack.c.l.b16 %v3642
  %v3821 = vunpack.c.h.b16 %v3642
  %v3822 = vunpack.c.l.b16 %v3643
  %v3823 = vunpack.c.h.b16 %v3643
  %v3824 = vunpack.c.l.b16 %v3644
  %v3825 = vunpack.c.h.b16 %v3644
  %v3826 = vunpack.c.l.b16 %v3645
  %v3827 = vunpack.c.h.b16 %v3645
  %v3828 = vunpack.c.l.b16 %v3646
  %v3829 = vunpack.c.h.b16 %v3646
  %v3830 = vunpack.c.l.b16 %v3647
  %v3831 = vunpack.c.h.b16 %v3647
  %v3832 = vunpack.c.l.b16 %v3648
  %v3833 = vunpack.c.h.b16 %v3648
  %v3834 = vunpack.c.l.b16 %v3649
  %v3835 = vunpack.c.h.b16 %v3649
  %v3836 = vunpack.c.l.b16 %v3650
  %v3837 = vunpack.c.h.b16 %v3650
  %v3838 = vunpack.c.l.b16 %v3651
  %v3839 = vunpack.c.h.b16 %v3651
  %v3840 = vunpack.c.l.b16 %v3652
  %v3841 = vunpack.c.h.b16 %v3652
  %v3842 = vunpack.c.l.b16 %v3653
  %v3843 = vunpack.c.h.b16 %v3653
  %v3844 = vunpack.c.l.b16 %v3654
  %v3845 = vunpack.c.h.b16 %v3654
  %v3846 = vunpack.c.l.b16 %v3655
  %v3847 = vunpack.c.h.b16 %v3655
  %v3848 = vunpack.c.l.b16 %v3656
  %v3849 = vunpack.c.h.b16 %v3656
  %v3850 = vunpack.c.l.b16 %v3657
  %v3851 = vunpack.c.h.b16 %v3657
  %v3852 = vunpack.c.l.b16 %v3658
  %v3853 = vunpack.c.h.b16 %v3658
  %v3854 = vunpack.c.l.b16 %v3659
  %v3855 = vunpack.c.h.b16 %v3659
  %v3856 = vunpack.c.l.b16 %v3660
  %v3857 = vunpack.c.h.b16 %v3660
  %v3858 = vunpack.c.l.b16 %v3661
  %v3859 = vunpack.c.h.b16 %v3661
  %v3860 = vunpack.c.l.b16 %v3662
  %v3861 = vunpack.c.h.b16 %v3662
  %v3862 = vunpack.c.l.b16 %v3663
  %v3863 = vunpack.c.h.b16 %v3663
  %v3864 = vunpack.c.l.b16 %v3664
  %v3865 = vunpack.c.h.b16 %v3664
  %v3866 = vunpack.c.l.b16 %v3665
  %v3867 = vunpack.c.h.b16 %v3665
  %v3868 = vunpack.c.l.b16 %v3666
  %v3869 = vunpack.c.h.b16 %v3666
  %v3870 = vunpack.c.l.b16 %v3667
  %v3871 = vunpack.c.h.b16 %v3667
  %v3872 = vunpack.c.l.b16 %v3668
  %v3873 = vunpack.c.h.b16 %v3668
  %v3874 = vunpack.c.l.b16 %v3669
  %v3875 = vunpack.c.h.b16 %v3669
  %v3876 = vunpack.c.l.b16 %v3670
  %v3877 = vunpack.c.h.b16 %v3670
  %v3878 = vunpack.c.l.b16 %v3671
  %v3879 = vunpack.c.h.b16 %v3671
  %v3880 = vunpack.c.l.b16 %v3672
  %v3881 = vunpack.c.h.b16 %v3672
  %v3882 = vunpack.c.l.b16 %v3673
  %v3883 = vunpack.c.h.b16 %v3673
  %v3884 = vunpack.c.l.b16 %v3674
  %v3885 = vunpack.c.h.b16 %v3674
  %v3886 = vunpack.c.l.b16 %v3675
  %v3887 = vunpack.c.h.b16 %v3675
  %v3888 = vunpack.c.l.b16 %v3676
  %v3889 = vunpack.c.h.b16 %v3676
  %v3890 = vunpack.c.l.b16 %v3677
  %v3891 = vunpack.c.h.b16 %v3677
  %v3892 = vunpack.c.l.b16 %v3678
  %v3893 = vunpack.c.h.b16 %v3678
  %v3894 = vunpack.c.l.b16 %v3679
  %v3895 = vunpack.c.h.b16 %v3679
  %v3896 = vunpack.c.l.b16 %v3680
  %v3897 = vunpack.c.h.b16 %v3680
  %v3898 = vunpack.c.l.b16 %v3681
  %v3899 = vunpack.c.h.b16 %v3681
  %v3900 = vunpack.c.l.b16 %v3682
  %v3901 = vunpack.c.h.b16 %v3682
  %v3902 = vunpack.c.l.b16 %v3683
  %v3903 = vunpack.c.h.b16 %v3683
  %v3904 = vunpack.c.l.b16 %v3684
  %v3905 = vunpack.c.h.b16 %v3684
  %v3906 = vunpack.c.l.b16 %v3685
  %v3907 = vunpack.c.h.b16 %v3685
  %v3908 = vunpack.c.l.b16 %v3686
  %v3909 = vunpack.c.h.b16 %v3686
  %v3910 = vunpack.c.l.b16 %v3687
  %v3911 = vunpack.c.h.b16 %v3687
  %v3912 = vunpack.c.l.b16 %v3688
  %v3913 = vunpack.c.h.b16 %v3688
  %v3914 = vunpack.c.l.b16 %v3689
  %v3915 = vunpack.c.h.b16 %v3689
  %v3916 = vunpack.c.l.b16 %v3690
  %v3917 = vunpack.c.h.b16 %v3690
  %v3918 = vunpack.c.l.b16 %v3691
  %v3919 = vunpack.c.h.b16 %v3691
  %v3920 = vunpack.c.l.b16 %v3692
  %v3921 = vunpack.c.h.b16 %v3692
  %v3922 = vunpack.c.l.b16 %v3693
  %v3923 = vunpack.c.h.b16 %v3693
  %v3924 = vunpack.c.l.b16 %v3694
  %v3925 = vunpack.c.h.b16 %v3694
  %v3926 = vunpack.c.l.b16 %v3695
  %v3927 = vunpack.c.h.b16 %v3695
  %v3928 = vunpack.c.l.b16 %v3696
  %v3929 = vunpack.c.h.b16 %v3696
  %v3930 = vunpack.c.l.b16 %v3697
  %v3931 = vunpack.c.h.b16 %v3697
  %v3932 = vunpack.c.l.b16 %v3698
  %v3933 = vunpack.c.h.b16 %v3698
  %v3934 = vunpack.c.l.b16 %v3699
  %v3935 = vunpack.c.h.b16 %v3699
  %v3936 = vunpack.c.l.b16 %v3700
  %v3937 = vunpack.c.h.b16 %v3700
  %v3938 = vunpack.c.l.b16 %v3701
  %v3939 = vunpack.c.h.b16 %v3701
  %v3940 = vunpack.c.l.b16 %v3702
  %v3941 = vunpack.c.h.b16 %v3702
  %v3942 = vunpack.c.l.b16 %v3703
  %v3943 = vunpack.c.h.b16 %v3703
  %v3944 = vunpack.c.l.b16 %v3704
  %v3945 = vunpack.c.h.b16 %v3704
  %v3946 = vunpack.c.l.b16 %v3705
  %v3947 = vunpack.c.h.b16 %v3705
  %v3948 = vunpack.c.l.b16 %v3706
  %v3949 = vunpack.c.h.b16 %v3706
  %v3950 = vunpack.c.l.b16 %v3707
  %v3951 = vunpack.c.h.b16 %v3707
  %v3952 = vunpack.c.l.b16 %v3708
  %v3953 = vunpack.c.h.b16 %v3708
  %v3954 = vunpack.c.l.b16 %v3709
  %v3955 = vunpack.c.h.b16 %v3709
  %v3956 = vunpack.c.l.b16 %v3710
  %v3957 = vunpack.c.h.b16 %v3710
  %v3958 = vunpack.c.l.b16 %v3711
  %v3959 = vunpack.c.h.b16 %v3711
  %v3960 = vunpack.c.l.b16 %v3712
  %v3961 = vunpack.c.h.b16 %v3712
  %v3962 = vunpack.c.l.b16 %v3713
  %v3963 = vunpack.c.h.b16 %v3713
  %v3964 = vunpack.c.l.b16 %v3714
  %v3965 = vunpack.c.h.b16 %v3714
  %v3966 = vunpack.c.l.b16 %v3715
  %v3967 = vunpack.c.h.b16 %v3715
  %v3968 = vunpack.c.l.b16 %v3716
  %v3969 = vunpack.c.h.b16 %v3716
  %v3970 = vunpack.c.l.b16 %v3717
  %v3971 = vunpack.c.h.b16 %v3717
  %v3972 = vunpack.c.l.b16 %v3718
  %v3973 = vpack.c.b16 %v3804, %v3804
  %v3974 = vpack.c.b16 %v3805, %v3805
  %v3975 = vpack.c.b16 %v3806, %v3806
  %v3976 = vpack.c.b16 %v3807, %v3807
  %v3977 = vpack.c.b16 %v3808, %v3808
  %v3978 = vpack.c.b16 %v3809, %v3809
  %v3979 = vpack.c.b16 %v3810, %v3810
  %v3980 = vpack.c.b16 %v3811, %v3811
  %v3981 = vpack.c.b16 %v3812, %v3812
  %v3982 = vpack.c.b16 %v3813, %v3813
  %v3983 = vpack.c.b16 %v3814, %v3814
  %v3984 = vpack.c.b16 %v3815, %v3815
  %v3985 = vpack.c.b16 %v3816, %v3816
  %v3986 = vpack.c.b16 %v3817, %v3817
  %v3987 = vpack.c.b16 %v3818, %v3818
  %v3988 = vpack.c.b16 %v3819, %v3819
  %v3989 = vpack.c.b16 %v3820, %v3820
  %v3990 = vpack.c.b16 %v3821, %v3821
  %v3991 = vpack.c.b16 %v3822, %v3822
  %v3992 = vpack.c.b16 %v3823, %v3823
  %v3993 = vpack.c.b16 %v3824, %v3824
  %v3994 = vpack.c.b16 %v3825, %v3825
  %v3995 = vpack.c.b16 %v3826, %v3826
  %v3996 = vpack.c.b16 %v3827, %v3827
  %v3997 = vpack.c.b16 %v3828, %v3828
  %v3998 = vpack.c.b16 %v3829, %v3829
  %v3999 = vpack.c.b16 %v3830, %v3830
  %v4000 = vpack.c.b16 %v3831, %v3831
  %v4001 = vpack.c.b16 %v3832, %v3832
  %v4002 = vpack.c.b16 %v3833, %v3833
  %v4003 = vpack.c.b16 %v3834, %v3834
  %v4004 = vpack.c.b16 %v3835, %v3835
  %v4005 = vpack.c.b16 %v3836, %v3836
  %v4006 = vpack.c.b16 %v3837, %v3837
  %v4007 = vpack.c.b16 %v3838, %v3838
  %v4008 = vpack.c.b16 %v3839, %v3839
  %v4009 = vpack.c.b16 %v3840, %v3840
  %v4010 = vpack.c.b16 %v3841, %v3841
  %v4011 = vpack.c.b16 %v3842, %v3842
  %v4012 = vpack.c.b16 %v3843, %v3843
  %v4013 = vpack.c.b16 %v3844, %v3844
  %v4014 = vpack.c.b16 %v3845, %v3845
  %v4015 = vpack.c.b16 %v3846, %v3846
  %v4016 = vpack.c.b16 %v3847, %v3847
  %v4017 = vpack.c.b16 %v3848, %v3848
  %v4018 = vpack.c.b16 %v3849, %v3849
  %v4019 = vpack.c.b16 %v3850, %v3850
  %v4020 = vpack.c.b16 %v3851, %v3851
  %v4021 = vpack.c.b16 %v3852, %v3852
  %v4022 = vpack.c.b16 %v3853, %v3853
  %v4023 = vpack.c.b16 %v3854, %v3854
  %v4024 = vpack.c.b16 %v3855, %v3855
  %v4025 = vpack.c.b16 %v3856, %v3856
  %v4026 = vpack.c.b16 %v3857, %v3857
  %v4027 = vpack.c.b16 %v3858, %v3858
  %v4028 = vpack.c.b16 %v3859, %v3859
  %v4029 = vpack.c.b16 %v3860, %v3860
  %v4030 = vpack.c.b16 %v3861, %v3861
  %v4031 = vpack.c.b16 %v3862, %v3862
  %v4032 = vpack.c.b16 %v3863, %v3863
  %v4033 = vpack.c.b16 %v3864, %v3864
  %v4034 = vpack.c.b16 %v3865, %v3865
  %v4035 = vpack.c.b16 %v3866, %v3866
  %v4036 = vpack.c.b16 %v3867, %v3867
  %v4037 = vpack.c.b16 %v3868, %v3868
  %v4038 = vpack.c.b16 %v3869, %v3869
  %v4039 = vpack.c.b16 %v3870, %v3870
  %v4040 = vpack.c.b16 %v3871, %v3871
  %v4041 = vpack.c.b16 %v3872, %v3872
  %v4042 = vpack.c.b16 %v3873, %v3873
  %v4043 = vpack.c.b16 %v3874, %v3874
  %v4044 = vpack.c.b16 %v3875, %v3875
  %v4045 = vpack.c.b16 %v3876, %v3876
  %v4046 = vpack.c.b16 %v3877, %v3877
  %v4047 = vpack.c.b16 %v3878, %v3878
  %v4048 = vpack.c.b16 %v3879, %v3879
  %v4049 = vpack.c.b16 %v3880, %v3880
  %v4050 = vpack.c.b16 %v3881, %v3881
  %v4051 = vpack.c.b16 %v3882, %v3882
  %v4052 = vpack.c.b16 %v3883, %v3883
  %v4053 = vpack.c.b16 %v3884, %v3884
  %v4054 = vpack.c.b16 %v3885, %v3885
  %v4055 = vpack.c.b16 %v3886, %v3886
  %v4056 = vpack.c.b16 %v3887, %v3887
  %v4057 = vpack.c.b16 %v3888, %v3888
  %v4058 = vpack.c.b16 %v3889, %v3889
  %v4059 = vpack.c.b16 %v3890, %v3890
  %v4060 = vpack.c.b16 %v3891, %v3891
  %v4061 = vpack.c.b16 %v3892, %v3892
  %v4062 = vpack.c.b16 %v3893, %v3893
  %v4063 = vpack.c.b16 %v3894, %v3894
  %v4064 = vpack.c.b16 %v3895, %v3895
  %v4065 = vpack.c.b16 %v3896, %v3896
  %v4066 = vpack.c.b16 %v3897, %v3897
  %v4067 = vpack.c.b16 %v3898, %v3898
  %v4068 = vpack.c.b16 %v3899, %v3899
  %v4069 = vpack.c.b16 %v3900, %v3900
  %v4070 = vpack.c.b16 %v3901, %v3901
  %v4071 = vpack.c.b16 %v3902, %v3902
  %v4072 = vpack.c.b16 %v3903, %v3903
  %v4073 = vpack.c.b16 %v3904, %v3904
  %v4074 = vpack.c.b16 %v3905, %v3905
  %v4075 = vpack.c.b16 %v3906, %v3906
  %v4076 = vpack.c.b16 %v3907, %v3907
  %v4077 = vpack.c.b16 %v3908, %v3908
  %v4078 = vpack.c.b16 %v3909, %v3909
  %v4079 = vpack.c.b16 %v3910, %v3910
  %v4080 = vpack.c.b16 %v3911, %v3911
  %v4081 = vpack.c.b16 %v3912, %v3912
  %v4082 = vpack.c.b16 %v3913, %v3913
  %v4083 = vpack.c.b16 %v3914, %v3914
  %v4084 = vpack.c.b16 %v3915, %v3915
  %v4085 = vpack.c.b16 %v3916, %v3916
  %v4086 = vpack.c.b16 %v3917, %v3917
  %v4087 = vpack.c.b16 %v3918, %v3918
  %v4088 = vpack.c.b16 %v3919, %v3919
  %v4089 = vpack.c.b16 %v3920, %v3920
  %v4090 = vpack.c.b16 %v3921, %v3921
  %v4091 = vpack.c.b16 %v3922, %v3922
  %v4092 = vpack.c.b16 %v3923, %v3923
  %v4093 = vpack.c.b16 %v3924, %v3924
  %v4094 = vpack.c.b16 %v3925, %v3925
  %v4095 = vpack.c.b16 %v3926, %v3926
  %v4096 = vpack.c.b16 %v3927, %v3927
  %v4097 = vpack.c.b16 %v3928, %v3928
  %v4098 = vpack.c.b16 %v3929, %v3929
  %v4099 = vpack.c.b16 %v3930, %v3930
  %v4100 = vpack.c.b16 %v3931, %v3931
  %v4101 = vpack.c.b16 %v3932, %v3932
  %v4102 = vpack.c.b16 %v3933, %v3933
  %v4103 = vpack.c.b16 %v3934, %v3934
  %v4104 = vpack.c.b16 %v3935, %v3935
  %v4105 = vpack.c.b16 %v3936, %v3936
  %v4106 = vpack.c.b16 %v3937, %v3937
  %v4107 = vpack.c.b16 %v3938, %v3938
  %v4108 = vpack.c.b16 %v3939, %v3939
  %v4109 = vpack.c.b16 %v3940, %v3940
  %v4110 = vpack.c.b16 %v3941, %v3941
  %v4111 = vpack.c.b16 %v3942, %v3942
  %v4112 = vpack.c.b16 %v3943, %v3943
  %v4113 = vpack.c.b16 %v3944, %v3944
  %v4114 = vpack.c.b16 %v3945, %v3945
  %v4115 = vpack.c.b16 %v3946, %v3946
  %v4116 = vpack.c.b16 %v3947, %v3947
  %v4117 = vpack.c.b16 %v3948, %v3948
  %v4118 = vpack.c.b16 %v3949, %v3949
  %v4119 = vpack.c.b16 %v3950, %v3950
  %v4120 = vpack.c.b16 %v3951, %v3951
  %v4121 = vpack.c.b16 %v3952, %v3952
  %v4122 = vpack.c.b16 %v3953, %v3953
  %v4123 = vpack.c.b16 %v3954, %v3954
  %v4124 = vpack.c.b16 %v3955, %v3955
  %v4125 = vpack.c.b16 %v3956, %v3956
  %v4126 = vpack.c.b16 %v3957, %v3957
  %v4127 = vpack.c.b16 %v3958, %v3958
  %v4128 = vpack.c.b16 %v3959, %v3959
  %v4129 = vpack.c.b16 %v3960, %v3960
  %v4130 = vpack.c.b16 %v3961, %v3961
  %v4131 = vpack.c.b16 %v3962, %v3962
  %v4132 = vpack.c.b16 %v3963, %v3963
  %v4133 = vpack.c.b16 %v3964, %v3964
  %v4134 = vpack.c.b16 %v3965, %v3965
  %v4135 = vpack.c.b16 %v3966, %v3966
  %v4136 = vpack.c.b16 %v3967, %v3967
  %v4137 = vpack.c.b16 %v3968, %v3968
  %v4138 = vpack.c.b16 %v3969, %v3969
  %v4139 = vpack.c.b16 %v3970, %v3970
  %v4140 = vpack.c.b16 %v3971, %v3971
  %v4141 = vpack.c.b16 %v3972, %v3972
  %vm4311 = vcmask 257024
  %4312 = vst.msk [vmem:[%s3] sm:$0xf] %vm4311, %v3973
  %4313 = vst.msk [vmem:[%s3 + $0x4] sm:$0xf] %vm4311, %v3974
  %4314 = vst.msk [vmem:[%s3 + $0x8] sm:$0xf] %vm4311, %v3975
  %4315 = vst.msk [vmem:[%s3 + $0xc] sm:$0xf] %vm4311, %v3976
  %4316 = vst.msk [vmem:[%s3 + $0x10] sm:$0xf] %vm4311, %v3977
  %4317 = vst.msk [vmem:[%s3 + $0x14] sm:$0xf] %vm4311, %v3978
  %4318 = vst.msk [vmem:[%s3 + $0x18] sm:$0xf] %vm4311, %v3979
  %4319 = vst.msk [vmem:[%s3 + $0x1c] sm:$0xf] %vm4311, %v3980
  %4320 = vst.msk [vmem:[%s3 + $0x20] sm:$0xf] %vm4311, %v3981
  %4321 = vst.msk [vmem:[%s3 + $0x24] sm:$0xf] %vm4311, %v3982
  %4322 = vst.msk [vmem:[%s3 + $0x28] sm:$0xf] %vm4311, %v3983
  %4323 = vst.msk [vmem:[%s3 + $0x2c] sm:$0xf] %vm4311, %v3984
  %4324 = vst.msk [vmem:[%s3 + $0x30] sm:$0xf] %vm4311, %v3985
  %4325 = vst.msk [vmem:[%s3 + $0x34] sm:$0xf] %vm4311, %v3986
  %4326 = vst.msk [vmem:[%s3 + $0x38] sm:$0xf] %vm4311, %v3987
  %4327 = vst.msk [vmem:[%s3 + $0x3c] sm:$0xf] %vm4311, %v3988
  %4328 = vst.msk [vmem:[%s3 + $0x40] sm:$0xf] %vm4311, %v3989
  %4329 = vst.msk [vmem:[%s3 + $0x44] sm:$0xf] %vm4311, %v3990
  %4330 = vst.msk [vmem:[%s3 + $0x48] sm:$0xf] %vm4311, %v3991
  %4331 = vst.msk [vmem:[%s3 + $0x4c] sm:$0xf] %vm4311, %v3992
  %4332 = vst.msk [vmem:[%s3 + $0x50] sm:$0xf] %vm4311, %v3993
  %4333 = vst.msk [vmem:[%s3 + $0x54] sm:$0xf] %vm4311, %v3994
  %4334 = vst.msk [vmem:[%s3 + $0x58] sm:$0xf] %vm4311, %v3995
  %4335 = vst.msk [vmem:[%s3 + $0x5c] sm:$0xf] %vm4311, %v3996
  %4336 = vst.msk [vmem:[%s3 + $0x60] sm:$0xf] %vm4311, %v3997
  %4337 = vst.msk [vmem:[%s3 + $0x64] sm:$0xf] %vm4311, %v3998
  %4338 = vst.msk [vmem:[%s3 + $0x68] sm:$0xf] %vm4311, %v3999
  %4339 = vst.msk [vmem:[%s3 + $0x6c] sm:$0xf] %vm4311, %v4000
  %4340 = vst.msk [vmem:[%s3 + $0x70] sm:$0xf] %vm4311, %v4001
  %4341 = vst.msk [vmem:[%s3 + $0x74] sm:$0xf] %vm4311, %v4002
  %4342 = vst.msk [vmem:[%s3 + $0x78] sm:$0xf] %vm4311, %v4003
  %4343 = vst.msk [vmem:[%s3 + $0x7c] sm:$0xf] %vm4311, %v4004
  %4344 = vst.msk [vmem:[%s3 + $0x80] sm:$0xf] %vm4311, %v4005
  %4345 = vst.msk [vmem:[%s3 + $0x84] sm:$0xf] %vm4311, %v4006
  %4346 = vst.msk [vmem:[%s3 + $0x88] sm:$0xf] %vm4311, %v4007
  %4347 = vst.msk [vmem:[%s3 + $0x8c] sm:$0xf] %vm4311, %v4008
  %4348 = vst.msk [vmem:[%s3 + $0x90] sm:$0xf] %vm4311, %v4009
  %4349 = vst.msk [vmem:[%s3 + $0x94] sm:$0xf] %vm4311, %v4010
  %4350 = vst.msk [vmem:[%s3 + $0x98] sm:$0xf] %vm4311, %v4011
  %4351 = vst.msk [vmem:[%s3 + $0x9c] sm:$0xf] %vm4311, %v4012
  %4352 = vst.msk [vmem:[%s3 + $0xa0] sm:$0xf] %vm4311, %v4013
  %4353 = vst.msk [vmem:[%s3 + $0xa4] sm:$0xf] %vm4311, %v4014
  %4354 = vst.msk [vmem:[%s3 + $0xa8] sm:$0xf] %vm4311, %v4015
  %4355 = vst.msk [vmem:[%s3 + $0xac] sm:$0xf] %vm4311, %v4016
  %4356 = vst.msk [vmem:[%s3 + $0xb0] sm:$0xf] %vm4311, %v4017
  %4357 = vst.msk [vmem:[%s3 + $0xb4] sm:$0xf] %vm4311, %v4018
  %4358 = vst.msk [vmem:[%s3 + $0xb8] sm:$0xf] %vm4311, %v4019
  %4359 = vst.msk [vmem:[%s3 + $0xbc] sm:$0xf] %vm4311, %v4020
  %4360 = vst.msk [vmem:[%s3 + $0xc0] sm:$0xf] %vm4311, %v4021
  %4361 = vst.msk [vmem:[%s3 + $0xc4] sm:$0xf] %vm4311, %v4022
  %4362 = vst.msk [vmem:[%s3 + $0xc8] sm:$0xf] %vm4311, %v4023
  %4363 = vst.msk [vmem:[%s3 + $0xcc] sm:$0xf] %vm4311, %v4024
  %4364 = vst.msk [vmem:[%s3 + $0xd0] sm:$0xf] %vm4311, %v4025
  %4365 = vst.msk [vmem:[%s3 + $0xd4] sm:$0xf] %vm4311, %v4026
  %4366 = vst.msk [vmem:[%s3 + $0xd8] sm:$0xf] %vm4311, %v4027
  %4367 = vst.msk [vmem:[%s3 + $0xdc] sm:$0xf] %vm4311, %v4028
  %4368 = vst.msk [vmem:[%s3 + $0xe0] sm:$0xf] %vm4311, %v4029
  %4369 = vst.msk [vmem:[%s3 + $0xe4] sm:$0xf] %vm4311, %v4030
  %4370 = vst.msk [vmem:[%s3 + $0xe8] sm:$0xf] %vm4311, %v4031
  %4371 = vst.msk [vmem:[%s3 + $0xec] sm:$0xf] %vm4311, %v4032
  %4372 = vst.msk [vmem:[%s3 + $0xf0] sm:$0xf] %vm4311, %v4033
  %4373 = vst.msk [vmem:[%s3 + $0xf4] sm:$0xf] %vm4311, %v4034
  %4374 = vst.msk [vmem:[%s3 + $0xf8] sm:$0xf] %vm4311, %v4035
  %4375 = vst.msk [vmem:[%s3 + $0xfc] sm:$0xf] %vm4311, %v4036
  %4376 = vst.msk [vmem:[%s3 + $0x100] sm:$0xf] %vm4311, %v4037
  %4377 = vst.msk [vmem:[%s3 + $0x104] sm:$0xf] %vm4311, %v4038
  %4378 = vst.msk [vmem:[%s3 + $0x108] sm:$0xf] %vm4311, %v4039
  %4379 = vst.msk [vmem:[%s3 + $0x10c] sm:$0xf] %vm4311, %v4040
  %4380 = vst.msk [vmem:[%s3 + $0x110] sm:$0xf] %vm4311, %v4041
  %4381 = vst.msk [vmem:[%s3 + $0x114] sm:$0xf] %vm4311, %v4042
  %4382 = vst.msk [vmem:[%s3 + $0x118] sm:$0xf] %vm4311, %v4043
  %4383 = vst.msk [vmem:[%s3 + $0x11c] sm:$0xf] %vm4311, %v4044
  %4384 = vst.msk [vmem:[%s3 + $0x120] sm:$0xf] %vm4311, %v4045
  %4385 = vst.msk [vmem:[%s3 + $0x124] sm:$0xf] %vm4311, %v4046
  %4386 = vst.msk [vmem:[%s3 + $0x128] sm:$0xf] %vm4311, %v4047
  %4387 = vst.msk [vmem:[%s3 + $0x12c] sm:$0xf] %vm4311, %v4048
  %4388 = vst.msk [vmem:[%s3 + $0x130] sm:$0xf] %vm4311, %v4049
  %4389 = vst.msk [vmem:[%s3 + $0x134] sm:$0xf] %vm4311, %v4050
  %4390 = vst.msk [vmem:[%s3 + $0x138] sm:$0xf] %vm4311, %v4051
  %4391 = vst.msk [vmem:[%s3 + $0x13c] sm:$0xf] %vm4311, %v4052
  %4392 = vst.msk [vmem:[%s3 + $0x140] sm:$0xf] %vm4311, %v4053
  %4393 = vst.msk [vmem:[%s3 + $0x144] sm:$0xf] %vm4311, %v4054
  %4394 = vst.msk [vmem:[%s3 + $0x148] sm:$0xf] %vm4311, %v4055
  %4395 = vst.msk [vmem:[%s3 + $0x14c] sm:$0xf] %vm4311, %v4056
  %4396 = vst.msk [vmem:[%s3 + $0x150] sm:$0xf] %vm4311, %v4057
  %4397 = vst.msk [vmem:[%s3 + $0x154] sm:$0xf] %vm4311, %v4058
  %4398 = vst.msk [vmem:[%s3 + $0x158] sm:$0xf] %vm4311, %v4059
  %4399 = vst.msk [vmem:[%s3 + $0x15c] sm:$0xf] %vm4311, %v4060
  %4400 = vst.msk [vmem:[%s3 + $0x160] sm:$0xf] %vm4311, %v4061
  %4401 = vst.msk [vmem:[%s3 + $0x164] sm:$0xf] %vm4311, %v4062
  %4402 = vst.msk [vmem:[%s3 + $0x168] sm:$0xf] %vm4311, %v4063
  %4403 = vst.msk [vmem:[%s3 + $0x16c] sm:$0xf] %vm4311, %v4064
  %4404 = vst.msk [vmem:[%s3 + $0x170] sm:$0xf] %vm4311, %v4065
  %4405 = vst.msk [vmem:[%s3 + $0x174] sm:$0xf] %vm4311, %v4066
  %4406 = vst.msk [vmem:[%s3 + $0x178] sm:$0xf] %vm4311, %v4067
  %4407 = vst.msk [vmem:[%s3 + $0x17c] sm:$0xf] %vm4311, %v4068
  %4408 = vst.msk [vmem:[%s3 + $0x180] sm:$0xf] %vm4311, %v4069
  %4409 = vst.msk [vmem:[%s3 + $0x184] sm:$0xf] %vm4311, %v4070
  %4410 = vst.msk [vmem:[%s3 + $0x188] sm:$0xf] %vm4311, %v4071
  %4411 = vst.msk [vmem:[%s3 + $0x18c] sm:$0xf] %vm4311, %v4072
  %4412 = vst.msk [vmem:[%s3 + $0x190] sm:$0xf] %vm4311, %v4073
  %4413 = vst.msk [vmem:[%s3 + $0x194] sm:$0xf] %vm4311, %v4074
  %4414 = vst.msk [vmem:[%s3 + $0x198] sm:$0xf] %vm4311, %v4075
  %4415 = vst.msk [vmem:[%s3 + $0x19c] sm:$0xf] %vm4311, %v4076
  %4416 = vst.msk [vmem:[%s3 + $0x1a0] sm:$0xf] %vm4311, %v4077
  %4417 = vst.msk [vmem:[%s3 + $0x1a4] sm:$0xf] %vm4311, %v4078
  %4418 = vst.msk [vmem:[%s3 + $0x1a8] sm:$0xf] %vm4311, %v4079
  %4419 = vst.msk [vmem:[%s3 + $0x1ac] sm:$0xf] %vm4311, %v4080
  %4420 = vst.msk [vmem:[%s3 + $0x1b0] sm:$0xf] %vm4311, %v4081
  %4421 = vst.msk [vmem:[%s3 + $0x1b4] sm:$0xf] %vm4311, %v4082
  %4422 = vst.msk [vmem:[%s3 + $0x1b8] sm:$0xf] %vm4311, %v4083
  %4423 = vst.msk [vmem:[%s3 + $0x1bc] sm:$0xf] %vm4311, %v4084
  %4424 = vst.msk [vmem:[%s3 + $0x1c0] sm:$0xf] %vm4311, %v4085
  %4425 = vst.msk [vmem:[%s3 + $0x1c4] sm:$0xf] %vm4311, %v4086
  %4426 = vst.msk [vmem:[%s3 + $0x1c8] sm:$0xf] %vm4311, %v4087
  %4427 = vst.msk [vmem:[%s3 + $0x1cc] sm:$0xf] %vm4311, %v4088
  %4428 = vst.msk [vmem:[%s3 + $0x1d0] sm:$0xf] %vm4311, %v4089
  %4429 = vst.msk [vmem:[%s3 + $0x1d4] sm:$0xf] %vm4311, %v4090
  %4430 = vst.msk [vmem:[%s3 + $0x1d8] sm:$0xf] %vm4311, %v4091
  %4431 = vst.msk [vmem:[%s3 + $0x1dc] sm:$0xf] %vm4311, %v4092
  %4432 = vst.msk [vmem:[%s3 + $0x1e0] sm:$0xf] %vm4311, %v4093
  %4433 = vst.msk [vmem:[%s3 + $0x1e4] sm:$0xf] %vm4311, %v4094
  %4434 = vst.msk [vmem:[%s3 + $0x1e8] sm:$0xf] %vm4311, %v4095
  %4435 = vst.msk [vmem:[%s3 + $0x1ec] sm:$0xf] %vm4311, %v4096
  %4436 = vst.msk [vmem:[%s3 + $0x1f0] sm:$0xf] %vm4311, %v4097
  %4437 = vst.msk [vmem:[%s3 + $0x1f4] sm:$0xf] %vm4311, %v4098
  %4438 = vst.msk [vmem:[%s3 + $0x1f8] sm:$0xf] %vm4311, %v4099
  %4439 = vst.msk [vmem:[%s3 + $0x1fc] sm:$0xf] %vm4311, %v4100
  %4440 = vst.msk [vmem:[%s3 + $0x200] sm:$0xf] %vm4311, %v4101
  %4441 = vst.msk [vmem:[%s3 + $0x204] sm:$0xf] %vm4311, %v4102
  %4442 = vst.msk [vmem:[%s3 + $0x208] sm:$0xf] %vm4311, %v4103
  %4443 = vst.msk [vmem:[%s3 + $0x20c] sm:$0xf] %vm4311, %v4104
  %4444 = vst.msk [vmem:[%s3 + $0x210] sm:$0xf] %vm4311, %v4105
  %4445 = vst.msk [vmem:[%s3 + $0x214] sm:$0xf] %vm4311, %v4106
  %4446 = vst.msk [vmem:[%s3 + $0x218] sm:$0xf] %vm4311, %v4107
  %4447 = vst.msk [vmem:[%s3 + $0x21c] sm:$0xf] %vm4311, %v4108
  %4448 = vst.msk [vmem:[%s3 + $0x220] sm:$0xf] %vm4311, %v4109
  %4449 = vst.msk [vmem:[%s3 + $0x224] sm:$0xf] %vm4311, %v4110
  %4450 = vst.msk [vmem:[%s3 + $0x228] sm:$0xf] %vm4311, %v4111
  %4451 = vst.msk [vmem:[%s3 + $0x22c] sm:$0xf] %vm4311, %v4112
  %4452 = vst.msk [vmem:[%s3 + $0x230] sm:$0xf] %vm4311, %v4113
  %4453 = vst.msk [vmem:[%s3 + $0x234] sm:$0xf] %vm4311, %v4114
  %4454 = vst.msk [vmem:[%s3 + $0x238] sm:$0xf] %vm4311, %v4115
  %4455 = vst.msk [vmem:[%s3 + $0x23c] sm:$0xf] %vm4311, %v4116
  %4456 = vst.msk [vmem:[%s3 + $0x240] sm:$0xf] %vm4311, %v4117
  %4457 = vst.msk [vmem:[%s3 + $0x244] sm:$0xf] %vm4311, %v4118
  %4458 = vst.msk [vmem:[%s3 + $0x248] sm:$0xf] %vm4311, %v4119
  %4459 = vst.msk [vmem:[%s3 + $0x24c] sm:$0xf] %vm4311, %v4120
  %4460 = vst.msk [vmem:[%s3 + $0x250] sm:$0xf] %vm4311, %v4121
  %4461 = vst.msk [vmem:[%s3 + $0x254] sm:$0xf] %vm4311, %v4122
  %4462 = vst.msk [vmem:[%s3 + $0x258] sm:$0xf] %vm4311, %v4123
  %4463 = vst.msk [vmem:[%s3 + $0x25c] sm:$0xf] %vm4311, %v4124
  %4464 = vst.msk [vmem:[%s3 + $0x260] sm:$0xf] %vm4311, %v4125
  %4465 = vst.msk [vmem:[%s3 + $0x264] sm:$0xf] %vm4311, %v4126
  %4466 = vst.msk [vmem:[%s3 + $0x268] sm:$0xf] %vm4311, %v4127
  %4467 = vst.msk [vmem:[%s3 + $0x26c] sm:$0xf] %vm4311, %v4128
  %4468 = vst.msk [vmem:[%s3 + $0x270] sm:$0xf] %vm4311, %v4129
  %4469 = vst.msk [vmem:[%s3 + $0x274] sm:$0xf] %vm4311, %v4130
  %4470 = vst.msk [vmem:[%s3 + $0x278] sm:$0xf] %vm4311, %v4131
  %4471 = vst.msk [vmem:[%s3 + $0x27c] sm:$0xf] %vm4311, %v4132
  %4472 = vst.msk [vmem:[%s3 + $0x280] sm:$0xf] %vm4311, %v4133
  %4473 = vst.msk [vmem:[%s3 + $0x284] sm:$0xf] %vm4311, %v4134
  %4474 = vst.msk [vmem:[%s3 + $0x288] sm:$0xf] %vm4311, %v4135
  %4475 = vst.msk [vmem:[%s3 + $0x28c] sm:$0xf] %vm4311, %v4136
  %4476 = vst.msk [vmem:[%s3 + $0x290] sm:$0xf] %vm4311, %v4137
  %4477 = vst.msk [vmem:[%s3 + $0x294] sm:$0xf] %vm4311, %v4138
  %4478 = vst.msk [vmem:[%s3 + $0x298] sm:$0xf] %vm4311, %v4139
  %4479 = vst.msk [vmem:[%s3 + $0x29c] sm:$0xf] %vm4311, %v4140
  %4480 = vst.msk [vmem:[%s3 + $0x2a0] sm:$0xf] %vm4311, %v4141
  // Predicated region
  $region14: #{cnn_forward.3} parent=0 // pred_check
    _
  $region15: #{cnn_forward.3} parent=0 // pred_check_branch
    %4482 = sbr.rel (0) target = $region17
  $region16: #{cnn_forward.3} parent=0 // pred_region
    _
  $region17: #{cnn_forward.3} parent=0 // pred_fallthru
    _
  // Predicated region
  $region18: #{cnn_forward.3} parent=0 // pred_check
    _
  $region19: #{cnn_forward.3} parent=0 // pred_check_branch
    %4484 = sbr.rel (0) target = $region21
  $region20: #{cnn_forward.3} parent=0 // pred_region
    _
  $region21: #{cnn_forward.3} parent=0 // pred_fallthru
    _

// kernel: cnn_forward.4
$region0: #{cnn_forward.4}
  #allocation0 [shape = 'u32[]', space=smem, size = 0x4, offset = 0x4, fixed_abs, tag = 'smem constant byte address 0x4 - core index']
  #allocation1 [shape = 'u32[144,128]{1,0:T(1,128)}', space=vmem, size = 0x12000, scoped, tag = 'internal scratch']
  %s0 = inlined_call_operand.vmem [shape: bf16[200,1152], index: 0, kind: input, shape index: {}]
  %s1 = inlined_call_operand.vmem [shape: bf16[1152,192], index: 1, kind: input, shape index: {}]
  %s2 = inlined_call_operand.vmem [shape: f32[1,48], index: 2, kind: input, shape index: {}]
  %s3 = inlined_call_operand.vmem [shape: bf16[200,48], index: 3, kind: output, shape index: {}]
  %s4 = sld [smem:[#allocation0]]
  $region22: #{cnn_forward.4} parent=0
    _
  %s6 = ssub.s32 1, %s4
  %s7 = scalar_select 0, %s6, %s4
  // Predicated region
  $region2: #{cnn_forward.4} parent=0 // pred_check
    _
  $region3: #{cnn_forward.4} parent=0 // pred_check_branch
    %9 = sbr.rel (0) target = $region5
  $region4: #{cnn_forward.4} parent=0 // pred_region
    _
  $region5: #{cnn_forward.4} parent=0 // pred_fallthru
    _
  // Predicated region
  $region6: #{cnn_forward.4} parent=0 // pred_check
    _
  $region7: #{cnn_forward.4} parent=0 // pred_check_branch
    %11 = sbr.rel (0) target = $region9
  $region8: #{cnn_forward.4} parent=0 // pred_region
    _
  $region9: #{cnn_forward.4} parent=0 // pred_fallthru
    _
  // Predicated region
  $region10: #{cnn_forward.4} parent=0 // pred_check
    _
  $region11: #{cnn_forward.4} parent=0 // pred_check_branch
    %13 = sbr.rel (0) target = $region13
  $region12: #{cnn_forward.4} parent=0 // pred_region
    _
  $region13: #{cnn_forward.4} parent=0 // pred_fallthru
    _
  %v15 = vld [vmem:[%s0] sm:$0xff]
  %v16 = vld [vmem:[%s0 + $0x8] sm:$0xff]
  %v17 = vld [vmem:[%s0 + $0x10] sm:$0xff]
  %v18 = vld [vmem:[%s0 + $0x18] sm:$0xff]
  %v19 = vld [vmem:[%s0 + $0x20] sm:$0xf]
  %v20 = vld [vmem:[%s0 + $0x24] sm:$0xff]
  %v21 = vld [vmem:[%s0 + $0x2c] sm:$0xff]
  %v22 = vld [vmem:[%s0 + $0x34] sm:$0xff]
  %v23 = vld [vmem:[%s0 + $0x3c] sm:$0xff]
  %v24 = vld [vmem:[%s0 + $0x44] sm:$0xf]
  %v25 = vld [vmem:[%s0 + $0x48] sm:$0xff]
  %v26 = vld [vmem:[%s0 + $0x50] sm:$0xff]
  %v27 = vld [vmem:[%s0 + $0x58] sm:$0xff]
  %v28 = vld [vmem:[%s0 + $0x60] sm:$0xff]
  %v29 = vld [vmem:[%s0 + $0x68] sm:$0xf]
  %v30 = vld [vmem:[%s0 + $0x6c] sm:$0xff]
  %v31 = vld [vmem:[%s0 + $0x74] sm:$0xff]
  %v32 = vld [vmem:[%s0 + $0x7c] sm:$0xff]
  %v33 = vld [vmem:[%s0 + $0x84] sm:$0xff]
  %v34 = vld [vmem:[%s0 + $0x8c] sm:$0xf]
  %v35 = vld [vmem:[%s0 + $0x90] sm:$0xff]
  %v36 = vld [vmem:[%s0 + $0x98] sm:$0xff]
  %v37 = vld [vmem:[%s0 + $0xa0] sm:$0xff]
  %v38 = vld [vmem:[%s0 + $0xa8] sm:$0xff]
  %v39 = vld [vmem:[%s0 + $0xb0] sm:$0xf]
  %v40 = vld [vmem:[%s0 + $0xb4] sm:$0xff]
  %v41 = vld [vmem:[%s0 + $0xbc] sm:$0xff]
  %v42 = vld [vmem:[%s0 + $0xc4] sm:$0xff]
  %v43 = vld [vmem:[%s0 + $0xcc] sm:$0xff]
  %v44 = vld [vmem:[%s0 + $0xd4] sm:$0xf]
  %v45 = vld [vmem:[%s0 + $0xd8] sm:$0xff]
  %v46 = vld [vmem:[%s0 + $0xe0] sm:$0xff]
  %v47 = vld [vmem:[%s0 + $0xe8] sm:$0xff]
  %v48 = vld [vmem:[%s0 + $0xf0] sm:$0xff]
  %v49 = vld [vmem:[%s0 + $0xf8] sm:$0xf]
  %v50 = vld [vmem:[%s0 + $0xfc] sm:$0xff]
  %v51 = vld [vmem:[%s0 + $0x104] sm:$0xff]
  %v52 = vld [vmem:[%s0 + $0x10c] sm:$0xff]
  %v53 = vld [vmem:[%s0 + $0x114] sm:$0xff]
  %v54 = vld [vmem:[%s0 + $0x11c] sm:$0xf]
  %v55 = vld [vmem:[%s0 + $0x120] sm:$0xff]
  %v56 = vld [vmem:[%s0 + $0x128] sm:$0xff]
  %v57 = vld [vmem:[%s0 + $0x130] sm:$0xff]
  %v58 = vld [vmem:[%s0 + $0x138] sm:$0xff]
  %v59 = vld [vmem:[%s0 + $0x140] sm:$0xf]
  %v60 = vld [vmem:[%s0 + $0x144] sm:$0xff]
  %v61 = vld [vmem:[%s0 + $0x14c] sm:$0xff]
  %v62 = vld [vmem:[%s0 + $0x154] sm:$0xff]
  %v63 = vld [vmem:[%s0 + $0x15c] sm:$0xff]
  %v64 = vld [vmem:[%s0 + $0x164] sm:$0xf]
  %v65 = vld [vmem:[%s0 + $0x168] sm:$0xff]
  %v66 = vld [vmem:[%s0 + $0x170] sm:$0xff]
  %v67 = vld [vmem:[%s0 + $0x178] sm:$0xff]
  %v68 = vld [vmem:[%s0 + $0x180] sm:$0xff]
  %v69 = vld [vmem:[%s0 + $0x188] sm:$0xf]
  %v70 = vld [vmem:[%s0 + $0x18c] sm:$0xff]
  %v71 = vld [vmem:[%s0 + $0x194] sm:$0xff]
  %v72 = vld [vmem:[%s0 + $0x19c] sm:$0xff]
  %v73 = vld [vmem:[%s0 + $0x1a4] sm:$0xff]
  %v74 = vld [vmem:[%s0 + $0x1ac] sm:$0xf]
  %v75 = vld [vmem:[%s0 + $0x1b0] sm:$0xff]
  %v76 = vld [vmem:[%s0 + $0x1b8] sm:$0xff]
  %v77 = vld [vmem:[%s0 + $0x1c0] sm:$0xff]
  %v78 = vld [vmem:[%s0 + $0x1c8] sm:$0xff]
  %v79 = vld [vmem:[%s0 + $0x1d0] sm:$0xf]
  %v80 = vld [vmem:[%s0 + $0x1d4] sm:$0xff]
  %v81 = vld [vmem:[%s0 + $0x1dc] sm:$0xff]
  %v82 = vld [vmem:[%s0 + $0x1e4] sm:$0xff]
  %v83 = vld [vmem:[%s0 + $0x1ec] sm:$0xff]
  %v84 = vld [vmem:[%s0 + $0x1f4] sm:$0xf]
  %v85 = vld [vmem:[%s0 + $0x1f8] sm:$0xff]
  %v86 = vld [vmem:[%s0 + $0x200] sm:$0xff]
  %v87 = vld [vmem:[%s0 + $0x208] sm:$0xff]
  %v88 = vld [vmem:[%s0 + $0x210] sm:$0xff]
  %v89 = vld [vmem:[%s0 + $0x218] sm:$0xf]
  %v90 = vld [vmem:[%s0 + $0x21c] sm:$0xff]
  %v91 = vld [vmem:[%s0 + $0x224] sm:$0xff]
  %v92 = vld [vmem:[%s0 + $0x22c] sm:$0xff]
  %v93 = vld [vmem:[%s0 + $0x234] sm:$0xff]
  %v94 = vld [vmem:[%s0 + $0x23c] sm:$0xf]
  %v95 = vld [vmem:[%s0 + $0x240] sm:$0xff]
  %v96 = vld [vmem:[%s0 + $0x248] sm:$0xff]
  %v97 = vld [vmem:[%s0 + $0x250] sm:$0xff]
  %v98 = vld [vmem:[%s0 + $0x258] sm:$0xff]
  %v99 = vld [vmem:[%s0 + $0x260] sm:$0xf]
  %v100 = vld [vmem:[%s0 + $0x264] sm:$0xff]
  %v101 = vld [vmem:[%s0 + $0x26c] sm:$0xff]
  %v102 = vld [vmem:[%s0 + $0x274] sm:$0xff]
  %v103 = vld [vmem:[%s0 + $0x27c] sm:$0xff]
  %v104 = vld [vmem:[%s0 + $0x284] sm:$0xf]
  %v105 = vld [vmem:[%s0 + $0x288] sm:$0xff]
  %v106 = vld [vmem:[%s0 + $0x290] sm:$0xff]
  %v107 = vld [vmem:[%s0 + $0x298] sm:$0xff]
  %v108 = vld [vmem:[%s0 + $0x2a0] sm:$0xff]
  %v109 = vld [vmem:[%s0 + $0x2a8] sm:$0xf]
  %v110 = vld [vmem:[%s0 + $0x2ac] sm:$0xff]
  %v111 = vld [vmem:[%s0 + $0x2b4] sm:$0xff]
  %v112 = vld [vmem:[%s0 + $0x2bc] sm:$0xff]
  %v113 = vld [vmem:[%s0 + $0x2c4] sm:$0xff]
  %v114 = vld [vmem:[%s0 + $0x2cc] sm:$0xf]
  %v115 = vld [vmem:[%s0 + $0x2d0] sm:$0xff]
  %v116 = vld [vmem:[%s0 + $0x2d8] sm:$0xff]
  %v117 = vld [vmem:[%s0 + $0x2e0] sm:$0xff]
  %v118 = vld [vmem:[%s0 + $0x2e8] sm:$0xff]
  %v119 = vld [vmem:[%s0 + $0x2f0] sm:$0xf]
  %v120 = vld [vmem:[%s0 + $0x2f4] sm:$0xff]
  %v121 = vld [vmem:[%s0 + $0x2fc] sm:$0xff]
  %v122 = vld [vmem:[%s0 + $0x304] sm:$0xff]
  %v123 = vld [vmem:[%s0 + $0x30c] sm:$0xff]
  %v124 = vld [vmem:[%s0 + $0x314] sm:$0xf]
  %v125 = vld [vmem:[%s0 + $0x318] sm:$0xff]
  %v126 = vld [vmem:[%s0 + $0x320] sm:$0xff]
  %v127 = vld [vmem:[%s0 + $0x328] sm:$0xff]
  %v128 = vld [vmem:[%s0 + $0x330] sm:$0xff]
  %v129 = vld [vmem:[%s0 + $0x338] sm:$0xf]
  %v130 = vld [vmem:[%s0 + $0x33c] sm:$0xff]
  %v131 = vld [vmem:[%s0 + $0x344] sm:$0xff]
  %v132 = vld [vmem:[%s0 + $0x34c] sm:$0xff]
  %v133 = vld [vmem:[%s0 + $0x354] sm:$0xff]
  %v134 = vld [vmem:[%s0 + $0x35c] sm:$0xf]
  %v135 = vld [vmem:[%s0 + $0x360] sm:$0xff]
  %v136 = vld [vmem:[%s0 + $0x368] sm:$0xff]
  %v137 = vld [vmem:[%s0 + $0x370] sm:$0xff]
  %v138 = vld [vmem:[%s0 + $0x378] sm:$0xff]
  %v139 = vld [vmem:[%s0 + $0x380] sm:$0xf]
  %v140 = vld [vmem:[%s1] sm:$0xff]
  %v141 = vld [vmem:[%s1 + $0x8] sm:$0xff]
  %v142 = vld [vmem:[%s1 + $0x10] sm:$0xff]
  %v143 = vld [vmem:[%s1 + $0x18] sm:$0xff]
  %v144 = vld [vmem:[%s1 + $0x20] sm:$0xff]
  %v145 = vld [vmem:[%s1 + $0x28] sm:$0xff]
  %v146 = vld [vmem:[%s1 + $0x30] sm:$0xff]
  %v147 = vld [vmem:[%s1 + $0x38] sm:$0xff]
  %v148 = vld [vmem:[%s1 + $0x40] sm:$0xff]
  %v149 = vld [vmem:[%s1 + $0x48] sm:$0xff]
  %v150 = vld [vmem:[%s1 + $0x50] sm:$0xff]
  %v151 = vld [vmem:[%s1 + $0x58] sm:$0xff]
  %v152 = vld [vmem:[%s1 + $0x60] sm:$0xff]
  %v153 = vld [vmem:[%s1 + $0x68] sm:$0xff]
  %v154 = vld [vmem:[%s1 + $0x70] sm:$0xff]
  %v155 = vld [vmem:[%s1 + $0x78] sm:$0xff]
  %v156 = vld [vmem:[%s1 + $0x80] sm:$0xff]
  %v157 = vld [vmem:[%s1 + $0x88] sm:$0xff]
  %v158 = vld [vmem:[%s1 + $0x90] sm:$0xff]
  %v159 = vld [vmem:[%s1 + $0x98] sm:$0xff]
  %v160 = vld [vmem:[%s1 + $0xa0] sm:$0xff]
  %v161 = vld [vmem:[%s1 + $0xa8] sm:$0xff]
  %v162 = vld [vmem:[%s1 + $0xb0] sm:$0xff]
  %v163 = vld [vmem:[%s1 + $0xb8] sm:$0xff]
  %v164 = vld [vmem:[%s1 + $0xc0] sm:$0xff]
  %v165 = vld [vmem:[%s1 + $0xc8] sm:$0xff]
  %v166 = vld [vmem:[%s1 + $0xd0] sm:$0xff]
  %v167 = vld [vmem:[%s1 + $0xd8] sm:$0xff]
  %v168 = vld [vmem:[%s1 + $0xe0] sm:$0xff]
  %v169 = vld [vmem:[%s1 + $0xe8] sm:$0xff]
  %v170 = vld [vmem:[%s1 + $0xf0] sm:$0xff]
  %v171 = vld [vmem:[%s1 + $0xf8] sm:$0xff]
  %v172 = vld [vmem:[%s1 + $0x100] sm:$0xff]
  %v173 = vld [vmem:[%s1 + $0x108] sm:$0xff]
  %v174 = vld [vmem:[%s1 + $0x110] sm:$0xff]
  %v175 = vld [vmem:[%s1 + $0x118] sm:$0xff]
  %v176 = vld [vmem:[%s1 + $0x120] sm:$0xff]
  %v177 = vld [vmem:[%s1 + $0x128] sm:$0xff]
  %v178 = vld [vmem:[%s1 + $0x130] sm:$0xff]
  %v179 = vld [vmem:[%s1 + $0x138] sm:$0xff]
  %v180 = vld [vmem:[%s1 + $0x140] sm:$0xff]
  %v181 = vld [vmem:[%s1 + $0x148] sm:$0xff]
  %v182 = vld [vmem:[%s1 + $0x150] sm:$0xff]
  %v183 = vld [vmem:[%s1 + $0x158] sm:$0xff]
  %v184 = vld [vmem:[%s1 + $0x160] sm:$0xff]
  %v185 = vld [vmem:[%s1 + $0x168] sm:$0xff]
  %v186 = vld [vmem:[%s1 + $0x170] sm:$0xff]
  %v187 = vld [vmem:[%s1 + $0x178] sm:$0xff]
  %v188 = vld [vmem:[%s1 + $0x180] sm:$0xff]
  %v189 = vld [vmem:[%s1 + $0x188] sm:$0xff]
  %v190 = vld [vmem:[%s1 + $0x190] sm:$0xff]
  %v191 = vld [vmem:[%s1 + $0x198] sm:$0xff]
  %v192 = vld [vmem:[%s1 + $0x1a0] sm:$0xff]
  %v193 = vld [vmem:[%s1 + $0x1a8] sm:$0xff]
  %v194 = vld [vmem:[%s1 + $0x1b0] sm:$0xff]
  %v195 = vld [vmem:[%s1 + $0x1b8] sm:$0xff]
  %v196 = vld [vmem:[%s1 + $0x1c0] sm:$0xff]
  %v197 = vld [vmem:[%s1 + $0x1c8] sm:$0xff]
  %v198 = vld [vmem:[%s1 + $0x1d0] sm:$0xff]
  %v199 = vld [vmem:[%s1 + $0x1d8] sm:$0xff]
  %v200 = vld [vmem:[%s1 + $0x1e0] sm:$0xff]
  %v201 = vld [vmem:[%s1 + $0x1e8] sm:$0xff]
  %v202 = vld [vmem:[%s1 + $0x1f0] sm:$0xff]
  %v203 = vld [vmem:[%s1 + $0x1f8] sm:$0xff]
  %v204 = vld [vmem:[%s1 + $0x200] sm:$0xff]
  %v205 = vld [vmem:[%s1 + $0x208] sm:$0xff]
  %v206 = vld [vmem:[%s1 + $0x210] sm:$0xff]
  %v207 = vld [vmem:[%s1 + $0x218] sm:$0xff]
  %v208 = vld [vmem:[%s1 + $0x220] sm:$0xff]
  %v209 = vld [vmem:[%s1 + $0x228] sm:$0xff]
  %v210 = vld [vmem:[%s1 + $0x230] sm:$0xff]
  %v211 = vld [vmem:[%s1 + $0x238] sm:$0xff]
  %v212 = vld [vmem:[%s1 + $0x240] sm:$0xff]
  %v213 = vld [vmem:[%s1 + $0x248] sm:$0xff]
  %v214 = vld [vmem:[%s1 + $0x250] sm:$0xff]
  %v215 = vld [vmem:[%s1 + $0x258] sm:$0xff]
  %v216 = vld [vmem:[%s1 + $0x260] sm:$0xff]
  %v217 = vld [vmem:[%s1 + $0x268] sm:$0xff]
  %v218 = vld [vmem:[%s1 + $0x270] sm:$0xff]
  %v219 = vld [vmem:[%s1 + $0x278] sm:$0xff]
  %v220 = vld [vmem:[%s1 + $0x280] sm:$0xff]
  %v221 = vld [vmem:[%s1 + $0x288] sm:$0xff]
  %v222 = vld [vmem:[%s1 + $0x290] sm:$0xff]
  %v223 = vld [vmem:[%s1 + $0x298] sm:$0xff]
  %v224 = vld [vmem:[%s1 + $0x2a0] sm:$0xff]
  %v225 = vld [vmem:[%s1 + $0x2a8] sm:$0xff]
  %v226 = vld [vmem:[%s1 + $0x2b0] sm:$0xff]
  %v227 = vld [vmem:[%s1 + $0x2b8] sm:$0xff]
  %v228 = vld [vmem:[%s1 + $0x2c0] sm:$0xff]
  %v229 = vld [vmem:[%s1 + $0x2c8] sm:$0xff]
  %v230 = vld [vmem:[%s1 + $0x2d0] sm:$0xff]
  %v231 = vld [vmem:[%s1 + $0x2d8] sm:$0xff]
  %v232 = vld [vmem:[%s1 + $0x2e0] sm:$0xff]
  %v233 = vld [vmem:[%s1 + $0x2e8] sm:$0xff]
  %v234 = vld [vmem:[%s1 + $0x2f0] sm:$0xff]
  %v235 = vld [vmem:[%s1 + $0x2f8] sm:$0xff]
  %v236 = vld [vmem:[%s1 + $0x300] sm:$0xff]
  %v237 = vld [vmem:[%s1 + $0x308] sm:$0xff]
  %v238 = vld [vmem:[%s1 + $0x310] sm:$0xff]
  %v239 = vld [vmem:[%s1 + $0x318] sm:$0xff]
  %v240 = vld [vmem:[%s1 + $0x320] sm:$0xff]
  %v241 = vld [vmem:[%s1 + $0x328] sm:$0xff]
  %v242 = vld [vmem:[%s1 + $0x330] sm:$0xff]
  %v243 = vld [vmem:[%s1 + $0x338] sm:$0xff]
  %v244 = vld [vmem:[%s1 + $0x340] sm:$0xff]
  %v245 = vld [vmem:[%s1 + $0x348] sm:$0xff]
  %v246 = vld [vmem:[%s1 + $0x350] sm:$0xff]
  %v247 = vld [vmem:[%s1 + $0x358] sm:$0xff]
  %v248 = vld [vmem:[%s1 + $0x360] sm:$0xff]
  %v249 = vld [vmem:[%s1 + $0x368] sm:$0xff]
  %v250 = vld [vmem:[%s1 + $0x370] sm:$0xff]
  %v251 = vld [vmem:[%s1 + $0x378] sm:$0xff]
  %v252 = vld [vmem:[%s1 + $0x380] sm:$0xff]
  %v253 = vld [vmem:[%s1 + $0x388] sm:$0xff]
  %v254 = vld [vmem:[%s1 + $0x390] sm:$0xff]
  %v255 = vld [vmem:[%s1 + $0x398] sm:$0xff]
  %v256 = vld [vmem:[%s1 + $0x3a0] sm:$0xff]
  %v257 = vld [vmem:[%s1 + $0x3a8] sm:$0xff]
  %v258 = vld [vmem:[%s1 + $0x3b0] sm:$0xff]
  %v259 = vld [vmem:[%s1 + $0x3b8] sm:$0xff]
  %v260 = vld [vmem:[%s1 + $0x3c0] sm:$0xff]
  %v261 = vld [vmem:[%s1 + $0x3c8] sm:$0xff]
  %v262 = vld [vmem:[%s1 + $0x3d0] sm:$0xff]
  %v263 = vld [vmem:[%s1 + $0x3d8] sm:$0xff]
  %v264 = vld [vmem:[%s1 + $0x3e0] sm:$0xff]
  %v265 = vld [vmem:[%s1 + $0x3e8] sm:$0xff]
  %v266 = vld [vmem:[%s1 + $0x3f0] sm:$0xff]
  %v267 = vld [vmem:[%s1 + $0x3f8] sm:$0xff]
  %v268 = vld [vmem:[%s1 + $0x400] sm:$0xff]
  %v269 = vld [vmem:[%s1 + $0x408] sm:$0xff]
  %v270 = vld [vmem:[%s1 + $0x410] sm:$0xff]
  %v271 = vld [vmem:[%s1 + $0x418] sm:$0xff]
  %v272 = vld [vmem:[%s1 + $0x420] sm:$0xff]
  %v273 = vld [vmem:[%s1 + $0x428] sm:$0xff]
  %v274 = vld [vmem:[%s1 + $0x430] sm:$0xff]
  %v275 = vld [vmem:[%s1 + $0x438] sm:$0xff]
  %v276 = vld [vmem:[%s1 + $0x440] sm:$0xff]
  %v277 = vld [vmem:[%s1 + $0x448] sm:$0xff]
  %v278 = vld [vmem:[%s1 + $0x450] sm:$0xff]
  %v279 = vld [vmem:[%s1 + $0x458] sm:$0xff]
  %v280 = vld [vmem:[%s1 + $0x460] sm:$0xff]
  %v281 = vld [vmem:[%s1 + $0x468] sm:$0xff]
  %v282 = vld [vmem:[%s1 + $0x470] sm:$0xff]
  %v283 = vld [vmem:[%s1 + $0x478] sm:$0xff]
  %v409 = vunpack.c.l.b16 %v15
  %v410 = vunpack.c.h.b16 %v15
  %v411 = vunpack.c.l.b16 %v16
  %v412 = vunpack.c.h.b16 %v16
  %v413 = vunpack.c.l.b16 %v17
  %v414 = vunpack.c.h.b16 %v17
  %v415 = vunpack.c.l.b16 %v18
  %v416 = vunpack.c.h.b16 %v18
  %v417 = vunpack.c.l.b16 %v19
  %v418 = vunpack.c.l.b16 %v20
  %v419 = vunpack.c.h.b16 %v20
  %v420 = vunpack.c.l.b16 %v21
  %v421 = vunpack.c.h.b16 %v21
  %v422 = vunpack.c.l.b16 %v22
  %v423 = vunpack.c.h.b16 %v22
  %v424 = vunpack.c.l.b16 %v23
  %v425 = vunpack.c.h.b16 %v23
  %v426 = vunpack.c.l.b16 %v24
  %v427 = vunpack.c.l.b16 %v25
  %v428 = vunpack.c.h.b16 %v25
  %v429 = vunpack.c.l.b16 %v26
  %v430 = vunpack.c.h.b16 %v26
  %v431 = vunpack.c.l.b16 %v27
  %v432 = vunpack.c.h.b16 %v27
  %v433 = vunpack.c.l.b16 %v28
  %v434 = vunpack.c.h.b16 %v28
  %v435 = vunpack.c.l.b16 %v29
  %v436 = vunpack.c.l.b16 %v30
  %v437 = vunpack.c.h.b16 %v30
  %v438 = vunpack.c.l.b16 %v31
  %v439 = vunpack.c.h.b16 %v31
  %v440 = vunpack.c.l.b16 %v32
  %v441 = vunpack.c.h.b16 %v32
  %v442 = vunpack.c.l.b16 %v33
  %v443 = vunpack.c.h.b16 %v33
  %v444 = vunpack.c.l.b16 %v34
  %v445 = vunpack.c.l.b16 %v35
  %v446 = vunpack.c.h.b16 %v35
  %v447 = vunpack.c.l.b16 %v36
  %v448 = vunpack.c.h.b16 %v36
  %v449 = vunpack.c.l.b16 %v37
  %v450 = vunpack.c.h.b16 %v37
  %v451 = vunpack.c.l.b16 %v38
  %v452 = vunpack.c.h.b16 %v38
  %v453 = vunpack.c.l.b16 %v39
  %v454 = vunpack.c.l.b16 %v40
  %v455 = vunpack.c.h.b16 %v40
  %v456 = vunpack.c.l.b16 %v41
  %v457 = vunpack.c.h.b16 %v41
  %v458 = vunpack.c.l.b16 %v42
  %v459 = vunpack.c.h.b16 %v42
  %v460 = vunpack.c.l.b16 %v43
  %v461 = vunpack.c.h.b16 %v43
  %v462 = vunpack.c.l.b16 %v44
  %v463 = vunpack.c.l.b16 %v45
  %v464 = vunpack.c.h.b16 %v45
  %v465 = vunpack.c.l.b16 %v46
  %v466 = vunpack.c.h.b16 %v46
  %v467 = vunpack.c.l.b16 %v47
  %v468 = vunpack.c.h.b16 %v47
  %v469 = vunpack.c.l.b16 %v48
  %v470 = vunpack.c.h.b16 %v48
  %v471 = vunpack.c.l.b16 %v49
  %v472 = vunpack.c.l.b16 %v50
  %v473 = vunpack.c.h.b16 %v50
  %v474 = vunpack.c.l.b16 %v51
  %v475 = vunpack.c.h.b16 %v51
  %v476 = vunpack.c.l.b16 %v52
  %v477 = vunpack.c.h.b16 %v52
  %v478 = vunpack.c.l.b16 %v53
  %v479 = vunpack.c.h.b16 %v53
  %v480 = vunpack.c.l.b16 %v54
  %v481 = vunpack.c.l.b16 %v55
  %v482 = vunpack.c.h.b16 %v55
  %v483 = vunpack.c.l.b16 %v56
  %v484 = vunpack.c.h.b16 %v56
  %v485 = vunpack.c.l.b16 %v57
  %v486 = vunpack.c.h.b16 %v57
  %v487 = vunpack.c.l.b16 %v58
  %v488 = vunpack.c.h.b16 %v58
  %v489 = vunpack.c.l.b16 %v59
  %v490 = vunpack.c.l.b16 %v60
  %v491 = vunpack.c.h.b16 %v60
  %v492 = vunpack.c.l.b16 %v61
  %v493 = vunpack.c.h.b16 %v61
  %v494 = vunpack.c.l.b16 %v62
  %v495 = vunpack.c.h.b16 %v62
  %v496 = vunpack.c.l.b16 %v63
  %v497 = vunpack.c.h.b16 %v63
  %v498 = vunpack.c.l.b16 %v64
  %v499 = vunpack.c.l.b16 %v65
  %v500 = vunpack.c.h.b16 %v65
  %v501 = vunpack.c.l.b16 %v66
  %v502 = vunpack.c.h.b16 %v66
  %v503 = vunpack.c.l.b16 %v67
  %v504 = vunpack.c.h.b16 %v67
  %v505 = vunpack.c.l.b16 %v68
  %v506 = vunpack.c.h.b16 %v68
  %v507 = vunpack.c.l.b16 %v69
  %v508 = vunpack.c.l.b16 %v70
  %v509 = vunpack.c.h.b16 %v70
  %v510 = vunpack.c.l.b16 %v71
  %v511 = vunpack.c.h.b16 %v71
  %v512 = vunpack.c.l.b16 %v72
  %v513 = vunpack.c.h.b16 %v72
  %v514 = vunpack.c.l.b16 %v73
  %v515 = vunpack.c.h.b16 %v73
  %v516 = vunpack.c.l.b16 %v74
  %v517 = vunpack.c.l.b16 %v75
  %v518 = vunpack.c.h.b16 %v75
  %v519 = vunpack.c.l.b16 %v76
  %v520 = vunpack.c.h.b16 %v76
  %v521 = vunpack.c.l.b16 %v77
  %v522 = vunpack.c.h.b16 %v77
  %v523 = vunpack.c.l.b16 %v78
  %v524 = vunpack.c.h.b16 %v78
  %v525 = vunpack.c.l.b16 %v79
  %v526 = vunpack.c.l.b16 %v80
  %v527 = vunpack.c.h.b16 %v80
  %v528 = vunpack.c.l.b16 %v81
  %v529 = vunpack.c.h.b16 %v81
  %v530 = vunpack.c.l.b16 %v82
  %v531 = vunpack.c.h.b16 %v82
  %v532 = vunpack.c.l.b16 %v83
  %v533 = vunpack.c.h.b16 %v83
  %v534 = vunpack.c.l.b16 %v84
  %v535 = vunpack.c.l.b16 %v85
  %v536 = vunpack.c.h.b16 %v85
  %v537 = vunpack.c.l.b16 %v86
  %v538 = vunpack.c.h.b16 %v86
  %v539 = vunpack.c.l.b16 %v87
  %v540 = vunpack.c.h.b16 %v87
  %v541 = vunpack.c.l.b16 %v88
  %v542 = vunpack.c.h.b16 %v88
  %v543 = vunpack.c.l.b16 %v89
  %v544 = vunpack.c.l.b16 %v90
  %v545 = vunpack.c.h.b16 %v90
  %v546 = vunpack.c.l.b16 %v91
  %v547 = vunpack.c.h.b16 %v91
  %v548 = vunpack.c.l.b16 %v92
  %v549 = vunpack.c.h.b16 %v92
  %v550 = vunpack.c.l.b16 %v93
  %v551 = vunpack.c.h.b16 %v93
  %v552 = vunpack.c.l.b16 %v94
  %v553 = vunpack.c.l.b16 %v95
  %v554 = vunpack.c.h.b16 %v95
  %v555 = vunpack.c.l.b16 %v96
  %v556 = vunpack.c.h.b16 %v96
  %v557 = vunpack.c.l.b16 %v97
  %v558 = vunpack.c.h.b16 %v97
  %v559 = vunpack.c.l.b16 %v98
  %v560 = vunpack.c.h.b16 %v98
  %v561 = vunpack.c.l.b16 %v99
  %v562 = vunpack.c.l.b16 %v100
  %v563 = vunpack.c.h.b16 %v100
  %v564 = vunpack.c.l.b16 %v101
  %v565 = vunpack.c.h.b16 %v101
  %v566 = vunpack.c.l.b16 %v102
  %v567 = vunpack.c.h.b16 %v102
  %v568 = vunpack.c.l.b16 %v103
  %v569 = vunpack.c.h.b16 %v103
  %v570 = vunpack.c.l.b16 %v104
  %v571 = vunpack.c.l.b16 %v105
  %v572 = vunpack.c.h.b16 %v105
  %v573 = vunpack.c.l.b16 %v106
  %v574 = vunpack.c.h.b16 %v106
  %v575 = vunpack.c.l.b16 %v107
  %v576 = vunpack.c.h.b16 %v107
  %v577 = vunpack.c.l.b16 %v108
  %v578 = vunpack.c.h.b16 %v108
  %v579 = vunpack.c.l.b16 %v109
  %v580 = vunpack.c.l.b16 %v110
  %v581 = vunpack.c.h.b16 %v110
  %v582 = vunpack.c.l.b16 %v111
  %v583 = vunpack.c.h.b16 %v111
  %v584 = vunpack.c.l.b16 %v112
  %v585 = vunpack.c.h.b16 %v112
  %v586 = vunpack.c.l.b16 %v113
  %v587 = vunpack.c.h.b16 %v113
  %v588 = vunpack.c.l.b16 %v114
  %v589 = vunpack.c.l.b16 %v115
  %v590 = vunpack.c.h.b16 %v115
  %v591 = vunpack.c.l.b16 %v116
  %v592 = vunpack.c.h.b16 %v116
  %v593 = vunpack.c.l.b16 %v117
  %v594 = vunpack.c.h.b16 %v117
  %v595 = vunpack.c.l.b16 %v118
  %v596 = vunpack.c.h.b16 %v118
  %v597 = vunpack.c.l.b16 %v119
  %v598 = vunpack.c.l.b16 %v120
  %v599 = vunpack.c.h.b16 %v120
  %v600 = vunpack.c.l.b16 %v121
  %v601 = vunpack.c.h.b16 %v121
  %v602 = vunpack.c.l.b16 %v122
  %v603 = vunpack.c.h.b16 %v122
  %v604 = vunpack.c.l.b16 %v123
  %v605 = vunpack.c.h.b16 %v123
  %v606 = vunpack.c.l.b16 %v124
  %v607 = vunpack.c.l.b16 %v125
  %v608 = vunpack.c.h.b16 %v125
  %v609 = vunpack.c.l.b16 %v126
  %v610 = vunpack.c.h.b16 %v126
  %v611 = vunpack.c.l.b16 %v127
  %v612 = vunpack.c.h.b16 %v127
  %v613 = vunpack.c.l.b16 %v128
  %v614 = vunpack.c.h.b16 %v128
  %v615 = vunpack.c.l.b16 %v129
  %v616 = vunpack.c.l.b16 %v130
  %v617 = vunpack.c.h.b16 %v130
  %v618 = vunpack.c.l.b16 %v131
  %v619 = vunpack.c.h.b16 %v131
  %v620 = vunpack.c.l.b16 %v132
  %v621 = vunpack.c.h.b16 %v132
  %v622 = vunpack.c.l.b16 %v133
  %v623 = vunpack.c.h.b16 %v133
  %v624 = vunpack.c.l.b16 %v134
  %v625 = vunpack.c.l.b16 %v135
  %v626 = vunpack.c.h.b16 %v135
  %v627 = vunpack.c.l.b16 %v136
  %v628 = vunpack.c.h.b16 %v136
  %v629 = vunpack.c.l.b16 %v137
  %v630 = vunpack.c.h.b16 %v137
  %v631 = vunpack.c.l.b16 %v138
  %v632 = vunpack.c.h.b16 %v138
  %v633 = vunpack.c.l.b16 %v139
  %v634 = vpack.c.b16 %v418, %v409
  %v635 = vpack.c.b16 %v419, %v410
  %v636 = vpack.c.b16 %v420, %v411
  %v637 = vpack.c.b16 %v421, %v412
  %v638 = vpack.c.b16 %v422, %v413
  %v639 = vpack.c.b16 %v423, %v414
  %v640 = vpack.c.b16 %v424, %v415
  %v641 = vpack.c.b16 %v425, %v416
  %v642 = vpack.c.b16 %v426, %v417
  %v643 = vpack.c.b16 %v436, %v427
  %v644 = vpack.c.b16 %v437, %v428
  %v645 = vpack.c.b16 %v438, %v429
  %v646 = vpack.c.b16 %v439, %v430
  %v647 = vpack.c.b16 %v440, %v431
  %v648 = vpack.c.b16 %v441, %v432
  %v649 = vpack.c.b16 %v442, %v433
  %v650 = vpack.c.b16 %v443, %v434
  %v651 = vpack.c.b16 %v444, %v435
  %v652 = vpack.c.b16 %v454, %v445
  %v653 = vpack.c.b16 %v455, %v446
  %v654 = vpack.c.b16 %v456, %v447
  %v655 = vpack.c.b16 %v457, %v448
  %v656 = vpack.c.b16 %v458, %v449
  %v657 = vpack.c.b16 %v459, %v450
  %v658 = vpack.c.b16 %v460, %v451
  %v659 = vpack.c.b16 %v461, %v452
  %v660 = vpack.c.b16 %v462, %v453
  %v661 = vpack.c.b16 %v472, %v463
  %v662 = vpack.c.b16 %v473, %v464
  %v663 = vpack.c.b16 %v474, %v465
  %v664 = vpack.c.b16 %v475, %v466
  %v665 = vpack.c.b16 %v476, %v467
  %v666 = vpack.c.b16 %v477, %v468
  %v667 = vpack.c.b16 %v478, %v469
  %v668 = vpack.c.b16 %v479, %v470
  %v669 = vpack.c.b16 %v480, %v471
  %v670 = vpack.c.b16 %v490, %v481
  %v671 = vpack.c.b16 %v491, %v482
  %v672 = vpack.c.b16 %v492, %v483
  %v673 = vpack.c.b16 %v493, %v484
  %v674 = vpack.c.b16 %v494, %v485
  %v675 = vpack.c.b16 %v495, %v486
  %v676 = vpack.c.b16 %v496, %v487
  %v677 = vpack.c.b16 %v497, %v488
  %v678 = vpack.c.b16 %v498, %v489
  %v679 = vpack.c.b16 %v508, %v499
  %v680 = vpack.c.b16 %v509, %v500
  %v681 = vpack.c.b16 %v510, %v501
  %v682 = vpack.c.b16 %v511, %v502
  %v683 = vpack.c.b16 %v512, %v503
  %v684 = vpack.c.b16 %v513, %v504
  %v685 = vpack.c.b16 %v514, %v505
  %v686 = vpack.c.b16 %v515, %v506
  %v687 = vpack.c.b16 %v516, %v507
  %v688 = vpack.c.b16 %v526, %v517
  %v689 = vpack.c.b16 %v527, %v518
  %v690 = vpack.c.b16 %v528, %v519
  %v691 = vpack.c.b16 %v529, %v520
  %v692 = vpack.c.b16 %v530, %v521
  %v693 = vpack.c.b16 %v531, %v522
  %v694 = vpack.c.b16 %v532, %v523
  %v695 = vpack.c.b16 %v533, %v524
  %v696 = vpack.c.b16 %v534, %v525
  %v697 = vpack.c.b16 %v544, %v535
  %v698 = vpack.c.b16 %v545, %v536
  %v699 = vpack.c.b16 %v546, %v537
  %v700 = vpack.c.b16 %v547, %v538
  %v701 = vpack.c.b16 %v548, %v539
  %v702 = vpack.c.b16 %v549, %v540
  %v703 = vpack.c.b16 %v550, %v541
  %v704 = vpack.c.b16 %v551, %v542
  %v705 = vpack.c.b16 %v552, %v543
  %v706 = vpack.c.b16 %v562, %v553
  %v707 = vpack.c.b16 %v563, %v554
  %v708 = vpack.c.b16 %v564, %v555
  %v709 = vpack.c.b16 %v565, %v556
  %v710 = vpack.c.b16 %v566, %v557
  %v711 = vpack.c.b16 %v567, %v558
  %v712 = vpack.c.b16 %v568, %v559
  %v713 = vpack.c.b16 %v569, %v560
  %v714 = vpack.c.b16 %v570, %v561
  %v715 = vpack.c.b16 %v580, %v571
  %v716 = vpack.c.b16 %v581, %v572
  %v717 = vpack.c.b16 %v582, %v573
  %v718 = vpack.c.b16 %v583, %v574
  %v719 = vpack.c.b16 %v584, %v575
  %v720 = vpack.c.b16 %v585, %v576
  %v721 = vpack.c.b16 %v586, %v577
  %v722 = vpack.c.b16 %v587, %v578
  %v723 = vpack.c.b16 %v588, %v579
  %v724 = vpack.c.b16 %v598, %v589
  %v725 = vpack.c.b16 %v599, %v590
  %v726 = vpack.c.b16 %v600, %v591
  %v727 = vpack.c.b16 %v601, %v592
  %v728 = vpack.c.b16 %v602, %v593
  %v729 = vpack.c.b16 %v603, %v594
  %v730 = vpack.c.b16 %v604, %v595
  %v731 = vpack.c.b16 %v605, %v596
  %v732 = vpack.c.b16 %v606, %v597
  %v733 = vpack.c.b16 %v616, %v607
  %v734 = vpack.c.b16 %v617, %v608
  %v735 = vpack.c.b16 %v618, %v609
  %v736 = vpack.c.b16 %v619, %v610
  %v737 = vpack.c.b16 %v620, %v611
  %v738 = vpack.c.b16 %v621, %v612
  %v739 = vpack.c.b16 %v622, %v613
  %v740 = vpack.c.b16 %v623, %v614
  %v741 = vpack.c.b16 %v624, %v615
  %v742 = vpack.c.b16 %v625, %v625
  %v743 = vpack.c.b16 %v626, %v626
  %v744 = vpack.c.b16 %v627, %v627
  %v745 = vpack.c.b16 %v628, %v628
  %v746 = vpack.c.b16 %v629, %v629
  %v747 = vpack.c.b16 %v630, %v630
  %v748 = vpack.c.b16 %v631, %v631
  %v749 = vpack.c.b16 %v632, %v632
  %v750 = vpack.c.b16 %v633, %v633
  %v1012 = vunpack.c.l.b16 %v140
  %v1013 = vunpack.c.h.b16 %v140
  %v1014 = vunpack.c.l.b16 %v141
  %v1015 = vunpack.c.h.b16 %v141
  %v1016 = vunpack.c.l.b16 %v142
  %v1017 = vunpack.c.h.b16 %v142
  %v1018 = vunpack.c.l.b16 %v143
  %v1019 = vunpack.c.h.b16 %v143
  %v1020 = vunpack.c.l.b16 %v144
  %v1021 = vunpack.c.h.b16 %v144
  %v1022 = vunpack.c.l.b16 %v145
  %v1023 = vunpack.c.h.b16 %v145
  %v1024 = vunpack.c.l.b16 %v146
  %v1025 = vunpack.c.h.b16 %v146
  %v1026 = vunpack.c.l.b16 %v147
  %v1027 = vunpack.c.h.b16 %v147
  %v1028 = vunpack.c.l.b16 %v148
  %v1029 = vunpack.c.h.b16 %v148
  %v1030 = vunpack.c.l.b16 %v149
  %v1031 = vunpack.c.h.b16 %v149
  %v1032 = vunpack.c.l.b16 %v150
  %v1033 = vunpack.c.h.b16 %v150
  %v1034 = vunpack.c.l.b16 %v151
  %v1035 = vunpack.c.h.b16 %v151
  %v1036 = vunpack.c.l.b16 %v152
  %v1037 = vunpack.c.h.b16 %v152
  %v1038 = vunpack.c.l.b16 %v153
  %v1039 = vunpack.c.h.b16 %v153
  %v1040 = vunpack.c.l.b16 %v154
  %v1041 = vunpack.c.h.b16 %v154
  %v1042 = vunpack.c.l.b16 %v155
  %v1043 = vunpack.c.h.b16 %v155
  %v1044 = vunpack.c.l.b16 %v156
  %v1045 = vunpack.c.h.b16 %v156
  %v1046 = vunpack.c.l.b16 %v157
  %v1047 = vunpack.c.h.b16 %v157
  %v1048 = vunpack.c.l.b16 %v158
  %v1049 = vunpack.c.h.b16 %v158
  %v1050 = vunpack.c.l.b16 %v159
  %v1051 = vunpack.c.h.b16 %v159
  %v1052 = vunpack.c.l.b16 %v160
  %v1053 = vunpack.c.h.b16 %v160
  %v1054 = vunpack.c.l.b16 %v161
  %v1055 = vunpack.c.h.b16 %v161
  %v1056 = vunpack.c.l.b16 %v162
  %v1057 = vunpack.c.h.b16 %v162
  %v1058 = vunpack.c.l.b16 %v163
  %v1059 = vunpack.c.h.b16 %v163
  %v1060 = vunpack.c.l.b16 %v164
  %v1061 = vunpack.c.h.b16 %v164
  %v1062 = vunpack.c.l.b16 %v165
  %v1063 = vunpack.c.h.b16 %v165
  %v1064 = vunpack.c.l.b16 %v166
  %v1065 = vunpack.c.h.b16 %v166
  %v1066 = vunpack.c.l.b16 %v167
  %v1067 = vunpack.c.h.b16 %v167
  %v1068 = vunpack.c.l.b16 %v168
  %v1069 = vunpack.c.h.b16 %v168
  %v1070 = vunpack.c.l.b16 %v169
  %v1071 = vunpack.c.h.b16 %v169
  %v1072 = vunpack.c.l.b16 %v170
  %v1073 = vunpack.c.h.b16 %v170
  %v1074 = vunpack.c.l.b16 %v171
  %v1075 = vunpack.c.h.b16 %v171
  %v1076 = vunpack.c.l.b16 %v172
  %v1077 = vunpack.c.h.b16 %v172
  %v1078 = vunpack.c.l.b16 %v173
  %v1079 = vunpack.c.h.b16 %v173
  %v1080 = vunpack.c.l.b16 %v174
  %v1081 = vunpack.c.h.b16 %v174
  %v1082 = vunpack.c.l.b16 %v175
  %v1083 = vunpack.c.h.b16 %v175
  %v1084 = vunpack.c.l.b16 %v176
  %v1085 = vunpack.c.h.b16 %v176
  %v1086 = vunpack.c.l.b16 %v177
  %v1087 = vunpack.c.h.b16 %v177
  %v1088 = vunpack.c.l.b16 %v178
  %v1089 = vunpack.c.h.b16 %v178
  %v1090 = vunpack.c.l.b16 %v179
  %v1091 = vunpack.c.h.b16 %v179
  %v1092 = vunpack.c.l.b16 %v180
  %v1093 = vunpack.c.h.b16 %v180
  %v1094 = vunpack.c.l.b16 %v181
  %v1095 = vunpack.c.h.b16 %v181
  %v1096 = vunpack.c.l.b16 %v182
  %v1097 = vunpack.c.h.b16 %v182
  %v1098 = vunpack.c.l.b16 %v183
  %v1099 = vunpack.c.h.b16 %v183
  %v1100 = vunpack.c.l.b16 %v184
  %v1101 = vunpack.c.h.b16 %v184
  %v1102 = vunpack.c.l.b16 %v185
  %v1103 = vunpack.c.h.b16 %v185
  %v1104 = vunpack.c.l.b16 %v186
  %v1105 = vunpack.c.h.b16 %v186
  %v1106 = vunpack.c.l.b16 %v187
  %v1107 = vunpack.c.h.b16 %v187
  %v1108 = vunpack.c.l.b16 %v188
  %v1109 = vunpack.c.h.b16 %v188
  %v1110 = vunpack.c.l.b16 %v189
  %v1111 = vunpack.c.h.b16 %v189
  %v1112 = vunpack.c.l.b16 %v190
  %v1113 = vunpack.c.h.b16 %v190
  %v1114 = vunpack.c.l.b16 %v191
  %v1115 = vunpack.c.h.b16 %v191
  %v1116 = vunpack.c.l.b16 %v192
  %v1117 = vunpack.c.h.b16 %v192
  %v1118 = vunpack.c.l.b16 %v193
  %v1119 = vunpack.c.h.b16 %v193
  %v1120 = vunpack.c.l.b16 %v194
  %v1121 = vunpack.c.h.b16 %v194
  %v1122 = vunpack.c.l.b16 %v195
  %v1123 = vunpack.c.h.b16 %v195
  %v1124 = vunpack.c.l.b16 %v196
  %v1125 = vunpack.c.h.b16 %v196
  %v1126 = vunpack.c.l.b16 %v197
  %v1127 = vunpack.c.h.b16 %v197
  %v1128 = vunpack.c.l.b16 %v198
  %v1129 = vunpack.c.h.b16 %v198
  %v1130 = vunpack.c.l.b16 %v199
  %v1131 = vunpack.c.h.b16 %v199
  %v1132 = vunpack.c.l.b16 %v200
  %v1133 = vunpack.c.h.b16 %v200
  %v1134 = vunpack.c.l.b16 %v201
  %v1135 = vunpack.c.h.b16 %v201
  %v1136 = vunpack.c.l.b16 %v202
  %v1137 = vunpack.c.h.b16 %v202
  %v1138 = vunpack.c.l.b16 %v203
  %v1139 = vunpack.c.h.b16 %v203
  %v1140 = vunpack.c.l.b16 %v204
  %v1141 = vunpack.c.h.b16 %v204
  %v1142 = vunpack.c.l.b16 %v205
  %v1143 = vunpack.c.h.b16 %v205
  %v1144 = vunpack.c.l.b16 %v206
  %v1145 = vunpack.c.h.b16 %v206
  %v1146 = vunpack.c.l.b16 %v207
  %v1147 = vunpack.c.h.b16 %v207
  %v1148 = vunpack.c.l.b16 %v208
  %v1149 = vunpack.c.h.b16 %v208
  %v1150 = vunpack.c.l.b16 %v209
  %v1151 = vunpack.c.h.b16 %v209
  %v1152 = vunpack.c.l.b16 %v210
  %v1153 = vunpack.c.h.b16 %v210
  %v1154 = vunpack.c.l.b16 %v211
  %v1155 = vunpack.c.h.b16 %v211
  %v1156 = vunpack.c.l.b16 %v212
  %v1157 = vunpack.c.h.b16 %v212
  %v1158 = vunpack.c.l.b16 %v213
  %v1159 = vunpack.c.h.b16 %v213
  %v1160 = vunpack.c.l.b16 %v214
  %v1161 = vunpack.c.h.b16 %v214
  %v1162 = vunpack.c.l.b16 %v215
  %v1163 = vunpack.c.h.b16 %v215
  %v1164 = vunpack.c.l.b16 %v216
  %v1165 = vunpack.c.h.b16 %v216
  %v1166 = vunpack.c.l.b16 %v217
  %v1167 = vunpack.c.h.b16 %v217
  %v1168 = vunpack.c.l.b16 %v218
  %v1169 = vunpack.c.h.b16 %v218
  %v1170 = vunpack.c.l.b16 %v219
  %v1171 = vunpack.c.h.b16 %v219
  %v1172 = vunpack.c.l.b16 %v220
  %v1173 = vunpack.c.h.b16 %v220
  %v1174 = vunpack.c.l.b16 %v221
  %v1175 = vunpack.c.h.b16 %v221
  %v1176 = vunpack.c.l.b16 %v222
  %v1177 = vunpack.c.h.b16 %v222
  %v1178 = vunpack.c.l.b16 %v223
  %v1179 = vunpack.c.h.b16 %v223
  %v1180 = vunpack.c.l.b16 %v224
  %v1181 = vunpack.c.h.b16 %v224
  %v1182 = vunpack.c.l.b16 %v225
  %v1183 = vunpack.c.h.b16 %v225
  %v1184 = vunpack.c.l.b16 %v226
  %v1185 = vunpack.c.h.b16 %v226
  %v1186 = vunpack.c.l.b16 %v227
  %v1187 = vunpack.c.h.b16 %v227
  %v1188 = vunpack.c.l.b16 %v228
  %v1189 = vunpack.c.h.b16 %v228
  %v1190 = vunpack.c.l.b16 %v229
  %v1191 = vunpack.c.h.b16 %v229
  %v1192 = vunpack.c.l.b16 %v230
  %v1193 = vunpack.c.h.b16 %v230
  %v1194 = vunpack.c.l.b16 %v231
  %v1195 = vunpack.c.h.b16 %v231
  %v1196 = vunpack.c.l.b16 %v232
  %v1197 = vunpack.c.h.b16 %v232
  %v1198 = vunpack.c.l.b16 %v233
  %v1199 = vunpack.c.h.b16 %v233
  %v1200 = vunpack.c.l.b16 %v234
  %v1201 = vunpack.c.h.b16 %v234
  %v1202 = vunpack.c.l.b16 %v235
  %v1203 = vunpack.c.h.b16 %v235
  %v1204 = vunpack.c.l.b16 %v236
  %v1205 = vunpack.c.h.b16 %v236
  %v1206 = vunpack.c.l.b16 %v237
  %v1207 = vunpack.c.h.b16 %v237
  %v1208 = vunpack.c.l.b16 %v238
  %v1209 = vunpack.c.h.b16 %v238
  %v1210 = vunpack.c.l.b16 %v239
  %v1211 = vunpack.c.h.b16 %v239
  %v1212 = vunpack.c.l.b16 %v240
  %v1213 = vunpack.c.h.b16 %v240
  %v1214 = vunpack.c.l.b16 %v241
  %v1215 = vunpack.c.h.b16 %v241
  %v1216 = vunpack.c.l.b16 %v242
  %v1217 = vunpack.c.h.b16 %v242
  %v1218 = vunpack.c.l.b16 %v243
  %v1219 = vunpack.c.h.b16 %v243
  %v1220 = vunpack.c.l.b16 %v244
  %v1221 = vunpack.c.h.b16 %v244
  %v1222 = vunpack.c.l.b16 %v245
  %v1223 = vunpack.c.h.b16 %v245
  %v1224 = vunpack.c.l.b16 %v246
  %v1225 = vunpack.c.h.b16 %v246
  %v1226 = vunpack.c.l.b16 %v247
  %v1227 = vunpack.c.h.b16 %v247
  %v1228 = vunpack.c.l.b16 %v248
  %v1229 = vunpack.c.h.b16 %v248
  %v1230 = vunpack.c.l.b16 %v249
  %v1231 = vunpack.c.h.b16 %v249
  %v1232 = vunpack.c.l.b16 %v250
  %v1233 = vunpack.c.h.b16 %v250
  %v1234 = vunpack.c.l.b16 %v251
  %v1235 = vunpack.c.h.b16 %v251
  %v1236 = vunpack.c.l.b16 %v252
  %v1237 = vunpack.c.h.b16 %v252
  %v1238 = vunpack.c.l.b16 %v253
  %v1239 = vunpack.c.h.b16 %v253
  %v1240 = vunpack.c.l.b16 %v254
  %v1241 = vunpack.c.h.b16 %v254
  %v1242 = vunpack.c.l.b16 %v255
  %v1243 = vunpack.c.h.b16 %v255
  %v1244 = vunpack.c.l.b16 %v256
  %v1245 = vunpack.c.h.b16 %v256
  %v1246 = vunpack.c.l.b16 %v257
  %v1247 = vunpack.c.h.b16 %v257
  %v1248 = vunpack.c.l.b16 %v258
  %v1249 = vunpack.c.h.b16 %v258
  %v1250 = vunpack.c.l.b16 %v259
  %v1251 = vunpack.c.h.b16 %v259
  %v1252 = vunpack.c.l.b16 %v260
  %v1253 = vunpack.c.h.b16 %v260
  %v1254 = vunpack.c.l.b16 %v261
  %v1255 = vunpack.c.h.b16 %v261
  %v1256 = vunpack.c.l.b16 %v262
  %v1257 = vunpack.c.h.b16 %v262
  %v1258 = vunpack.c.l.b16 %v263
  %v1259 = vunpack.c.h.b16 %v263
  %v1260 = vunpack.c.l.b16 %v264
  %v1261 = vunpack.c.h.b16 %v264
  %v1262 = vunpack.c.l.b16 %v265
  %v1263 = vunpack.c.h.b16 %v265
  %v1264 = vunpack.c.l.b16 %v266
  %v1265 = vunpack.c.h.b16 %v266
  %v1266 = vunpack.c.l.b16 %v267
  %v1267 = vunpack.c.h.b16 %v267
  %v1268 = vunpack.c.l.b16 %v268
  %v1269 = vunpack.c.h.b16 %v268
  %v1270 = vunpack.c.l.b16 %v269
  %v1271 = vunpack.c.h.b16 %v269
  %v1272 = vunpack.c.l.b16 %v270
  %v1273 = vunpack.c.h.b16 %v270
  %v1274 = vunpack.c.l.b16 %v271
  %v1275 = vunpack.c.h.b16 %v271
  %v1276 = vunpack.c.l.b16 %v272
  %v1277 = vunpack.c.h.b16 %v272
  %v1278 = vunpack.c.l.b16 %v273
  %v1279 = vunpack.c.h.b16 %v273
  %v1280 = vunpack.c.l.b16 %v274
  %v1281 = vunpack.c.h.b16 %v274
  %v1282 = vunpack.c.l.b16 %v275
  %v1283 = vunpack.c.h.b16 %v275
  %v1284 = vunpack.c.l.b16 %v276
  %v1285 = vunpack.c.h.b16 %v276
  %v1286 = vunpack.c.l.b16 %v277
  %v1287 = vunpack.c.h.b16 %v277
  %v1288 = vunpack.c.l.b16 %v278
  %v1289 = vunpack.c.h.b16 %v278
  %v1290 = vunpack.c.l.b16 %v279
  %v1291 = vunpack.c.h.b16 %v279
  %v1292 = vunpack.c.l.b16 %v280
  %v1293 = vunpack.c.h.b16 %v280
  %v1294 = vunpack.c.l.b16 %v281
  %v1295 = vunpack.c.h.b16 %v281
  %v1296 = vunpack.c.l.b16 %v282
  %v1297 = vunpack.c.h.b16 %v282
  %v1298 = vunpack.c.l.b16 %v283
  %v1299 = vunpack.c.h.b16 %v283
  %v1300 = vpack.c.b16 %v1014, %v1012
  %v1301 = vpack.c.b16 %v1015, %v1013
  %v1302 = vpack.c.b16 %v1018, %v1016
  %v1303 = vpack.c.b16 %v1019, %v1017
  %v1304 = vpack.c.b16 %v1022, %v1020
  %v1305 = vpack.c.b16 %v1023, %v1021
  %v1306 = vpack.c.b16 %v1026, %v1024
  %v1307 = vpack.c.b16 %v1027, %v1025
  %v1308 = vpack.c.b16 %v1030, %v1028
  %v1309 = vpack.c.b16 %v1031, %v1029
  %v1310 = vpack.c.b16 %v1034, %v1032
  %v1311 = vpack.c.b16 %v1035, %v1033
  %v1312 = vpack.c.b16 %v1038, %v1036
  %v1313 = vpack.c.b16 %v1039, %v1037
  %v1314 = vpack.c.b16 %v1042, %v1040
  %v1315 = vpack.c.b16 %v1043, %v1041
  %v1316 = vpack.c.b16 %v1046, %v1044
  %v1317 = vpack.c.b16 %v1047, %v1045
  %v1318 = vpack.c.b16 %v1050, %v1048
  %v1319 = vpack.c.b16 %v1051, %v1049
  %v1320 = vpack.c.b16 %v1054, %v1052
  %v1321 = vpack.c.b16 %v1055, %v1053
  %v1322 = vpack.c.b16 %v1058, %v1056
  %v1323 = vpack.c.b16 %v1059, %v1057
  %v1324 = vpack.c.b16 %v1062, %v1060
  %v1325 = vpack.c.b16 %v1063, %v1061
  %v1326 = vpack.c.b16 %v1066, %v1064
  %v1327 = vpack.c.b16 %v1067, %v1065
  %v1328 = vpack.c.b16 %v1070, %v1068
  %v1329 = vpack.c.b16 %v1071, %v1069
  %v1330 = vpack.c.b16 %v1074, %v1072
  %v1331 = vpack.c.b16 %v1075, %v1073
  %v1332 = vpack.c.b16 %v1078, %v1076
  %v1333 = vpack.c.b16 %v1079, %v1077
  %v1334 = vpack.c.b16 %v1082, %v1080
  %v1335 = vpack.c.b16 %v1083, %v1081
  %v1336 = vpack.c.b16 %v1086, %v1084
  %v1337 = vpack.c.b16 %v1087, %v1085
  %v1338 = vpack.c.b16 %v1090, %v1088
  %v1339 = vpack.c.b16 %v1091, %v1089
  %v1340 = vpack.c.b16 %v1094, %v1092
  %v1341 = vpack.c.b16 %v1095, %v1093
  %v1342 = vpack.c.b16 %v1098, %v1096
  %v1343 = vpack.c.b16 %v1099, %v1097
  %v1344 = vpack.c.b16 %v1102, %v1100
  %v1345 = vpack.c.b16 %v1103, %v1101
  %v1346 = vpack.c.b16 %v1106, %v1104
  %v1347 = vpack.c.b16 %v1107, %v1105
  %v1348 = vpack.c.b16 %v1110, %v1108
  %v1349 = vpack.c.b16 %v1111, %v1109
  %v1350 = vpack.c.b16 %v1114, %v1112
  %v1351 = vpack.c.b16 %v1115, %v1113
  %v1352 = vpack.c.b16 %v1118, %v1116
  %v1353 = vpack.c.b16 %v1119, %v1117
  %v1354 = vpack.c.b16 %v1122, %v1120
  %v1355 = vpack.c.b16 %v1123, %v1121
  %v1356 = vpack.c.b16 %v1126, %v1124
  %v1357 = vpack.c.b16 %v1127, %v1125
  %v1358 = vpack.c.b16 %v1130, %v1128
  %v1359 = vpack.c.b16 %v1131, %v1129
  %v1360 = vpack.c.b16 %v1134, %v1132
  %v1361 = vpack.c.b16 %v1135, %v1133
  %v1362 = vpack.c.b16 %v1138, %v1136
  %v1363 = vpack.c.b16 %v1139, %v1137
  %v1364 = vpack.c.b16 %v1142, %v1140
  %v1365 = vpack.c.b16 %v1143, %v1141
  %v1366 = vpack.c.b16 %v1146, %v1144
  %v1367 = vpack.c.b16 %v1147, %v1145
  %v1368 = vpack.c.b16 %v1150, %v1148
  %v1369 = vpack.c.b16 %v1151, %v1149
  %v1370 = vpack.c.b16 %v1154, %v1152
  %v1371 = vpack.c.b16 %v1155, %v1153
  %v1372 = vpack.c.b16 %v1158, %v1156
  %v1373 = vpack.c.b16 %v1159, %v1157
  %v1374 = vpack.c.b16 %v1162, %v1160
  %v1375 = vpack.c.b16 %v1163, %v1161
  %v1376 = vpack.c.b16 %v1166, %v1164
  %v1377 = vpack.c.b16 %v1167, %v1165
  %v1378 = vpack.c.b16 %v1170, %v1168
  %v1379 = vpack.c.b16 %v1171, %v1169
  %v1380 = vpack.c.b16 %v1174, %v1172
  %v1381 = vpack.c.b16 %v1175, %v1173
  %v1382 = vpack.c.b16 %v1178, %v1176
  %v1383 = vpack.c.b16 %v1179, %v1177
  %v1384 = vpack.c.b16 %v1182, %v1180
  %v1385 = vpack.c.b16 %v1183, %v1181
  %v1386 = vpack.c.b16 %v1186, %v1184
  %v1387 = vpack.c.b16 %v1187, %v1185
  %v1388 = vpack.c.b16 %v1190, %v1188
  %v1389 = vpack.c.b16 %v1191, %v1189
  %v1390 = vpack.c.b16 %v1194, %v1192
  %v1391 = vpack.c.b16 %v1195, %v1193
  %v1392 = vpack.c.b16 %v1198, %v1196
  %v1393 = vpack.c.b16 %v1199, %v1197
  %v1394 = vpack.c.b16 %v1202, %v1200
  %v1395 = vpack.c.b16 %v1203, %v1201
  %v1396 = vpack.c.b16 %v1206, %v1204
  %v1397 = vpack.c.b16 %v1207, %v1205
  %v1398 = vpack.c.b16 %v1210, %v1208
  %v1399 = vpack.c.b16 %v1211, %v1209
  %v1400 = vpack.c.b16 %v1214, %v1212
  %v1401 = vpack.c.b16 %v1215, %v1213
  %v1402 = vpack.c.b16 %v1218, %v1216
  %v1403 = vpack.c.b16 %v1219, %v1217
  %v1404 = vpack.c.b16 %v1222, %v1220
  %v1405 = vpack.c.b16 %v1223, %v1221
  %v1406 = vpack.c.b16 %v1226, %v1224
  %v1407 = vpack.c.b16 %v1227, %v1225
  %v1408 = vpack.c.b16 %v1230, %v1228
  %v1409 = vpack.c.b16 %v1231, %v1229
  %v1410 = vpack.c.b16 %v1234, %v1232
  %v1411 = vpack.c.b16 %v1235, %v1233
  %v1412 = vpack.c.b16 %v1238, %v1236
  %v1413 = vpack.c.b16 %v1239, %v1237
  %v1414 = vpack.c.b16 %v1242, %v1240
  %v1415 = vpack.c.b16 %v1243, %v1241
  %v1416 = vpack.c.b16 %v1246, %v1244
  %v1417 = vpack.c.b16 %v1247, %v1245
  %v1418 = vpack.c.b16 %v1250, %v1248
  %v1419 = vpack.c.b16 %v1251, %v1249
  %v1420 = vpack.c.b16 %v1254, %v1252
  %v1421 = vpack.c.b16 %v1255, %v1253
  %v1422 = vpack.c.b16 %v1258, %v1256
  %v1423 = vpack.c.b16 %v1259, %v1257
  %v1424 = vpack.c.b16 %v1262, %v1260
  %v1425 = vpack.c.b16 %v1263, %v1261
  %v1426 = vpack.c.b16 %v1266, %v1264
  %v1427 = vpack.c.b16 %v1267, %v1265
  %v1428 = vpack.c.b16 %v1270, %v1268
  %v1429 = vpack.c.b16 %v1271, %v1269
  %v1430 = vpack.c.b16 %v1274, %v1272
  %v1431 = vpack.c.b16 %v1275, %v1273
  %v1432 = vpack.c.b16 %v1278, %v1276
  %v1433 = vpack.c.b16 %v1279, %v1277
  %v1434 = vpack.c.b16 %v1282, %v1280
  %v1435 = vpack.c.b16 %v1283, %v1281
  %v1436 = vpack.c.b16 %v1286, %v1284
  %v1437 = vpack.c.b16 %v1287, %v1285
  %v1438 = vpack.c.b16 %v1290, %v1288
  %v1439 = vpack.c.b16 %v1291, %v1289
  %v1440 = vpack.c.b16 %v1294, %v1292
  %v1441 = vpack.c.b16 %v1295, %v1293
  %v1442 = vpack.c.b16 %v1298, %v1296
  %v1443 = vpack.c.b16 %v1299, %v1297
  %1588 = vmatprep.subr.bf16.mxu0 %v1315
  %1589 = vmatpush1.bf16.msra.mxu0 %v1314
  %1590 = vmatprep.subr.bf16.mxu0 %v1313
  %1591 = vmatpush1.bf16.msra.mxu0 %v1312
  %1592 = vmatprep.subr.bf16.mxu0 %v1311
  %1593 = vmatpush1.bf16.msra.mxu0 %v1310
  %1594 = vmatprep.subr.bf16.mxu0 %v1309
  %1595 = vmatpush1.bf16.msra.mxu0 %v1308
  %1596 = vmatprep.subr.bf16.mxu0 %v1307
  %1597 = vmatpush1.bf16.msra.mxu0 %v1306
  %1598 = vmatprep.subr.bf16.mxu0 %v1305
  %1599 = vmatpush1.bf16.msra.mxu0 %v1304
  %1600 = vmatprep.subr.bf16.mxu0 %v1303
  %1601 = vmatpush1.bf16.msra.mxu0 %v1302
  %1602 = vmatprep.subr.bf16.mxu0 %v1301
  %1603 = vmatpush1.bf16.msra.mxu0 %v1300
  %1604 = vmatprep.subr.bf16.mxu0 %v1331
  %1605 = vmatpush2.bf16.msra.mxu0 %v1330
  %1606 = vmatprep.subr.bf16.mxu0 %v1329
  %1607 = vmatpush2.bf16.msra.mxu0 %v1328
  %1608 = vmatprep.subr.bf16.mxu0 %v1327
  %1609 = vmatpush2.bf16.msra.mxu0 %v1326
  %1610 = vmatprep.subr.bf16.mxu0 %v1325
  %1611 = vmatpush2.bf16.msra.mxu0 %v1324
  %1612 = vmatprep.subr.bf16.mxu0 %v1323
  %1613 = vmatpush2.bf16.msra.mxu0 %v1322
  %1614 = vmatprep.subr.bf16.mxu0 %v1321
  %1615 = vmatpush2.bf16.msra.mxu0 %v1320
  %1616 = vmatprep.subr.bf16.mxu0 %v1319
  %1617 = vmatpush2.bf16.msra.mxu0 %v1318
  %1618 = vmatprep.subr.bf16.mxu0 %v1317
  %1619 = vmatpush2.bf16.msra.mxu0 %v1316
  %1620 = vmatprep.mubr.bf16.mxu0 %v635
  %1621 = vmatmul.mubr.bf16.gmra.mxu0 %v634
  %v1622 = vpop.f32.mrf.mxu0
  %v1623 = vadd.f32 0.0, %v1622
  %v1624 = vpop.f32.mrf.mxu0
  %v1625 = vadd.f32 0.0, %v1624
  %v1626 = vpop.f32.mrf.mxu0
  %v1627 = vadd.f32 0.0, %v1626
  %v1628 = vpop.f32.mrf.mxu0
  %v1629 = vadd.f32 0.0, %v1628
  %1630 = vmatprep.mubr.bf16.mxu0 %v644
  %1631 = vmatmul.mubr.bf16.gmra.mxu0 %v643
  %v1632 = vpop.f32.mrf.mxu0
  %v1633 = vadd.f32 0.0, %v1632
  %v1634 = vpop.f32.mrf.mxu0
  %v1635 = vadd.f32 0.0, %v1634
  %v1636 = vpop.f32.mrf.mxu0
  %v1637 = vadd.f32 0.0, %v1636
  %v1638 = vpop.f32.mrf.mxu0
  %v1639 = vadd.f32 0.0, %v1638
  %1640 = vmatprep.mubr.bf16.mxu0 %v653
  %1641 = vmatmul.mubr.bf16.gmra.mxu0 %v652
  %v1642 = vpop.f32.mrf.mxu0
  %v1643 = vadd.f32 0.0, %v1642
  %v1644 = vpop.f32.mrf.mxu0
  %v1645 = vadd.f32 0.0, %v1644
  %v1646 = vpop.f32.mrf.mxu0
  %v1647 = vadd.f32 0.0, %v1646
  %v1648 = vpop.f32.mrf.mxu0
  %v1649 = vadd.f32 0.0, %v1648
  %1650 = vmatprep.mubr.bf16.mxu0 %v662
  %1651 = vmatmul.mubr.bf16.gmra.mxu0 %v661
  %v1652 = vpop.f32.mrf.mxu0
  %v1653 = vadd.f32 0.0, %v1652
  %v1654 = vpop.f32.mrf.mxu0
  %v1655 = vadd.f32 0.0, %v1654
  %v1656 = vpop.f32.mrf.mxu0
  %v1657 = vadd.f32 0.0, %v1656
  %v1658 = vpop.f32.mrf.mxu0
  %v1659 = vadd.f32 0.0, %v1658
  %1660 = vmatprep.mubr.bf16.mxu0 %v671
  %1661 = vmatmul.mubr.bf16.gmra.mxu0 %v670
  %v1662 = vpop.f32.mrf.mxu0
  %v1663 = vadd.f32 0.0, %v1662
  %v1664 = vpop.f32.mrf.mxu0
  %v1665 = vadd.f32 0.0, %v1664
  %v1666 = vpop.f32.mrf.mxu0
  %v1667 = vadd.f32 0.0, %v1666
  %v1668 = vpop.f32.mrf.mxu0
  %v1669 = vadd.f32 0.0, %v1668
  %1670 = vmatprep.mubr.bf16.mxu0 %v680
  %1671 = vmatmul.mubr.bf16.gmra.mxu0 %v679
  %v1672 = vpop.f32.mrf.mxu0
  %v1673 = vadd.f32 0.0, %v1672
  %v1674 = vpop.f32.mrf.mxu0
  %v1675 = vadd.f32 0.0, %v1674
  %v1676 = vpop.f32.mrf.mxu0
  %v1677 = vadd.f32 0.0, %v1676
  %v1678 = vpop.f32.mrf.mxu0
  %v1679 = vadd.f32 0.0, %v1678
  %1680 = vmatprep.mubr.bf16.mxu0 %v689
  %1681 = vmatmul.mubr.bf16.gmra.mxu0 %v688
  %v1682 = vpop.f32.mrf.mxu0
  %v1683 = vadd.f32 0.0, %v1682
  %v1684 = vpop.f32.mrf.mxu0
  %v1685 = vadd.f32 0.0, %v1684
  %v1686 = vpop.f32.mrf.mxu0
  %v1687 = vadd.f32 0.0, %v1686
  %v1688 = vpop.f32.mrf.mxu0
  %v1689 = vadd.f32 0.0, %v1688
  %1690 = vmatprep.mubr.bf16.mxu0 %v698
  %1691 = vmatmul.mubr.bf16.gmra.mxu0 %v697
  %v1692 = vpop.f32.mrf.mxu0
  %v1693 = vadd.f32 0.0, %v1692
  %v1694 = vpop.f32.mrf.mxu0
  %v1695 = vadd.f32 0.0, %v1694
  %v1696 = vpop.f32.mrf.mxu0
  %v1697 = vadd.f32 0.0, %v1696
  %v1698 = vpop.f32.mrf.mxu0
  %v1699 = vadd.f32 0.0, %v1698
  %1700 = vmatprep.mubr.bf16.mxu0 %v707
  %1701 = vmatmul.mubr.bf16.gmra.mxu0 %v706
  %v1702 = vpop.f32.mrf.mxu0
  %v1703 = vadd.f32 0.0, %v1702
  %v1704 = vpop.f32.mrf.mxu0
  %v1705 = vadd.f32 0.0, %v1704
  %v1706 = vpop.f32.mrf.mxu0
  %v1707 = vadd.f32 0.0, %v1706
  %v1708 = vpop.f32.mrf.mxu0
  %v1709 = vadd.f32 0.0, %v1708
  %1710 = vmatprep.mubr.bf16.mxu0 %v716
  %1711 = vmatmul.mubr.bf16.gmra.mxu0 %v715
  %v1712 = vpop.f32.mrf.mxu0
  %v1713 = vadd.f32 0.0, %v1712
  %v1714 = vpop.f32.mrf.mxu0
  %v1715 = vadd.f32 0.0, %v1714
  %v1716 = vpop.f32.mrf.mxu0
  %v1717 = vadd.f32 0.0, %v1716
  %v1718 = vpop.f32.mrf.mxu0
  %v1719 = vadd.f32 0.0, %v1718
  %1720 = vmatprep.mubr.bf16.mxu0 %v725
  %1721 = vmatmul.mubr.bf16.gmra.mxu0 %v724
  %v1722 = vpop.f32.mrf.mxu0
  %v1723 = vadd.f32 0.0, %v1722
  %v1724 = vpop.f32.mrf.mxu0
  %v1725 = vadd.f32 0.0, %v1724
  %v1726 = vpop.f32.mrf.mxu0
  %v1727 = vadd.f32 0.0, %v1726
  %v1728 = vpop.f32.mrf.mxu0
  %v1729 = vadd.f32 0.0, %v1728
  %1730 = vmatprep.mubr.bf16.mxu0 %v734
  %1731 = vmatmul.mubr.bf16.gmra.mxu0 %v733
  %v1732 = vpop.f32.mrf.mxu0
  %v1733 = vadd.f32 0.0, %v1732
  %v1734 = vpop.f32.mrf.mxu0
  %v1735 = vadd.f32 0.0, %v1734
  %v1736 = vpop.f32.mrf.mxu0
  %v1737 = vadd.f32 0.0, %v1736
  %v1738 = vpop.f32.mrf.mxu0
  %v1739 = vadd.f32 0.0, %v1738
  %1740 = vmatprep.mubr.bf16.mxu0 %v743
  %1741 = vmatmul.mubr.bf16.gmra.mxu0 %v742
  %v1742 = vpop.f32.mrf.mxu0
  %v1743 = vadd.f32 0.0, %v1742
  %v1744 = vpop.f32.mrf.mxu0
  %v1745 = vadd.f32 0.0, %v1744
  %v1746 = vpop.f32.mrf.mxu0
  %v1747 = vpop.f32.mrf.mxu0
  %1748 = vdwg.mxu0
  %1749 = vmatprep.subr.bf16.mxu0 %v1347
  %1750 = vmatpush1.bf16.msra.mxu0 %v1346
  %1751 = vmatprep.subr.bf16.mxu0 %v1345
  %1752 = vmatpush1.bf16.msra.mxu0 %v1344
  %1753 = vmatprep.subr.bf16.mxu0 %v1343
  %1754 = vmatpush1.bf16.msra.mxu0 %v1342
  %1755 = vmatprep.subr.bf16.mxu0 %v1341
  %1756 = vmatpush1.bf16.msra.mxu0 %v1340
  %1757 = vmatprep.subr.bf16.mxu0 %v1339
  %1758 = vmatpush1.bf16.msra.mxu0 %v1338
  %1759 = vmatprep.subr.bf16.mxu0 %v1337
  %1760 = vmatpush1.bf16.msra.mxu0 %v1336
  %1761 = vmatprep.subr.bf16.mxu0 %v1335
  %1762 = vmatpush1.bf16.msra.mxu0 %v1334
  %1763 = vmatprep.subr.bf16.mxu0 %v1333
  %1764 = vmatpush1.bf16.msra.mxu0 %v1332
  %1765 = vmatprep.subr.bf16.mxu0 %v1363
  %1766 = vmatpush2.bf16.msra.mxu0 %v1362
  %1767 = vmatprep.subr.bf16.mxu0 %v1361
  %1768 = vmatpush2.bf16.msra.mxu0 %v1360
  %1769 = vmatprep.subr.bf16.mxu0 %v1359
  %1770 = vmatpush2.bf16.msra.mxu0 %v1358
  %1771 = vmatprep.subr.bf16.mxu0 %v1357
  %1772 = vmatpush2.bf16.msra.mxu0 %v1356
  %1773 = vmatprep.subr.bf16.mxu0 %v1355
  %1774 = vmatpush2.bf16.msra.mxu0 %v1354
  %1775 = vmatprep.subr.bf16.mxu0 %v1353
  %1776 = vmatpush2.bf16.msra.mxu0 %v1352
  %1777 = vmatprep.subr.bf16.mxu0 %v1351
  %1778 = vmatpush2.bf16.msra.mxu0 %v1350
  %1779 = vmatprep.subr.bf16.mxu0 %v1349
  %1780 = vmatpush2.bf16.msra.mxu0 %v1348
  %1781 = vmatprep.mubr.bf16.mxu0 %v637
  %1782 = vmatmul.mubr.bf16.gmra.mxu0 %v636
  %v1783 = vpop.f32.mrf.mxu0
  %v1784 = vadd.f32 %v1623, %v1783
  %v1785 = vpop.f32.mrf.mxu0
  %v1786 = vadd.f32 %v1625, %v1785
  %v1787 = vpop.f32.mrf.mxu0
  %v1788 = vadd.f32 %v1627, %v1787
  %v1789 = vpop.f32.mrf.mxu0
  %v1790 = vadd.f32 %v1629, %v1789
  %1791 = vmatprep.mubr.bf16.mxu0 %v646
  %1792 = vmatmul.mubr.bf16.gmra.mxu0 %v645
  %v1793 = vpop.f32.mrf.mxu0
  %v1794 = vadd.f32 %v1633, %v1793
  %v1795 = vpop.f32.mrf.mxu0
  %v1796 = vadd.f32 %v1635, %v1795
  %v1797 = vpop.f32.mrf.mxu0
  %v1798 = vadd.f32 %v1637, %v1797
  %v1799 = vpop.f32.mrf.mxu0
  %v1800 = vadd.f32 %v1639, %v1799
  %1801 = vmatprep.mubr.bf16.mxu0 %v655
  %1802 = vmatmul.mubr.bf16.gmra.mxu0 %v654
  %v1803 = vpop.f32.mrf.mxu0
  %v1804 = vadd.f32 %v1643, %v1803
  %v1805 = vpop.f32.mrf.mxu0
  %v1806 = vadd.f32 %v1645, %v1805
  %v1807 = vpop.f32.mrf.mxu0
  %v1808 = vadd.f32 %v1647, %v1807
  %v1809 = vpop.f32.mrf.mxu0
  %v1810 = vadd.f32 %v1649, %v1809
  %1811 = vmatprep.mubr.bf16.mxu0 %v664
  %1812 = vmatmul.mubr.bf16.gmra.mxu0 %v663
  %v1813 = vpop.f32.mrf.mxu0
  %v1814 = vadd.f32 %v1653, %v1813
  %v1815 = vpop.f32.mrf.mxu0
  %v1816 = vadd.f32 %v1655, %v1815
  %v1817 = vpop.f32.mrf.mxu0
  %v1818 = vadd.f32 %v1657, %v1817
  %v1819 = vpop.f32.mrf.mxu0
  %v1820 = vadd.f32 %v1659, %v1819
  %1821 = vmatprep.mubr.bf16.mxu0 %v673
  %1822 = vmatmul.mubr.bf16.gmra.mxu0 %v672
  %v1823 = vpop.f32.mrf.mxu0
  %v1824 = vadd.f32 %v1663, %v1823
  %v1825 = vpop.f32.mrf.mxu0
  %v1826 = vadd.f32 %v1665, %v1825
  %v1827 = vpop.f32.mrf.mxu0
  %v1828 = vadd.f32 %v1667, %v1827
  %v1829 = vpop.f32.mrf.mxu0
  %v1830 = vadd.f32 %v1669, %v1829
  %1831 = vmatprep.mubr.bf16.mxu0 %v682
  %1832 = vmatmul.mubr.bf16.gmra.mxu0 %v681
  %v1833 = vpop.f32.mrf.mxu0
  %v1834 = vadd.f32 %v1673, %v1833
  %v1835 = vpop.f32.mrf.mxu0
  %v1836 = vadd.f32 %v1675, %v1835
  %v1837 = vpop.f32.mrf.mxu0
  %v1838 = vadd.f32 %v1677, %v1837
  %v1839 = vpop.f32.mrf.mxu0
  %v1840 = vadd.f32 %v1679, %v1839
  %1841 = vmatprep.mubr.bf16.mxu0 %v691
  %1842 = vmatmul.mubr.bf16.gmra.mxu0 %v690
  %v1843 = vpop.f32.mrf.mxu0
  %v1844 = vadd.f32 %v1683, %v1843
  %v1845 = vpop.f32.mrf.mxu0
  %v1846 = vadd.f32 %v1685, %v1845
  %v1847 = vpop.f32.mrf.mxu0
  %v1848 = vadd.f32 %v1687, %v1847
  %v1849 = vpop.f32.mrf.mxu0
  %v1850 = vadd.f32 %v1689, %v1849
  %1851 = vmatprep.mubr.bf16.mxu0 %v700
  %1852 = vmatmul.mubr.bf16.gmra.mxu0 %v699
  %v1853 = vpop.f32.mrf.mxu0
  %v1854 = vadd.f32 %v1693, %v1853
  %v1855 = vpop.f32.mrf.mxu0
  %v1856 = vadd.f32 %v1695, %v1855
  %v1857 = vpop.f32.mrf.mxu0
  %v1858 = vadd.f32 %v1697, %v1857
  %v1859 = vpop.f32.mrf.mxu0
  %v1860 = vadd.f32 %v1699, %v1859
  %1861 = vmatprep.mubr.bf16.mxu0 %v709
  %1862 = vmatmul.mubr.bf16.gmra.mxu0 %v708
  %v1863 = vpop.f32.mrf.mxu0
  %v1864 = vadd.f32 %v1703, %v1863
  %v1865 = vpop.f32.mrf.mxu0
  %v1866 = vadd.f32 %v1705, %v1865
  %v1867 = vpop.f32.mrf.mxu0
  %v1868 = vadd.f32 %v1707, %v1867
  %v1869 = vpop.f32.mrf.mxu0
  %v1870 = vadd.f32 %v1709, %v1869
  %1871 = vmatprep.mubr.bf16.mxu0 %v718
  %1872 = vmatmul.mubr.bf16.gmra.mxu0 %v717
  %v1873 = vpop.f32.mrf.mxu0
  %v1874 = vadd.f32 %v1713, %v1873
  %v1875 = vpop.f32.mrf.mxu0
  %v1876 = vadd.f32 %v1715, %v1875
  %v1877 = vpop.f32.mrf.mxu0
  %v1878 = vadd.f32 %v1717, %v1877
  %v1879 = vpop.f32.mrf.mxu0
  %v1880 = vadd.f32 %v1719, %v1879
  %1881 = vmatprep.mubr.bf16.mxu0 %v727
  %1882 = vmatmul.mubr.bf16.gmra.mxu0 %v726
  %v1883 = vpop.f32.mrf.mxu0
  %v1884 = vadd.f32 %v1723, %v1883
  %v1885 = vpop.f32.mrf.mxu0
  %v1886 = vadd.f32 %v1725, %v1885
  %v1887 = vpop.f32.mrf.mxu0
  %v1888 = vadd.f32 %v1727, %v1887
  %v1889 = vpop.f32.mrf.mxu0
  %v1890 = vadd.f32 %v1729, %v1889
  %1891 = vmatprep.mubr.bf16.mxu0 %v736
  %1892 = vmatmul.mubr.bf16.gmra.mxu0 %v735
  %v1893 = vpop.f32.mrf.mxu0
  %v1894 = vadd.f32 %v1733, %v1893
  %v1895 = vpop.f32.mrf.mxu0
  %v1896 = vadd.f32 %v1735, %v1895
  %v1897 = vpop.f32.mrf.mxu0
  %v1898 = vadd.f32 %v1737, %v1897
  %v1899 = vpop.f32.mrf.mxu0
  %v1900 = vadd.f32 %v1739, %v1899
  %1901 = vmatprep.mubr.bf16.mxu0 %v745
  %1902 = vmatmul.mubr.bf16.gmra.mxu0 %v744
  %v1903 = vpop.f32.mrf.mxu0
  %v1904 = vadd.f32 %v1743, %v1903
  %v1905 = vpop.f32.mrf.mxu0
  %v1906 = vadd.f32 %v1745, %v1905
  %v1907 = vpop.f32.mrf.mxu0
  %v1908 = vpop.f32.mrf.mxu0
  %1909 = vdwg.mxu0
  %1910 = vmatprep.subr.bf16.mxu0 %v1379
  %1911 = vmatpush1.bf16.msra.mxu0 %v1378
  %1912 = vmatprep.subr.bf16.mxu0 %v1377
  %1913 = vmatpush1.bf16.msra.mxu0 %v1376
  %1914 = vmatprep.subr.bf16.mxu0 %v1375
  %1915 = vmatpush1.bf16.msra.mxu0 %v1374
  %1916 = vmatprep.subr.bf16.mxu0 %v1373
  %1917 = vmatpush1.bf16.msra.mxu0 %v1372
  %1918 = vmatprep.subr.bf16.mxu0 %v1371
  %1919 = vmatpush1.bf16.msra.mxu0 %v1370
  %1920 = vmatprep.subr.bf16.mxu0 %v1369
  %1921 = vmatpush1.bf16.msra.mxu0 %v1368
  %1922 = vmatprep.subr.bf16.mxu0 %v1367
  %1923 = vmatpush1.bf16.msra.mxu0 %v1366
  %1924 = vmatprep.subr.bf16.mxu0 %v1365
  %1925 = vmatpush1.bf16.msra.mxu0 %v1364
  %1926 = vmatprep.subr.bf16.mxu0 %v1395
  %1927 = vmatpush2.bf16.msra.mxu0 %v1394
  %1928 = vmatprep.subr.bf16.mxu0 %v1393
  %1929 = vmatpush2.bf16.msra.mxu0 %v1392
  %1930 = vmatprep.subr.bf16.mxu0 %v1391
  %1931 = vmatpush2.bf16.msra.mxu0 %v1390
  %1932 = vmatprep.subr.bf16.mxu0 %v1389
  %1933 = vmatpush2.bf16.msra.mxu0 %v1388
  %1934 = vmatprep.subr.bf16.mxu0 %v1387
  %1935 = vmatpush2.bf16.msra.mxu0 %v1386
  %1936 = vmatprep.subr.bf16.mxu0 %v1385
  %1937 = vmatpush2.bf16.msra.mxu0 %v1384
  %1938 = vmatprep.subr.bf16.mxu0 %v1383
  %1939 = vmatpush2.bf16.msra.mxu0 %v1382
  %1940 = vmatprep.subr.bf16.mxu0 %v1381
  %1941 = vmatpush2.bf16.msra.mxu0 %v1380
  %1942 = vmatprep.mubr.bf16.mxu0 %v639
  %1943 = vmatmul.mubr.bf16.gmra.mxu0 %v638
  %v1944 = vpop.f32.mrf.mxu0
  %v1945 = vadd.f32 %v1784, %v1944
  %v1946 = vpop.f32.mrf.mxu0
  %v1947 = vadd.f32 %v1786, %v1946
  %v1948 = vpop.f32.mrf.mxu0
  %v1949 = vadd.f32 %v1788, %v1948
  %v1950 = vpop.f32.mrf.mxu0
  %v1951 = vadd.f32 %v1790, %v1950
  %1952 = vmatprep.mubr.bf16.mxu0 %v648
  %1953 = vmatmul.mubr.bf16.gmra.mxu0 %v647
  %v1954 = vpop.f32.mrf.mxu0
  %v1955 = vadd.f32 %v1794, %v1954
  %v1956 = vpop.f32.mrf.mxu0
  %v1957 = vadd.f32 %v1796, %v1956
  %v1958 = vpop.f32.mrf.mxu0
  %v1959 = vadd.f32 %v1798, %v1958
  %v1960 = vpop.f32.mrf.mxu0
  %v1961 = vadd.f32 %v1800, %v1960
  %1962 = vmatprep.mubr.bf16.mxu0 %v657
  %1963 = vmatmul.mubr.bf16.gmra.mxu0 %v656
  %v1964 = vpop.f32.mrf.mxu0
  %v1965 = vadd.f32 %v1804, %v1964
  %v1966 = vpop.f32.mrf.mxu0
  %v1967 = vadd.f32 %v1806, %v1966
  %v1968 = vpop.f32.mrf.mxu0
  %v1969 = vadd.f32 %v1808, %v1968
  %v1970 = vpop.f32.mrf.mxu0
  %v1971 = vadd.f32 %v1810, %v1970
  %1972 = vmatprep.mubr.bf16.mxu0 %v666
  %1973 = vmatmul.mubr.bf16.gmra.mxu0 %v665
  %v1974 = vpop.f32.mrf.mxu0
  %v1975 = vadd.f32 %v1814, %v1974
  %v1976 = vpop.f32.mrf.mxu0
  %v1977 = vadd.f32 %v1816, %v1976
  %v1978 = vpop.f32.mrf.mxu0
  %v1979 = vadd.f32 %v1818, %v1978
  %v1980 = vpop.f32.mrf.mxu0
  %v1981 = vadd.f32 %v1820, %v1980
  %1982 = vmatprep.mubr.bf16.mxu0 %v675
  %1983 = vmatmul.mubr.bf16.gmra.mxu0 %v674
  %v1984 = vpop.f32.mrf.mxu0
  %v1985 = vadd.f32 %v1824, %v1984
  %v1986 = vpop.f32.mrf.mxu0
  %v1987 = vadd.f32 %v1826, %v1986
  %v1988 = vpop.f32.mrf.mxu0
  %v1989 = vadd.f32 %v1828, %v1988
  %v1990 = vpop.f32.mrf.mxu0
  %v1991 = vadd.f32 %v1830, %v1990
  %1992 = vmatprep.mubr.bf16.mxu0 %v684
  %1993 = vmatmul.mubr.bf16.gmra.mxu0 %v683
  %v1994 = vpop.f32.mrf.mxu0
  %v1995 = vadd.f32 %v1834, %v1994
  %v1996 = vpop.f32.mrf.mxu0
  %v1997 = vadd.f32 %v1836, %v1996
  %v1998 = vpop.f32.mrf.mxu0
  %v1999 = vadd.f32 %v1838, %v1998
  %v2000 = vpop.f32.mrf.mxu0
  %v2001 = vadd.f32 %v1840, %v2000
  %2002 = vmatprep.mubr.bf16.mxu0 %v693
  %2003 = vmatmul.mubr.bf16.gmra.mxu0 %v692
  %v2004 = vpop.f32.mrf.mxu0
  %v2005 = vadd.f32 %v1844, %v2004
  %v2006 = vpop.f32.mrf.mxu0
  %v2007 = vadd.f32 %v1846, %v2006
  %v2008 = vpop.f32.mrf.mxu0
  %v2009 = vadd.f32 %v1848, %v2008
  %v2010 = vpop.f32.mrf.mxu0
  %v2011 = vadd.f32 %v1850, %v2010
  %2012 = vmatprep.mubr.bf16.mxu0 %v702
  %2013 = vmatmul.mubr.bf16.gmra.mxu0 %v701
  %v2014 = vpop.f32.mrf.mxu0
  %v2015 = vadd.f32 %v1854, %v2014
  %v2016 = vpop.f32.mrf.mxu0
  %v2017 = vadd.f32 %v1856, %v2016
  %v2018 = vpop.f32.mrf.mxu0
  %v2019 = vadd.f32 %v1858, %v2018
  %v2020 = vpop.f32.mrf.mxu0
  %v2021 = vadd.f32 %v1860, %v2020
  %2022 = vmatprep.mubr.bf16.mxu0 %v711
  %2023 = vmatmul.mubr.bf16.gmra.mxu0 %v710
  %v2024 = vpop.f32.mrf.mxu0
  %v2025 = vadd.f32 %v1864, %v2024
  %v2026 = vpop.f32.mrf.mxu0
  %v2027 = vadd.f32 %v1866, %v2026
  %v2028 = vpop.f32.mrf.mxu0
  %v2029 = vadd.f32 %v1868, %v2028
  %v2030 = vpop.f32.mrf.mxu0
  %v2031 = vadd.f32 %v1870, %v2030
  %2032 = vmatprep.mubr.bf16.mxu0 %v720
  %2033 = vmatmul.mubr.bf16.gmra.mxu0 %v719
  %v2034 = vpop.f32.mrf.mxu0
  %v2035 = vadd.f32 %v1874, %v2034
  %v2036 = vpop.f32.mrf.mxu0
  %v2037 = vadd.f32 %v1876, %v2036
  %v2038 = vpop.f32.mrf.mxu0
  %v2039 = vadd.f32 %v1878, %v2038
  %v2040 = vpop.f32.mrf.mxu0
  %v2041 = vadd.f32 %v1880, %v2040
  %2042 = vmatprep.mubr.bf16.mxu0 %v729
  %2043 = vmatmul.mubr.bf16.gmra.mxu0 %v728
  %v2044 = vpop.f32.mrf.mxu0
  %v2045 = vadd.f32 %v1884, %v2044
  %v2046 = vpop.f32.mrf.mxu0
  %v2047 = vadd.f32 %v1886, %v2046
  %v2048 = vpop.f32.mrf.mxu0
  %v2049 = vadd.f32 %v1888, %v2048
  %v2050 = vpop.f32.mrf.mxu0
  %v2051 = vadd.f32 %v1890, %v2050
  %2052 = vmatprep.mubr.bf16.mxu0 %v738
  %2053 = vmatmul.mubr.bf16.gmra.mxu0 %v737
  %v2054 = vpop.f32.mrf.mxu0
  %v2055 = vadd.f32 %v1894, %v2054
  %v2056 = vpop.f32.mrf.mxu0
  %v2057 = vadd.f32 %v1896, %v2056
  %v2058 = vpop.f32.mrf.mxu0
  %v2059 = vadd.f32 %v1898, %v2058
  %v2060 = vpop.f32.mrf.mxu0
  %v2061 = vadd.f32 %v1900, %v2060
  %2062 = vmatprep.mubr.bf16.mxu0 %v747
  %2063 = vmatmul.mubr.bf16.gmra.mxu0 %v746
  %v2064 = vpop.f32.mrf.mxu0
  %v2065 = vadd.f32 %v1904, %v2064
  %v2066 = vpop.f32.mrf.mxu0
  %v2067 = vadd.f32 %v1906, %v2066
  %v2068 = vpop.f32.mrf.mxu0
  %v2069 = vpop.f32.mrf.mxu0
  %2070 = vdwg.mxu0
  %2071 = vmatprep.subr.bf16.mxu0 %v1411
  %2072 = vmatpush1.bf16.msra.mxu0 %v1410
  %2073 = vmatprep.subr.bf16.mxu0 %v1409
  %2074 = vmatpush1.bf16.msra.mxu0 %v1408
  %2075 = vmatprep.subr.bf16.mxu0 %v1407
  %2076 = vmatpush1.bf16.msra.mxu0 %v1406
  %2077 = vmatprep.subr.bf16.mxu0 %v1405
  %2078 = vmatpush1.bf16.msra.mxu0 %v1404
  %2079 = vmatprep.subr.bf16.mxu0 %v1403
  %2080 = vmatpush1.bf16.msra.mxu0 %v1402
  %2081 = vmatprep.subr.bf16.mxu0 %v1401
  %2082 = vmatpush1.bf16.msra.mxu0 %v1400
  %2083 = vmatprep.subr.bf16.mxu0 %v1399
  %2084 = vmatpush1.bf16.msra.mxu0 %v1398
  %2085 = vmatprep.subr.bf16.mxu0 %v1397
  %2086 = vmatpush1.bf16.msra.mxu0 %v1396
  %2087 = vmatprep.subr.bf16.mxu0 %v1427
  %2088 = vmatpush2.bf16.msra.mxu0 %v1426
  %2089 = vmatprep.subr.bf16.mxu0 %v1425
  %2090 = vmatpush2.bf16.msra.mxu0 %v1424
  %2091 = vmatprep.subr.bf16.mxu0 %v1423
  %2092 = vmatpush2.bf16.msra.mxu0 %v1422
  %2093 = vmatprep.subr.bf16.mxu0 %v1421
  %2094 = vmatpush2.bf16.msra.mxu0 %v1420
  %2095 = vmatprep.subr.bf16.mxu0 %v1419
  %2096 = vmatpush2.bf16.msra.mxu0 %v1418
  %2097 = vmatprep.subr.bf16.mxu0 %v1417
  %2098 = vmatpush2.bf16.msra.mxu0 %v1416
  %2099 = vmatprep.subr.bf16.mxu0 %v1415
  %2100 = vmatpush2.bf16.msra.mxu0 %v1414
  %2101 = vmatprep.subr.bf16.mxu0 %v1413
  %2102 = vmatpush2.bf16.msra.mxu0 %v1412
  %2103 = vmatprep.mubr.bf16.mxu0 %v641
  %2104 = vmatmul.mubr.bf16.gmra.mxu0 %v640
  %v2105 = vpop.f32.mrf.mxu0
  %v2106 = vadd.f32 %v1945, %v2105
  %v2107 = vpop.f32.mrf.mxu0
  %v2108 = vadd.f32 %v1947, %v2107
  %v2109 = vpop.f32.mrf.mxu0
  %v2110 = vadd.f32 %v1949, %v2109
  %v2111 = vpop.f32.mrf.mxu0
  %v2112 = vadd.f32 %v1951, %v2111
  %2113 = vmatprep.mubr.bf16.mxu0 %v650
  %2114 = vmatmul.mubr.bf16.gmra.mxu0 %v649
  %v2115 = vpop.f32.mrf.mxu0
  %v2116 = vadd.f32 %v1955, %v2115
  %v2117 = vpop.f32.mrf.mxu0
  %v2118 = vadd.f32 %v1957, %v2117
  %v2119 = vpop.f32.mrf.mxu0
  %v2120 = vadd.f32 %v1959, %v2119
  %v2121 = vpop.f32.mrf.mxu0
  %v2122 = vadd.f32 %v1961, %v2121
  %2123 = vmatprep.mubr.bf16.mxu0 %v659
  %2124 = vmatmul.mubr.bf16.gmra.mxu0 %v658
  %v2125 = vpop.f32.mrf.mxu0
  %v2126 = vadd.f32 %v1965, %v2125
  %v2127 = vpop.f32.mrf.mxu0
  %v2128 = vadd.f32 %v1967, %v2127
  %v2129 = vpop.f32.mrf.mxu0
  %v2130 = vadd.f32 %v1969, %v2129
  %v2131 = vpop.f32.mrf.mxu0
  %v2132 = vadd.f32 %v1971, %v2131
  %2133 = vmatprep.mubr.bf16.mxu0 %v668
  %2134 = vmatmul.mubr.bf16.gmra.mxu0 %v667
  %v2135 = vpop.f32.mrf.mxu0
  %v2136 = vadd.f32 %v1975, %v2135
  %v2137 = vpop.f32.mrf.mxu0
  %v2138 = vadd.f32 %v1977, %v2137
  %v2139 = vpop.f32.mrf.mxu0
  %v2140 = vadd.f32 %v1979, %v2139
  %v2141 = vpop.f32.mrf.mxu0
  %v2142 = vadd.f32 %v1981, %v2141
  %2143 = vmatprep.mubr.bf16.mxu0 %v677
  %2144 = vmatmul.mubr.bf16.gmra.mxu0 %v676
  %v2145 = vpop.f32.mrf.mxu0
  %v2146 = vadd.f32 %v1985, %v2145
  %v2147 = vpop.f32.mrf.mxu0
  %v2148 = vadd.f32 %v1987, %v2147
  %v2149 = vpop.f32.mrf.mxu0
  %v2150 = vadd.f32 %v1989, %v2149
  %v2151 = vpop.f32.mrf.mxu0
  %v2152 = vadd.f32 %v1991, %v2151
  %2153 = vmatprep.mubr.bf16.mxu0 %v686
  %2154 = vmatmul.mubr.bf16.gmra.mxu0 %v685
  %v2155 = vpop.f32.mrf.mxu0
  %v2156 = vadd.f32 %v1995, %v2155
  %v2157 = vpop.f32.mrf.mxu0
  %v2158 = vadd.f32 %v1997, %v2157
  %v2159 = vpop.f32.mrf.mxu0
  %v2160 = vadd.f32 %v1999, %v2159
  %v2161 = vpop.f32.mrf.mxu0
  %v2162 = vadd.f32 %v2001, %v2161
  %2163 = vmatprep.mubr.bf16.mxu0 %v695
  %2164 = vmatmul.mubr.bf16.gmra.mxu0 %v694
  %v2165 = vpop.f32.mrf.mxu0
  %v2166 = vadd.f32 %v2005, %v2165
  %v2167 = vpop.f32.mrf.mxu0
  %v2168 = vadd.f32 %v2007, %v2167
  %v2169 = vpop.f32.mrf.mxu0
  %v2170 = vadd.f32 %v2009, %v2169
  %v2171 = vpop.f32.mrf.mxu0
  %v2172 = vadd.f32 %v2011, %v2171
  %2173 = vmatprep.mubr.bf16.mxu0 %v704
  %2174 = vmatmul.mubr.bf16.gmra.mxu0 %v703
  %v2175 = vpop.f32.mrf.mxu0
  %v2176 = vadd.f32 %v2015, %v2175
  %v2177 = vpop.f32.mrf.mxu0
  %v2178 = vadd.f32 %v2017, %v2177
  %v2179 = vpop.f32.mrf.mxu0
  %v2180 = vadd.f32 %v2019, %v2179
  %v2181 = vpop.f32.mrf.mxu0
  %v2182 = vadd.f32 %v2021, %v2181
  %2183 = vmatprep.mubr.bf16.mxu0 %v713
  %2184 = vmatmul.mubr.bf16.gmra.mxu0 %v712
  %v2185 = vpop.f32.mrf.mxu0
  %v2186 = vadd.f32 %v2025, %v2185
  %v2187 = vpop.f32.mrf.mxu0
  %v2188 = vadd.f32 %v2027, %v2187
  %v2189 = vpop.f32.mrf.mxu0
  %v2190 = vadd.f32 %v2029, %v2189
  %v2191 = vpop.f32.mrf.mxu0
  %v2192 = vadd.f32 %v2031, %v2191
  %2193 = vmatprep.mubr.bf16.mxu0 %v722
  %2194 = vmatmul.mubr.bf16.gmra.mxu0 %v721
  %v2195 = vpop.f32.mrf.mxu0
  %v2196 = vadd.f32 %v2035, %v2195
  %v2197 = vpop.f32.mrf.mxu0
  %v2198 = vadd.f32 %v2037, %v2197
  %v2199 = vpop.f32.mrf.mxu0
  %v2200 = vadd.f32 %v2039, %v2199
  %v2201 = vpop.f32.mrf.mxu0
  %v2202 = vadd.f32 %v2041, %v2201
  %2203 = vmatprep.mubr.bf16.mxu0 %v731
  %2204 = vmatmul.mubr.bf16.gmra.mxu0 %v730
  %v2205 = vpop.f32.mrf.mxu0
  %v2206 = vadd.f32 %v2045, %v2205
  %v2207 = vpop.f32.mrf.mxu0
  %v2208 = vadd.f32 %v2047, %v2207
  %v2209 = vpop.f32.mrf.mxu0
  %v2210 = vadd.f32 %v2049, %v2209
  %v2211 = vpop.f32.mrf.mxu0
  %v2212 = vadd.f32 %v2051, %v2211
  %2213 = vmatprep.mubr.bf16.mxu0 %v740
  %2214 = vmatmul.mubr.bf16.gmra.mxu0 %v739
  %v2215 = vpop.f32.mrf.mxu0
  %v2216 = vadd.f32 %v2055, %v2215
  %v2217 = vpop.f32.mrf.mxu0
  %v2218 = vadd.f32 %v2057, %v2217
  %v2219 = vpop.f32.mrf.mxu0
  %v2220 = vadd.f32 %v2059, %v2219
  %v2221 = vpop.f32.mrf.mxu0
  %v2222 = vadd.f32 %v2061, %v2221
  %2223 = vmatprep.mubr.bf16.mxu0 %v749
  %2224 = vmatmul.mubr.bf16.gmra.mxu0 %v748
  %v2225 = vpop.f32.mrf.mxu0
  %v2226 = vadd.f32 %v2065, %v2225
  %v2227 = vpop.f32.mrf.mxu0
  %v2228 = vadd.f32 %v2067, %v2227
  %v2229 = vpop.f32.mrf.mxu0
  %v2230 = vpop.f32.mrf.mxu0
  %2231 = vdwg.mxu0
  %2232 = vmatprep.subr.bf16.mxu0 %v1443
  %2233 = vmatpush1.bf16.msra.mxu0 %v1442
  %2234 = vmatprep.subr.bf16.mxu0 %v1441
  %2235 = vmatpush1.bf16.msra.mxu0 %v1440
  %2236 = vmatprep.subr.bf16.mxu0 %v1439
  %2237 = vmatpush1.bf16.msra.mxu0 %v1438
  %2238 = vmatprep.subr.bf16.mxu0 %v1437
  %2239 = vmatpush1.bf16.msra.mxu0 %v1436
  %2240 = vmatprep.subr.bf16.mxu0 %v1435
  %2241 = vmatpush1.bf16.msra.mxu0 %v1434
  %2242 = vmatprep.subr.bf16.mxu0 %v1433
  %2243 = vmatpush1.bf16.msra.mxu0 %v1432
  %2244 = vmatprep.subr.bf16.mxu0 %v1431
  %2245 = vmatpush1.bf16.msra.mxu0 %v1430
  %2246 = vmatprep.subr.bf16.mxu0 %v1429
  %2247 = vmatpush1.bf16.msra.mxu0 %v1428
  %2248 = vmatprep.subr.bf16.mxu0 0
  %2249 = vmatpush2.bf16.msra.mxu0 0
  %2250 = vmatprep.subr.bf16.mxu0 0
  %2251 = vmatpush2.bf16.msra.mxu0 0
  %2252 = vmatprep.subr.bf16.mxu0 0
  %2253 = vmatpush2.bf16.msra.mxu0 0
  %2254 = vmatprep.subr.bf16.mxu0 0
  %2255 = vmatpush2.bf16.msra.mxu0 0
  %2256 = vmatprep.subr.bf16.mxu0 0
  %2257 = vmatpush2.bf16.msra.mxu0 0
  %2258 = vmatprep.subr.bf16.mxu0 0
  %2259 = vmatpush2.bf16.msra.mxu0 0
  %2260 = vmatprep.subr.bf16.mxu0 0
  %2261 = vmatpush2.bf16.msra.mxu0 0
  %2262 = vmatprep.subr.bf16.mxu0 0
  %2263 = vmatpush2.bf16.msra.mxu0 0
  %2264 = vmatprep.mubr.bf16.mxu0 0
  %2265 = vmatmul.mubr.bf16.gmra.mxu0 %v642
  %v2266 = vpop.f32.mrf.mxu0
  %v2267 = vadd.f32 %v2106, %v2266
  %v2268 = vpop.f32.mrf.mxu0
  %v2269 = vadd.f32 %v2108, %v2268
  %v2270 = vpop.f32.mrf.mxu0
  %v2271 = vadd.f32 %v2110, %v2270
  %v2272 = vpop.f32.mrf.mxu0
  %v2273 = vadd.f32 %v2112, %v2272
  %2274 = vmatprep.mubr.bf16.mxu0 0
  %2275 = vmatmul.mubr.bf16.gmra.mxu0 %v651
  %v2276 = vpop.f32.mrf.mxu0
  %v2277 = vadd.f32 %v2116, %v2276
  %v2278 = vpop.f32.mrf.mxu0
  %v2279 = vadd.f32 %v2118, %v2278
  %v2280 = vpop.f32.mrf.mxu0
  %v2281 = vadd.f32 %v2120, %v2280
  %v2282 = vpop.f32.mrf.mxu0
  %v2283 = vadd.f32 %v2122, %v2282
  %2284 = vmatprep.mubr.bf16.mxu0 0
  %2285 = vmatmul.mubr.bf16.gmra.mxu0 %v660
  %v2286 = vpop.f32.mrf.mxu0
  %v2287 = vadd.f32 %v2126, %v2286
  %v2288 = vpop.f32.mrf.mxu0
  %v2289 = vadd.f32 %v2128, %v2288
  %v2290 = vpop.f32.mrf.mxu0
  %v2291 = vadd.f32 %v2130, %v2290
  %v2292 = vpop.f32.mrf.mxu0
  %v2293 = vadd.f32 %v2132, %v2292
  %2294 = vmatprep.mubr.bf16.mxu0 0
  %2295 = vmatmul.mubr.bf16.gmra.mxu0 %v669
  %v2296 = vpop.f32.mrf.mxu0
  %v2297 = vadd.f32 %v2136, %v2296
  %v2298 = vpop.f32.mrf.mxu0
  %v2299 = vadd.f32 %v2138, %v2298
  %v2300 = vpop.f32.mrf.mxu0
  %v2301 = vadd.f32 %v2140, %v2300
  %v2302 = vpop.f32.mrf.mxu0
  %v2303 = vadd.f32 %v2142, %v2302
  %2304 = vmatprep.mubr.bf16.mxu0 0
  %2305 = vmatmul.mubr.bf16.gmra.mxu0 %v678
  %v2306 = vpop.f32.mrf.mxu0
  %v2307 = vadd.f32 %v2146, %v2306
  %v2308 = vpop.f32.mrf.mxu0
  %v2309 = vadd.f32 %v2148, %v2308
  %v2310 = vpop.f32.mrf.mxu0
  %v2311 = vadd.f32 %v2150, %v2310
  %v2312 = vpop.f32.mrf.mxu0
  %v2313 = vadd.f32 %v2152, %v2312
  %2314 = vmatprep.mubr.bf16.mxu0 0
  %2315 = vmatmul.mubr.bf16.gmra.mxu0 %v687
  %v2316 = vpop.f32.mrf.mxu0
  %v2317 = vadd.f32 %v2156, %v2316
  %v2318 = vpop.f32.mrf.mxu0
  %v2319 = vadd.f32 %v2158, %v2318
  %v2320 = vpop.f32.mrf.mxu0
  %v2321 = vadd.f32 %v2160, %v2320
  %v2322 = vpop.f32.mrf.mxu0
  %v2323 = vadd.f32 %v2162, %v2322
  %2324 = vmatprep.mubr.bf16.mxu0 0
  %2325 = vmatmul.mubr.bf16.gmra.mxu0 %v696
  %v2326 = vpop.f32.mrf.mxu0
  %v2327 = vadd.f32 %v2166, %v2326
  %v2328 = vpop.f32.mrf.mxu0
  %v2329 = vadd.f32 %v2168, %v2328
  %v2330 = vpop.f32.mrf.mxu0
  %v2331 = vadd.f32 %v2170, %v2330
  %v2332 = vpop.f32.mrf.mxu0
  %v2333 = vadd.f32 %v2172, %v2332
  %2334 = vmatprep.mubr.bf16.mxu0 0
  %2335 = vmatmul.mubr.bf16.gmra.mxu0 %v705
  %v2336 = vpop.f32.mrf.mxu0
  %v2337 = vadd.f32 %v2176, %v2336
  %v2338 = vpop.f32.mrf.mxu0
  %v2339 = vadd.f32 %v2178, %v2338
  %v2340 = vpop.f32.mrf.mxu0
  %v2341 = vadd.f32 %v2180, %v2340
  %v2342 = vpop.f32.mrf.mxu0
  %v2343 = vadd.f32 %v2182, %v2342
  %2344 = vmatprep.mubr.bf16.mxu0 0
  %2345 = vmatmul.mubr.bf16.gmra.mxu0 %v714
  %v2346 = vpop.f32.mrf.mxu0
  %v2347 = vadd.f32 %v2186, %v2346
  %v2348 = vpop.f32.mrf.mxu0
  %v2349 = vadd.f32 %v2188, %v2348
  %v2350 = vpop.f32.mrf.mxu0
  %v2351 = vadd.f32 %v2190, %v2350
  %v2352 = vpop.f32.mrf.mxu0
  %v2353 = vadd.f32 %v2192, %v2352
  %2354 = vmatprep.mubr.bf16.mxu0 0
  %2355 = vmatmul.mubr.bf16.gmra.mxu0 %v723
  %v2356 = vpop.f32.mrf.mxu0
  %v2357 = vadd.f32 %v2196, %v2356
  %v2358 = vpop.f32.mrf.mxu0
  %v2359 = vadd.f32 %v2198, %v2358
  %v2360 = vpop.f32.mrf.mxu0
  %v2361 = vadd.f32 %v2200, %v2360
  %v2362 = vpop.f32.mrf.mxu0
  %v2363 = vadd.f32 %v2202, %v2362
  %2364 = vmatprep.mubr.bf16.mxu0 0
  %2365 = vmatmul.mubr.bf16.gmra.mxu0 %v732
  %v2366 = vpop.f32.mrf.mxu0
  %v2367 = vadd.f32 %v2206, %v2366
  %v2368 = vpop.f32.mrf.mxu0
  %v2369 = vadd.f32 %v2208, %v2368
  %v2370 = vpop.f32.mrf.mxu0
  %v2371 = vadd.f32 %v2210, %v2370
  %v2372 = vpop.f32.mrf.mxu0
  %v2373 = vadd.f32 %v2212, %v2372
  %2374 = vmatprep.mubr.bf16.mxu0 0
  %2375 = vmatmul.mubr.bf16.gmra.mxu0 %v741
  %v2376 = vpop.f32.mrf.mxu0
  %v2377 = vadd.f32 %v2216, %v2376
  %v2378 = vpop.f32.mrf.mxu0
  %v2379 = vadd.f32 %v2218, %v2378
  %v2380 = vpop.f32.mrf.mxu0
  %v2381 = vadd.f32 %v2220, %v2380
  %v2382 = vpop.f32.mrf.mxu0
  %v2383 = vadd.f32 %v2222, %v2382
  %2384 = vmatprep.mubr.bf16.mxu0 0
  %2385 = vmatmul.mubr.bf16.gmra.mxu0 %v750
  %v2386 = vpop.f32.mrf.mxu0
  %v2387 = vadd.f32 %v2226, %v2386
  %v2388 = vpop.f32.mrf.mxu0
  %v2389 = vadd.f32 %v2228, %v2388
  %v2390 = vpop.f32.mrf.mxu0
  %v2391 = vpop.f32.mrf.mxu0
  %2392 = vdwg.mxu0
  %2418 = vrot.lane.b32.xlu0 %v2267, 80
  %v2419 = vpop.permute.xlu0 %2418
  %2420 = vrot.lane.b32.xlu0 %v2271, 80
  %v2421 = vpop.permute.xlu0 %2420
  %2422 = vrot.lane.b32.xlu0 %v2277, 80
  %v2423 = vpop.permute.xlu0 %2422
  %2424 = vrot.lane.b32.xlu0 %v2281, 80
  %v2425 = vpop.permute.xlu0 %2424
  %2426 = vrot.lane.b32.xlu0 %v2287, 80
  %v2427 = vpop.permute.xlu0 %2426
  %2428 = vrot.lane.b32.xlu0 %v2291, 80
  %v2429 = vpop.permute.xlu0 %2428
  %2430 = vrot.lane.b32.xlu0 %v2297, 80
  %v2431 = vpop.permute.xlu0 %2430
  %2432 = vrot.lane.b32.xlu0 %v2301, 80
  %v2433 = vpop.permute.xlu0 %2432
  %2434 = vrot.lane.b32.xlu0 %v2307, 80
  %v2435 = vpop.permute.xlu0 %2434
  %2436 = vrot.lane.b32.xlu0 %v2311, 80
  %v2437 = vpop.permute.xlu0 %2436
  %2438 = vrot.lane.b32.xlu0 %v2317, 80
  %v2439 = vpop.permute.xlu0 %2438
  %2440 = vrot.lane.b32.xlu0 %v2321, 80
  %v2441 = vpop.permute.xlu0 %2440
  %2442 = vrot.lane.b32.xlu0 %v2327, 80
  %v2443 = vpop.permute.xlu0 %2442
  %2444 = vrot.lane.b32.xlu0 %v2331, 80
  %v2445 = vpop.permute.xlu0 %2444
  %2446 = vrot.lane.b32.xlu0 %v2337, 80
  %v2447 = vpop.permute.xlu0 %2446
  %2448 = vrot.lane.b32.xlu0 %v2341, 80
  %v2449 = vpop.permute.xlu0 %2448
  %2450 = vrot.lane.b32.xlu0 %v2347, 80
  %v2451 = vpop.permute.xlu0 %2450
  %2452 = vrot.lane.b32.xlu0 %v2351, 80
  %v2453 = vpop.permute.xlu0 %2452
  %2454 = vrot.lane.b32.xlu0 %v2357, 80
  %v2455 = vpop.permute.xlu0 %2454
  %2456 = vrot.lane.b32.xlu0 %v2361, 80
  %v2457 = vpop.permute.xlu0 %2456
  %2458 = vrot.lane.b32.xlu0 %v2367, 80
  %v2459 = vpop.permute.xlu0 %2458
  %2460 = vrot.lane.b32.xlu0 %v2371, 80
  %v2461 = vpop.permute.xlu0 %2460
  %2462 = vrot.lane.b32.xlu0 %v2377, 80
  %v2463 = vpop.permute.xlu0 %2462
  %2464 = vrot.lane.b32.xlu0 %v2381, 80
  %v2465 = vpop.permute.xlu0 %2464
  %2466 = vrot.lane.b32.xlu0 %v2387, 80
  %v2467 = vpop.permute.xlu0 %2466
  %v2493 = vmax.f32 %v2267, %v2419
  %v2494 = vmax.f32 %v2271, %v2421
  %v2495 = vmax.f32 %v2277, %v2423
  %v2496 = vmax.f32 %v2281, %v2425
  %v2497 = vmax.f32 %v2287, %v2427
  %v2498 = vmax.f32 %v2291, %v2429
  %v2499 = vmax.f32 %v2297, %v2431
  %v2500 = vmax.f32 %v2301, %v2433
  %v2501 = vmax.f32 %v2307, %v2435
  %v2502 = vmax.f32 %v2311, %v2437
  %v2503 = vmax.f32 %v2317, %v2439
  %v2504 = vmax.f32 %v2321, %v2441
  %v2505 = vmax.f32 %v2327, %v2443
  %v2506 = vmax.f32 %v2331, %v2445
  %v2507 = vmax.f32 %v2337, %v2447
  %v2508 = vmax.f32 %v2341, %v2449
  %v2509 = vmax.f32 %v2347, %v2451
  %v2510 = vmax.f32 %v2351, %v2453
  %v2511 = vmax.f32 %v2357, %v2455
  %v2512 = vmax.f32 %v2361, %v2457
  %v2513 = vmax.f32 %v2367, %v2459
  %v2514 = vmax.f32 %v2371, %v2461
  %v2515 = vmax.f32 %v2377, %v2463
  %v2516 = vmax.f32 %v2381, %v2465
  %v2517 = vmax.f32 %v2387, %v2467
  %2543 = vrot.lane.b32.xlu0 %v2269, 80
  %v2544 = vpop.permute.xlu0 %2543
  %2545 = vrot.lane.b32.xlu0 %v2273, 80
  %v2546 = vpop.permute.xlu0 %2545
  %2547 = vrot.lane.b32.xlu0 %v2279, 80
  %v2548 = vpop.permute.xlu0 %2547
  %2549 = vrot.lane.b32.xlu0 %v2283, 80
  %v2550 = vpop.permute.xlu0 %2549
  %2551 = vrot.lane.b32.xlu0 %v2289, 80
  %v2552 = vpop.permute.xlu0 %2551
  %2553 = vrot.lane.b32.xlu0 %v2293, 80
  %v2554 = vpop.permute.xlu0 %2553
  %2555 = vrot.lane.b32.xlu0 %v2299, 80
  %v2556 = vpop.permute.xlu0 %2555
  %2557 = vrot.lane.b32.xlu0 %v2303, 80
  %v2558 = vpop.permute.xlu0 %2557
  %2559 = vrot.lane.b32.xlu0 %v2309, 80
  %v2560 = vpop.permute.xlu0 %2559
  %2561 = vrot.lane.b32.xlu0 %v2313, 80
  %v2562 = vpop.permute.xlu0 %2561
  %2563 = vrot.lane.b32.xlu0 %v2319, 80
  %v2564 = vpop.permute.xlu0 %2563
  %2565 = vrot.lane.b32.xlu0 %v2323, 80
  %v2566 = vpop.permute.xlu0 %2565
  %2567 = vrot.lane.b32.xlu0 %v2329, 80
  %v2568 = vpop.permute.xlu0 %2567
  %2569 = vrot.lane.b32.xlu0 %v2333, 80
  %v2570 = vpop.permute.xlu0 %2569
  %2571 = vrot.lane.b32.xlu0 %v2339, 80
  %v2572 = vpop.permute.xlu0 %2571
  %2573 = vrot.lane.b32.xlu0 %v2343, 80
  %v2574 = vpop.permute.xlu0 %2573
  %2575 = vrot.lane.b32.xlu0 %v2349, 80
  %v2576 = vpop.permute.xlu0 %2575
  %2577 = vrot.lane.b32.xlu0 %v2353, 80
  %v2578 = vpop.permute.xlu0 %2577
  %2579 = vrot.lane.b32.xlu0 %v2359, 80
  %v2580 = vpop.permute.xlu0 %2579
  %2581 = vrot.lane.b32.xlu0 %v2363, 80
  %v2582 = vpop.permute.xlu0 %2581
  %2583 = vrot.lane.b32.xlu0 %v2369, 80
  %v2584 = vpop.permute.xlu0 %2583
  %2585 = vrot.lane.b32.xlu0 %v2373, 80
  %v2586 = vpop.permute.xlu0 %2585
  %2587 = vrot.lane.b32.xlu0 %v2379, 80
  %v2588 = vpop.permute.xlu0 %2587
  %2589 = vrot.lane.b32.xlu0 %v2383, 80
  %v2590 = vpop.permute.xlu0 %2589
  %2591 = vrot.lane.b32.xlu0 %v2389, 80
  %v2592 = vpop.permute.xlu0 %2591
  %v2618 = vmax.f32 %v2267, %v2544
  %v2619 = vmax.f32 %v2269, %v2544
  %v2620 = vmax.f32 %v2271, %v2546
  %v2621 = vmax.f32 %v2273, %v2546
  %v2622 = vmax.f32 %v2277, %v2548
  %v2623 = vmax.f32 %v2279, %v2548
  %v2624 = vmax.f32 %v2281, %v2550
  %v2625 = vmax.f32 %v2283, %v2550
  %v2626 = vmax.f32 %v2287, %v2552
  %v2627 = vmax.f32 %v2289, %v2552
  %v2628 = vmax.f32 %v2291, %v2554
  %v2629 = vmax.f32 %v2293, %v2554
  %v2630 = vmax.f32 %v2297, %v2556
  %v2631 = vmax.f32 %v2299, %v2556
  %v2632 = vmax.f32 %v2301, %v2558
  %v2633 = vmax.f32 %v2303, %v2558
  %v2634 = vmax.f32 %v2307, %v2560
  %v2635 = vmax.f32 %v2309, %v2560
  %v2636 = vmax.f32 %v2311, %v2562
  %v2637 = vmax.f32 %v2313, %v2562
  %v2638 = vmax.f32 %v2317, %v2564
  %v2639 = vmax.f32 %v2319, %v2564
  %v2640 = vmax.f32 %v2321, %v2566
  %v2641 = vmax.f32 %v2323, %v2566
  %v2642 = vmax.f32 %v2327, %v2568
  %v2643 = vmax.f32 %v2329, %v2568
  %v2644 = vmax.f32 %v2331, %v2570
  %v2645 = vmax.f32 %v2333, %v2570
  %v2646 = vmax.f32 %v2337, %v2572
  %v2647 = vmax.f32 %v2339, %v2572
  %v2648 = vmax.f32 %v2341, %v2574
  %v2649 = vmax.f32 %v2343, %v2574
  %v2650 = vmax.f32 %v2347, %v2576
  %v2651 = vmax.f32 %v2349, %v2576
  %v2652 = vmax.f32 %v2351, %v2578
  %v2653 = vmax.f32 %v2353, %v2578
  %v2654 = vmax.f32 %v2357, %v2580
  %v2655 = vmax.f32 %v2359, %v2580
  %v2656 = vmax.f32 %v2361, %v2582
  %v2657 = vmax.f32 %v2363, %v2582
  %v2658 = vmax.f32 %v2367, %v2584
  %v2659 = vmax.f32 %v2369, %v2584
  %v2660 = vmax.f32 %v2371, %v2586
  %v2661 = vmax.f32 %v2373, %v2586
  %v2662 = vmax.f32 %v2377, %v2588
  %v2663 = vmax.f32 %v2379, %v2588
  %v2664 = vmax.f32 %v2381, %v2590
  %v2665 = vmax.f32 %v2383, %v2590
  %v2666 = vmax.f32 %v2387, %v2592
  %v2667 = vmax.f32 %v2389, %v2592
  %2718 = vrot.lane.b32.xlu0 %v2618, 32
  %v2719 = vpop.permute.xlu0 %2718
  %2720 = vrot.lane.b32.xlu0 %v2619, 32
  %v2721 = vpop.permute.xlu0 %2720
  %2722 = vrot.lane.b32.xlu0 %v2620, 32
  %v2723 = vpop.permute.xlu0 %2722
  %2724 = vrot.lane.b32.xlu0 %v2621, 32
  %v2725 = vpop.permute.xlu0 %2724
  %2726 = vrot.lane.b32.xlu0 %v2622, 32
  %v2727 = vpop.permute.xlu0 %2726
  %2728 = vrot.lane.b32.xlu0 %v2623, 32
  %v2729 = vpop.permute.xlu0 %2728
  %2730 = vrot.lane.b32.xlu0 %v2624, 32
  %v2731 = vpop.permute.xlu0 %2730
  %2732 = vrot.lane.b32.xlu0 %v2625, 32
  %v2733 = vpop.permute.xlu0 %2732
  %2734 = vrot.lane.b32.xlu0 %v2626, 32
  %v2735 = vpop.permute.xlu0 %2734
  %2736 = vrot.lane.b32.xlu0 %v2627, 32
  %v2737 = vpop.permute.xlu0 %2736
  %2738 = vrot.lane.b32.xlu0 %v2628, 32
  %v2739 = vpop.permute.xlu0 %2738
  %2740 = vrot.lane.b32.xlu0 %v2629, 32
  %v2741 = vpop.permute.xlu0 %2740
  %2742 = vrot.lane.b32.xlu0 %v2630, 32
  %v2743 = vpop.permute.xlu0 %2742
  %2744 = vrot.lane.b32.xlu0 %v2631, 32
  %v2745 = vpop.permute.xlu0 %2744
  %2746 = vrot.lane.b32.xlu0 %v2632, 32
  %v2747 = vpop.permute.xlu0 %2746
  %2748 = vrot.lane.b32.xlu0 %v2633, 32
  %v2749 = vpop.permute.xlu0 %2748
  %2750 = vrot.lane.b32.xlu0 %v2634, 32
  %v2751 = vpop.permute.xlu0 %2750
  %2752 = vrot.lane.b32.xlu0 %v2635, 32
  %v2753 = vpop.permute.xlu0 %2752
  %2754 = vrot.lane.b32.xlu0 %v2636, 32
  %v2755 = vpop.permute.xlu0 %2754
  %2756 = vrot.lane.b32.xlu0 %v2637, 32
  %v2757 = vpop.permute.xlu0 %2756
  %2758 = vrot.lane.b32.xlu0 %v2638, 32
  %v2759 = vpop.permute.xlu0 %2758
  %2760 = vrot.lane.b32.xlu0 %v2639, 32
  %v2761 = vpop.permute.xlu0 %2760
  %2762 = vrot.lane.b32.xlu0 %v2640, 32
  %v2763 = vpop.permute.xlu0 %2762
  %2764 = vrot.lane.b32.xlu0 %v2641, 32
  %v2765 = vpop.permute.xlu0 %2764
  %2766 = vrot.lane.b32.xlu0 %v2642, 32
  %v2767 = vpop.permute.xlu0 %2766
  %2768 = vrot.lane.b32.xlu0 %v2643, 32
  %v2769 = vpop.permute.xlu0 %2768
  %2770 = vrot.lane.b32.xlu0 %v2644, 32
  %v2771 = vpop.permute.xlu0 %2770
  %2772 = vrot.lane.b32.xlu0 %v2645, 32
  %v2773 = vpop.permute.xlu0 %2772
  %2774 = vrot.lane.b32.xlu0 %v2646, 32
  %v2775 = vpop.permute.xlu0 %2774
  %2776 = vrot.lane.b32.xlu0 %v2647, 32
  %v2777 = vpop.permute.xlu0 %2776
  %2778 = vrot.lane.b32.xlu0 %v2648, 32
  %v2779 = vpop.permute.xlu0 %2778
  %2780 = vrot.lane.b32.xlu0 %v2649, 32
  %v2781 = vpop.permute.xlu0 %2780
  %2782 = vrot.lane.b32.xlu0 %v2650, 32
  %v2783 = vpop.permute.xlu0 %2782
  %2784 = vrot.lane.b32.xlu0 %v2651, 32
  %v2785 = vpop.permute.xlu0 %2784
  %2786 = vrot.lane.b32.xlu0 %v2652, 32
  %v2787 = vpop.permute.xlu0 %2786
  %2788 = vrot.lane.b32.xlu0 %v2653, 32
  %v2789 = vpop.permute.xlu0 %2788
  %2790 = vrot.lane.b32.xlu0 %v2654, 32
  %v2791 = vpop.permute.xlu0 %2790
  %2792 = vrot.lane.b32.xlu0 %v2655, 32
  %v2793 = vpop.permute.xlu0 %2792
  %2794 = vrot.lane.b32.xlu0 %v2656, 32
  %v2795 = vpop.permute.xlu0 %2794
  %2796 = vrot.lane.b32.xlu0 %v2657, 32
  %v2797 = vpop.permute.xlu0 %2796
  %2798 = vrot.lane.b32.xlu0 %v2658, 32
  %v2799 = vpop.permute.xlu0 %2798
  %2800 = vrot.lane.b32.xlu0 %v2659, 32
  %v2801 = vpop.permute.xlu0 %2800
  %2802 = vrot.lane.b32.xlu0 %v2660, 32
  %v2803 = vpop.permute.xlu0 %2802
  %2804 = vrot.lane.b32.xlu0 %v2661, 32
  %v2805 = vpop.permute.xlu0 %2804
  %2806 = vrot.lane.b32.xlu0 %v2662, 32
  %v2807 = vpop.permute.xlu0 %2806
  %2808 = vrot.lane.b32.xlu0 %v2663, 32
  %v2809 = vpop.permute.xlu0 %2808
  %2810 = vrot.lane.b32.xlu0 %v2664, 32
  %v2811 = vpop.permute.xlu0 %2810
  %2812 = vrot.lane.b32.xlu0 %v2665, 32
  %v2813 = vpop.permute.xlu0 %2812
  %2814 = vrot.lane.b32.xlu0 %v2666, 32
  %v2815 = vpop.permute.xlu0 %2814
  %2816 = vrot.lane.b32.xlu0 %v2667, 32
  %v2817 = vpop.permute.xlu0 %2816
  %vm2818 = vcmask 261120
  %v2819 = vsel %vm2818, %v2719, %v2721
  %v2820 = vsel %vm2818, %v2723, %v2725
  %v2821 = vsel %vm2818, %v2727, %v2729
  %v2822 = vsel %vm2818, %v2731, %v2733
  %v2823 = vsel %vm2818, %v2735, %v2737
  %v2824 = vsel %vm2818, %v2739, %v2741
  %v2825 = vsel %vm2818, %v2743, %v2745
  %v2826 = vsel %vm2818, %v2747, %v2749
  %v2827 = vsel %vm2818, %v2751, %v2753
  %v2828 = vsel %vm2818, %v2755, %v2757
  %v2829 = vsel %vm2818, %v2759, %v2761
  %v2830 = vsel %vm2818, %v2763, %v2765
  %v2831 = vsel %vm2818, %v2767, %v2769
  %v2832 = vsel %vm2818, %v2771, %v2773
  %v2833 = vsel %vm2818, %v2775, %v2777
  %v2834 = vsel %vm2818, %v2779, %v2781
  %v2835 = vsel %vm2818, %v2783, %v2785
  %v2836 = vsel %vm2818, %v2787, %v2789
  %v2837 = vsel %vm2818, %v2791, %v2793
  %v2838 = vsel %vm2818, %v2795, %v2797
  %v2839 = vsel %vm2818, %v2799, %v2801
  %v2840 = vsel %vm2818, %v2803, %v2805
  %v2841 = vsel %vm2818, %v2807, %v2809
  %v2842 = vsel %vm2818, %v2811, %v2813
  %v2843 = vsel %vm2818, %v2815, %v2817
  %v2869 = vmax.f32 %v2493, %v2819
  %v2870 = vmax.f32 %v2494, %v2820
  %v2871 = vmax.f32 %v2495, %v2821
  %v2872 = vmax.f32 %v2496, %v2822
  %v2873 = vmax.f32 %v2497, %v2823
  %v2874 = vmax.f32 %v2498, %v2824
  %v2875 = vmax.f32 %v2499, %v2825
  %v2876 = vmax.f32 %v2500, %v2826
  %v2877 = vmax.f32 %v2501, %v2827
  %v2878 = vmax.f32 %v2502, %v2828
  %v2879 = vmax.f32 %v2503, %v2829
  %v2880 = vmax.f32 %v2504, %v2830
  %v2881 = vmax.f32 %v2505, %v2831
  %v2882 = vmax.f32 %v2506, %v2832
  %v2883 = vmax.f32 %v2507, %v2833
  %v2884 = vmax.f32 %v2508, %v2834
  %v2885 = vmax.f32 %v2509, %v2835
  %v2886 = vmax.f32 %v2510, %v2836
  %v2887 = vmax.f32 %v2511, %v2837
  %v2888 = vmax.f32 %v2512, %v2838
  %v2889 = vmax.f32 %v2513, %v2839
  %v2890 = vmax.f32 %v2514, %v2840
  %v2891 = vmax.f32 %v2515, %v2841
  %v2892 = vmax.f32 %v2516, %v2842
  %v2893 = vmax.f32 %v2517, %v2843
  %v2894 = vld [vmem:[%s2] sm:$0x1]
  %v2896 = vlaneseq
  %v2897 = vshrl.u32 %v2896, 7
  %v2898 = vsub.s32 0, %v2897
  %v2899 = vrot.slane %v2894, %v2898
  %v2901 = vadd.f32 %v2869, %v2899
  %v2902 = vadd.f32 %v2870, %v2899
  %v2903 = vadd.f32 %v2871, %v2899
  %v2904 = vadd.f32 %v2872, %v2899
  %v2905 = vadd.f32 %v2873, %v2899
  %v2906 = vadd.f32 %v2874, %v2899
  %v2907 = vadd.f32 %v2875, %v2899
  %v2908 = vadd.f32 %v2876, %v2899
  %v2909 = vadd.f32 %v2877, %v2899
  %v2910 = vadd.f32 %v2878, %v2899
  %v2911 = vadd.f32 %v2879, %v2899
  %v2912 = vadd.f32 %v2880, %v2899
  %v2913 = vadd.f32 %v2881, %v2899
  %v2914 = vadd.f32 %v2882, %v2899
  %v2915 = vadd.f32 %v2883, %v2899
  %v2916 = vadd.f32 %v2884, %v2899
  %v2917 = vadd.f32 %v2885, %v2899
  %v2918 = vadd.f32 %v2886, %v2899
  %v2919 = vadd.f32 %v2887, %v2899
  %v2920 = vadd.f32 %v2888, %v2899
  %v2921 = vadd.f32 %v2889, %v2899
  %v2922 = vadd.f32 %v2890, %v2899
  %v2923 = vadd.f32 %v2891, %v2899
  %v2924 = vadd.f32 %v2892, %v2899
  %v2925 = vadd.f32 %v2893, %v2899
  %v2926 = vmax.f32 %v2901, 0.0
  %v2927 = vmax.f32 %v2902, 0.0
  %v2928 = vmax.f32 %v2903, 0.0
  %v2929 = vmax.f32 %v2904, 0.0
  %v2930 = vmax.f32 %v2905, 0.0
  %v2931 = vmax.f32 %v2906, 0.0
  %v2932 = vmax.f32 %v2907, 0.0
  %v2933 = vmax.f32 %v2908, 0.0
  %v2934 = vmax.f32 %v2909, 0.0
  %v2935 = vmax.f32 %v2910, 0.0
  %v2936 = vmax.f32 %v2911, 0.0
  %v2937 = vmax.f32 %v2912, 0.0
  %v2938 = vmax.f32 %v2913, 0.0
  %v2939 = vmax.f32 %v2914, 0.0
  %v2940 = vmax.f32 %v2915, 0.0
  %v2941 = vmax.f32 %v2916, 0.0
  %v2942 = vmax.f32 %v2917, 0.0
  %v2943 = vmax.f32 %v2918, 0.0
  %v2944 = vmax.f32 %v2919, 0.0
  %v2945 = vmax.f32 %v2920, 0.0
  %v2946 = vmax.f32 %v2921, 0.0
  %v2947 = vmax.f32 %v2922, 0.0
  %v2948 = vmax.f32 %v2923, 0.0
  %v2949 = vmax.f32 %v2924, 0.0
  %v2950 = vmax.f32 %v2925, 0.0
  %v2951 = vpack.c.bf16 %v2927, %v2926
  %v2952 = vpack.c.bf16 %v2929, %v2928
  %v2953 = vpack.c.bf16 %v2931, %v2930
  %v2954 = vpack.c.bf16 %v2933, %v2932
  %v2955 = vpack.c.bf16 %v2935, %v2934
  %v2956 = vpack.c.bf16 %v2937, %v2936
  %v2957 = vpack.c.bf16 %v2939, %v2938
  %v2958 = vpack.c.bf16 %v2941, %v2940
  %v2959 = vpack.c.bf16 %v2943, %v2942
  %v2960 = vpack.c.bf16 %v2945, %v2944
  %v2961 = vpack.c.bf16 %v2947, %v2946
  %v2962 = vpack.c.bf16 %v2949, %v2948
  %v2963 = vpack.c.bf16 %v2950, %v2950
  %v2977 = vunpack.c.l.b16 %v2951
  %v2978 = vunpack.c.h.b16 %v2951
  %v2979 = vunpack.c.l.b16 %v2952
  %v2980 = vunpack.c.h.b16 %v2952
  %v2981 = vunpack.c.l.b16 %v2953
  %v2982 = vunpack.c.h.b16 %v2953
  %v2983 = vunpack.c.l.b16 %v2954
  %v2984 = vunpack.c.h.b16 %v2954
  %v2985 = vunpack.c.l.b16 %v2955
  %v2986 = vunpack.c.h.b16 %v2955
  %v2987 = vunpack.c.l.b16 %v2956
  %v2988 = vunpack.c.h.b16 %v2956
  %v2989 = vunpack.c.l.b16 %v2957
  %v2990 = vunpack.c.h.b16 %v2957
  %v2991 = vunpack.c.l.b16 %v2958
  %v2992 = vunpack.c.h.b16 %v2958
  %v2993 = vunpack.c.l.b16 %v2959
  %v2994 = vunpack.c.h.b16 %v2959
  %v2995 = vunpack.c.l.b16 %v2960
  %v2996 = vunpack.c.h.b16 %v2960
  %v2997 = vunpack.c.l.b16 %v2961
  %v2998 = vunpack.c.h.b16 %v2961
  %v2999 = vunpack.c.l.b16 %v2962
  %v3000 = vunpack.c.h.b16 %v2962
  %v3001 = vunpack.c.l.b16 %v2963
  %v3002 = vpack.c.b16 %v2977, %v2977
  %v3003 = vpack.c.b16 %v2978, %v2978
  %v3004 = vpack.c.b16 %v2979, %v2979
  %v3005 = vpack.c.b16 %v2980, %v2980
  %v3006 = vpack.c.b16 %v2981, %v2981
  %v3007 = vpack.c.b16 %v2982, %v2982
  %v3008 = vpack.c.b16 %v2983, %v2983
  %v3009 = vpack.c.b16 %v2984, %v2984
  %v3010 = vpack.c.b16 %v2985, %v2985
  %v3011 = vpack.c.b16 %v2986, %v2986
  %v3012 = vpack.c.b16 %v2987, %v2987
  %v3013 = vpack.c.b16 %v2988, %v2988
  %v3014 = vpack.c.b16 %v2989, %v2989
  %v3015 = vpack.c.b16 %v2990, %v2990
  %v3016 = vpack.c.b16 %v2991, %v2991
  %v3017 = vpack.c.b16 %v2992, %v2992
  %v3018 = vpack.c.b16 %v2993, %v2993
  %v3019 = vpack.c.b16 %v2994, %v2994
  %v3020 = vpack.c.b16 %v2995, %v2995
  %v3021 = vpack.c.b16 %v2996, %v2996
  %v3022 = vpack.c.b16 %v2997, %v2997
  %v3023 = vpack.c.b16 %v2998, %v2998
  %v3024 = vpack.c.b16 %v2999, %v2999
  %v3025 = vpack.c.b16 %v3000, %v3000
  %v3026 = vpack.c.b16 %v3001, %v3001
  %vm3052 = vcmask 388096
  %3053 = vst.msk [vmem:[%s3] sm:$0xf] %vm3052, %v3002
  %3054 = vst.msk [vmem:[%s3 + $0x4] sm:$0xf] %vm3052, %v3003
  %3055 = vst.msk [vmem:[%s3 + $0x8] sm:$0xf] %vm3052, %v3004
  %3056 = vst.msk [vmem:[%s3 + $0xc] sm:$0xf] %vm3052, %v3005
  %3057 = vst.msk [vmem:[%s3 + $0x10] sm:$0xf] %vm3052, %v3006
  %3058 = vst.msk [vmem:[%s3 + $0x14] sm:$0xf] %vm3052, %v3007
  %3059 = vst.msk [vmem:[%s3 + $0x18] sm:$0xf] %vm3052, %v3008
  %3060 = vst.msk [vmem:[%s3 + $0x1c] sm:$0xf] %vm3052, %v3009
  %3061 = vst.msk [vmem:[%s3 + $0x20] sm:$0xf] %vm3052, %v3010
  %3062 = vst.msk [vmem:[%s3 + $0x24] sm:$0xf] %vm3052, %v3011
  %3063 = vst.msk [vmem:[%s3 + $0x28] sm:$0xf] %vm3052, %v3012
  %3064 = vst.msk [vmem:[%s3 + $0x2c] sm:$0xf] %vm3052, %v3013
  %3065 = vst.msk [vmem:[%s3 + $0x30] sm:$0xf] %vm3052, %v3014
  %3066 = vst.msk [vmem:[%s3 + $0x34] sm:$0xf] %vm3052, %v3015
  %3067 = vst.msk [vmem:[%s3 + $0x38] sm:$0xf] %vm3052, %v3016
  %3068 = vst.msk [vmem:[%s3 + $0x3c] sm:$0xf] %vm3052, %v3017
  %3069 = vst.msk [vmem:[%s3 + $0x40] sm:$0xf] %vm3052, %v3018
  %3070 = vst.msk [vmem:[%s3 + $0x44] sm:$0xf] %vm3052, %v3019
  %3071 = vst.msk [vmem:[%s3 + $0x48] sm:$0xf] %vm3052, %v3020
  %3072 = vst.msk [vmem:[%s3 + $0x4c] sm:$0xf] %vm3052, %v3021
  %3073 = vst.msk [vmem:[%s3 + $0x50] sm:$0xf] %vm3052, %v3022
  %3074 = vst.msk [vmem:[%s3 + $0x54] sm:$0xf] %vm3052, %v3023
  %3075 = vst.msk [vmem:[%s3 + $0x58] sm:$0xf] %vm3052, %v3024
  %3076 = vst.msk [vmem:[%s3 + $0x5c] sm:$0xf] %vm3052, %v3025
  %3077 = vst.msk [vmem:[%s3 + $0x60] sm:$0xf] %vm3052, %v3026
  // Predicated region
  $region14: #{cnn_forward.4} parent=0 // pred_check
    _
  $region15: #{cnn_forward.4} parent=0 // pred_check_branch
    %3079 = sbr.rel (0) target = $region17
  $region16: #{cnn_forward.4} parent=0 // pred_region
    _
  $region17: #{cnn_forward.4} parent=0 // pred_fallthru
    _
  // Predicated region
  $region18: #{cnn_forward.4} parent=0 // pred_check
    _
  $region19: #{cnn_forward.4} parent=0 // pred_check_branch
    %3081 = sbr.rel (0) target = $region21
  $region20: #{cnn_forward.4} parent=0 // pred_region
    _
  $region21: #{cnn_forward.4} parent=0 // pred_fallthru
    _

// kernel: cnn_forward.5
$region0: #{cnn_forward.5}
  #allocation0 [shape = 'u32[]', space=smem, size = 0x4, offset = 0x4, fixed_abs, tag = 'smem constant byte address 0x4 - core index']
  #allocation1 [shape = 'u32[144,128]{1,0:T(1,128)}', space=vmem, size = 0x12000, scoped, tag = 'internal scratch']
  %s0 = inlined_call_operand.vmem [shape: bf16[8,1280], index: 0, kind: input, shape index: {}]
  %s1 = inlined_call_operand.vmem [shape: bf16[1280,512], index: 1, kind: input, shape index: {}]
  %s2 = inlined_call_operand.vmem [shape: f32[1,512], index: 2, kind: input, shape index: {}]
  %s3 = inlined_call_operand.vmem [shape: bf16[512,128], index: 3, kind: input, shape index: {}]
  %s4 = inlined_call_operand.vmem [shape: f32[1,128], index: 4, kind: input, shape index: {}]
  %s5 = inlined_call_operand.vmem [shape: f32[8,128], index: 5, kind: output, shape index: {}]
  %s6 = sld [smem:[#allocation0]]
  $region30: #{cnn_forward.5} parent=0
    _
  %s8 = ssub.s32 1, %s6
  %s9 = scalar_select 0, %s8, %s6
  // Predicated region
  $region2: #{cnn_forward.5} parent=0 // pred_check
    _
  $region3: #{cnn_forward.5} parent=0 // pred_check_branch
    %11 = sbr.rel (0) target = $region5
  $region4: #{cnn_forward.5} parent=0 // pred_region
    _
  $region5: #{cnn_forward.5} parent=0 // pred_fallthru
    _
  // Predicated region
  $region6: #{cnn_forward.5} parent=0 // pred_check
    _
  $region7: #{cnn_forward.5} parent=0 // pred_check_branch
    %13 = sbr.rel (0) target = $region9
  $region8: #{cnn_forward.5} parent=0 // pred_region
    _
  $region9: #{cnn_forward.5} parent=0 // pred_fallthru
    _
  // Predicated region
  $region10: #{cnn_forward.5} parent=0 // pred_check
    _
  $region11: #{cnn_forward.5} parent=0 // pred_check_branch
    %15 = sbr.rel (0) target = $region13
  $region12: #{cnn_forward.5} parent=0 // pred_region
    _
  $region13: #{cnn_forward.5} parent=0 // pred_fallthru
    _
  // Predicated region
  $region14: #{cnn_forward.5} parent=0 // pred_check
    _
  $region15: #{cnn_forward.5} parent=0 // pred_check_branch
    %17 = sbr.rel (0) target = $region17
  $region16: #{cnn_forward.5} parent=0 // pred_region
    _
  $region17: #{cnn_forward.5} parent=0 // pred_fallthru
    _
  // Predicated region
  $region18: #{cnn_forward.5} parent=0 // pred_check
    _
  $region19: #{cnn_forward.5} parent=0 // pred_check_branch
    %19 = sbr.rel (0) target = $region21
  $region20: #{cnn_forward.5} parent=0 // pred_region
    _
  $region21: #{cnn_forward.5} parent=0 // pred_fallthru
    _
  %v21 = vld [vmem:[%s0] sm:$0xff]
  %v22 = vld [vmem:[%s0 + $0x8] sm:$0xff]
  %v23 = vld [vmem:[%s0 + $0x10] sm:$0xff]
  %v24 = vld [vmem:[%s0 + $0x18] sm:$0xff]
  %v25 = vld [vmem:[%s0 + $0x20] sm:$0xff]
  %v26 = vld [vmem:[%s1] sm:$0xff]
  %v27 = vld [vmem:[%s1 + $0x8] sm:$0xff]
  %v28 = vld [vmem:[%s1 + $0x10] sm:$0xff]
  %v29 = vld [vmem:[%s1 + $0x18] sm:$0xff]
  %v30 = vld [vmem:[%s1 + $0x20] sm:$0xff]
  %v31 = vld [vmem:[%s1 + $0x28] sm:$0xff]
  %v32 = vld [vmem:[%s1 + $0x30] sm:$0xff]
  %v33 = vld [vmem:[%s1 + $0x38] sm:$0xff]
  %v34 = vld [vmem:[%s1 + $0x40] sm:$0xff]
  %v35 = vld [vmem:[%s1 + $0x48] sm:$0xff]
  %v36 = vld [vmem:[%s1 + $0x50] sm:$0xff]
  %v37 = vld [vmem:[%s1 + $0x58] sm:$0xff]
  %v38 = vld [vmem:[%s1 + $0x60] sm:$0xff]
  %v39 = vld [vmem:[%s1 + $0x68] sm:$0xff]
  %v40 = vld [vmem:[%s1 + $0x70] sm:$0xff]
  %v41 = vld [vmem:[%s1 + $0x78] sm:$0xff]
  %v42 = vld [vmem:[%s1 + $0x80] sm:$0xff]
  %v43 = vld [vmem:[%s1 + $0x88] sm:$0xff]
  %v44 = vld [vmem:[%s1 + $0x90] sm:$0xff]
  %v45 = vld [vmem:[%s1 + $0x98] sm:$0xff]
  %v46 = vld [vmem:[%s1 + $0xa0] sm:$0xff]
  %v47 = vld [vmem:[%s1 + $0xa8] sm:$0xff]
  %v48 = vld [vmem:[%s1 + $0xb0] sm:$0xff]
  %v49 = vld [vmem:[%s1 + $0xb8] sm:$0xff]
  %v50 = vld [vmem:[%s1 + $0xc0] sm:$0xff]
  %v51 = vld [vmem:[%s1 + $0xc8] sm:$0xff]
  %v52 = vld [vmem:[%s1 + $0xd0] sm:$0xff]
  %v53 = vld [vmem:[%s1 + $0xd8] sm:$0xff]
  %v54 = vld [vmem:[%s1 + $0xe0] sm:$0xff]
  %v55 = vld [vmem:[%s1 + $0xe8] sm:$0xff]
  %v56 = vld [vmem:[%s1 + $0xf0] sm:$0xff]
  %v57 = vld [vmem:[%s1 + $0xf8] sm:$0xff]
  %v58 = vld [vmem:[%s1 + $0x100] sm:$0xff]
  %v59 = vld [vmem:[%s1 + $0x108] sm:$0xff]
  %v60 = vld [vmem:[%s1 + $0x110] sm:$0xff]
  %v61 = vld [vmem:[%s1 + $0x118] sm:$0xff]
  %v62 = vld [vmem:[%s1 + $0x120] sm:$0xff]
  %v63 = vld [vmem:[%s1 + $0x128] sm:$0xff]
  %v64 = vld [vmem:[%s1 + $0x130] sm:$0xff]
  %v65 = vld [vmem:[%s1 + $0x138] sm:$0xff]
  %v66 = vld [vmem:[%s1 + $0x140] sm:$0xff]
  %v67 = vld [vmem:[%s1 + $0x148] sm:$0xff]
  %v68 = vld [vmem:[%s1 + $0x150] sm:$0xff]
  %v69 = vld [vmem:[%s1 + $0x158] sm:$0xff]
  %v70 = vld [vmem:[%s1 + $0x160] sm:$0xff]
  %v71 = vld [vmem:[%s1 + $0x168] sm:$0xff]
  %v72 = vld [vmem:[%s1 + $0x170] sm:$0xff]
  %v73 = vld [vmem:[%s1 + $0x178] sm:$0xff]
  %v74 = vld [vmem:[%s1 + $0x180] sm:$0xff]
  %v75 = vld [vmem:[%s1 + $0x188] sm:$0xff]
  %v76 = vld [vmem:[%s1 + $0x190] sm:$0xff]
  %v77 = vld [vmem:[%s1 + $0x198] sm:$0xff]
  %v78 = vld [vmem:[%s1 + $0x1a0] sm:$0xff]
  %v79 = vld [vmem:[%s1 + $0x1a8] sm:$0xff]
  %v80 = vld [vmem:[%s1 + $0x1b0] sm:$0xff]
  %v81 = vld [vmem:[%s1 + $0x1b8] sm:$0xff]
  %v82 = vld [vmem:[%s1 + $0x1c0] sm:$0xff]
  %v83 = vld [vmem:[%s1 + $0x1c8] sm:$0xff]
  %v84 = vld [vmem:[%s1 + $0x1d0] sm:$0xff]
  %v85 = vld [vmem:[%s1 + $0x1d8] sm:$0xff]
  %v86 = vld [vmem:[%s1 + $0x1e0] sm:$0xff]
  %v87 = vld [vmem:[%s1 + $0x1e8] sm:$0xff]
  %v88 = vld [vmem:[%s1 + $0x1f0] sm:$0xff]
  %v89 = vld [vmem:[%s1 + $0x1f8] sm:$0xff]
  %v90 = vld [vmem:[%s1 + $0x200] sm:$0xff]
  %v91 = vld [vmem:[%s1 + $0x208] sm:$0xff]
  %v92 = vld [vmem:[%s1 + $0x210] sm:$0xff]
  %v93 = vld [vmem:[%s1 + $0x218] sm:$0xff]
  %v94 = vld [vmem:[%s1 + $0x220] sm:$0xff]
  %v95 = vld [vmem:[%s1 + $0x228] sm:$0xff]
  %v96 = vld [vmem:[%s1 + $0x230] sm:$0xff]
  %v97 = vld [vmem:[%s1 + $0x238] sm:$0xff]
  %v98 = vld [vmem:[%s1 + $0x240] sm:$0xff]
  %v99 = vld [vmem:[%s1 + $0x248] sm:$0xff]
  %v100 = vld [vmem:[%s1 + $0x250] sm:$0xff]
  %v101 = vld [vmem:[%s1 + $0x258] sm:$0xff]
  %v102 = vld [vmem:[%s1 + $0x260] sm:$0xff]
  %v103 = vld [vmem:[%s1 + $0x268] sm:$0xff]
  %v104 = vld [vmem:[%s1 + $0x270] sm:$0xff]
  %v105 = vld [vmem:[%s1 + $0x278] sm:$0xff]
  %v106 = vld [vmem:[%s1 + $0x280] sm:$0xff]
  %v107 = vld [vmem:[%s1 + $0x288] sm:$0xff]
  %v108 = vld [vmem:[%s1 + $0x290] sm:$0xff]
  %v109 = vld [vmem:[%s1 + $0x298] sm:$0xff]
  %v110 = vld [vmem:[%s1 + $0x2a0] sm:$0xff]
  %v111 = vld [vmem:[%s1 + $0x2a8] sm:$0xff]
  %v112 = vld [vmem:[%s1 + $0x2b0] sm:$0xff]
  %v113 = vld [vmem:[%s1 + $0x2b8] sm:$0xff]
  %v114 = vld [vmem:[%s1 + $0x2c0] sm:$0xff]
  %v115 = vld [vmem:[%s1 + $0x2c8] sm:$0xff]
  %v116 = vld [vmem:[%s1 + $0x2d0] sm:$0xff]
  %v117 = vld [vmem:[%s1 + $0x2d8] sm:$0xff]
  %v118 = vld [vmem:[%s1 + $0x2e0] sm:$0xff]
  %v119 = vld [vmem:[%s1 + $0x2e8] sm:$0xff]
  %v120 = vld [vmem:[%s1 + $0x2f0] sm:$0xff]
  %v121 = vld [vmem:[%s1 + $0x2f8] sm:$0xff]
  %v122 = vld [vmem:[%s1 + $0x300] sm:$0xff]
  %v123 = vld [vmem:[%s1 + $0x308] sm:$0xff]
  %v124 = vld [vmem:[%s1 + $0x310] sm:$0xff]
  %v125 = vld [vmem:[%s1 + $0x318] sm:$0xff]
  %v126 = vld [vmem:[%s1 + $0x320] sm:$0xff]
  %v127 = vld [vmem:[%s1 + $0x328] sm:$0xff]
  %v128 = vld [vmem:[%s1 + $0x330] sm:$0xff]
  %v129 = vld [vmem:[%s1 + $0x338] sm:$0xff]
  %v130 = vld [vmem:[%s1 + $0x340] sm:$0xff]
  %v131 = vld [vmem:[%s1 + $0x348] sm:$0xff]
  %v132 = vld [vmem:[%s1 + $0x350] sm:$0xff]
  %v133 = vld [vmem:[%s1 + $0x358] sm:$0xff]
  %v134 = vld [vmem:[%s1 + $0x360] sm:$0xff]
  %v135 = vld [vmem:[%s1 + $0x368] sm:$0xff]
  %v136 = vld [vmem:[%s1 + $0x370] sm:$0xff]
  %v137 = vld [vmem:[%s1 + $0x378] sm:$0xff]
  %v138 = vld [vmem:[%s1 + $0x380] sm:$0xff]
  %v139 = vld [vmem:[%s1 + $0x388] sm:$0xff]
  %v140 = vld [vmem:[%s1 + $0x390] sm:$0xff]
  %v141 = vld [vmem:[%s1 + $0x398] sm:$0xff]
  %v142 = vld [vmem:[%s1 + $0x3a0] sm:$0xff]
  %v143 = vld [vmem:[%s1 + $0x3a8] sm:$0xff]
  %v144 = vld [vmem:[%s1 + $0x3b0] sm:$0xff]
  %v145 = vld [vmem:[%s1 + $0x3b8] sm:$0xff]
  %v146 = vld [vmem:[%s1 + $0x3c0] sm:$0xff]
  %v147 = vld [vmem:[%s1 + $0x3c8] sm:$0xff]
  %v148 = vld [vmem:[%s1 + $0x3d0] sm:$0xff]
  %v149 = vld [vmem:[%s1 + $0x3d8] sm:$0xff]
  %v150 = vld [vmem:[%s1 + $0x3e0] sm:$0xff]
  %v151 = vld [vmem:[%s1 + $0x3e8] sm:$0xff]
  %v152 = vld [vmem:[%s1 + $0x3f0] sm:$0xff]
  %v153 = vld [vmem:[%s1 + $0x3f8] sm:$0xff]
  %v154 = vld [vmem:[%s1 + $0x400] sm:$0xff]
  %v155 = vld [vmem:[%s1 + $0x408] sm:$0xff]
  %v156 = vld [vmem:[%s1 + $0x410] sm:$0xff]
  %v157 = vld [vmem:[%s1 + $0x418] sm:$0xff]
  %v158 = vld [vmem:[%s1 + $0x420] sm:$0xff]
  %v159 = vld [vmem:[%s1 + $0x428] sm:$0xff]
  %v160 = vld [vmem:[%s1 + $0x430] sm:$0xff]
  %v161 = vld [vmem:[%s1 + $0x438] sm:$0xff]
  %v162 = vld [vmem:[%s1 + $0x440] sm:$0xff]
  %v163 = vld [vmem:[%s1 + $0x448] sm:$0xff]
  %v164 = vld [vmem:[%s1 + $0x450] sm:$0xff]
  %v165 = vld [vmem:[%s1 + $0x458] sm:$0xff]
  %v166 = vld [vmem:[%s1 + $0x460] sm:$0xff]
  %v167 = vld [vmem:[%s1 + $0x468] sm:$0xff]
  %v168 = vld [vmem:[%s1 + $0x470] sm:$0xff]
  %v169 = vld [vmem:[%s1 + $0x478] sm:$0xff]
  %v170 = vld [vmem:[%s1 + $0x480] sm:$0xff]
  %v171 = vld [vmem:[%s1 + $0x488] sm:$0xff]
  %v172 = vld [vmem:[%s1 + $0x490] sm:$0xff]
  %v173 = vld [vmem:[%s1 + $0x498] sm:$0xff]
  %v174 = vld [vmem:[%s1 + $0x4a0] sm:$0xff]
  %v175 = vld [vmem:[%s1 + $0x4a8] sm:$0xff]
  %v176 = vld [vmem:[%s1 + $0x4b0] sm:$0xff]
  %v177 = vld [vmem:[%s1 + $0x4b8] sm:$0xff]
  %v178 = vld [vmem:[%s1 + $0x4c0] sm:$0xff]
  %v179 = vld [vmem:[%s1 + $0x4c8] sm:$0xff]
  %v180 = vld [vmem:[%s1 + $0x4d0] sm:$0xff]
  %v181 = vld [vmem:[%s1 + $0x4d8] sm:$0xff]
  %v182 = vld [vmem:[%s1 + $0x4e0] sm:$0xff]
  %v183 = vld [vmem:[%s1 + $0x4e8] sm:$0xff]
  %v184 = vld [vmem:[%s1 + $0x4f0] sm:$0xff]
  %v185 = vld [vmem:[%s1 + $0x4f8] sm:$0xff]
  %v186 = vld [vmem:[%s1 + $0x500] sm:$0xff]
  %v187 = vld [vmem:[%s1 + $0x508] sm:$0xff]
  %v188 = vld [vmem:[%s1 + $0x510] sm:$0xff]
  %v189 = vld [vmem:[%s1 + $0x518] sm:$0xff]
  %v190 = vld [vmem:[%s1 + $0x520] sm:$0xff]
  %v191 = vld [vmem:[%s1 + $0x528] sm:$0xff]
  %v192 = vld [vmem:[%s1 + $0x530] sm:$0xff]
  %v193 = vld [vmem:[%s1 + $0x538] sm:$0xff]
  %v194 = vld [vmem:[%s1 + $0x540] sm:$0xff]
  %v195 = vld [vmem:[%s1 + $0x548] sm:$0xff]
  %v196 = vld [vmem:[%s1 + $0x550] sm:$0xff]
  %v197 = vld [vmem:[%s1 + $0x558] sm:$0xff]
  %v198 = vld [vmem:[%s1 + $0x560] sm:$0xff]
  %v199 = vld [vmem:[%s1 + $0x568] sm:$0xff]
  %v200 = vld [vmem:[%s1 + $0x570] sm:$0xff]
  %v201 = vld [vmem:[%s1 + $0x578] sm:$0xff]
  %v202 = vld [vmem:[%s1 + $0x580] sm:$0xff]
  %v203 = vld [vmem:[%s1 + $0x588] sm:$0xff]
  %v204 = vld [vmem:[%s1 + $0x590] sm:$0xff]
  %v205 = vld [vmem:[%s1 + $0x598] sm:$0xff]
  %v206 = vld [vmem:[%s1 + $0x5a0] sm:$0xff]
  %v207 = vld [vmem:[%s1 + $0x5a8] sm:$0xff]
  %v208 = vld [vmem:[%s1 + $0x5b0] sm:$0xff]
  %v209 = vld [vmem:[%s1 + $0x5b8] sm:$0xff]
  %v210 = vld [vmem:[%s1 + $0x5c0] sm:$0xff]
  %v211 = vld [vmem:[%s1 + $0x5c8] sm:$0xff]
  %v212 = vld [vmem:[%s1 + $0x5d0] sm:$0xff]
  %v213 = vld [vmem:[%s1 + $0x5d8] sm:$0xff]
  %v214 = vld [vmem:[%s1 + $0x5e0] sm:$0xff]
  %v215 = vld [vmem:[%s1 + $0x5e8] sm:$0xff]
  %v216 = vld [vmem:[%s1 + $0x5f0] sm:$0xff]
  %v217 = vld [vmem:[%s1 + $0x5f8] sm:$0xff]
  %v218 = vld [vmem:[%s1 + $0x600] sm:$0xff]
  %v219 = vld [vmem:[%s1 + $0x608] sm:$0xff]
  %v220 = vld [vmem:[%s1 + $0x610] sm:$0xff]
  %v221 = vld [vmem:[%s1 + $0x618] sm:$0xff]
  %v222 = vld [vmem:[%s1 + $0x620] sm:$0xff]
  %v223 = vld [vmem:[%s1 + $0x628] sm:$0xff]
  %v224 = vld [vmem:[%s1 + $0x630] sm:$0xff]
  %v225 = vld [vmem:[%s1 + $0x638] sm:$0xff]
  %v226 = vld [vmem:[%s1 + $0x640] sm:$0xff]
  %v227 = vld [vmem:[%s1 + $0x648] sm:$0xff]
  %v228 = vld [vmem:[%s1 + $0x650] sm:$0xff]
  %v229 = vld [vmem:[%s1 + $0x658] sm:$0xff]
  %v230 = vld [vmem:[%s1 + $0x660] sm:$0xff]
  %v231 = vld [vmem:[%s1 + $0x668] sm:$0xff]
  %v232 = vld [vmem:[%s1 + $0x670] sm:$0xff]
  %v233 = vld [vmem:[%s1 + $0x678] sm:$0xff]
  %v234 = vld [vmem:[%s1 + $0x680] sm:$0xff]
  %v235 = vld [vmem:[%s1 + $0x688] sm:$0xff]
  %v236 = vld [vmem:[%s1 + $0x690] sm:$0xff]
  %v237 = vld [vmem:[%s1 + $0x698] sm:$0xff]
  %v238 = vld [vmem:[%s1 + $0x6a0] sm:$0xff]
  %v239 = vld [vmem:[%s1 + $0x6a8] sm:$0xff]
  %v240 = vld [vmem:[%s1 + $0x6b0] sm:$0xff]
  %v241 = vld [vmem:[%s1 + $0x6b8] sm:$0xff]
  %v242 = vld [vmem:[%s1 + $0x6c0] sm:$0xff]
  %v243 = vld [vmem:[%s1 + $0x6c8] sm:$0xff]
  %v244 = vld [vmem:[%s1 + $0x6d0] sm:$0xff]
  %v245 = vld [vmem:[%s1 + $0x6d8] sm:$0xff]
  %v246 = vld [vmem:[%s1 + $0x6e0] sm:$0xff]
  %v247 = vld [vmem:[%s1 + $0x6e8] sm:$0xff]
  %v248 = vld [vmem:[%s1 + $0x6f0] sm:$0xff]
  %v249 = vld [vmem:[%s1 + $0x6f8] sm:$0xff]
  %v250 = vld [vmem:[%s1 + $0x700] sm:$0xff]
  %v251 = vld [vmem:[%s1 + $0x708] sm:$0xff]
  %v252 = vld [vmem:[%s1 + $0x710] sm:$0xff]
  %v253 = vld [vmem:[%s1 + $0x718] sm:$0xff]
  %v254 = vld [vmem:[%s1 + $0x720] sm:$0xff]
  %v255 = vld [vmem:[%s1 + $0x728] sm:$0xff]
  %v256 = vld [vmem:[%s1 + $0x730] sm:$0xff]
  %v257 = vld [vmem:[%s1 + $0x738] sm:$0xff]
  %v258 = vld [vmem:[%s1 + $0x740] sm:$0xff]
  %v259 = vld [vmem:[%s1 + $0x748] sm:$0xff]
  %v260 = vld [vmem:[%s1 + $0x750] sm:$0xff]
  %v261 = vld [vmem:[%s1 + $0x758] sm:$0xff]
  %v262 = vld [vmem:[%s1 + $0x760] sm:$0xff]
  %v263 = vld [vmem:[%s1 + $0x768] sm:$0xff]
  %v264 = vld [vmem:[%s1 + $0x770] sm:$0xff]
  %v265 = vld [vmem:[%s1 + $0x778] sm:$0xff]
  %v266 = vld [vmem:[%s1 + $0x780] sm:$0xff]
  %v267 = vld [vmem:[%s1 + $0x788] sm:$0xff]
  %v268 = vld [vmem:[%s1 + $0x790] sm:$0xff]
  %v269 = vld [vmem:[%s1 + $0x798] sm:$0xff]
  %v270 = vld [vmem:[%s1 + $0x7a0] sm:$0xff]
  %v271 = vld [vmem:[%s1 + $0x7a8] sm:$0xff]
  %v272 = vld [vmem:[%s1 + $0x7b0] sm:$0xff]
  %v273 = vld [vmem:[%s1 + $0x7b8] sm:$0xff]
  %v274 = vld [vmem:[%s1 + $0x7c0] sm:$0xff]
  %v275 = vld [vmem:[%s1 + $0x7c8] sm:$0xff]
  %v276 = vld [vmem:[%s1 + $0x7d0] sm:$0xff]
  %v277 = vld [vmem:[%s1 + $0x7d8] sm:$0xff]
  %v278 = vld [vmem:[%s1 + $0x7e0] sm:$0xff]
  %v279 = vld [vmem:[%s1 + $0x7e8] sm:$0xff]
  %v280 = vld [vmem:[%s1 + $0x7f0] sm:$0xff]
  %v281 = vld [vmem:[%s1 + $0x7f8] sm:$0xff]
  %v282 = vld [vmem:[%s1 + $0x800] sm:$0xff]
  %v283 = vld [vmem:[%s1 + $0x808] sm:$0xff]
  %v284 = vld [vmem:[%s1 + $0x810] sm:$0xff]
  %v285 = vld [vmem:[%s1 + $0x818] sm:$0xff]
  %v286 = vld [vmem:[%s1 + $0x820] sm:$0xff]
  %v287 = vld [vmem:[%s1 + $0x828] sm:$0xff]
  %v288 = vld [vmem:[%s1 + $0x830] sm:$0xff]
  %v289 = vld [vmem:[%s1 + $0x838] sm:$0xff]
  %v290 = vld [vmem:[%s1 + $0x840] sm:$0xff]
  %v291 = vld [vmem:[%s1 + $0x848] sm:$0xff]
  %v292 = vld [vmem:[%s1 + $0x850] sm:$0xff]
  %v293 = vld [vmem:[%s1 + $0x858] sm:$0xff]
  %v294 = vld [vmem:[%s1 + $0x860] sm:$0xff]
  %v295 = vld [vmem:[%s1 + $0x868] sm:$0xff]
  %v296 = vld [vmem:[%s1 + $0x870] sm:$0xff]
  %v297 = vld [vmem:[%s1 + $0x878] sm:$0xff]
  %v298 = vld [vmem:[%s1 + $0x880] sm:$0xff]
  %v299 = vld [vmem:[%s1 + $0x888] sm:$0xff]
  %v300 = vld [vmem:[%s1 + $0x890] sm:$0xff]
  %v301 = vld [vmem:[%s1 + $0x898] sm:$0xff]
  %v302 = vld [vmem:[%s1 + $0x8a0] sm:$0xff]
  %v303 = vld [vmem:[%s1 + $0x8a8] sm:$0xff]
  %v304 = vld [vmem:[%s1 + $0x8b0] sm:$0xff]
  %v305 = vld [vmem:[%s1 + $0x8b8] sm:$0xff]
  %v306 = vld [vmem:[%s1 + $0x8c0] sm:$0xff]
  %v307 = vld [vmem:[%s1 + $0x8c8] sm:$0xff]
  %v308 = vld [vmem:[%s1 + $0x8d0] sm:$0xff]
  %v309 = vld [vmem:[%s1 + $0x8d8] sm:$0xff]
  %v310 = vld [vmem:[%s1 + $0x8e0] sm:$0xff]
  %v311 = vld [vmem:[%s1 + $0x8e8] sm:$0xff]
  %v312 = vld [vmem:[%s1 + $0x8f0] sm:$0xff]
  %v313 = vld [vmem:[%s1 + $0x8f8] sm:$0xff]
  %v314 = vld [vmem:[%s1 + $0x900] sm:$0xff]
  %v315 = vld [vmem:[%s1 + $0x908] sm:$0xff]
  %v316 = vld [vmem:[%s1 + $0x910] sm:$0xff]
  %v317 = vld [vmem:[%s1 + $0x918] sm:$0xff]
  %v318 = vld [vmem:[%s1 + $0x920] sm:$0xff]
  %v319 = vld [vmem:[%s1 + $0x928] sm:$0xff]
  %v320 = vld [vmem:[%s1 + $0x930] sm:$0xff]
  %v321 = vld [vmem:[%s1 + $0x938] sm:$0xff]
  %v322 = vld [vmem:[%s1 + $0x940] sm:$0xff]
  %v323 = vld [vmem:[%s1 + $0x948] sm:$0xff]
  %v324 = vld [vmem:[%s1 + $0x950] sm:$0xff]
  %v325 = vld [vmem:[%s1 + $0x958] sm:$0xff]
  %v326 = vld [vmem:[%s1 + $0x960] sm:$0xff]
  %v327 = vld [vmem:[%s1 + $0x968] sm:$0xff]
  %v328 = vld [vmem:[%s1 + $0x970] sm:$0xff]
  %v329 = vld [vmem:[%s1 + $0x978] sm:$0xff]
  %v330 = vld [vmem:[%s1 + $0x980] sm:$0xff]
  %v331 = vld [vmem:[%s1 + $0x988] sm:$0xff]
  %v332 = vld [vmem:[%s1 + $0x990] sm:$0xff]
  %v333 = vld [vmem:[%s1 + $0x998] sm:$0xff]
  %v334 = vld [vmem:[%s1 + $0x9a0] sm:$0xff]
  %v335 = vld [vmem:[%s1 + $0x9a8] sm:$0xff]
  %v336 = vld [vmem:[%s1 + $0x9b0] sm:$0xff]
  %v337 = vld [vmem:[%s1 + $0x9b8] sm:$0xff]
  %v338 = vld [vmem:[%s1 + $0x9c0] sm:$0xff]
  %v339 = vld [vmem:[%s1 + $0x9c8] sm:$0xff]
  %v340 = vld [vmem:[%s1 + $0x9d0] sm:$0xff]
  %v341 = vld [vmem:[%s1 + $0x9d8] sm:$0xff]
  %v342 = vld [vmem:[%s1 + $0x9e0] sm:$0xff]
  %v343 = vld [vmem:[%s1 + $0x9e8] sm:$0xff]
  %v344 = vld [vmem:[%s1 + $0x9f0] sm:$0xff]
  %v345 = vld [vmem:[%s1 + $0x9f8] sm:$0xff]
  %v346 = vld [vmem:[%s2] sm:$0xf]
  %v348 = vlaneseq
  %v349 = vshrl.u32 %v348, 7
  %v350 = vsub.s32 0, %v349
  %v351 = vrot.slane %v346, %v350
  %v352 = vlaneseq
  %v353 = vshrl.u32 %v352, 7
  %v354 = vsub.s32 1, %v353
  %v355 = vrot.slane %v346, %v354
  %v356 = vlaneseq
  %v357 = vshrl.u32 %v356, 7
  %v358 = vsub.s32 2, %v357
  %v359 = vrot.slane %v346, %v358
  %v360 = vlaneseq
  %v361 = vshrl.u32 %v360, 7
  %v362 = vsub.s32 3, %v361
  %v363 = vrot.slane %v346, %v362
  %v373 = vunpack.c.l.b16 %v21
  %v374 = vunpack.c.h.b16 %v21
  %v375 = vunpack.c.l.b16 %v22
  %v376 = vunpack.c.h.b16 %v22
  %v377 = vunpack.c.l.b16 %v23
  %v378 = vunpack.c.h.b16 %v23
  %v379 = vunpack.c.l.b16 %v24
  %v380 = vunpack.c.h.b16 %v24
  %v381 = vunpack.c.l.b16 %v25
  %v382 = vunpack.c.h.b16 %v25
  %v383 = vpack.c.b16 %v373, %v373
  %v384 = vpack.c.b16 %v374, %v374
  %v385 = vpack.c.b16 %v375, %v375
  %v386 = vpack.c.b16 %v376, %v376
  %v387 = vpack.c.b16 %v377, %v377
  %v388 = vpack.c.b16 %v378, %v378
  %v389 = vpack.c.b16 %v379, %v379
  %v390 = vpack.c.b16 %v380, %v380
  %v391 = vpack.c.b16 %v381, %v381
  %v392 = vpack.c.b16 %v382, %v382
  %v723 = vunpack.c.l.b16 %v26
  %v724 = vunpack.c.h.b16 %v26
  %v725 = vunpack.c.l.b16 %v27
  %v726 = vunpack.c.h.b16 %v27
  %v727 = vunpack.c.l.b16 %v28
  %v728 = vunpack.c.h.b16 %v28
  %v729 = vunpack.c.l.b16 %v29
  %v730 = vunpack.c.h.b16 %v29
  %v731 = vunpack.c.l.b16 %v30
  %v732 = vunpack.c.h.b16 %v30
  %v733 = vunpack.c.l.b16 %v31
  %v734 = vunpack.c.h.b16 %v31
  %v735 = vunpack.c.l.b16 %v32
  %v736 = vunpack.c.h.b16 %v32
  %v737 = vunpack.c.l.b16 %v33
  %v738 = vunpack.c.h.b16 %v33
  %v739 = vunpack.c.l.b16 %v34
  %v740 = vunpack.c.h.b16 %v34
  %v741 = vunpack.c.l.b16 %v35
  %v742 = vunpack.c.h.b16 %v35
  %v743 = vunpack.c.l.b16 %v36
  %v744 = vunpack.c.h.b16 %v36
  %v745 = vunpack.c.l.b16 %v37
  %v746 = vunpack.c.h.b16 %v37
  %v747 = vunpack.c.l.b16 %v38
  %v748 = vunpack.c.h.b16 %v38
  %v749 = vunpack.c.l.b16 %v39
  %v750 = vunpack.c.h.b16 %v39
  %v751 = vunpack.c.l.b16 %v40
  %v752 = vunpack.c.h.b16 %v40
  %v753 = vunpack.c.l.b16 %v41
  %v754 = vunpack.c.h.b16 %v41
  %v755 = vunpack.c.l.b16 %v42
  %v756 = vunpack.c.h.b16 %v42
  %v757 = vunpack.c.l.b16 %v43
  %v758 = vunpack.c.h.b16 %v43
  %v759 = vunpack.c.l.b16 %v44
  %v760 = vunpack.c.h.b16 %v44
  %v761 = vunpack.c.l.b16 %v45
  %v762 = vunpack.c.h.b16 %v45
  %v763 = vunpack.c.l.b16 %v46
  %v764 = vunpack.c.h.b16 %v46
  %v765 = vunpack.c.l.b16 %v47
  %v766 = vunpack.c.h.b16 %v47
  %v767 = vunpack.c.l.b16 %v48
  %v768 = vunpack.c.h.b16 %v48
  %v769 = vunpack.c.l.b16 %v49
  %v770 = vunpack.c.h.b16 %v49
  %v771 = vunpack.c.l.b16 %v50
  %v772 = vunpack.c.h.b16 %v50
  %v773 = vunpack.c.l.b16 %v51
  %v774 = vunpack.c.h.b16 %v51
  %v775 = vunpack.c.l.b16 %v52
  %v776 = vunpack.c.h.b16 %v52
  %v777 = vunpack.c.l.b16 %v53
  %v778 = vunpack.c.h.b16 %v53
  %v779 = vunpack.c.l.b16 %v54
  %v780 = vunpack.c.h.b16 %v54
  %v781 = vunpack.c.l.b16 %v55
  %v782 = vunpack.c.h.b16 %v55
  %v783 = vunpack.c.l.b16 %v56
  %v784 = vunpack.c.h.b16 %v56
  %v785 = vunpack.c.l.b16 %v57
  %v786 = vunpack.c.h.b16 %v57
  %v787 = vunpack.c.l.b16 %v58
  %v788 = vunpack.c.h.b16 %v58
  %v789 = vunpack.c.l.b16 %v59
  %v790 = vunpack.c.h.b16 %v59
  %v791 = vunpack.c.l.b16 %v60
  %v792 = vunpack.c.h.b16 %v60
  %v793 = vunpack.c.l.b16 %v61
  %v794 = vunpack.c.h.b16 %v61
  %v795 = vunpack.c.l.b16 %v62
  %v796 = vunpack.c.h.b16 %v62
  %v797 = vunpack.c.l.b16 %v63
  %v798 = vunpack.c.h.b16 %v63
  %v799 = vunpack.c.l.b16 %v64
  %v800 = vunpack.c.h.b16 %v64
  %v801 = vunpack.c.l.b16 %v65
  %v802 = vunpack.c.h.b16 %v65
  %v803 = vunpack.c.l.b16 %v66
  %v804 = vunpack.c.h.b16 %v66
  %v805 = vunpack.c.l.b16 %v67
  %v806 = vunpack.c.h.b16 %v67
  %v807 = vunpack.c.l.b16 %v68
  %v808 = vunpack.c.h.b16 %v68
  %v809 = vunpack.c.l.b16 %v69
  %v810 = vunpack.c.h.b16 %v69
  %v811 = vunpack.c.l.b16 %v70
  %v812 = vunpack.c.h.b16 %v70
  %v813 = vunpack.c.l.b16 %v71
  %v814 = vunpack.c.h.b16 %v71
  %v815 = vunpack.c.l.b16 %v72
  %v816 = vunpack.c.h.b16 %v72
  %v817 = vunpack.c.l.b16 %v73
  %v818 = vunpack.c.h.b16 %v73
  %v819 = vunpack.c.l.b16 %v74
  %v820 = vunpack.c.h.b16 %v74
  %v821 = vunpack.c.l.b16 %v75
  %v822 = vunpack.c.h.b16 %v75
  %v823 = vunpack.c.l.b16 %v76
  %v824 = vunpack.c.h.b16 %v76
  %v825 = vunpack.c.l.b16 %v77
  %v826 = vunpack.c.h.b16 %v77
  %v827 = vunpack.c.l.b16 %v78
  %v828 = vunpack.c.h.b16 %v78
  %v829 = vunpack.c.l.b16 %v79
  %v830 = vunpack.c.h.b16 %v79
  %v831 = vunpack.c.l.b16 %v80
  %v832 = vunpack.c.h.b16 %v80
  %v833 = vunpack.c.l.b16 %v81
  %v834 = vunpack.c.h.b16 %v81
  %v835 = vunpack.c.l.b16 %v82
  %v836 = vunpack.c.h.b16 %v82
  %v837 = vunpack.c.l.b16 %v83
  %v838 = vunpack.c.h.b16 %v83
  %v839 = vunpack.c.l.b16 %v84
  %v840 = vunpack.c.h.b16 %v84
  %v841 = vunpack.c.l.b16 %v85
  %v842 = vunpack.c.h.b16 %v85
  %v843 = vunpack.c.l.b16 %v86
  %v844 = vunpack.c.h.b16 %v86
  %v845 = vunpack.c.l.b16 %v87
  %v846 = vunpack.c.h.b16 %v87
  %v847 = vunpack.c.l.b16 %v88
  %v848 = vunpack.c.h.b16 %v88
  %v849 = vunpack.c.l.b16 %v89
  %v850 = vunpack.c.h.b16 %v89
  %v851 = vunpack.c.l.b16 %v90
  %v852 = vunpack.c.h.b16 %v90
  %v853 = vunpack.c.l.b16 %v91
  %v854 = vunpack.c.h.b16 %v91
  %v855 = vunpack.c.l.b16 %v92
  %v856 = vunpack.c.h.b16 %v92
  %v857 = vunpack.c.l.b16 %v93
  %v858 = vunpack.c.h.b16 %v93
  %v859 = vunpack.c.l.b16 %v94
  %v860 = vunpack.c.h.b16 %v94
  %v861 = vunpack.c.l.b16 %v95
  %v862 = vunpack.c.h.b16 %v95
  %v863 = vunpack.c.l.b16 %v96
  %v864 = vunpack.c.h.b16 %v96
  %v865 = vunpack.c.l.b16 %v97
  %v866 = vunpack.c.h.b16 %v97
  %v867 = vunpack.c.l.b16 %v98
  %v868 = vunpack.c.h.b16 %v98
  %v869 = vunpack.c.l.b16 %v99
  %v870 = vunpack.c.h.b16 %v99
  %v871 = vunpack.c.l.b16 %v100
  %v872 = vunpack.c.h.b16 %v100
  %v873 = vunpack.c.l.b16 %v101
  %v874 = vunpack.c.h.b16 %v101
  %v875 = vunpack.c.l.b16 %v102
  %v876 = vunpack.c.h.b16 %v102
  %v877 = vunpack.c.l.b16 %v103
  %v878 = vunpack.c.h.b16 %v103
  %v879 = vunpack.c.l.b16 %v104
  %v880 = vunpack.c.h.b16 %v104
  %v881 = vunpack.c.l.b16 %v105
  %v882 = vunpack.c.h.b16 %v105
  %v883 = vunpack.c.l.b16 %v106
  %v884 = vunpack.c.h.b16 %v106
  %v885 = vunpack.c.l.b16 %v107
  %v886 = vunpack.c.h.b16 %v107
  %v887 = vunpack.c.l.b16 %v108
  %v888 = vunpack.c.h.b16 %v108
  %v889 = vunpack.c.l.b16 %v109
  %v890 = vunpack.c.h.b16 %v109
  %v891 = vunpack.c.l.b16 %v110
  %v892 = vunpack.c.h.b16 %v110
  %v893 = vunpack.c.l.b16 %v111
  %v894 = vunpack.c.h.b16 %v111
  %v895 = vunpack.c.l.b16 %v112
  %v896 = vunpack.c.h.b16 %v112
  %v897 = vunpack.c.l.b16 %v113
  %v898 = vunpack.c.h.b16 %v113
  %v899 = vunpack.c.l.b16 %v114
  %v900 = vunpack.c.h.b16 %v114
  %v901 = vunpack.c.l.b16 %v115
  %v902 = vunpack.c.h.b16 %v115
  %v903 = vunpack.c.l.b16 %v116
  %v904 = vunpack.c.h.b16 %v116
  %v905 = vunpack.c.l.b16 %v117
  %v906 = vunpack.c.h.b16 %v117
  %v907 = vunpack.c.l.b16 %v118
  %v908 = vunpack.c.h.b16 %v118
  %v909 = vunpack.c.l.b16 %v119
  %v910 = vunpack.c.h.b16 %v119
  %v911 = vunpack.c.l.b16 %v120
  %v912 = vunpack.c.h.b16 %v120
  %v913 = vunpack.c.l.b16 %v121
  %v914 = vunpack.c.h.b16 %v121
  %v915 = vunpack.c.l.b16 %v122
  %v916 = vunpack.c.h.b16 %v122
  %v917 = vunpack.c.l.b16 %v123
  %v918 = vunpack.c.h.b16 %v123
  %v919 = vunpack.c.l.b16 %v124
  %v920 = vunpack.c.h.b16 %v124
  %v921 = vunpack.c.l.b16 %v125
  %v922 = vunpack.c.h.b16 %v125
  %v923 = vunpack.c.l.b16 %v126
  %v924 = vunpack.c.h.b16 %v126
  %v925 = vunpack.c.l.b16 %v127
  %v926 = vunpack.c.h.b16 %v127
  %v927 = vunpack.c.l.b16 %v128
  %v928 = vunpack.c.h.b16 %v128
  %v929 = vunpack.c.l.b16 %v129
  %v930 = vunpack.c.h.b16 %v129
  %v931 = vunpack.c.l.b16 %v130
  %v932 = vunpack.c.h.b16 %v130
  %v933 = vunpack.c.l.b16 %v131
  %v934 = vunpack.c.h.b16 %v131
  %v935 = vunpack.c.l.b16 %v132
  %v936 = vunpack.c.h.b16 %v132
  %v937 = vunpack.c.l.b16 %v133
  %v938 = vunpack.c.h.b16 %v133
  %v939 = vunpack.c.l.b16 %v134
  %v940 = vunpack.c.h.b16 %v134
  %v941 = vunpack.c.l.b16 %v135
  %v942 = vunpack.c.h.b16 %v135
  %v943 = vunpack.c.l.b16 %v136
  %v944 = vunpack.c.h.b16 %v136
  %v945 = vunpack.c.l.b16 %v137
  %v946 = vunpack.c.h.b16 %v137
  %v947 = vunpack.c.l.b16 %v138
  %v948 = vunpack.c.h.b16 %v138
  %v949 = vunpack.c.l.b16 %v139
  %v950 = vunpack.c.h.b16 %v139
  %v951 = vunpack.c.l.b16 %v140
  %v952 = vunpack.c.h.b16 %v140
  %v953 = vunpack.c.l.b16 %v141
  %v954 = vunpack.c.h.b16 %v141
  %v955 = vunpack.c.l.b16 %v142
  %v956 = vunpack.c.h.b16 %v142
  %v957 = vunpack.c.l.b16 %v143
  %v958 = vunpack.c.h.b16 %v143
  %v959 = vunpack.c.l.b16 %v144
  %v960 = vunpack.c.h.b16 %v144
  %v961 = vunpack.c.l.b16 %v145
  %v962 = vunpack.c.h.b16 %v145
  %v963 = vunpack.c.l.b16 %v146
  %v964 = vunpack.c.h.b16 %v146
  %v965 = vunpack.c.l.b16 %v147
  %v966 = vunpack.c.h.b16 %v147
  %v967 = vunpack.c.l.b16 %v148
  %v968 = vunpack.c.h.b16 %v148
  %v969 = vunpack.c.l.b16 %v149
  %v970 = vunpack.c.h.b16 %v149
  %v971 = vunpack.c.l.b16 %v150
  %v972 = vunpack.c.h.b16 %v150
  %v973 = vunpack.c.l.b16 %v151
  %v974 = vunpack.c.h.b16 %v151
  %v975 = vunpack.c.l.b16 %v152
  %v976 = vunpack.c.h.b16 %v152
  %v977 = vunpack.c.l.b16 %v153
  %v978 = vunpack.c.h.b16 %v153
  %v979 = vunpack.c.l.b16 %v154
  %v980 = vunpack.c.h.b16 %v154
  %v981 = vunpack.c.l.b16 %v155
  %v982 = vunpack.c.h.b16 %v155
  %v983 = vunpack.c.l.b16 %v156
  %v984 = vunpack.c.h.b16 %v156
  %v985 = vunpack.c.l.b16 %v157
  %v986 = vunpack.c.h.b16 %v157
  %v987 = vunpack.c.l.b16 %v158
  %v988 = vunpack.c.h.b16 %v158
  %v989 = vunpack.c.l.b16 %v159
  %v990 = vunpack.c.h.b16 %v159
  %v991 = vunpack.c.l.b16 %v160
  %v992 = vunpack.c.h.b16 %v160
  %v993 = vunpack.c.l.b16 %v161
  %v994 = vunpack.c.h.b16 %v161
  %v995 = vunpack.c.l.b16 %v162
  %v996 = vunpack.c.h.b16 %v162
  %v997 = vunpack.c.l.b16 %v163
  %v998 = vunpack.c.h.b16 %v163
  %v999 = vunpack.c.l.b16 %v164
  %v1000 = vunpack.c.h.b16 %v164
  %v1001 = vunpack.c.l.b16 %v165
  %v1002 = vunpack.c.h.b16 %v165
  %v1003 = vunpack.c.l.b16 %v166
  %v1004 = vunpack.c.h.b16 %v166
  %v1005 = vunpack.c.l.b16 %v167
  %v1006 = vunpack.c.h.b16 %v167
  %v1007 = vunpack.c.l.b16 %v168
  %v1008 = vunpack.c.h.b16 %v168
  %v1009 = vunpack.c.l.b16 %v169
  %v1010 = vunpack.c.h.b16 %v169
  %v1011 = vunpack.c.l.b16 %v170
  %v1012 = vunpack.c.h.b16 %v170
  %v1013 = vunpack.c.l.b16 %v171
  %v1014 = vunpack.c.h.b16 %v171
  %v1015 = vunpack.c.l.b16 %v172
  %v1016 = vunpack.c.h.b16 %v172
  %v1017 = vunpack.c.l.b16 %v173
  %v1018 = vunpack.c.h.b16 %v173
  %v1019 = vunpack.c.l.b16 %v174
  %v1020 = vunpack.c.h.b16 %v174
  %v1021 = vunpack.c.l.b16 %v175
  %v1022 = vunpack.c.h.b16 %v175
  %v1023 = vunpack.c.l.b16 %v176
  %v1024 = vunpack.c.h.b16 %v176
  %v1025 = vunpack.c.l.b16 %v177
  %v1026 = vunpack.c.h.b16 %v177
  %v1027 = vunpack.c.l.b16 %v178
  %v1028 = vunpack.c.h.b16 %v178
  %v1029 = vunpack.c.l.b16 %v179
  %v1030 = vunpack.c.h.b16 %v179
  %v1031 = vunpack.c.l.b16 %v180
  %v1032 = vunpack.c.h.b16 %v180
  %v1033 = vunpack.c.l.b16 %v181
  %v1034 = vunpack.c.h.b16 %v181
  %v1035 = vunpack.c.l.b16 %v182
  %v1036 = vunpack.c.h.b16 %v182
  %v1037 = vunpack.c.l.b16 %v183
  %v1038 = vunpack.c.h.b16 %v183
  %v1039 = vunpack.c.l.b16 %v184
  %v1040 = vunpack.c.h.b16 %v184
  %v1041 = vunpack.c.l.b16 %v185
  %v1042 = vunpack.c.h.b16 %v185
  %v1043 = vunpack.c.l.b16 %v186
  %v1044 = vunpack.c.h.b16 %v186
  %v1045 = vunpack.c.l.b16 %v187
  %v1046 = vunpack.c.h.b16 %v187
  %v1047 = vunpack.c.l.b16 %v188
  %v1048 = vunpack.c.h.b16 %v188
  %v1049 = vunpack.c.l.b16 %v189
  %v1050 = vunpack.c.h.b16 %v189
  %v1051 = vunpack.c.l.b16 %v190
  %v1052 = vunpack.c.h.b16 %v190
  %v1053 = vunpack.c.l.b16 %v191
  %v1054 = vunpack.c.h.b16 %v191
  %v1055 = vunpack.c.l.b16 %v192
  %v1056 = vunpack.c.h.b16 %v192
  %v1057 = vunpack.c.l.b16 %v193
  %v1058 = vunpack.c.h.b16 %v193
  %v1059 = vunpack.c.l.b16 %v194
  %v1060 = vunpack.c.h.b16 %v194
  %v1061 = vunpack.c.l.b16 %v195
  %v1062 = vunpack.c.h.b16 %v195
  %v1063 = vunpack.c.l.b16 %v196
  %v1064 = vunpack.c.h.b16 %v196
  %v1065 = vunpack.c.l.b16 %v197
  %v1066 = vunpack.c.h.b16 %v197
  %v1067 = vunpack.c.l.b16 %v198
  %v1068 = vunpack.c.h.b16 %v198
  %v1069 = vunpack.c.l.b16 %v199
  %v1070 = vunpack.c.h.b16 %v199
  %v1071 = vunpack.c.l.b16 %v200
  %v1072 = vunpack.c.h.b16 %v200
  %v1073 = vunpack.c.l.b16 %v201
  %v1074 = vunpack.c.h.b16 %v201
  %v1075 = vunpack.c.l.b16 %v202
  %v1076 = vunpack.c.h.b16 %v202
  %v1077 = vunpack.c.l.b16 %v203
  %v1078 = vunpack.c.h.b16 %v203
  %v1079 = vunpack.c.l.b16 %v204
  %v1080 = vunpack.c.h.b16 %v204
  %v1081 = vunpack.c.l.b16 %v205
  %v1082 = vunpack.c.h.b16 %v205
  %v1083 = vunpack.c.l.b16 %v206
  %v1084 = vunpack.c.h.b16 %v206
  %v1085 = vunpack.c.l.b16 %v207
  %v1086 = vunpack.c.h.b16 %v207
  %v1087 = vunpack.c.l.b16 %v208
  %v1088 = vunpack.c.h.b16 %v208
  %v1089 = vunpack.c.l.b16 %v209
  %v1090 = vunpack.c.h.b16 %v209
  %v1091 = vunpack.c.l.b16 %v210
  %v1092 = vunpack.c.h.b16 %v210
  %v1093 = vunpack.c.l.b16 %v211
  %v1094 = vunpack.c.h.b16 %v211
  %v1095 = vunpack.c.l.b16 %v212
  %v1096 = vunpack.c.h.b16 %v212
  %v1097 = vunpack.c.l.b16 %v213
  %v1098 = vunpack.c.h.b16 %v213
  %v1099 = vunpack.c.l.b16 %v214
  %v1100 = vunpack.c.h.b16 %v214
  %v1101 = vunpack.c.l.b16 %v215
  %v1102 = vunpack.c.h.b16 %v215
  %v1103 = vunpack.c.l.b16 %v216
  %v1104 = vunpack.c.h.b16 %v216
  %v1105 = vunpack.c.l.b16 %v217
  %v1106 = vunpack.c.h.b16 %v217
  %v1107 = vunpack.c.l.b16 %v218
  %v1108 = vunpack.c.h.b16 %v218
  %v1109 = vunpack.c.l.b16 %v219
  %v1110 = vunpack.c.h.b16 %v219
  %v1111 = vunpack.c.l.b16 %v220
  %v1112 = vunpack.c.h.b16 %v220
  %v1113 = vunpack.c.l.b16 %v221
  %v1114 = vunpack.c.h.b16 %v221
  %v1115 = vunpack.c.l.b16 %v222
  %v1116 = vunpack.c.h.b16 %v222
  %v1117 = vunpack.c.l.b16 %v223
  %v1118 = vunpack.c.h.b16 %v223
  %v1119 = vunpack.c.l.b16 %v224
  %v1120 = vunpack.c.h.b16 %v224
  %v1121 = vunpack.c.l.b16 %v225
  %v1122 = vunpack.c.h.b16 %v225
  %v1123 = vunpack.c.l.b16 %v226
  %v1124 = vunpack.c.h.b16 %v226
  %v1125 = vunpack.c.l.b16 %v227
  %v1126 = vunpack.c.h.b16 %v227
  %v1127 = vunpack.c.l.b16 %v228
  %v1128 = vunpack.c.h.b16 %v228
  %v1129 = vunpack.c.l.b16 %v229
  %v1130 = vunpack.c.h.b16 %v229
  %v1131 = vunpack.c.l.b16 %v230
  %v1132 = vunpack.c.h.b16 %v230
  %v1133 = vunpack.c.l.b16 %v231
  %v1134 = vunpack.c.h.b16 %v231
  %v1135 = vunpack.c.l.b16 %v232
  %v1136 = vunpack.c.h.b16 %v232
  %v1137 = vunpack.c.l.b16 %v233
  %v1138 = vunpack.c.h.b16 %v233
  %v1139 = vunpack.c.l.b16 %v234
  %v1140 = vunpack.c.h.b16 %v234
  %v1141 = vunpack.c.l.b16 %v235
  %v1142 = vunpack.c.h.b16 %v235
  %v1143 = vunpack.c.l.b16 %v236
  %v1144 = vunpack.c.h.b16 %v236
  %v1145 = vunpack.c.l.b16 %v237
  %v1146 = vunpack.c.h.b16 %v237
  %v1147 = vunpack.c.l.b16 %v238
  %v1148 = vunpack.c.h.b16 %v238
  %v1149 = vunpack.c.l.b16 %v239
  %v1150 = vunpack.c.h.b16 %v239
  %v1151 = vunpack.c.l.b16 %v240
  %v1152 = vunpack.c.h.b16 %v240
  %v1153 = vunpack.c.l.b16 %v241
  %v1154 = vunpack.c.h.b16 %v241
  %v1155 = vunpack.c.l.b16 %v242
  %v1156 = vunpack.c.h.b16 %v242
  %v1157 = vunpack.c.l.b16 %v243
  %v1158 = vunpack.c.h.b16 %v243
  %v1159 = vunpack.c.l.b16 %v244
  %v1160 = vunpack.c.h.b16 %v244
  %v1161 = vunpack.c.l.b16 %v245
  %v1162 = vunpack.c.h.b16 %v245
  %v1163 = vunpack.c.l.b16 %v246
  %v1164 = vunpack.c.h.b16 %v246
  %v1165 = vunpack.c.l.b16 %v247
  %v1166 = vunpack.c.h.b16 %v247
  %v1167 = vunpack.c.l.b16 %v248
  %v1168 = vunpack.c.h.b16 %v248
  %v1169 = vunpack.c.l.b16 %v249
  %v1170 = vunpack.c.h.b16 %v249
  %v1171 = vunpack.c.l.b16 %v250
  %v1172 = vunpack.c.h.b16 %v250
  %v1173 = vunpack.c.l.b16 %v251
  %v1174 = vunpack.c.h.b16 %v251
  %v1175 = vunpack.c.l.b16 %v252
  %v1176 = vunpack.c.h.b16 %v252
  %v1177 = vunpack.c.l.b16 %v253
  %v1178 = vunpack.c.h.b16 %v253
  %v1179 = vunpack.c.l.b16 %v254
  %v1180 = vunpack.c.h.b16 %v254
  %v1181 = vunpack.c.l.b16 %v255
  %v1182 = vunpack.c.h.b16 %v255
  %v1183 = vunpack.c.l.b16 %v256
  %v1184 = vunpack.c.h.b16 %v256
  %v1185 = vunpack.c.l.b16 %v257
  %v1186 = vunpack.c.h.b16 %v257
  %v1187 = vunpack.c.l.b16 %v258
  %v1188 = vunpack.c.h.b16 %v258
  %v1189 = vunpack.c.l.b16 %v259
  %v1190 = vunpack.c.h.b16 %v259
  %v1191 = vunpack.c.l.b16 %v260
  %v1192 = vunpack.c.h.b16 %v260
  %v1193 = vunpack.c.l.b16 %v261
  %v1194 = vunpack.c.h.b16 %v261
  %v1195 = vunpack.c.l.b16 %v262
  %v1196 = vunpack.c.h.b16 %v262
  %v1197 = vunpack.c.l.b16 %v263
  %v1198 = vunpack.c.h.b16 %v263
  %v1199 = vunpack.c.l.b16 %v264
  %v1200 = vunpack.c.h.b16 %v264
  %v1201 = vunpack.c.l.b16 %v265
  %v1202 = vunpack.c.h.b16 %v265
  %v1203 = vunpack.c.l.b16 %v266
  %v1204 = vunpack.c.h.b16 %v266
  %v1205 = vunpack.c.l.b16 %v267
  %v1206 = vunpack.c.h.b16 %v267
  %v1207 = vunpack.c.l.b16 %v268
  %v1208 = vunpack.c.h.b16 %v268
  %v1209 = vunpack.c.l.b16 %v269
  %v1210 = vunpack.c.h.b16 %v269
  %v1211 = vunpack.c.l.b16 %v270
  %v1212 = vunpack.c.h.b16 %v270
  %v1213 = vunpack.c.l.b16 %v271
  %v1214 = vunpack.c.h.b16 %v271
  %v1215 = vunpack.c.l.b16 %v272
  %v1216 = vunpack.c.h.b16 %v272
  %v1217 = vunpack.c.l.b16 %v273
  %v1218 = vunpack.c.h.b16 %v273
  %v1219 = vunpack.c.l.b16 %v274
  %v1220 = vunpack.c.h.b16 %v274
  %v1221 = vunpack.c.l.b16 %v275
  %v1222 = vunpack.c.h.b16 %v275
  %v1223 = vunpack.c.l.b16 %v276
  %v1224 = vunpack.c.h.b16 %v276
  %v1225 = vunpack.c.l.b16 %v277
  %v1226 = vunpack.c.h.b16 %v277
  %v1227 = vunpack.c.l.b16 %v278
  %v1228 = vunpack.c.h.b16 %v278
  %v1229 = vunpack.c.l.b16 %v279
  %v1230 = vunpack.c.h.b16 %v279
  %v1231 = vunpack.c.l.b16 %v280
  %v1232 = vunpack.c.h.b16 %v280
  %v1233 = vunpack.c.l.b16 %v281
  %v1234 = vunpack.c.h.b16 %v281
  %v1235 = vunpack.c.l.b16 %v282
  %v1236 = vunpack.c.h.b16 %v282
  %v1237 = vunpack.c.l.b16 %v283
  %v1238 = vunpack.c.h.b16 %v283
  %v1239 = vunpack.c.l.b16 %v284
  %v1240 = vunpack.c.h.b16 %v284
  %v1241 = vunpack.c.l.b16 %v285
  %v1242 = vunpack.c.h.b16 %v285
  %v1243 = vunpack.c.l.b16 %v286
  %v1244 = vunpack.c.h.b16 %v286
  %v1245 = vunpack.c.l.b16 %v287
  %v1246 = vunpack.c.h.b16 %v287
  %v1247 = vunpack.c.l.b16 %v288
  %v1248 = vunpack.c.h.b16 %v288
  %v1249 = vunpack.c.l.b16 %v289
  %v1250 = vunpack.c.h.b16 %v289
  %v1251 = vunpack.c.l.b16 %v290
  %v1252 = vunpack.c.h.b16 %v290
  %v1253 = vunpack.c.l.b16 %v291
  %v1254 = vunpack.c.h.b16 %v291
  %v1255 = vunpack.c.l.b16 %v292
  %v1256 = vunpack.c.h.b16 %v292
  %v1257 = vunpack.c.l.b16 %v293
  %v1258 = vunpack.c.h.b16 %v293
  %v1259 = vunpack.c.l.b16 %v294
  %v1260 = vunpack.c.h.b16 %v294
  %v1261 = vunpack.c.l.b16 %v295
  %v1262 = vunpack.c.h.b16 %v295
  %v1263 = vunpack.c.l.b16 %v296
  %v1264 = vunpack.c.h.b16 %v296
  %v1265 = vunpack.c.l.b16 %v297
  %v1266 = vunpack.c.h.b16 %v297
  %v1267 = vunpack.c.l.b16 %v298
  %v1268 = vunpack.c.h.b16 %v298
  %v1269 = vunpack.c.l.b16 %v299
  %v1270 = vunpack.c.h.b16 %v299
  %v1271 = vunpack.c.l.b16 %v300
  %v1272 = vunpack.c.h.b16 %v300
  %v1273 = vunpack.c.l.b16 %v301
  %v1274 = vunpack.c.h.b16 %v301
  %v1275 = vunpack.c.l.b16 %v302
  %v1276 = vunpack.c.h.b16 %v302
  %v1277 = vunpack.c.l.b16 %v303
  %v1278 = vunpack.c.h.b16 %v303
  %v1279 = vunpack.c.l.b16 %v304
  %v1280 = vunpack.c.h.b16 %v304
  %v1281 = vunpack.c.l.b16 %v305
  %v1282 = vunpack.c.h.b16 %v305
  %v1283 = vunpack.c.l.b16 %v306
  %v1284 = vunpack.c.h.b16 %v306
  %v1285 = vunpack.c.l.b16 %v307
  %v1286 = vunpack.c.h.b16 %v307
  %v1287 = vunpack.c.l.b16 %v308
  %v1288 = vunpack.c.h.b16 %v308
  %v1289 = vunpack.c.l.b16 %v309
  %v1290 = vunpack.c.h.b16 %v309
  %v1291 = vunpack.c.l.b16 %v310
  %v1292 = vunpack.c.h.b16 %v310
  %v1293 = vunpack.c.l.b16 %v311
  %v1294 = vunpack.c.h.b16 %v311
  %v1295 = vunpack.c.l.b16 %v312
  %v1296 = vunpack.c.h.b16 %v312
  %v1297 = vunpack.c.l.b16 %v313
  %v1298 = vunpack.c.h.b16 %v313
  %v1299 = vunpack.c.l.b16 %v314
  %v1300 = vunpack.c.h.b16 %v314
  %v1301 = vunpack.c.l.b16 %v315
  %v1302 = vunpack.c.h.b16 %v315
  %v1303 = vunpack.c.l.b16 %v316
  %v1304 = vunpack.c.h.b16 %v316
  %v1305 = vunpack.c.l.b16 %v317
  %v1306 = vunpack.c.h.b16 %v317
  %v1307 = vunpack.c.l.b16 %v318
  %v1308 = vunpack.c.h.b16 %v318
  %v1309 = vunpack.c.l.b16 %v319
  %v1310 = vunpack.c.h.b16 %v319
  %v1311 = vunpack.c.l.b16 %v320
  %v1312 = vunpack.c.h.b16 %v320
  %v1313 = vunpack.c.l.b16 %v321
  %v1314 = vunpack.c.h.b16 %v321
  %v1315 = vunpack.c.l.b16 %v322
  %v1316 = vunpack.c.h.b16 %v322
  %v1317 = vunpack.c.l.b16 %v323
  %v1318 = vunpack.c.h.b16 %v323
  %v1319 = vunpack.c.l.b16 %v324
  %v1320 = vunpack.c.h.b16 %v324
  %v1321 = vunpack.c.l.b16 %v325
  %v1322 = vunpack.c.h.b16 %v325
  %v1323 = vunpack.c.l.b16 %v326
  %v1324 = vunpack.c.h.b16 %v326
  %v1325 = vunpack.c.l.b16 %v327
  %v1326 = vunpack.c.h.b16 %v327
  %v1327 = vunpack.c.l.b16 %v328
  %v1328 = vunpack.c.h.b16 %v328
  %v1329 = vunpack.c.l.b16 %v329
  %v1330 = vunpack.c.h.b16 %v329
  %v1331 = vunpack.c.l.b16 %v330
  %v1332 = vunpack.c.h.b16 %v330
  %v1333 = vunpack.c.l.b16 %v331
  %v1334 = vunpack.c.h.b16 %v331
  %v1335 = vunpack.c.l.b16 %v332
  %v1336 = vunpack.c.h.b16 %v332
  %v1337 = vunpack.c.l.b16 %v333
  %v1338 = vunpack.c.h.b16 %v333
  %v1339 = vunpack.c.l.b16 %v334
  %v1340 = vunpack.c.h.b16 %v334
  %v1341 = vunpack.c.l.b16 %v335
  %v1342 = vunpack.c.h.b16 %v335
  %v1343 = vunpack.c.l.b16 %v336
  %v1344 = vunpack.c.h.b16 %v336
  %v1345 = vunpack.c.l.b16 %v337
  %v1346 = vunpack.c.h.b16 %v337
  %v1347 = vunpack.c.l.b16 %v338
  %v1348 = vunpack.c.h.b16 %v338
  %v1349 = vunpack.c.l.b16 %v339
  %v1350 = vunpack.c.h.b16 %v339
  %v1351 = vunpack.c.l.b16 %v340
  %v1352 = vunpack.c.h.b16 %v340
  %v1353 = vunpack.c.l.b16 %v341
  %v1354 = vunpack.c.h.b16 %v341
  %v1355 = vunpack.c.l.b16 %v342
  %v1356 = vunpack.c.h.b16 %v342
  %v1357 = vunpack.c.l.b16 %v343
  %v1358 = vunpack.c.h.b16 %v343
  %v1359 = vunpack.c.l.b16 %v344
  %v1360 = vunpack.c.h.b16 %v344
  %v1361 = vunpack.c.l.b16 %v345
  %v1362 = vunpack.c.h.b16 %v345
  %v1363 = vpack.c.b16 %v727, %v723
  %v1364 = vpack.c.b16 %v728, %v724
  %v1365 = vpack.c.b16 %v729, %v725
  %v1366 = vpack.c.b16 %v730, %v726
  %v1367 = vpack.c.b16 %v735, %v731
  %v1368 = vpack.c.b16 %v736, %v732
  %v1369 = vpack.c.b16 %v737, %v733
  %v1370 = vpack.c.b16 %v738, %v734
  %v1371 = vpack.c.b16 %v743, %v739
  %v1372 = vpack.c.b16 %v744, %v740
  %v1373 = vpack.c.b16 %v745, %v741
  %v1374 = vpack.c.b16 %v746, %v742
  %v1375 = vpack.c.b16 %v751, %v747
  %v1376 = vpack.c.b16 %v752, %v748
  %v1377 = vpack.c.b16 %v753, %v749
  %v1378 = vpack.c.b16 %v754, %v750
  %v1379 = vpack.c.b16 %v759, %v755
  %v1380 = vpack.c.b16 %v760, %v756
  %v1381 = vpack.c.b16 %v761, %v757
  %v1382 = vpack.c.b16 %v762, %v758
  %v1383 = vpack.c.b16 %v767, %v763
  %v1384 = vpack.c.b16 %v768, %v764
  %v1385 = vpack.c.b16 %v769, %v765
  %v1386 = vpack.c.b16 %v770, %v766
  %v1387 = vpack.c.b16 %v775, %v771
  %v1388 = vpack.c.b16 %v776, %v772
  %v1389 = vpack.c.b16 %v777, %v773
  %v1390 = vpack.c.b16 %v778, %v774
  %v1391 = vpack.c.b16 %v783, %v779
  %v1392 = vpack.c.b16 %v784, %v780
  %v1393 = vpack.c.b16 %v785, %v781
  %v1394 = vpack.c.b16 %v786, %v782
  %v1395 = vpack.c.b16 %v791, %v787
  %v1396 = vpack.c.b16 %v792, %v788
  %v1397 = vpack.c.b16 %v793, %v789
  %v1398 = vpack.c.b16 %v794, %v790
  %v1399 = vpack.c.b16 %v799, %v795
  %v1400 = vpack.c.b16 %v800, %v796
  %v1401 = vpack.c.b16 %v801, %v797
  %v1402 = vpack.c.b16 %v802, %v798
  %v1403 = vpack.c.b16 %v807, %v803
  %v1404 = vpack.c.b16 %v808, %v804
  %v1405 = vpack.c.b16 %v809, %v805
  %v1406 = vpack.c.b16 %v810, %v806
  %v1407 = vpack.c.b16 %v815, %v811
  %v1408 = vpack.c.b16 %v816, %v812
  %v1409 = vpack.c.b16 %v817, %v813
  %v1410 = vpack.c.b16 %v818, %v814
  %v1411 = vpack.c.b16 %v823, %v819
  %v1412 = vpack.c.b16 %v824, %v820
  %v1413 = vpack.c.b16 %v825, %v821
  %v1414 = vpack.c.b16 %v826, %v822
  %v1415 = vpack.c.b16 %v831, %v827
  %v1416 = vpack.c.b16 %v832, %v828
  %v1417 = vpack.c.b16 %v833, %v829
  %v1418 = vpack.c.b16 %v834, %v830
  %v1419 = vpack.c.b16 %v839, %v835
  %v1420 = vpack.c.b16 %v840, %v836
  %v1421 = vpack.c.b16 %v841, %v837
  %v1422 = vpack.c.b16 %v842, %v838
  %v1423 = vpack.c.b16 %v847, %v843
  %v1424 = vpack.c.b16 %v848, %v844
  %v1425 = vpack.c.b16 %v849, %v845
  %v1426 = vpack.c.b16 %v850, %v846
  %v1427 = vpack.c.b16 %v855, %v851
  %v1428 = vpack.c.b16 %v856, %v852
  %v1429 = vpack.c.b16 %v857, %v853
  %v1430 = vpack.c.b16 %v858, %v854
  %v1431 = vpack.c.b16 %v863, %v859
  %v1432 = vpack.c.b16 %v864, %v860
  %v1433 = vpack.c.b16 %v865, %v861
  %v1434 = vpack.c.b16 %v866, %v862
  %v1435 = vpack.c.b16 %v871, %v867
  %v1436 = vpack.c.b16 %v872, %v868
  %v1437 = vpack.c.b16 %v873, %v869
  %v1438 = vpack.c.b16 %v874, %v870
  %v1439 = vpack.c.b16 %v879, %v875
  %v1440 = vpack.c.b16 %v880, %v876
  %v1441 = vpack.c.b16 %v881, %v877
  %v1442 = vpack.c.b16 %v882, %v878
  %v1443 = vpack.c.b16 %v887, %v883
  %v1444 = vpack.c.b16 %v888, %v884
  %v1445 = vpack.c.b16 %v889, %v885
  %v1446 = vpack.c.b16 %v890, %v886
  %v1447 = vpack.c.b16 %v895, %v891
  %v1448 = vpack.c.b16 %v896, %v892
  %v1449 = vpack.c.b16 %v897, %v893
  %v1450 = vpack.c.b16 %v898, %v894
  %v1451 = vpack.c.b16 %v903, %v899
  %v1452 = vpack.c.b16 %v904, %v900
  %v1453 = vpack.c.b16 %v905, %v901
  %v1454 = vpack.c.b16 %v906, %v902
  %v1455 = vpack.c.b16 %v911, %v907
  %v1456 = vpack.c.b16 %v912, %v908
  %v1457 = vpack.c.b16 %v913, %v909
  %v1458 = vpack.c.b16 %v914, %v910
  %v1459 = vpack.c.b16 %v919, %v915
  %v1460 = vpack.c.b16 %v920, %v916
  %v1461 = vpack.c.b16 %v921, %v917
  %v1462 = vpack.c.b16 %v922, %v918
  %v1463 = vpack.c.b16 %v927, %v923
  %v1464 = vpack.c.b16 %v928, %v924
  %v1465 = vpack.c.b16 %v929, %v925
  %v1466 = vpack.c.b16 %v930, %v926
  %v1467 = vpack.c.b16 %v935, %v931
  %v1468 = vpack.c.b16 %v936, %v932
  %v1469 = vpack.c.b16 %v937, %v933
  %v1470 = vpack.c.b16 %v938, %v934
  %v1471 = vpack.c.b16 %v943, %v939
  %v1472 = vpack.c.b16 %v944, %v940
  %v1473 = vpack.c.b16 %v945, %v941
  %v1474 = vpack.c.b16 %v946, %v942
  %v1475 = vpack.c.b16 %v951, %v947
  %v1476 = vpack.c.b16 %v952, %v948
  %v1477 = vpack.c.b16 %v953, %v949
  %v1478 = vpack.c.b16 %v954, %v950
  %v1479 = vpack.c.b16 %v959, %v955
  %v1480 = vpack.c.b16 %v960, %v956
  %v1481 = vpack.c.b16 %v961, %v957
  %v1482 = vpack.c.b16 %v962, %v958
  %v1483 = vpack.c.b16 %v967, %v963
  %v1484 = vpack.c.b16 %v968, %v964
  %v1485 = vpack.c.b16 %v969, %v965
  %v1486 = vpack.c.b16 %v970, %v966
  %v1487 = vpack.c.b16 %v975, %v971
  %v1488 = vpack.c.b16 %v976, %v972
  %v1489 = vpack.c.b16 %v977, %v973
  %v1490 = vpack.c.b16 %v978, %v974
  %v1491 = vpack.c.b16 %v983, %v979
  %v1492 = vpack.c.b16 %v984, %v980
  %v1493 = vpack.c.b16 %v985, %v981
  %v1494 = vpack.c.b16 %v986, %v982
  %v1495 = vpack.c.b16 %v991, %v987
  %v1496 = vpack.c.b16 %v992, %v988
  %v1497 = vpack.c.b16 %v993, %v989
  %v1498 = vpack.c.b16 %v994, %v990
  %v1499 = vpack.c.b16 %v999, %v995
  %v1500 = vpack.c.b16 %v1000, %v996
  %v1501 = vpack.c.b16 %v1001, %v997
  %v1502 = vpack.c.b16 %v1002, %v998
  %v1503 = vpack.c.b16 %v1007, %v1003
  %v1504 = vpack.c.b16 %v1008, %v1004
  %v1505 = vpack.c.b16 %v1009, %v1005
  %v1506 = vpack.c.b16 %v1010, %v1006
  %v1507 = vpack.c.b16 %v1015, %v1011
  %v1508 = vpack.c.b16 %v1016, %v1012
  %v1509 = vpack.c.b16 %v1017, %v1013
  %v1510 = vpack.c.b16 %v1018, %v1014
  %v1511 = vpack.c.b16 %v1023, %v1019
  %v1512 = vpack.c.b16 %v1024, %v1020
  %v1513 = vpack.c.b16 %v1025, %v1021
  %v1514 = vpack.c.b16 %v1026, %v1022
  %v1515 = vpack.c.b16 %v1031, %v1027
  %v1516 = vpack.c.b16 %v1032, %v1028
  %v1517 = vpack.c.b16 %v1033, %v1029
  %v1518 = vpack.c.b16 %v1034, %v1030
  %v1519 = vpack.c.b16 %v1039, %v1035
  %v1520 = vpack.c.b16 %v1040, %v1036
  %v1521 = vpack.c.b16 %v1041, %v1037
  %v1522 = vpack.c.b16 %v1042, %v1038
  %v1523 = vpack.c.b16 %v1047, %v1043
  %v1524 = vpack.c.b16 %v1048, %v1044
  %v1525 = vpack.c.b16 %v1049, %v1045
  %v1526 = vpack.c.b16 %v1050, %v1046
  %v1527 = vpack.c.b16 %v1055, %v1051
  %v1528 = vpack.c.b16 %v1056, %v1052
  %v1529 = vpack.c.b16 %v1057, %v1053
  %v1530 = vpack.c.b16 %v1058, %v1054
  %v1531 = vpack.c.b16 %v1063, %v1059
  %v1532 = vpack.c.b16 %v1064, %v1060
  %v1533 = vpack.c.b16 %v1065, %v1061
  %v1534 = vpack.c.b16 %v1066, %v1062
  %v1535 = vpack.c.b16 %v1071, %v1067
  %v1536 = vpack.c.b16 %v1072, %v1068
  %v1537 = vpack.c.b16 %v1073, %v1069
  %v1538 = vpack.c.b16 %v1074, %v1070
  %v1539 = vpack.c.b16 %v1079, %v1075
  %v1540 = vpack.c.b16 %v1080, %v1076
  %v1541 = vpack.c.b16 %v1081, %v1077
  %v1542 = vpack.c.b16 %v1082, %v1078
  %v1543 = vpack.c.b16 %v1087, %v1083
  %v1544 = vpack.c.b16 %v1088, %v1084
  %v1545 = vpack.c.b16 %v1089, %v1085
  %v1546 = vpack.c.b16 %v1090, %v1086
  %v1547 = vpack.c.b16 %v1095, %v1091
  %v1548 = vpack.c.b16 %v1096, %v1092
  %v1549 = vpack.c.b16 %v1097, %v1093
  %v1550 = vpack.c.b16 %v1098, %v1094
  %v1551 = vpack.c.b16 %v1103, %v1099
  %v1552 = vpack.c.b16 %v1104, %v1100
  %v1553 = vpack.c.b16 %v1105, %v1101
  %v1554 = vpack.c.b16 %v1106, %v1102
  %v1555 = vpack.c.b16 %v1111, %v1107
  %v1556 = vpack.c.b16 %v1112, %v1108
  %v1557 = vpack.c.b16 %v1113, %v1109
  %v1558 = vpack.c.b16 %v1114, %v1110
  %v1559 = vpack.c.b16 %v1119, %v1115
  %v1560 = vpack.c.b16 %v1120, %v1116
  %v1561 = vpack.c.b16 %v1121, %v1117
  %v1562 = vpack.c.b16 %v1122, %v1118
  %v1563 = vpack.c.b16 %v1127, %v1123
  %v1564 = vpack.c.b16 %v1128, %v1124
  %v1565 = vpack.c.b16 %v1129, %v1125
  %v1566 = vpack.c.b16 %v1130, %v1126
  %v1567 = vpack.c.b16 %v1135, %v1131
  %v1568 = vpack.c.b16 %v1136, %v1132
  %v1569 = vpack.c.b16 %v1137, %v1133
  %v1570 = vpack.c.b16 %v1138, %v1134
  %v1571 = vpack.c.b16 %v1143, %v1139
  %v1572 = vpack.c.b16 %v1144, %v1140
  %v1573 = vpack.c.b16 %v1145, %v1141
  %v1574 = vpack.c.b16 %v1146, %v1142
  %v1575 = vpack.c.b16 %v1151, %v1147
  %v1576 = vpack.c.b16 %v1152, %v1148
  %v1577 = vpack.c.b16 %v1153, %v1149
  %v1578 = vpack.c.b16 %v1154, %v1150
  %v1579 = vpack.c.b16 %v1159, %v1155
  %v1580 = vpack.c.b16 %v1160, %v1156
  %v1581 = vpack.c.b16 %v1161, %v1157
  %v1582 = vpack.c.b16 %v1162, %v1158
  %v1583 = vpack.c.b16 %v1167, %v1163
  %v1584 = vpack.c.b16 %v1168, %v1164
  %v1585 = vpack.c.b16 %v1169, %v1165
  %v1586 = vpack.c.b16 %v1170, %v1166
  %v1587 = vpack.c.b16 %v1175, %v1171
  %v1588 = vpack.c.b16 %v1176, %v1172
  %v1589 = vpack.c.b16 %v1177, %v1173
  %v1590 = vpack.c.b16 %v1178, %v1174
  %v1591 = vpack.c.b16 %v1183, %v1179
  %v1592 = vpack.c.b16 %v1184, %v1180
  %v1593 = vpack.c.b16 %v1185, %v1181
  %v1594 = vpack.c.b16 %v1186, %v1182
  %v1595 = vpack.c.b16 %v1191, %v1187
  %v1596 = vpack.c.b16 %v1192, %v1188
  %v1597 = vpack.c.b16 %v1193, %v1189
  %v1598 = vpack.c.b16 %v1194, %v1190
  %v1599 = vpack.c.b16 %v1199, %v1195
  %v1600 = vpack.c.b16 %v1200, %v1196
  %v1601 = vpack.c.b16 %v1201, %v1197
  %v1602 = vpack.c.b16 %v1202, %v1198
  %v1603 = vpack.c.b16 %v1207, %v1203
  %v1604 = vpack.c.b16 %v1208, %v1204
  %v1605 = vpack.c.b16 %v1209, %v1205
  %v1606 = vpack.c.b16 %v1210, %v1206
  %v1607 = vpack.c.b16 %v1215, %v1211
  %v1608 = vpack.c.b16 %v1216, %v1212
  %v1609 = vpack.c.b16 %v1217, %v1213
  %v1610 = vpack.c.b16 %v1218, %v1214
  %v1611 = vpack.c.b16 %v1223, %v1219
  %v1612 = vpack.c.b16 %v1224, %v1220
  %v1613 = vpack.c.b16 %v1225, %v1221
  %v1614 = vpack.c.b16 %v1226, %v1222
  %v1615 = vpack.c.b16 %v1231, %v1227
  %v1616 = vpack.c.b16 %v1232, %v1228
  %v1617 = vpack.c.b16 %v1233, %v1229
  %v1618 = vpack.c.b16 %v1234, %v1230
  %v1619 = vpack.c.b16 %v1239, %v1235
  %v1620 = vpack.c.b16 %v1240, %v1236
  %v1621 = vpack.c.b16 %v1241, %v1237
  %v1622 = vpack.c.b16 %v1242, %v1238
  %v1623 = vpack.c.b16 %v1247, %v1243
  %v1624 = vpack.c.b16 %v1248, %v1244
  %v1625 = vpack.c.b16 %v1249, %v1245
  %v1626 = vpack.c.b16 %v1250, %v1246
  %v1627 = vpack.c.b16 %v1255, %v1251
  %v1628 = vpack.c.b16 %v1256, %v1252
  %v1629 = vpack.c.b16 %v1257, %v1253
  %v1630 = vpack.c.b16 %v1258, %v1254
  %v1631 = vpack.c.b16 %v1263, %v1259
  %v1632 = vpack.c.b16 %v1264, %v1260
  %v1633 = vpack.c.b16 %v1265, %v1261
  %v1634 = vpack.c.b16 %v1266, %v1262
  %v1635 = vpack.c.b16 %v1271, %v1267
  %v1636 = vpack.c.b16 %v1272, %v1268
  %v1637 = vpack.c.b16 %v1273, %v1269
  %v1638 = vpack.c.b16 %v1274, %v1270
  %v1639 = vpack.c.b16 %v1279, %v1275
  %v1640 = vpack.c.b16 %v1280, %v1276
  %v1641 = vpack.c.b16 %v1281, %v1277
  %v1642 = vpack.c.b16 %v1282, %v1278
  %v1643 = vpack.c.b16 %v1287, %v1283
  %v1644 = vpack.c.b16 %v1288, %v1284
  %v1645 = vpack.c.b16 %v1289, %v1285
  %v1646 = vpack.c.b16 %v1290, %v1286
  %v1647 = vpack.c.b16 %v1295, %v1291
  %v1648 = vpack.c.b16 %v1296, %v1292
  %v1649 = vpack.c.b16 %v1297, %v1293
  %v1650 = vpack.c.b16 %v1298, %v1294
  %v1651 = vpack.c.b16 %v1303, %v1299
  %v1652 = vpack.c.b16 %v1304, %v1300
  %v1653 = vpack.c.b16 %v1305, %v1301
  %v1654 = vpack.c.b16 %v1306, %v1302
  %v1655 = vpack.c.b16 %v1311, %v1307
  %v1656 = vpack.c.b16 %v1312, %v1308
  %v1657 = vpack.c.b16 %v1313, %v1309
  %v1658 = vpack.c.b16 %v1314, %v1310
  %v1659 = vpack.c.b16 %v1319, %v1315
  %v1660 = vpack.c.b16 %v1320, %v1316
  %v1661 = vpack.c.b16 %v1321, %v1317
  %v1662 = vpack.c.b16 %v1322, %v1318
  %v1663 = vpack.c.b16 %v1327, %v1323
  %v1664 = vpack.c.b16 %v1328, %v1324
  %v1665 = vpack.c.b16 %v1329, %v1325
  %v1666 = vpack.c.b16 %v1330, %v1326
  %v1667 = vpack.c.b16 %v1335, %v1331
  %v1668 = vpack.c.b16 %v1336, %v1332
  %v1669 = vpack.c.b16 %v1337, %v1333
  %v1670 = vpack.c.b16 %v1338, %v1334
  %v1671 = vpack.c.b16 %v1343, %v1339
  %v1672 = vpack.c.b16 %v1344, %v1340
  %v1673 = vpack.c.b16 %v1345, %v1341
  %v1674 = vpack.c.b16 %v1346, %v1342
  %v1675 = vpack.c.b16 %v1351, %v1347
  %v1676 = vpack.c.b16 %v1352, %v1348
  %v1677 = vpack.c.b16 %v1353, %v1349
  %v1678 = vpack.c.b16 %v1354, %v1350
  %v1679 = vpack.c.b16 %v1359, %v1355
  %v1680 = vpack.c.b16 %v1360, %v1356
  %v1681 = vpack.c.b16 %v1361, %v1357
  %v1682 = vpack.c.b16 %v1362, %v1358
  %2003 = vmatprep.subr.bf16.mxu0 %v1392
  %2004 = vmatpush1.bf16.msra.mxu0 %v1391
  %2005 = vmatprep.subr.bf16.mxu0 %v1388
  %2006 = vmatpush1.bf16.msra.mxu0 %v1387
  %2007 = vmatprep.subr.bf16.mxu0 %v1384
  %2008 = vmatpush1.bf16.msra.mxu0 %v1383
  %2009 = vmatprep.subr.bf16.mxu0 %v1380
  %2010 = vmatpush1.bf16.msra.mxu0 %v1379
  %2011 = vmatprep.subr.bf16.mxu0 %v1376
  %2012 = vmatpush1.bf16.msra.mxu0 %v1375
  %2013 = vmatprep.subr.bf16.mxu0 %v1372
  %2014 = vmatpush1.bf16.msra.mxu0 %v1371
  %2015 = vmatprep.subr.bf16.mxu0 %v1368
  %2016 = vmatpush1.bf16.msra.mxu0 %v1367
  %2017 = vmatprep.subr.bf16.mxu0 %v1364
  %2018 = vmatpush1.bf16.msra.mxu0 %v1363
  %2019 = vmatprep.subr.bf16.mxu0 %v1424
  %2020 = vmatpush2.bf16.msra.mxu0 %v1423
  %2021 = vmatprep.subr.bf16.mxu0 %v1420
  %2022 = vmatpush2.bf16.msra.mxu0 %v1419
  %2023 = vmatprep.subr.bf16.mxu0 %v1416
  %2024 = vmatpush2.bf16.msra.mxu0 %v1415
  %2025 = vmatprep.subr.bf16.mxu0 %v1412
  %2026 = vmatpush2.bf16.msra.mxu0 %v1411
  %2027 = vmatprep.subr.bf16.mxu0 %v1408
  %2028 = vmatpush2.bf16.msra.mxu0 %v1407
  %2029 = vmatprep.subr.bf16.mxu0 %v1404
  %2030 = vmatpush2.bf16.msra.mxu0 %v1403
  %2031 = vmatprep.subr.bf16.mxu0 %v1400
  %2032 = vmatpush2.bf16.msra.mxu0 %v1399
  %2033 = vmatprep.subr.bf16.mxu0 %v1396
  %2034 = vmatpush2.bf16.msra.mxu0 %v1395
  %2035 = vmatprep.mubr.bf16.mxu0 %v384
  %2036 = vmatmul.mubr.bf16.gmra.mxu0 %v383
  %v2037 = vpop.f32.mrf.mxu0
  %v2038 = vadd.f32 %v351, %v2037
  %v2039 = vpop.f32.mrf.mxu0
  %v2040 = vadd.f32 %v355, %v2039
  %v2041 = vpop.f32.mrf.mxu0
  %v2042 = vpop.f32.mrf.mxu0
  %2043 = vdwg.mxu0
  %2044 = vmatprep.subr.bf16.mxu0 %v1456
  %2045 = vmatpush1.bf16.msra.mxu0 %v1455
  %2046 = vmatprep.subr.bf16.mxu0 %v1452
  %2047 = vmatpush1.bf16.msra.mxu0 %v1451
  %2048 = vmatprep.subr.bf16.mxu0 %v1448
  %2049 = vmatpush1.bf16.msra.mxu0 %v1447
  %2050 = vmatprep.subr.bf16.mxu0 %v1444
  %2051 = vmatpush1.bf16.msra.mxu0 %v1443
  %2052 = vmatprep.subr.bf16.mxu0 %v1440
  %2053 = vmatpush1.bf16.msra.mxu0 %v1439
  %2054 = vmatprep.subr.bf16.mxu0 %v1436
  %2055 = vmatpush1.bf16.msra.mxu0 %v1435
  %2056 = vmatprep.subr.bf16.mxu0 %v1432
  %2057 = vmatpush1.bf16.msra.mxu0 %v1431
  %2058 = vmatprep.subr.bf16.mxu0 %v1428
  %2059 = vmatpush1.bf16.msra.mxu0 %v1427
  %2060 = vmatprep.subr.bf16.mxu0 %v1488
  %2061 = vmatpush2.bf16.msra.mxu0 %v1487
  %2062 = vmatprep.subr.bf16.mxu0 %v1484
  %2063 = vmatpush2.bf16.msra.mxu0 %v1483
  %2064 = vmatprep.subr.bf16.mxu0 %v1480
  %2065 = vmatpush2.bf16.msra.mxu0 %v1479
  %2066 = vmatprep.subr.bf16.mxu0 %v1476
  %2067 = vmatpush2.bf16.msra.mxu0 %v1475
  %2068 = vmatprep.subr.bf16.mxu0 %v1472
  %2069 = vmatpush2.bf16.msra.mxu0 %v1471
  %2070 = vmatprep.subr.bf16.mxu0 %v1468
  %2071 = vmatpush2.bf16.msra.mxu0 %v1467
  %2072 = vmatprep.subr.bf16.mxu0 %v1464
  %2073 = vmatpush2.bf16.msra.mxu0 %v1463
  %2074 = vmatprep.subr.bf16.mxu0 %v1460
  %2075 = vmatpush2.bf16.msra.mxu0 %v1459
  %2076 = vmatprep.mubr.bf16.mxu0 %v386
  %2077 = vmatmul.mubr.bf16.gmra.mxu0 %v385
  %v2078 = vpop.f32.mrf.mxu0
  %v2079 = vadd.f32 %v2038, %v2078
  %v2080 = vpop.f32.mrf.mxu0
  %v2081 = vadd.f32 %v2040, %v2080
  %v2082 = vpop.f32.mrf.mxu0
  %v2083 = vpop.f32.mrf.mxu0
  %2084 = vdwg.mxu0
  %2085 = vmatprep.subr.bf16.mxu0 %v1520
  %2086 = vmatpush1.bf16.msra.mxu0 %v1519
  %2087 = vmatprep.subr.bf16.mxu0 %v1516
  %2088 = vmatpush1.bf16.msra.mxu0 %v1515
  %2089 = vmatprep.subr.bf16.mxu0 %v1512
  %2090 = vmatpush1.bf16.msra.mxu0 %v1511
  %2091 = vmatprep.subr.bf16.mxu0 %v1508
  %2092 = vmatpush1.bf16.msra.mxu0 %v1507
  %2093 = vmatprep.subr.bf16.mxu0 %v1504
  %2094 = vmatpush1.bf16.msra.mxu0 %v1503
  %2095 = vmatprep.subr.bf16.mxu0 %v1500
  %2096 = vmatpush1.bf16.msra.mxu0 %v1499
  %2097 = vmatprep.subr.bf16.mxu0 %v1496
  %2098 = vmatpush1.bf16.msra.mxu0 %v1495
  %2099 = vmatprep.subr.bf16.mxu0 %v1492
  %2100 = vmatpush1.bf16.msra.mxu0 %v1491
  %2101 = vmatprep.subr.bf16.mxu0 %v1552
  %2102 = vmatpush2.bf16.msra.mxu0 %v1551
  %2103 = vmatprep.subr.bf16.mxu0 %v1548
  %2104 = vmatpush2.bf16.msra.mxu0 %v1547
  %2105 = vmatprep.subr.bf16.mxu0 %v1544
  %2106 = vmatpush2.bf16.msra.mxu0 %v1543
  %2107 = vmatprep.subr.bf16.mxu0 %v1540
  %2108 = vmatpush2.bf16.msra.mxu0 %v1539
  %2109 = vmatprep.subr.bf16.mxu0 %v1536
  %2110 = vmatpush2.bf16.msra.mxu0 %v1535
  %2111 = vmatprep.subr.bf16.mxu0 %v1532
  %2112 = vmatpush2.bf16.msra.mxu0 %v1531
  %2113 = vmatprep.subr.bf16.mxu0 %v1528
  %2114 = vmatpush2.bf16.msra.mxu0 %v1527
  %2115 = vmatprep.subr.bf16.mxu0 %v1524
  %2116 = vmatpush2.bf16.msra.mxu0 %v1523
  %2117 = vmatprep.mubr.bf16.mxu0 %v388
  %2118 = vmatmul.mubr.bf16.gmra.mxu0 %v387
  %v2119 = vpop.f32.mrf.mxu0
  %v2120 = vadd.f32 %v2079, %v2119
  %v2121 = vpop.f32.mrf.mxu0
  %v2122 = vadd.f32 %v2081, %v2121
  %v2123 = vpop.f32.mrf.mxu0
  %v2124 = vpop.f32.mrf.mxu0
  %2125 = vdwg.mxu0
  %2126 = vmatprep.subr.bf16.mxu0 %v1584
  %2127 = vmatpush1.bf16.msra.mxu0 %v1583
  %2128 = vmatprep.subr.bf16.mxu0 %v1580
  %2129 = vmatpush1.bf16.msra.mxu0 %v1579
  %2130 = vmatprep.subr.bf16.mxu0 %v1576
  %2131 = vmatpush1.bf16.msra.mxu0 %v1575
  %2132 = vmatprep.subr.bf16.mxu0 %v1572
  %2133 = vmatpush1.bf16.msra.mxu0 %v1571
  %2134 = vmatprep.subr.bf16.mxu0 %v1568
  %2135 = vmatpush1.bf16.msra.mxu0 %v1567
  %2136 = vmatprep.subr.bf16.mxu0 %v1564
  %2137 = vmatpush1.bf16.msra.mxu0 %v1563
  %2138 = vmatprep.subr.bf16.mxu0 %v1560
  %2139 = vmatpush1.bf16.msra.mxu0 %v1559
  %2140 = vmatprep.subr.bf16.mxu0 %v1556
  %2141 = vmatpush1.bf16.msra.mxu0 %v1555
  %2142 = vmatprep.subr.bf16.mxu0 %v1616
  %2143 = vmatpush2.bf16.msra.mxu0 %v1615
  %2144 = vmatprep.subr.bf16.mxu0 %v1612
  %2145 = vmatpush2.bf16.msra.mxu0 %v1611
  %2146 = vmatprep.subr.bf16.mxu0 %v1608
  %2147 = vmatpush2.bf16.msra.mxu0 %v1607
  %2148 = vmatprep.subr.bf16.mxu0 %v1604
  %2149 = vmatpush2.bf16.msra.mxu0 %v1603
  %2150 = vmatprep.subr.bf16.mxu0 %v1600
  %2151 = vmatpush2.bf16.msra.mxu0 %v1599
  %2152 = vmatprep.subr.bf16.mxu0 %v1596
  %2153 = vmatpush2.bf16.msra.mxu0 %v1595
  %2154 = vmatprep.subr.bf16.mxu0 %v1592
  %2155 = vmatpush2.bf16.msra.mxu0 %v1591
  %2156 = vmatprep.subr.bf16.mxu0 %v1588
  %2157 = vmatpush2.bf16.msra.mxu0 %v1587
  %2158 = vmatprep.mubr.bf16.mxu0 %v390
  %2159 = vmatmul.mubr.bf16.gmra.mxu0 %v389
  %v2160 = vpop.f32.mrf.mxu0
  %v2161 = vadd.f32 %v2120, %v2160
  %v2162 = vpop.f32.mrf.mxu0
  %v2163 = vadd.f32 %v2122, %v2162
  %v2164 = vpop.f32.mrf.mxu0
  %v2165 = vpop.f32.mrf.mxu0
  %2166 = vdwg.mxu0
  %2167 = vmatprep.subr.bf16.mxu0 %v1648
  %2168 = vmatpush1.bf16.msra.mxu0 %v1647
  %2169 = vmatprep.subr.bf16.mxu0 %v1644
  %2170 = vmatpush1.bf16.msra.mxu0 %v1643
  %2171 = vmatprep.subr.bf16.mxu0 %v1640
  %2172 = vmatpush1.bf16.msra.mxu0 %v1639
  %2173 = vmatprep.subr.bf16.mxu0 %v1636
  %2174 = vmatpush1.bf16.msra.mxu0 %v1635
  %2175 = vmatprep.subr.bf16.mxu0 %v1632
  %2176 = vmatpush1.bf16.msra.mxu0 %v1631
  %2177 = vmatprep.subr.bf16.mxu0 %v1628
  %2178 = vmatpush1.bf16.msra.mxu0 %v1627
  %2179 = vmatprep.subr.bf16.mxu0 %v1624
  %2180 = vmatpush1.bf16.msra.mxu0 %v1623
  %2181 = vmatprep.subr.bf16.mxu0 %v1620
  %2182 = vmatpush1.bf16.msra.mxu0 %v1619
  %2183 = vmatprep.subr.bf16.mxu0 %v1680
  %2184 = vmatpush2.bf16.msra.mxu0 %v1679
  %2185 = vmatprep.subr.bf16.mxu0 %v1676
  %2186 = vmatpush2.bf16.msra.mxu0 %v1675
  %2187 = vmatprep.subr.bf16.mxu0 %v1672
  %2188 = vmatpush2.bf16.msra.mxu0 %v1671
  %2189 = vmatprep.subr.bf16.mxu0 %v1668
  %2190 = vmatpush2.bf16.msra.mxu0 %v1667
  %2191 = vmatprep.subr.bf16.mxu0 %v1664
  %2192 = vmatpush2.bf16.msra.mxu0 %v1663
  %2193 = vmatprep.subr.bf16.mxu0 %v1660
  %2194 = vmatpush2.bf16.msra.mxu0 %v1659
  %2195 = vmatprep.subr.bf16.mxu0 %v1656
  %2196 = vmatpush2.bf16.msra.mxu0 %v1655
  %2197 = vmatprep.subr.bf16.mxu0 %v1652
  %2198 = vmatpush2.bf16.msra.mxu0 %v1651
  %2199 = vmatprep.mubr.bf16.mxu0 %v392
  %2200 = vmatmul.mubr.bf16.gmra.mxu0 %v391
  %v2201 = vpop.f32.mrf.mxu0
  %v2202 = vadd.f32 %v2161, %v2201
  %v2203 = vpop.f32.mrf.mxu0
  %v2204 = vadd.f32 %v2163, %v2203
  %v2205 = vpop.f32.mrf.mxu0
  %v2206 = vpop.f32.mrf.mxu0
  %2207 = vdwg.mxu0
  %2208 = vmatprep.subr.bf16.mxu0 %v1394
  %2209 = vmatpush1.bf16.msra.mxu0 %v1393
  %2210 = vmatprep.subr.bf16.mxu0 %v1390
  %2211 = vmatpush1.bf16.msra.mxu0 %v1389
  %2212 = vmatprep.subr.bf16.mxu0 %v1386
  %2213 = vmatpush1.bf16.msra.mxu0 %v1385
  %2214 = vmatprep.subr.bf16.mxu0 %v1382
  %2215 = vmatpush1.bf16.msra.mxu0 %v1381
  %2216 = vmatprep.subr.bf16.mxu0 %v1378
  %2217 = vmatpush1.bf16.msra.mxu0 %v1377
  %2218 = vmatprep.subr.bf16.mxu0 %v1374
  %2219 = vmatpush1.bf16.msra.mxu0 %v1373
  %2220 = vmatprep.subr.bf16.mxu0 %v1370
  %2221 = vmatpush1.bf16.msra.mxu0 %v1369
  %2222 = vmatprep.subr.bf16.mxu0 %v1366
  %2223 = vmatpush1.bf16.msra.mxu0 %v1365
  %2224 = vmatprep.subr.bf16.mxu0 %v1426
  %2225 = vmatpush2.bf16.msra.mxu0 %v1425
  %2226 = vmatprep.subr.bf16.mxu0 %v1422
  %2227 = vmatpush2.bf16.msra.mxu0 %v1421
  %2228 = vmatprep.subr.bf16.mxu0 %v1418
  %2229 = vmatpush2.bf16.msra.mxu0 %v1417
  %2230 = vmatprep.subr.bf16.mxu0 %v1414
  %2231 = vmatpush2.bf16.msra.mxu0 %v1413
  %2232 = vmatprep.subr.bf16.mxu0 %v1410
  %2233 = vmatpush2.bf16.msra.mxu0 %v1409
  %2234 = vmatprep.subr.bf16.mxu0 %v1406
  %2235 = vmatpush2.bf16.msra.mxu0 %v1405
  %2236 = vmatprep.subr.bf16.mxu0 %v1402
  %2237 = vmatpush2.bf16.msra.mxu0 %v1401
  %2238 = vmatprep.subr.bf16.mxu0 %v1398
  %2239 = vmatpush2.bf16.msra.mxu0 %v1397
  %2240 = vmatprep.mubr.bf16.mxu0 %v384
  %2241 = vmatmul.mubr.bf16.gmra.mxu0 %v383
  %v2242 = vpop.f32.mrf.mxu0
  %v2243 = vadd.f32 %v359, %v2242
  %v2244 = vpop.f32.mrf.mxu0
  %v2245 = vadd.f32 %v363, %v2244
  %v2246 = vpop.f32.mrf.mxu0
  %v2247 = vpop.f32.mrf.mxu0
  %2248 = vdwg.mxu0
  %2249 = vmatprep.subr.bf16.mxu0 %v1458
  %2250 = vmatpush1.bf16.msra.mxu0 %v1457
  %2251 = vmatprep.subr.bf16.mxu0 %v1454
  %2252 = vmatpush1.bf16.msra.mxu0 %v1453
  %2253 = vmatprep.subr.bf16.mxu0 %v1450
  %2254 = vmatpush1.bf16.msra.mxu0 %v1449
  %2255 = vmatprep.subr.bf16.mxu0 %v1446
  %2256 = vmatpush1.bf16.msra.mxu0 %v1445
  %2257 = vmatprep.subr.bf16.mxu0 %v1442
  %2258 = vmatpush1.bf16.msra.mxu0 %v1441
  %2259 = vmatprep.subr.bf16.mxu0 %v1438
  %2260 = vmatpush1.bf16.msra.mxu0 %v1437
  %2261 = vmatprep.subr.bf16.mxu0 %v1434
  %2262 = vmatpush1.bf16.msra.mxu0 %v1433
  %2263 = vmatprep.subr.bf16.mxu0 %v1430
  %2264 = vmatpush1.bf16.msra.mxu0 %v1429
  %2265 = vmatprep.subr.bf16.mxu0 %v1490
  %2266 = vmatpush2.bf16.msra.mxu0 %v1489
  %2267 = vmatprep.subr.bf16.mxu0 %v1486
  %2268 = vmatpush2.bf16.msra.mxu0 %v1485
  %2269 = vmatprep.subr.bf16.mxu0 %v1482
  %2270 = vmatpush2.bf16.msra.mxu0 %v1481
  %2271 = vmatprep.subr.bf16.mxu0 %v1478
  %2272 = vmatpush2.bf16.msra.mxu0 %v1477
  %2273 = vmatprep.subr.bf16.mxu0 %v1474
  %2274 = vmatpush2.bf16.msra.mxu0 %v1473
  %2275 = vmatprep.subr.bf16.mxu0 %v1470
  %2276 = vmatpush2.bf16.msra.mxu0 %v1469
  %2277 = vmatprep.subr.bf16.mxu0 %v1466
  %2278 = vmatpush2.bf16.msra.mxu0 %v1465
  %2279 = vmatprep.subr.bf16.mxu0 %v1462
  %2280 = vmatpush2.bf16.msra.mxu0 %v1461
  %2281 = vmatprep.mubr.bf16.mxu0 %v386
  %2282 = vmatmul.mubr.bf16.gmra.mxu0 %v385
  %v2283 = vpop.f32.mrf.mxu0
  %v2284 = vadd.f32 %v2243, %v2283
  %v2285 = vpop.f32.mrf.mxu0
  %v2286 = vadd.f32 %v2245, %v2285
  %v2287 = vpop.f32.mrf.mxu0
  %v2288 = vpop.f32.mrf.mxu0
  %2289 = vdwg.mxu0
  %2290 = vmatprep.subr.bf16.mxu0 %v1522
  %2291 = vmatpush1.bf16.msra.mxu0 %v1521
  %2292 = vmatprep.subr.bf16.mxu0 %v1518
  %2293 = vmatpush1.bf16.msra.mxu0 %v1517
  %2294 = vmatprep.subr.bf16.mxu0 %v1514
  %2295 = vmatpush1.bf16.msra.mxu0 %v1513
  %2296 = vmatprep.subr.bf16.mxu0 %v1510
  %2297 = vmatpush1.bf16.msra.mxu0 %v1509
  %2298 = vmatprep.subr.bf16.mxu0 %v1506
  %2299 = vmatpush1.bf16.msra.mxu0 %v1505
  %2300 = vmatprep.subr.bf16.mxu0 %v1502
  %2301 = vmatpush1.bf16.msra.mxu0 %v1501
  %2302 = vmatprep.subr.bf16.mxu0 %v1498
  %2303 = vmatpush1.bf16.msra.mxu0 %v1497
  %2304 = vmatprep.subr.bf16.mxu0 %v1494
  %2305 = vmatpush1.bf16.msra.mxu0 %v1493
  %2306 = vmatprep.subr.bf16.mxu0 %v1554
  %2307 = vmatpush2.bf16.msra.mxu0 %v1553
  %2308 = vmatprep.subr.bf16.mxu0 %v1550
  %2309 = vmatpush2.bf16.msra.mxu0 %v1549
  %2310 = vmatprep.subr.bf16.mxu0 %v1546
  %2311 = vmatpush2.bf16.msra.mxu0 %v1545
  %2312 = vmatprep.subr.bf16.mxu0 %v1542
  %2313 = vmatpush2.bf16.msra.mxu0 %v1541
  %2314 = vmatprep.subr.bf16.mxu0 %v1538
  %2315 = vmatpush2.bf16.msra.mxu0 %v1537
  %2316 = vmatprep.subr.bf16.mxu0 %v1534
  %2317 = vmatpush2.bf16.msra.mxu0 %v1533
  %2318 = vmatprep.subr.bf16.mxu0 %v1530
  %2319 = vmatpush2.bf16.msra.mxu0 %v1529
  %2320 = vmatprep.subr.bf16.mxu0 %v1526
  %2321 = vmatpush2.bf16.msra.mxu0 %v1525
  %2322 = vmatprep.mubr.bf16.mxu0 %v388
  %2323 = vmatmul.mubr.bf16.gmra.mxu0 %v387
  %v2324 = vpop.f32.mrf.mxu0
  %v2325 = vadd.f32 %v2284, %v2324
  %v2326 = vpop.f32.mrf.mxu0
  %v2327 = vadd.f32 %v2286, %v2326
  %v2328 = vpop.f32.mrf.mxu0
  %v2329 = vpop.f32.mrf.mxu0
  %2330 = vdwg.mxu0
  %2331 = vmatprep.subr.bf16.mxu0 %v1586
  %2332 = vmatpush1.bf16.msra.mxu0 %v1585
  %2333 = vmatprep.subr.bf16.mxu0 %v1582
  %2334 = vmatpush1.bf16.msra.mxu0 %v1581
  %2335 = vmatprep.subr.bf16.mxu0 %v1578
  %2336 = vmatpush1.bf16.msra.mxu0 %v1577
  %2337 = vmatprep.subr.bf16.mxu0 %v1574
  %2338 = vmatpush1.bf16.msra.mxu0 %v1573
  %2339 = vmatprep.subr.bf16.mxu0 %v1570
  %2340 = vmatpush1.bf16.msra.mxu0 %v1569
  %2341 = vmatprep.subr.bf16.mxu0 %v1566
  %2342 = vmatpush1.bf16.msra.mxu0 %v1565
  %2343 = vmatprep.subr.bf16.mxu0 %v1562
  %2344 = vmatpush1.bf16.msra.mxu0 %v1561
  %2345 = vmatprep.subr.bf16.mxu0 %v1558
  %2346 = vmatpush1.bf16.msra.mxu0 %v1557
  %2347 = vmatprep.subr.bf16.mxu0 %v1618
  %2348 = vmatpush2.bf16.msra.mxu0 %v1617
  %2349 = vmatprep.subr.bf16.mxu0 %v1614
  %2350 = vmatpush2.bf16.msra.mxu0 %v1613
  %2351 = vmatprep.subr.bf16.mxu0 %v1610
  %2352 = vmatpush2.bf16.msra.mxu0 %v1609
  %2353 = vmatprep.subr.bf16.mxu0 %v1606
  %2354 = vmatpush2.bf16.msra.mxu0 %v1605
  %2355 = vmatprep.subr.bf16.mxu0 %v1602
  %2356 = vmatpush2.bf16.msra.mxu0 %v1601
  %2357 = vmatprep.subr.bf16.mxu0 %v1598
  %2358 = vmatpush2.bf16.msra.mxu0 %v1597
  %2359 = vmatprep.subr.bf16.mxu0 %v1594
  %2360 = vmatpush2.bf16.msra.mxu0 %v1593
  %2361 = vmatprep.subr.bf16.mxu0 %v1590
  %2362 = vmatpush2.bf16.msra.mxu0 %v1589
  %2363 = vmatprep.mubr.bf16.mxu0 %v390
  %2364 = vmatmul.mubr.bf16.gmra.mxu0 %v389
  %v2365 = vpop.f32.mrf.mxu0
  %v2366 = vadd.f32 %v2325, %v2365
  %v2367 = vpop.f32.mrf.mxu0
  %v2368 = vadd.f32 %v2327, %v2367
  %v2369 = vpop.f32.mrf.mxu0
  %v2370 = vpop.f32.mrf.mxu0
  %2371 = vdwg.mxu0
  %2372 = vmatprep.subr.bf16.mxu0 %v1650
  %2373 = vmatpush1.bf16.msra.mxu0 %v1649
  %2374 = vmatprep.subr.bf16.mxu0 %v1646
  %2375 = vmatpush1.bf16.msra.mxu0 %v1645
  %2376 = vmatprep.subr.bf16.mxu0 %v1642
  %2377 = vmatpush1.bf16.msra.mxu0 %v1641
  %2378 = vmatprep.subr.bf16.mxu0 %v1638
  %2379 = vmatpush1.bf16.msra.mxu0 %v1637
  %2380 = vmatprep.subr.bf16.mxu0 %v1634
  %2381 = vmatpush1.bf16.msra.mxu0 %v1633
  %2382 = vmatprep.subr.bf16.mxu0 %v1630
  %2383 = vmatpush1.bf16.msra.mxu0 %v1629
  %2384 = vmatprep.subr.bf16.mxu0 %v1626
  %2385 = vmatpush1.bf16.msra.mxu0 %v1625
  %2386 = vmatprep.subr.bf16.mxu0 %v1622
  %2387 = vmatpush1.bf16.msra.mxu0 %v1621
  %2388 = vmatprep.subr.bf16.mxu0 %v1682
  %2389 = vmatpush2.bf16.msra.mxu0 %v1681
  %2390 = vmatprep.subr.bf16.mxu0 %v1678
  %2391 = vmatpush2.bf16.msra.mxu0 %v1677
  %2392 = vmatprep.subr.bf16.mxu0 %v1674
  %2393 = vmatpush2.bf16.msra.mxu0 %v1673
  %2394 = vmatprep.subr.bf16.mxu0 %v1670
  %2395 = vmatpush2.bf16.msra.mxu0 %v1669
  %2396 = vmatprep.subr.bf16.mxu0 %v1666
  %2397 = vmatpush2.bf16.msra.mxu0 %v1665
  %2398 = vmatprep.subr.bf16.mxu0 %v1662
  %2399 = vmatpush2.bf16.msra.mxu0 %v1661
  %2400 = vmatprep.subr.bf16.mxu0 %v1658
  %2401 = vmatpush2.bf16.msra.mxu0 %v1657
  %2402 = vmatprep.subr.bf16.mxu0 %v1654
  %2403 = vmatpush2.bf16.msra.mxu0 %v1653
  %2404 = vmatprep.mubr.bf16.mxu0 %v392
  %2405 = vmatmul.mubr.bf16.gmra.mxu0 %v391
  %v2406 = vpop.f32.mrf.mxu0
  %v2407 = vadd.f32 %v2366, %v2406
  %v2408 = vpop.f32.mrf.mxu0
  %v2409 = vadd.f32 %v2368, %v2408
  %v2410 = vpop.f32.mrf.mxu0
  %v2411 = vpop.f32.mrf.mxu0
  %2412 = vdwg.mxu0
  %v2413 = vmax.f32 %v2202, 0.0
  %v2414 = vmax.f32 %v2204, 0.0
  %v2415 = vmax.f32 %v2407, 0.0
  %v2416 = vmax.f32 %v2409, 0.0
  %v2417 = vpack.c.bf16 %v2413, %v2413
  %v2418 = vpack.c.bf16 %v2414, %v2414
  %v2419 = vpack.c.bf16 %v2415, %v2415
  %v2420 = vpack.c.bf16 %v2416, %v2416
  %v2421 = vld [vmem:[%s3] sm:$0xf]
  %v2422 = vld [vmem:[%s3 + $0x4] sm:$0xf]
  %v2423 = vld [vmem:[%s3 + $0x8] sm:$0xf]
  %v2424 = vld [vmem:[%s3 + $0xc] sm:$0xf]
  %v2425 = vld [vmem:[%s3 + $0x10] sm:$0xf]
  %v2426 = vld [vmem:[%s3 + $0x14] sm:$0xf]
  %v2427 = vld [vmem:[%s3 + $0x18] sm:$0xf]
  %v2428 = vld [vmem:[%s3 + $0x1c] sm:$0xf]
  %v2429 = vld [vmem:[%s3 + $0x20] sm:$0xf]
  %v2430 = vld [vmem:[%s3 + $0x24] sm:$0xf]
  %v2431 = vld [vmem:[%s3 + $0x28] sm:$0xf]
  %v2432 = vld [vmem:[%s3 + $0x2c] sm:$0xf]
  %v2433 = vld [vmem:[%s3 + $0x30] sm:$0xf]
  %v2434 = vld [vmem:[%s3 + $0x34] sm:$0xf]
  %v2435 = vld [vmem:[%s3 + $0x38] sm:$0xf]
  %v2436 = vld [vmem:[%s3 + $0x3c] sm:$0xf]
  %v2437 = vld [vmem:[%s3 + $0x40] sm:$0xf]
  %v2438 = vld [vmem:[%s3 + $0x44] sm:$0xf]
  %v2439 = vld [vmem:[%s3 + $0x48] sm:$0xf]
  %v2440 = vld [vmem:[%s3 + $0x4c] sm:$0xf]
  %v2441 = vld [vmem:[%s3 + $0x50] sm:$0xf]
  %v2442 = vld [vmem:[%s3 + $0x54] sm:$0xf]
  %v2443 = vld [vmem:[%s3 + $0x58] sm:$0xf]
  %v2444 = vld [vmem:[%s3 + $0x5c] sm:$0xf]
  %v2445 = vld [vmem:[%s3 + $0x60] sm:$0xf]
  %v2446 = vld [vmem:[%s3 + $0x64] sm:$0xf]
  %v2447 = vld [vmem:[%s3 + $0x68] sm:$0xf]
  %v2448 = vld [vmem:[%s3 + $0x6c] sm:$0xf]
  %v2449 = vld [vmem:[%s3 + $0x70] sm:$0xf]
  %v2450 = vld [vmem:[%s3 + $0x74] sm:$0xf]
  %v2451 = vld [vmem:[%s3 + $0x78] sm:$0xf]
  %v2452 = vld [vmem:[%s3 + $0x7c] sm:$0xf]
  %v2453 = vld [vmem:[%s3 + $0x80] sm:$0xf]
  %v2454 = vld [vmem:[%s3 + $0x84] sm:$0xf]
  %v2455 = vld [vmem:[%s3 + $0x88] sm:$0xf]
  %v2456 = vld [vmem:[%s3 + $0x8c] sm:$0xf]
  %v2457 = vld [vmem:[%s3 + $0x90] sm:$0xf]
  %v2458 = vld [vmem:[%s3 + $0x94] sm:$0xf]
  %v2459 = vld [vmem:[%s3 + $0x98] sm:$0xf]
  %v2460 = vld [vmem:[%s3 + $0x9c] sm:$0xf]
  %v2461 = vld [vmem:[%s3 + $0xa0] sm:$0xf]
  %v2462 = vld [vmem:[%s3 + $0xa4] sm:$0xf]
  %v2463 = vld [vmem:[%s3 + $0xa8] sm:$0xf]
  %v2464 = vld [vmem:[%s3 + $0xac] sm:$0xf]
  %v2465 = vld [vmem:[%s3 + $0xb0] sm:$0xf]
  %v2466 = vld [vmem:[%s3 + $0xb4] sm:$0xf]
  %v2467 = vld [vmem:[%s3 + $0xb8] sm:$0xf]
  %v2468 = vld [vmem:[%s3 + $0xbc] sm:$0xf]
  %v2469 = vld [vmem:[%s3 + $0xc0] sm:$0xf]
  %v2470 = vld [vmem:[%s3 + $0xc4] sm:$0xf]
  %v2471 = vld [vmem:[%s3 + $0xc8] sm:$0xf]
  %v2472 = vld [vmem:[%s3 + $0xcc] sm:$0xf]
  %v2473 = vld [vmem:[%s3 + $0xd0] sm:$0xf]
  %v2474 = vld [vmem:[%s3 + $0xd4] sm:$0xf]
  %v2475 = vld [vmem:[%s3 + $0xd8] sm:$0xf]
  %v2476 = vld [vmem:[%s3 + $0xdc] sm:$0xf]
  %v2477 = vld [vmem:[%s3 + $0xe0] sm:$0xf]
  %v2478 = vld [vmem:[%s3 + $0xe4] sm:$0xf]
  %v2479 = vld [vmem:[%s3 + $0xe8] sm:$0xf]
  %v2480 = vld [vmem:[%s3 + $0xec] sm:$0xf]
  %v2481 = vld [vmem:[%s3 + $0xf0] sm:$0xf]
  %v2482 = vld [vmem:[%s3 + $0xf4] sm:$0xf]
  %v2483 = vld [vmem:[%s3 + $0xf8] sm:$0xf]
  %v2484 = vld [vmem:[%s3 + $0xfc] sm:$0xf]
  %v2485 = vld [vmem:[%s4] sm:$0x1]
  %v2487 = vlaneseq
  %v2488 = vshrl.u32 %v2487, 7
  %v2489 = vsub.s32 0, %v2488
  %v2490 = vrot.slane %v2485, %v2489
  %v2556 = vunpack.c.l.b16 %v2421
  %v2557 = vunpack.c.l.b16 %v2422
  %v2558 = vunpack.c.l.b16 %v2423
  %v2559 = vunpack.c.l.b16 %v2424
  %v2560 = vunpack.c.l.b16 %v2425
  %v2561 = vunpack.c.l.b16 %v2426
  %v2562 = vunpack.c.l.b16 %v2427
  %v2563 = vunpack.c.l.b16 %v2428
  %v2564 = vunpack.c.l.b16 %v2429
  %v2565 = vunpack.c.l.b16 %v2430
  %v2566 = vunpack.c.l.b16 %v2431
  %v2567 = vunpack.c.l.b16 %v2432
  %v2568 = vunpack.c.l.b16 %v2433
  %v2569 = vunpack.c.l.b16 %v2434
  %v2570 = vunpack.c.l.b16 %v2435
  %v2571 = vunpack.c.l.b16 %v2436
  %v2572 = vunpack.c.l.b16 %v2437
  %v2573 = vunpack.c.l.b16 %v2438
  %v2574 = vunpack.c.l.b16 %v2439
  %v2575 = vunpack.c.l.b16 %v2440
  %v2576 = vunpack.c.l.b16 %v2441
  %v2577 = vunpack.c.l.b16 %v2442
  %v2578 = vunpack.c.l.b16 %v2443
  %v2579 = vunpack.c.l.b16 %v2444
  %v2580 = vunpack.c.l.b16 %v2445
  %v2581 = vunpack.c.l.b16 %v2446
  %v2582 = vunpack.c.l.b16 %v2447
  %v2583 = vunpack.c.l.b16 %v2448
  %v2584 = vunpack.c.l.b16 %v2449
  %v2585 = vunpack.c.l.b16 %v2450
  %v2586 = vunpack.c.l.b16 %v2451
  %v2587 = vunpack.c.l.b16 %v2452
  %v2588 = vunpack.c.l.b16 %v2453
  %v2589 = vunpack.c.l.b16 %v2454
  %v2590 = vunpack.c.l.b16 %v2455
  %v2591 = vunpack.c.l.b16 %v2456
  %v2592 = vunpack.c.l.b16 %v2457
  %v2593 = vunpack.c.l.b16 %v2458
  %v2594 = vunpack.c.l.b16 %v2459
  %v2595 = vunpack.c.l.b16 %v2460
  %v2596 = vunpack.c.l.b16 %v2461
  %v2597 = vunpack.c.l.b16 %v2462
  %v2598 = vunpack.c.l.b16 %v2463
  %v2599 = vunpack.c.l.b16 %v2464
  %v2600 = vunpack.c.l.b16 %v2465
  %v2601 = vunpack.c.l.b16 %v2466
  %v2602 = vunpack.c.l.b16 %v2467
  %v2603 = vunpack.c.l.b16 %v2468
  %v2604 = vunpack.c.l.b16 %v2469
  %v2605 = vunpack.c.l.b16 %v2470
  %v2606 = vunpack.c.l.b16 %v2471
  %v2607 = vunpack.c.l.b16 %v2472
  %v2608 = vunpack.c.l.b16 %v2473
  %v2609 = vunpack.c.l.b16 %v2474
  %v2610 = vunpack.c.l.b16 %v2475
  %v2611 = vunpack.c.l.b16 %v2476
  %v2612 = vunpack.c.l.b16 %v2477
  %v2613 = vunpack.c.l.b16 %v2478
  %v2614 = vunpack.c.l.b16 %v2479
  %v2615 = vunpack.c.l.b16 %v2480
  %v2616 = vunpack.c.l.b16 %v2481
  %v2617 = vunpack.c.l.b16 %v2482
  %v2618 = vunpack.c.l.b16 %v2483
  %v2619 = vunpack.c.l.b16 %v2484
  %v2620 = vpack.c.b16 %v2557, %v2556
  %v2621 = vpack.c.b16 %v2559, %v2558
  %v2622 = vpack.c.b16 %v2561, %v2560
  %v2623 = vpack.c.b16 %v2563, %v2562
  %v2624 = vpack.c.b16 %v2565, %v2564
  %v2625 = vpack.c.b16 %v2567, %v2566
  %v2626 = vpack.c.b16 %v2569, %v2568
  %v2627 = vpack.c.b16 %v2571, %v2570
  %v2628 = vpack.c.b16 %v2573, %v2572
  %v2629 = vpack.c.b16 %v2575, %v2574
  %v2630 = vpack.c.b16 %v2577, %v2576
  %v2631 = vpack.c.b16 %v2579, %v2578
  %v2632 = vpack.c.b16 %v2581, %v2580
  %v2633 = vpack.c.b16 %v2583, %v2582
  %v2634 = vpack.c.b16 %v2585, %v2584
  %v2635 = vpack.c.b16 %v2587, %v2586
  %v2636 = vpack.c.b16 %v2589, %v2588
  %v2637 = vpack.c.b16 %v2591, %v2590
  %v2638 = vpack.c.b16 %v2593, %v2592
  %v2639 = vpack.c.b16 %v2595, %v2594
  %v2640 = vpack.c.b16 %v2597, %v2596
  %v2641 = vpack.c.b16 %v2599, %v2598
  %v2642 = vpack.c.b16 %v2601, %v2600
  %v2643 = vpack.c.b16 %v2603, %v2602
  %v2644 = vpack.c.b16 %v2605, %v2604
  %v2645 = vpack.c.b16 %v2607, %v2606
  %v2646 = vpack.c.b16 %v2609, %v2608
  %v2647 = vpack.c.b16 %v2611, %v2610
  %v2648 = vpack.c.b16 %v2613, %v2612
  %v2649 = vpack.c.b16 %v2615, %v2614
  %v2650 = vpack.c.b16 %v2617, %v2616
  %v2651 = vpack.c.b16 %v2619, %v2618
  %2684 = vmatprep.subr.bf16.mxu0 0
  %2685 = vmatpush1.bf16.msra.mxu0 %v2627
  %2686 = vmatprep.subr.bf16.mxu0 0
  %2687 = vmatpush1.bf16.msra.mxu0 %v2626
  %2688 = vmatprep.subr.bf16.mxu0 0
  %2689 = vmatpush1.bf16.msra.mxu0 %v2625
  %2690 = vmatprep.subr.bf16.mxu0 0
  %2691 = vmatpush1.bf16.msra.mxu0 %v2624
  %2692 = vmatprep.subr.bf16.mxu0 0
  %2693 = vmatpush1.bf16.msra.mxu0 %v2623
  %2694 = vmatprep.subr.bf16.mxu0 0
  %2695 = vmatpush1.bf16.msra.mxu0 %v2622
  %2696 = vmatprep.subr.bf16.mxu0 0
  %2697 = vmatpush1.bf16.msra.mxu0 %v2621
  %2698 = vmatprep.subr.bf16.mxu0 0
  %2699 = vmatpush1.bf16.msra.mxu0 %v2620
  %2700 = vmatprep.subr.bf16.mxu0 0
  %2701 = vmatpush2.bf16.msra.mxu0 %v2635
  %2702 = vmatprep.subr.bf16.mxu0 0
  %2703 = vmatpush2.bf16.msra.mxu0 %v2634
  %2704 = vmatprep.subr.bf16.mxu0 0
  %2705 = vmatpush2.bf16.msra.mxu0 %v2633
  %2706 = vmatprep.subr.bf16.mxu0 0
  %2707 = vmatpush2.bf16.msra.mxu0 %v2632
  %2708 = vmatprep.subr.bf16.mxu0 0
  %2709 = vmatpush2.bf16.msra.mxu0 %v2631
  %2710 = vmatprep.subr.bf16.mxu0 0
  %2711 = vmatpush2.bf16.msra.mxu0 %v2630
  %2712 = vmatprep.subr.bf16.mxu0 0
  %2713 = vmatpush2.bf16.msra.mxu0 %v2629
  %2714 = vmatprep.subr.bf16.mxu0 0
  %2715 = vmatpush2.bf16.msra.mxu0 %v2628
  %2716 = vmatprep.mubr.bf16.mxu0 %v2418
  %2717 = vmatmul.mubr.bf16.gmra.mxu0 %v2417
  %v2718 = vpop.f32.mrf.mxu0
  %v2719 = vadd.f32 %v2490, %v2718
  %v2720 = vpop.f32.mrf.mxu0
  %v2721 = vpop.f32.mrf.mxu0
  %v2722 = vpop.f32.mrf.mxu0
  %2723 = vdwg.mxu0
  %2724 = vmatprep.subr.bf16.mxu0 0
  %2725 = vmatpush1.bf16.msra.mxu0 %v2643
  %2726 = vmatprep.subr.bf16.mxu0 0
  %2727 = vmatpush1.bf16.msra.mxu0 %v2642
  %2728 = vmatprep.subr.bf16.mxu0 0
  %2729 = vmatpush1.bf16.msra.mxu0 %v2641
  %2730 = vmatprep.subr.bf16.mxu0 0
  %2731 = vmatpush1.bf16.msra.mxu0 %v2640
  %2732 = vmatprep.subr.bf16.mxu0 0
  %2733 = vmatpush1.bf16.msra.mxu0 %v2639
  %2734 = vmatprep.subr.bf16.mxu0 0
  %2735 = vmatpush1.bf16.msra.mxu0 %v2638
  %2736 = vmatprep.subr.bf16.mxu0 0
  %2737 = vmatpush1.bf16.msra.mxu0 %v2637
  %2738 = vmatprep.subr.bf16.mxu0 0
  %2739 = vmatpush1.bf16.msra.mxu0 %v2636
  %2740 = vmatprep.subr.bf16.mxu0 0
  %2741 = vmatpush2.bf16.msra.mxu0 %v2651
  %2742 = vmatprep.subr.bf16.mxu0 0
  %2743 = vmatpush2.bf16.msra.mxu0 %v2650
  %2744 = vmatprep.subr.bf16.mxu0 0
  %2745 = vmatpush2.bf16.msra.mxu0 %v2649
  %2746 = vmatprep.subr.bf16.mxu0 0
  %2747 = vmatpush2.bf16.msra.mxu0 %v2648
  %2748 = vmatprep.subr.bf16.mxu0 0
  %2749 = vmatpush2.bf16.msra.mxu0 %v2647
  %2750 = vmatprep.subr.bf16.mxu0 0
  %2751 = vmatpush2.bf16.msra.mxu0 %v2646
  %2752 = vmatprep.subr.bf16.mxu0 0
  %2753 = vmatpush2.bf16.msra.mxu0 %v2645
  %2754 = vmatprep.subr.bf16.mxu0 0
  %2755 = vmatpush2.bf16.msra.mxu0 %v2644
  %2756 = vmatprep.mubr.bf16.mxu0 %v2420
  %2757 = vmatmul.mubr.bf16.gmra.mxu0 %v2419
  %v2758 = vpop.f32.mrf.mxu0
  %v2759 = vadd.f32 %v2719, %v2758
  %v2760 = vpop.f32.mrf.mxu0
  %v2761 = vpop.f32.mrf.mxu0
  %v2762 = vpop.f32.mrf.mxu0
  %2763 = vdwg.mxu0
  %2764 = vmax.xlane.f32.xlu0 %v2759
  %v2765 = vpop.xlane.xlu0 %2764
  %v2766 = vsub.f32 %v2759, %v2765
  %v2767 = vmul.f32 %v2766, 1.442695
  %v2768 = vpow.pop %v2767
  %2769 = vadd.xlane.f32.xlu0 %v2768
  %v2770 = vpop.xlane.xlu0 %2769
  %v2771 = vrcp.pop %v2770
  %v2772 = vmul.f32 %v2768, %v2771
  %2773 = vst [vmem:[%s5] sm:$0xff] %v2772
  // Predicated region
  $region22: #{cnn_forward.5} parent=0 // pred_check
    _
  $region23: #{cnn_forward.5} parent=0 // pred_check_branch
    %2775 = sbr.rel (0) target = $region25
  $region24: #{cnn_forward.5} parent=0 // pred_region
    _
  $region25: #{cnn_forward.5} parent=0 // pred_fallthru
    _
  // Predicated region
  $region26: #{cnn_forward.5} parent=0 // pred_check
    _
  $region27: #{cnn_forward.5} parent=0 // pred_check_branch
    %2777 = sbr.rel (0) target = $region29
  $region28: #{cnn_forward.5} parent=0 // pred_region
    _
  $region29: #{cnn_forward.5} parent=0 // pred_fallthru
    _

</llo_original>
